<compile_context>
chip_gen: v7x
topology: tpu7x:2x2x1
jax: 0.10.0
libtpu: 0.0.40
codegen_flags: <defaults>
</compile_context>

<pallas_src>
import math
import numpy as np
import jax
import jax.numpy as jnp
from jax import lax
from jax.experimental import pallas as pl
from jax.experimental.pallas import tpu as pltpu

# ----------------------------- configuration -----------------------------
N = 64            # number of nodes
K = 8             # neighbours per node
SIZE = 32         # node feature size
DIST = 8          # distance_size
SEQ = 8           # sequence_size
PAIR = DIST + SEQ
IN_SIZE = SIZE + PAIR          # attention key/value input size (48)
ATT = 16          # attention_size
HEADS = 4         # heads
HID = 32          # mlp hidden_size
DEPTH = 2         # decoder blocks
OUT_SIZE = 16     # postprocessor output size
HA = HEADS * ATT               # 64
HS = HEADS * SIZE              # 128
SCALE = 1.0 / math.sqrt(ATT)   # folded into Wq/bq at pack time


# ----------------------------- fused Pallas kernel -----------------------------
def decoder_kernel(x_ref, nb_ref, pair_ref,
                   wq_ref, bq_ref, wkvx_ref, wkvp_ref, bkv_ref,
                   wo_ref, bo_ref, w1_ref, b1_ref, w2_ref, b2_ref, w3_ref, b3_ref,
                   postw_ref, postb_ref, out_ref):
    """Whole decoder (DEPTH blocks + postprocessor) on all N nodes at once."""
    f32 = jnp.float32
    bf16 = jnp.bfloat16

    x = x_ref[...]            # (N, SIZE)    node features, stays resident (f32)
    nb = nb_ref[...]          # (N*K, 1)     int32 neighbour indices
    pair = pair_ref[...]      # (N*K, PAIR)  distance+sequence pair features (bf16)

    def onehot(cond):         # 0/1 matrix, exact in bf16 (matmul selector)
        return jnp.where(cond, 1.0, 0.0).astype(bf16)

    # ---- constant selector / segment matrices built in-kernel (no HBM DMA) ----
    ri = lax.broadcasted_iota(jnp.int32, (N * K, N), 0)
    cj = lax.broadcasted_iota(jnp.int32, (N * K, N), 1)
    sel = onehot(nb == cj)                                   # (N*K, N)  neighbour gather
    d0 = ri - cj * K
    rep = onehot((d0 >= 0) & (d0 < K))                       # (N*K, N)  repeat node K times
    pi = lax.broadcasted_iota(jnp.int32, (N, N * K), 0)
    pj = lax.broadcasted_iota(jnp.int32, (N, N * K), 1)
    d1 = pj - pi * K
    pool = onehot((d1 >= 0) & (d1 < K))                      # (N, N*K)  segment-sum over K
    ai = lax.broadcasted_iota(jnp.int32, (HA, HEADS), 0)
    aj = lax.broadcasted_iota(jnp.int32, (HA, HEADS), 1)
    d2 = ai - aj * ATT
    hsum = onehot((d2 >= 0) & (d2 < ATT))                    # (HA, HEADS)  sum within head
    bi = lax.broadcasted_iota(jnp.int32, (HEADS, HS), 0)
    bj = lax.broadcasted_iota(jnp.int32, (HEADS, HS), 1)
    d3 = bj - bi * SIZE
    hexp = onehot((d3 >= 0) & (d3 < SIZE))                   # (HEADS, HS)  head -> SIZE lanes

    def bdot(a, b):
        # single-pass bf16 MXU matmul, f32 accumulation
        return jnp.dot(a.astype(bf16), b.astype(bf16), preferred_element_type=f32)

    for d in range(DEPTH):    # static unroll: weights stay in VMEM, x stays resident
        # ---- attention projections (all MXU, 1 bf16 pass each) ----
        q = bdot(x, wq_ref[d]) + bq_ref[d]                    # (N, HA)   (1/sqrt(ATT) pre-folded)
        kvx = bdot(x, wkvx_ref[d])                            # (N, HS+HA)
        kv = (bdot(sel, kvx)                                  # neighbour gather via MXU
              + bdot(pair, wkvp_ref[d])
              + bkv_ref[d])                                   # (N*K, HS+HA)
        v = kv[:, :HS]                                        # (N*K, HS)
        k = kv[:, HS:]                                        # (N*K, HA)

        # ---- per-head dot-product logits via block-diagonal matmul ----
        qb = bdot(rep, q)                                     # (N*K, HA)
        logits = bdot(qb * k, hsum)                           # (N*K, HEADS)

        # ---- softmax over the K neighbours of each node (f32 elementwise) ----
        m = jnp.max(logits.reshape(N, K, HEADS), axis=1)      # (N, HEADS)
        e = jnp.exp(logits - bdot(rep, m))                    # (N*K, HEADS)
        denom = bdot(pool, e)                                 # (N, HEADS)

        # ---- weighted V sum as matmuls (no per-head loop / concat) ----
        a_b = bdot(e, hexp)                                   # (N*K, HS)
        raw = bdot(pool, a_b * v)                             # (N, HS)
        den_b = bdot(denom, hexp)                             # (N, HS)
        att = raw * pl.reciprocal(den_b, approx=True)         # (N, HS)

        out1 = x + bdot(att, wo_ref[d]) + bo_ref[d]           # (N, SIZE)

        # ---- local MLP (3 linear layers, ReLU between) ----
        h1 = jnp.maximum(bdot(out1, w1_ref[d]) + b1_ref[d], 0.0)
        h2 = jnp.maximum(bdot(h1, w2_ref[d]) + b2_ref[d], 0.0)
        x = out1 + bdot(h2, w3_ref[d]) + b3_ref[d]

    # ---- postprocessor (only HBM store of the whole decoder) ----
    out_ref[...] = bdot(x, postw_ref[...]) + postb_ref[...]


# ----------------------------- weight packing -----------------------------
def pack_params(params):
    """Stack per-block weights on a DEPTH axis, fuse Wk/Wv into one [v | k]
    weight, fold 1/sqrt(ATT) into Wq/bq, and pre-truncate weights to bf16
    (biases stay f32)."""
    bf = lambda a: a.astype(jnp.bfloat16)
    blocks = params["blocks"]
    st = lambda f: jnp.stack([f(b) for b in blocks])
    return dict(
        wq=bf(st(lambda b: b["wq"] * SCALE)),                                   # (D, SIZE, HA)
        bq=st(lambda b: b["bq"] * SCALE),                                       # (D, 1, HA)  f32
        wkvx=bf(st(lambda b: jnp.concatenate([b["wv"][:SIZE], b["wk"][:SIZE]], axis=1))),  # (D, SIZE, HS+HA)
        wkvp=bf(st(lambda b: jnp.concatenate([b["wv"][SIZE:], b["wk"][SIZE:]], axis=1))),  # (D, PAIR, HS+HA)
        bkv=st(lambda b: jnp.concatenate([b["bv"], b["bk"]], axis=1)),          # (D, 1, HS+HA) f32
        wo=bf(st(lambda b: b["wo"])), bo=st(lambda b: b["bo"]),
        w1=bf(st(lambda b: b["w1"])), b1=st(lambda b: b["b1"]),
        w2=bf(st(lambda b: b["w2"])), b2=st(lambda b: b["b2"]),
        w3=bf(st(lambda b: b["w3"])), b3=st(lambda b: b["b3"]),
        post_w=bf(params["post_w"]), post_b=params["post_b"],
    )


# ----------------------------- wrapper -----------------------------
def decoder_forward(features, neighbors, pair, packed):
    nb_col = neighbors.reshape(N * K, 1)                      # 2 KB int32 (replaces 384 KB one-hots)
    pair_flat = pair.reshape(N * K, PAIR).astype(jnp.bfloat16)

    args = (features, nb_col, pair_flat,
            packed["wq"], packed["bq"], packed["wkvx"], packed["wkvp"], packed["bkv"],
            packed["wo"], packed["bo"], packed["w1"], packed["b1"],
            packed["w2"], packed["b2"], packed["w3"], packed["b3"],
            packed["post_w"], packed["post_b"])

    # Single pallas_call, no grid: every operand is a whole-array VMEM-resident
    # ref; the only HBM write is the final (N, OUT_SIZE) output.
    return pl.pallas_call(
        decoder_kernel,
        out_shape=jax.ShapeDtypeStruct((N, OUT_SIZE), jnp.float32),
        in_specs=[pl.BlockSpec(memory_space=pltpu.MemorySpace.VMEM) for _ in args],
        out_specs=pl.BlockSpec(memory_space=pltpu.MemorySpace.VMEM),
    )(*args)


# ----------------------------- high-precision reference (numpy, f64) -----------------------------
def decoder_ref(features, neighbors, pair, params):
    f64 = lambda a: np.asarray(a, dtype=np.float64)
    x = f64(features)
    nbr = np.asarray(neighbors)
    pr = f64(pair)
    for bp in params["blocks"]:
        nf = x[nbr]                                           # (N, K, SIZE)
        kv_in = np.concatenate([nf, pr], axis=-1)             # (N, K, IN_SIZE)
        q = x @ f64(bp["wq"]) + f64(bp["bq"])                 # (N, HA)
        k = kv_in @ f64(bp["wk"]) + f64(bp["bk"])             # (N, K, HA)
        v = kv_in @ f64(bp["wv"]) + f64(bp["bv"])             # (N, K, HS)
        logits = (q.reshape(N, 1, HEADS, ATT) * k.reshape(N, K, HEADS, ATT)).sum(-1) / math.sqrt(ATT)
        logits = logits - logits.max(axis=1, keepdims=True)
        a = np.exp(logits)
        a = a / a.sum(axis=1, keepdims=True)                  # softmax over K
        att = (a[..., None] * v.reshape(N, K, HEADS, SIZE)).sum(1).reshape(N, HS)
        out1 = x + att @ f64(bp["wo"]) + f64(bp["bo"])
        h = np.maximum(out1 @ f64(bp["w1"]) + f64(bp["b1"]), 0.0)
        h = np.maximum(h @ f64(bp["w2"]) + f64(bp["b2"]), 0.0)
        x = out1 + h @ f64(bp["w3"]) + f64(bp["b3"])
    return x @ f64(params["post_w"]) + f64(params["post_b"])


# ----------------------------- parameter init -----------------------------
def linear_params(key, fan_in, fan_out):
    kw, kb = jax.random.split(key)
    bound = 1.0 / math.sqrt(fan_in)
    w = jax.random.uniform(kw, (fan_in, fan_out), jnp.float32, -bound, bound)
    b = jax.random.uniform(kb, (1, fan_out), jnp.float32, -bound, bound)
    return w, b


def build_params(key):
    params = {"blocks": []}
    keys = jax.random.split(key, DEPTH + 1)
    for d in range(DEPTH):
        ks = jax.random.split(keys[d], 7)
        wq, bq = linear_params(ks[0], SIZE, HA)
        wk, bk = linear_params(ks[1], IN_SIZE, HA)
        wv, bv = linear_params(ks[2], IN_SIZE, HS)
        wo, bo = linear_params(ks[3], HS, SIZE)
        w1, b1 = linear_params(ks[4], SIZE, HID)
        w2, b2 = linear_params(ks[5], HID, HID)
        w3, b3 = linear_params(ks[6], HID, SIZE)
        params["blocks"].append(dict(wq=wq, bq=bq, wk=wk, bk=bk, wv=wv, bv=bv,
                                     wo=wo, bo=bo, w1=w1, b1=b1, w2=w2, b2=b2,
                                     w3=w3, b3=b3))
    params["post_w"], params["post_b"] = linear_params(keys[-1], SIZE, OUT_SIZE)
    return params


# ----------------------------- main -----------------------------
if __name__ == "__main__":
    key = jax.random.PRNGKey(0)
    kf, kn, kp, kw = jax.random.split(key, 4)

    features = jax.random.normal(kf, (N, SIZE), jnp.float32)
    neighbors = jax.random.randint(kn, (N, K), 0, N, dtype=jnp.int32)   # structure: neighbour indices
    pair = jax.random.normal(kp, (N, K, PAIR), jnp.float32)             # structure: distance+sequence feats
    params = build_params(kw)

    packed = pack_params(params)          # one-time host-side weight packing (bf16, scale folded)
    fwd = jax.jit(decoder_forward)
    out = jax.block_until_ready(fwd(features, neighbors, pair, packed))

    # Tolerance budget: single-pass bf16 MXU inputs (f32 accumulation) give
    # ~0.2% noise per matmul, well inside 2e-2 vs the float64 reference.
    ref = decoder_ref(features, neighbors, pair, params)
    np.testing.assert_allclose(np.asarray(out), ref, rtol=2e-2, atol=2e-2)

    print("KERNEL_OK")
</pallas_src>

<mosaic_0001>
module attributes {stable_mosaic.version = 11 : i64} {
  func.func @decoder_kernel(%arg0: memref<64x32xf32, #tpu.memory_space<vmem>>, %arg1: memref<512x1xi32, #tpu.memory_space<vmem>>, %arg2: memref<512x16xbf16, #tpu.memory_space<vmem>>, %arg3: memref<2x32x64xbf16, #tpu.memory_space<vmem>>, %arg4: memref<2x1x64xf32, #tpu.memory_space<vmem>>, %arg5: memref<2x32x192xbf16, #tpu.memory_space<vmem>>, %arg6: memref<2x16x192xbf16, #tpu.memory_space<vmem>>, %arg7: memref<2x1x192xf32, #tpu.memory_space<vmem>>, %arg8: memref<2x128x32xbf16, #tpu.memory_space<vmem>>, %arg9: memref<2x1x32xf32, #tpu.memory_space<vmem>>, %arg10: memref<2x32x32xbf16, #tpu.memory_space<vmem>>, %arg11: memref<2x1x32xf32, #tpu.memory_space<vmem>>, %arg12: memref<2x32x32xbf16, #tpu.memory_space<vmem>>, %arg13: memref<2x1x32xf32, #tpu.memory_space<vmem>>, %arg14: memref<2x32x32xbf16, #tpu.memory_space<vmem>>, %arg15: memref<2x1x32xf32, #tpu.memory_space<vmem>>, %arg16: memref<32x16xbf16, #tpu.memory_space<vmem>>, %arg17: memref<1x16xf32, #tpu.memory_space<vmem>>, %arg18: memref<64x16xf32, #tpu.memory_space<vmem>>) attributes {dimension_semantics = [], scalar_prefetch = 0 : i64, scratch_operands = 0 : i64, tpu.core_type = #tpu.core_type<tc>} {
    %c0 = arith.constant 0 : index
    %c0_0 = arith.constant 0 : index
    %0 = vector.load %arg0[%c0, %c0_0] : memref<64x32xf32, #tpu.memory_space<vmem>>, vector<64x32xf32>
    %c0_1 = arith.constant 0 : index
    %c0_2 = arith.constant 0 : index
    %1 = vector.load %arg1[%c0_1, %c0_2] : memref<512x1xi32, #tpu.memory_space<vmem>>, vector<512x1xi32>
    %c0_3 = arith.constant 0 : index
    %c0_4 = arith.constant 0 : index
    %2 = vector.load %arg2[%c0_3, %c0_4] : memref<512x16xbf16, #tpu.memory_space<vmem>>, vector<512x16xbf16>
    %3 = tpu.iota {dimensions = array<i32: 0>} : vector<512x64xi32>
    %4 = tpu.iota {dimensions = array<i32: 1>} : vector<512x64xi32>
    %5 = vector.broadcast %1 : vector<512x1xi32> to vector<512x64xi32>
    %6 = arith.cmpi eq, %5, %4 : vector<512x64xi32>
    %cst = arith.constant 1.000000e+00 : f32
    %cst_5 = arith.constant 0.000000e+00 : f32
    %7 = vector.broadcast %cst : f32 to vector<512x64xf32>
    %8 = vector.broadcast %cst_5 : f32 to vector<512x64xf32>
    %9 = arith.select %6, %7, %8 : vector<512x64xi1>, vector<512x64xf32>
    %10 = arith.truncf %9 : vector<512x64xf32> to vector<512x64xbf16>
    %c8_i32 = arith.constant 8 : i32
    %11 = vector.broadcast %c8_i32 : i32 to vector<512x64xi32>
    %12 = arith.muli %4, %11 : vector<512x64xi32>
    %13 = arith.subi %3, %12 : vector<512x64xi32>
    %c0_i32 = arith.constant 0 : i32
    %14 = vector.broadcast %c0_i32 : i32 to vector<512x64xi32>
    %15 = arith.cmpi sge, %13, %14 : vector<512x64xi32>
    %c8_i32_6 = arith.constant 8 : i32
    %16 = vector.broadcast %c8_i32_6 : i32 to vector<512x64xi32>
    %17 = arith.cmpi slt, %13, %16 : vector<512x64xi32>
    %18 = arith.andi %15, %17 : vector<512x64xi1>
    %cst_7 = arith.constant 1.000000e+00 : f32
    %cst_8 = arith.constant 0.000000e+00 : f32
    %19 = vector.broadcast %cst_7 : f32 to vector<512x64xf32>
    %20 = vector.broadcast %cst_8 : f32 to vector<512x64xf32>
    %21 = arith.select %18, %19, %20 : vector<512x64xi1>, vector<512x64xf32>
    %22 = arith.truncf %21 : vector<512x64xf32> to vector<512x64xbf16>
    %23 = tpu.iota {dimensions = array<i32: 0>} : vector<64x512xi32>
    %24 = tpu.iota {dimensions = array<i32: 1>} : vector<64x512xi32>
    %c8_i32_9 = arith.constant 8 : i32
    %25 = vector.broadcast %c8_i32_9 : i32 to vector<64x512xi32>
    %26 = arith.muli %23, %25 : vector<64x512xi32>
    %27 = arith.subi %24, %26 : vector<64x512xi32>
    %c0_i32_10 = arith.constant 0 : i32
    %28 = vector.broadcast %c0_i32_10 : i32 to vector<64x512xi32>
    %29 = arith.cmpi sge, %27, %28 : vector<64x512xi32>
    %c8_i32_11 = arith.constant 8 : i32
    %30 = vector.broadcast %c8_i32_11 : i32 to vector<64x512xi32>
    %31 = arith.cmpi slt, %27, %30 : vector<64x512xi32>
    %32 = arith.andi %29, %31 : vector<64x512xi1>
    %cst_12 = arith.constant 1.000000e+00 : f32
    %cst_13 = arith.constant 0.000000e+00 : f32
    %33 = vector.broadcast %cst_12 : f32 to vector<64x512xf32>
    %34 = vector.broadcast %cst_13 : f32 to vector<64x512xf32>
    %35 = arith.select %32, %33, %34 : vector<64x512xi1>, vector<64x512xf32>
    %36 = arith.truncf %35 : vector<64x512xf32> to vector<64x512xbf16>
    %37 = tpu.iota {dimensions = array<i32: 0>} : vector<64x4xi32>
    %38 = tpu.iota {dimensions = array<i32: 1>} : vector<64x4xi32>
    %c16_i32 = arith.constant 16 : i32
    %39 = vector.broadcast %c16_i32 : i32 to vector<64x4xi32>
    %40 = arith.muli %38, %39 : vector<64x4xi32>
    %41 = arith.subi %37, %40 : vector<64x4xi32>
    %c0_i32_14 = arith.constant 0 : i32
    %42 = vector.broadcast %c0_i32_14 : i32 to vector<64x4xi32>
    %43 = arith.cmpi sge, %41, %42 : vector<64x4xi32>
    %c16_i32_15 = arith.constant 16 : i32
    %44 = vector.broadcast %c16_i32_15 : i32 to vector<64x4xi32>
    %45 = arith.cmpi slt, %41, %44 : vector<64x4xi32>
    %46 = arith.andi %43, %45 : vector<64x4xi1>
    %cst_16 = arith.constant 1.000000e+00 : f32
    %cst_17 = arith.constant 0.000000e+00 : f32
    %47 = vector.broadcast %cst_16 : f32 to vector<64x4xf32>
    %48 = vector.broadcast %cst_17 : f32 to vector<64x4xf32>
    %49 = arith.select %46, %47, %48 : vector<64x4xi1>, vector<64x4xf32>
    %50 = arith.truncf %49 : vector<64x4xf32> to vector<64x4xbf16>
    %51 = tpu.iota {dimensions = array<i32: 0>} : vector<4x128xi32>
    %52 = tpu.iota {dimensions = array<i32: 1>} : vector<4x128xi32>
    %c32_i32 = arith.constant 32 : i32
    %53 = vector.broadcast %c32_i32 : i32 to vector<4x128xi32>
    %54 = arith.muli %51, %53 : vector<4x128xi32>
    %55 = arith.subi %52, %54 : vector<4x128xi32>
    %c0_i32_18 = arith.constant 0 : i32
    %56 = vector.broadcast %c0_i32_18 : i32 to vector<4x128xi32>
    %57 = arith.cmpi sge, %55, %56 : vector<4x128xi32>
    %c32_i32_19 = arith.constant 32 : i32
    %58 = vector.broadcast %c32_i32_19 : i32 to vector<4x128xi32>
    %59 = arith.cmpi slt, %55, %58 : vector<4x128xi32>
    %60 = arith.andi %57, %59 : vector<4x128xi1>
    %cst_20 = arith.constant 1.000000e+00 : f32
    %cst_21 = arith.constant 0.000000e+00 : f32
    %61 = vector.broadcast %cst_20 : f32 to vector<4x128xf32>
    %62 = vector.broadcast %cst_21 : f32 to vector<4x128xf32>
    %63 = arith.select %60, %61, %62 : vector<4x128xi1>, vector<4x128xf32>
    %64 = arith.truncf %63 : vector<4x128xf32> to vector<4x128xbf16>
    %c0_22 = arith.constant 0 : index
    %c0_23 = arith.constant 0 : index
    %c0_24 = arith.constant 0 : index
    %65 = vector.load %arg3[%c0_22, %c0_23, %c0_24] : memref<2x32x64xbf16, #tpu.memory_space<vmem>>, vector<1x32x64xbf16>
    %66 = vector.shape_cast %65 : vector<1x32x64xbf16> to vector<32x64xbf16>
    %67 = arith.truncf %0 : vector<64x32xf32> to vector<64x32xbf16>
    %cst_25 = arith.constant dense<0.000000e+00> : vector<64x64xf32>
    %68 = tpu.matmul %67, %66, %cst_25 {dimension_numbers = #tpu.dot_dimension_numbers<[1], [0], [0], [1], [0, 0, 1, 1], [], []>} : vector<64x32xbf16>, vector<32x64xbf16>, vector<64x64xf32> -> vector<64x64xf32>
    %c0_26 = arith.constant 0 : index
    %c0_27 = arith.constant 0 : index
    %c0_28 = arith.constant 0 : index
    %69 = vector.load %arg4[%c0_26, %c0_27, %c0_28] : memref<2x1x64xf32, #tpu.memory_space<vmem>>, vector<1x1x64xf32>
    %70 = vector.shape_cast %69 : vector<1x1x64xf32> to vector<1x64xf32>
    %71 = vector.broadcast %70 : vector<1x64xf32> to vector<64x64xf32>
    %72 = arith.addf %68, %71 : vector<64x64xf32>
    %c0_29 = arith.constant 0 : index
    %c0_30 = arith.constant 0 : index
    %c0_31 = arith.constant 0 : index
    %73 = vector.load %arg5[%c0_29, %c0_30, %c0_31] : memref<2x32x192xbf16, #tpu.memory_space<vmem>>, vector<1x32x192xbf16>
    %74 = vector.shape_cast %73 : vector<1x32x192xbf16> to vector<32x192xbf16>
    %75 = arith.truncf %0 : vector<64x32xf32> to vector<64x32xbf16>
    %cst_32 = arith.constant dense<0.000000e+00> : vector<64x192xf32>
    %76 = tpu.matmul %75, %74, %cst_32 {dimension_numbers = #tpu.dot_dimension_numbers<[1], [0], [0], [1], [0, 0, 1, 1], [], []>} : vector<64x32xbf16>, vector<32x192xbf16>, vector<64x192xf32> -> vector<64x192xf32>
    %77 = arith.truncf %76 : vector<64x192xf32> to vector<64x192xbf16>
    %cst_33 = arith.constant dense<0.000000e+00> : vector<512x192xf32>
    %78 = tpu.matmul %10, %77, %cst_33 {dimension_numbers = #tpu.dot_dimension_numbers<[1], [0], [0], [1], [0, 0, 1, 1], [], []>} : vector<512x64xbf16>, vector<64x192xbf16>, vector<512x192xf32> -> vector<512x192xf32>
    %c0_34 = arith.constant 0 : index
    %c0_35 = arith.constant 0 : index
    %c0_36 = arith.constant 0 : index
    %79 = vector.load %arg6[%c0_34, %c0_35, %c0_36] : memref<2x16x192xbf16, #tpu.memory_space<vmem>>, vector<1x16x192xbf16>
    %80 = vector.shape_cast %79 : vector<1x16x192xbf16> to vector<16x192xbf16>
    %cst_37 = arith.constant dense<0.000000e+00> : vector<512x192xf32>
    %81 = tpu.matmul %2, %80, %cst_37 {dimension_numbers = #tpu.dot_dimension_numbers<[1], [0], [0], [1], [0, 0, 1, 1], [], []>} : vector<512x16xbf16>, vector<16x192xbf16>, vector<512x192xf32> -> vector<512x192xf32>
    %82 = arith.addf %78, %81 : vector<512x192xf32>
    %c0_38 = arith.constant 0 : index
    %c0_39 = arith.constant 0 : index
    %c0_40 = arith.constant 0 : index
    %83 = vector.load %arg7[%c0_38, %c0_39, %c0_40] : memref<2x1x192xf32, #tpu.memory_space<vmem>>, vector<1x1x192xf32>
    %84 = vector.shape_cast %83 : vector<1x1x192xf32> to vector<1x192xf32>
    %85 = vector.broadcast %84 : vector<1x192xf32> to vector<512x192xf32>
    %86 = arith.addf %82, %85 : vector<512x192xf32>
    %87 = vector.extract_strided_slice %86 {offsets = [0, 0], sizes = [512, 128], strides = [1, 1]} : vector<512x192xf32> to vector<512x128xf32>
    %88 = vector.extract_strided_slice %86 {offsets = [0, 128], sizes = [512, 64], strides = [1, 1]} : vector<512x192xf32> to vector<512x64xf32>
    %89 = arith.truncf %72 : vector<64x64xf32> to vector<64x64xbf16>
    %cst_41 = arith.constant dense<0.000000e+00> : vector<512x64xf32>
    %90 = tpu.matmul %22, %89, %cst_41 {dimension_numbers = #tpu.dot_dimension_numbers<[1], [0], [0], [1], [0, 0, 1, 1], [], []>} : vector<512x64xbf16>, vector<64x64xbf16>, vector<512x64xf32> -> vector<512x64xf32>
    %91 = arith.mulf %90, %88 : vector<512x64xf32>
    %92 = arith.truncf %91 : vector<512x64xf32> to vector<512x64xbf16>
    %cst_42 = arith.constant dense<0.000000e+00> : vector<512x4xf32>
    %93 = tpu.matmul %92, %50, %cst_42 {dimension_numbers = #tpu.dot_dimension_numbers<[1], [0], [0], [1], [0, 0, 1, 1], [], []>} : vector<512x64xbf16>, vector<64x4xbf16>, vector<512x4xf32> -> vector<512x4xf32>
    %94 = vector.shape_cast %93 : vector<512x4xf32> to vector<64x8x4xf32>
    %cst_43 = arith.constant dense<0xFF800000> : vector<64x4xf32>
    %95 = vector.multi_reduction <maximumf>, %94, %cst_43 [1] : vector<64x8x4xf32> to vector<64x4xf32>
    %96 = arith.truncf %95 : vector<64x4xf32> to vector<64x4xbf16>
    %cst_44 = arith.constant dense<0.000000e+00> : vector<512x4xf32>
    %97 = tpu.matmul %22, %96, %cst_44 {dimension_numbers = #tpu.dot_dimension_numbers<[1], [0], [0], [1], [0, 0, 1, 1], [], []>} : vector<512x64xbf16>, vector<64x4xbf16>, vector<512x4xf32> -> vector<512x4xf32>
    %98 = arith.subf %93, %97 : vector<512x4xf32>
    %99 = math.exp %98 : vector<512x4xf32>
    %100 = arith.truncf %99 : vector<512x4xf32> to vector<512x4xbf16>
    %cst_45 = arith.constant dense<0.000000e+00> : vector<64x4xf32>
    %101 = tpu.matmul %36, %100, %cst_45 {dimension_numbers = #tpu.dot_dimension_numbers<[1], [0], [0], [1], [0, 0, 1, 1], [], []>} : vector<64x512xbf16>, vector<512x4xbf16>, vector<64x4xf32> -> vector<64x4xf32>
    %102 = arith.truncf %99 : vector<512x4xf32> to vector<512x4xbf16>
    %cst_46 = arith.constant dense<0.000000e+00> : vector<512x128xf32>
    %103 = tpu.matmul %102, %64, %cst_46 {dimension_numbers = #tpu.dot_dimension_numbers<[1], [0], [0], [1], [0, 0, 1, 1], [], []>} : vector<512x4xbf16>, vector<4x128xbf16>, vector<512x128xf32> -> vector<512x128xf32>
    %104 = arith.mulf %103, %87 : vector<512x128xf32>
    %105 = arith.truncf %104 : vector<512x128xf32> to vector<512x128xbf16>
    %cst_47 = arith.constant dense<0.000000e+00> : vector<64x128xf32>
    %106 = tpu.matmul %36, %105, %cst_47 {dimension_numbers = #tpu.dot_dimension_numbers<[1], [0], [0], [1], [0, 0, 1, 1], [], []>} : vector<64x512xbf16>, vector<512x128xbf16>, vector<64x128xf32> -> vector<64x128xf32>
    %107 = arith.truncf %101 : vector<64x4xf32> to vector<64x4xbf16>
    %cst_48 = arith.constant dense<0.000000e+00> : vector<64x128xf32>
    %108 = tpu.matmul %107, %64, %cst_48 {dimension_numbers = #tpu.dot_dimension_numbers<[1], [0], [0], [1], [0, 0, 1, 1], [], []>} : vector<64x4xbf16>, vector<4x128xbf16>, vector<64x128xf32> -> vector<64x128xf32>
    %109 = tpu.reciprocal %108 {approx = true} : vector<64x128xf32> -> vector<64x128xf32>
    %110 = arith.mulf %106, %109 : vector<64x128xf32>
    %c0_49 = arith.constant 0 : index
    %c0_50 = arith.constant 0 : index
    %c0_51 = arith.constant 0 : index
    %111 = vector.load %arg8[%c0_49, %c0_50, %c0_51] : memref<2x128x32xbf16, #tpu.memory_space<vmem>>, vector<1x128x32xbf16>
    %112 = vector.shape_cast %111 : vector<1x128x32xbf16> to vector<128x32xbf16>
    %113 = arith.truncf %110 : vector<64x128xf32> to vector<64x128xbf16>
    %cst_52 = arith.constant dense<0.000000e+00> : vector<64x32xf32>
    %114 = tpu.matmul %113, %112, %cst_52 {dimension_numbers = #tpu.dot_dimension_numbers<[1], [0], [0], [1], [0, 0, 1, 1], [], []>} : vector<64x128xbf16>, vector<128x32xbf16>, vector<64x32xf32> -> vector<64x32xf32>
    %115 = arith.addf %0, %114 : vector<64x32xf32>
    %c0_53 = arith.constant 0 : index
    %c0_54 = arith.constant 0 : index
    %c0_55 = arith.constant 0 : index
    %116 = vector.load %arg9[%c0_53, %c0_54, %c0_55] : memref<2x1x32xf32, #tpu.memory_space<vmem>>, vector<1x1x32xf32>
    %117 = vector.shape_cast %116 : vector<1x1x32xf32> to vector<1x32xf32>
    %118 = vector.broadcast %117 : vector<1x32xf32> to vector<64x32xf32>
    %119 = arith.addf %115, %118 : vector<64x32xf32>
    %c0_56 = arith.constant 0 : index
    %c0_57 = arith.constant 0 : index
    %c0_58 = arith.constant 0 : index
    %120 = vector.load %arg10[%c0_56, %c0_57, %c0_58] : memref<2x32x32xbf16, #tpu.memory_space<vmem>>, vector<1x32x32xbf16>
    %121 = vector.shape_cast %120 : vector<1x32x32xbf16> to vector<32x32xbf16>
    %122 = arith.truncf %119 : vector<64x32xf32> to vector<64x32xbf16>
    %cst_59 = arith.constant dense<0.000000e+00> : vector<64x32xf32>
    %123 = tpu.matmul %122, %121, %cst_59 {dimension_numbers = #tpu.dot_dimension_numbers<[1], [0], [0], [1], [0, 0, 1, 1], [], []>} : vector<64x32xbf16>, vector<32x32xbf16>, vector<64x32xf32> -> vector<64x32xf32>
    %c0_60 = arith.constant 0 : index
    %c0_61 = arith.constant 0 : index
    %c0_62 = arith.constant 0 : index
    %124 = vector.load %arg11[%c0_60, %c0_61, %c0_62] : memref<2x1x32xf32, #tpu.memory_space<vmem>>, vector<1x1x32xf32>
    %125 = vector.shape_cast %124 : vector<1x1x32xf32> to vector<1x32xf32>
    %126 = vector.broadcast %125 : vector<1x32xf32> to vector<64x32xf32>
    %127 = arith.addf %123, %126 : vector<64x32xf32>
    %cst_63 = arith.constant 0.000000e+00 : f32
    %128 = vector.broadcast %cst_63 : f32 to vector<64x32xf32>
    %129 = arith.maximumf %127, %128 : vector<64x32xf32>
    %c0_64 = arith.constant 0 : index
    %c0_65 = arith.constant 0 : index
    %c0_66 = arith.constant 0 : index
    %130 = vector.load %arg12[%c0_64, %c0_65, %c0_66] : memref<2x32x32xbf16, #tpu.memory_space<vmem>>, vector<1x32x32xbf16>
    %131 = vector.shape_cast %130 : vector<1x32x32xbf16> to vector<32x32xbf16>
    %132 = arith.truncf %129 : vector<64x32xf32> to vector<64x32xbf16>
    %cst_67 = arith.constant dense<0.000000e+00> : vector<64x32xf32>
    %133 = tpu.matmul %132, %131, %cst_67 {dimension_numbers = #tpu.dot_dimension_numbers<[1], [0], [0], [1], [0, 0, 1, 1], [], []>} : vector<64x32xbf16>, vector<32x32xbf16>, vector<64x32xf32> -> vector<64x32xf32>
    %c0_68 = arith.constant 0 : index
    %c0_69 = arith.constant 0 : index
    %c0_70 = arith.constant 0 : index
    %134 = vector.load %arg13[%c0_68, %c0_69, %c0_70] : memref<2x1x32xf32, #tpu.memory_space<vmem>>, vector<1x1x32xf32>
    %135 = vector.shape_cast %134 : vector<1x1x32xf32> to vector<1x32xf32>
    %136 = vector.broadcast %135 : vector<1x32xf32> to vector<64x32xf32>
    %137 = arith.addf %133, %136 : vector<64x32xf32>
    %cst_71 = arith.constant 0.000000e+00 : f32
    %138 = vector.broadcast %cst_71 : f32 to vector<64x32xf32>
    %139 = arith.maximumf %137, %138 : vector<64x32xf32>
    %c0_72 = arith.constant 0 : index
    %c0_73 = arith.constant 0 : index
    %c0_74 = arith.constant 0 : index
    %140 = vector.load %arg14[%c0_72, %c0_73, %c0_74] : memref<2x32x32xbf16, #tpu.memory_space<vmem>>, vector<1x32x32xbf16>
    %141 = vector.shape_cast %140 : vector<1x32x32xbf16> to vector<32x32xbf16>
    %142 = arith.truncf %139 : vector<64x32xf32> to vector<64x32xbf16>
    %cst_75 = arith.constant dense<0.000000e+00> : vector<64x32xf32>
    %143 = tpu.matmul %142, %141, %cst_75 {dimension_numbers = #tpu.dot_dimension_numbers<[1], [0], [0], [1], [0, 0, 1, 1], [], []>} : vector<64x32xbf16>, vector<32x32xbf16>, vector<64x32xf32> -> vector<64x32xf32>
    %144 = arith.addf %119, %143 : vector<64x32xf32>
    %c0_76 = arith.constant 0 : index
    %c0_77 = arith.constant 0 : index
    %c0_78 = arith.constant 0 : index
    %145 = vector.load %arg15[%c0_76, %c0_77, %c0_78] : memref<2x1x32xf32, #tpu.memory_space<vmem>>, vector<1x1x32xf32>
    %146 = vector.shape_cast %145 : vector<1x1x32xf32> to vector<1x32xf32>
    %147 = vector.broadcast %146 : vector<1x32xf32> to vector<64x32xf32>
    %148 = arith.addf %144, %147 : vector<64x32xf32>
    %c1 = arith.constant 1 : index
    %c0_79 = arith.constant 0 : index
    %c0_80 = arith.constant 0 : index
    %149 = vector.load %arg3[%c1, %c0_79, %c0_80] : memref<2x32x64xbf16, #tpu.memory_space<vmem>>, vector<1x32x64xbf16>
    %150 = vector.shape_cast %149 : vector<1x32x64xbf16> to vector<32x64xbf16>
    %151 = arith.truncf %148 : vector<64x32xf32> to vector<64x32xbf16>
    %cst_81 = arith.constant dense<0.000000e+00> : vector<64x64xf32>
    %152 = tpu.matmul %151, %150, %cst_81 {dimension_numbers = #tpu.dot_dimension_numbers<[1], [0], [0], [1], [0, 0, 1, 1], [], []>} : vector<64x32xbf16>, vector<32x64xbf16>, vector<64x64xf32> -> vector<64x64xf32>
    %c1_82 = arith.constant 1 : index
    %c0_83 = arith.constant 0 : index
    %c0_84 = arith.constant 0 : index
    %153 = vector.load %arg4[%c1_82, %c0_83, %c0_84] : memref<2x1x64xf32, #tpu.memory_space<vmem>>, vector<1x1x64xf32>
    %154 = vector.shape_cast %153 : vector<1x1x64xf32> to vector<1x64xf32>
    %155 = vector.broadcast %154 : vector<1x64xf32> to vector<64x64xf32>
    %156 = arith.addf %152, %155 : vector<64x64xf32>
    %c1_85 = arith.constant 1 : index
    %c0_86 = arith.constant 0 : index
    %c0_87 = arith.constant 0 : index
    %157 = vector.load %arg5[%c1_85, %c0_86, %c0_87] : memref<2x32x192xbf16, #tpu.memory_space<vmem>>, vector<1x32x192xbf16>
    %158 = vector.shape_cast %157 : vector<1x32x192xbf16> to vector<32x192xbf16>
    %159 = arith.truncf %148 : vector<64x32xf32> to vector<64x32xbf16>
    %cst_88 = arith.constant dense<0.000000e+00> : vector<64x192xf32>
    %160 = tpu.matmul %159, %158, %cst_88 {dimension_numbers = #tpu.dot_dimension_numbers<[1], [0], [0], [1], [0, 0, 1, 1], [], []>} : vector<64x32xbf16>, vector<32x192xbf16>, vector<64x192xf32> -> vector<64x192xf32>
    %161 = arith.truncf %160 : vector<64x192xf32> to vector<64x192xbf16>
    %cst_89 = arith.constant dense<0.000000e+00> : vector<512x192xf32>
    %162 = tpu.matmul %10, %161, %cst_89 {dimension_numbers = #tpu.dot_dimension_numbers<[1], [0], [0], [1], [0, 0, 1, 1], [], []>} : vector<512x64xbf16>, vector<64x192xbf16>, vector<512x192xf32> -> vector<512x192xf32>
    %c1_90 = arith.constant 1 : index
    %c0_91 = arith.constant 0 : index
    %c0_92 = arith.constant 0 : index
    %163 = vector.load %arg6[%c1_90, %c0_91, %c0_92] : memref<2x16x192xbf16, #tpu.memory_space<vmem>>, vector<1x16x192xbf16>
    %164 = vector.shape_cast %163 : vector<1x16x192xbf16> to vector<16x192xbf16>
    %cst_93 = arith.constant dense<0.000000e+00> : vector<512x192xf32>
    %165 = tpu.matmul %2, %164, %cst_93 {dimension_numbers = #tpu.dot_dimension_numbers<[1], [0], [0], [1], [0, 0, 1, 1], [], []>} : vector<512x16xbf16>, vector<16x192xbf16>, vector<512x192xf32> -> vector<512x192xf32>
    %166 = arith.addf %162, %165 : vector<512x192xf32>
    %c1_94 = arith.constant 1 : index
    %c0_95 = arith.constant 0 : index
    %c0_96 = arith.constant 0 : index
    %167 = vector.load %arg7[%c1_94, %c0_95, %c0_96] : memref<2x1x192xf32, #tpu.memory_space<vmem>>, vector<1x1x192xf32>
    %168 = vector.shape_cast %167 : vector<1x1x192xf32> to vector<1x192xf32>
    %169 = vector.broadcast %168 : vector<1x192xf32> to vector<512x192xf32>
    %170 = arith.addf %166, %169 : vector<512x192xf32>
    %171 = vector.extract_strided_slice %170 {offsets = [0, 0], sizes = [512, 128], strides = [1, 1]} : vector<512x192xf32> to vector<512x128xf32>
    %172 = vector.extract_strided_slice %170 {offsets = [0, 128], sizes = [512, 64], strides = [1, 1]} : vector<512x192xf32> to vector<512x64xf32>
    %173 = arith.truncf %156 : vector<64x64xf32> to vector<64x64xbf16>
    %cst_97 = arith.constant dense<0.000000e+00> : vector<512x64xf32>
    %174 = tpu.matmul %22, %173, %cst_97 {dimension_numbers = #tpu.dot_dimension_numbers<[1], [0], [0], [1], [0, 0, 1, 1], [], []>} : vector<512x64xbf16>, vector<64x64xbf16>, vector<512x64xf32> -> vector<512x64xf32>
    %175 = arith.mulf %174, %172 : vector<512x64xf32>
    %176 = arith.truncf %175 : vector<512x64xf32> to vector<512x64xbf16>
    %cst_98 = arith.constant dense<0.000000e+00> : vector<512x4xf32>
    %177 = tpu.matmul %176, %50, %cst_98 {dimension_numbers = #tpu.dot_dimension_numbers<[1], [0], [0], [1], [0, 0, 1, 1], [], []>} : vector<512x64xbf16>, vector<64x4xbf16>, vector<512x4xf32> -> vector<512x4xf32>
    %178 = vector.shape_cast %177 : vector<512x4xf32> to vector<64x8x4xf32>
    %cst_99 = arith.constant dense<0xFF800000> : vector<64x4xf32>
    %179 = vector.multi_reduction <maximumf>, %178, %cst_99 [1] : vector<64x8x4xf32> to vector<64x4xf32>
    %180 = arith.truncf %179 : vector<64x4xf32> to vector<64x4xbf16>
    %cst_100 = arith.constant dense<0.000000e+00> : vector<512x4xf32>
    %181 = tpu.matmul %22, %180, %cst_100 {dimension_numbers = #tpu.dot_dimension_numbers<[1], [0], [0], [1], [0, 0, 1, 1], [], []>} : vector<512x64xbf16>, vector<64x4xbf16>, vector<512x4xf32> -> vector<512x4xf32>
    %182 = arith.subf %177, %181 : vector<512x4xf32>
    %183 = math.exp %182 : vector<512x4xf32>
    %184 = arith.truncf %183 : vector<512x4xf32> to vector<512x4xbf16>
    %cst_101 = arith.constant dense<0.000000e+00> : vector<64x4xf32>
    %185 = tpu.matmul %36, %184, %cst_101 {dimension_numbers = #tpu.dot_dimension_numbers<[1], [0], [0], [1], [0, 0, 1, 1], [], []>} : vector<64x512xbf16>, vector<512x4xbf16>, vector<64x4xf32> -> vector<64x4xf32>
    %186 = arith.truncf %183 : vector<512x4xf32> to vector<512x4xbf16>
    %cst_102 = arith.constant dense<0.000000e+00> : vector<512x128xf32>
    %187 = tpu.matmul %186, %64, %cst_102 {dimension_numbers = #tpu.dot_dimension_numbers<[1], [0], [0], [1], [0, 0, 1, 1], [], []>} : vector<512x4xbf16>, vector<4x128xbf16>, vector<512x128xf32> -> vector<512x128xf32>
    %188 = arith.mulf %187, %171 : vector<512x128xf32>
    %189 = arith.truncf %188 : vector<512x128xf32> to vector<512x128xbf16>
    %cst_103 = arith.constant dense<0.000000e+00> : vector<64x128xf32>
    %190 = tpu.matmul %36, %189, %cst_103 {dimension_numbers = #tpu.dot_dimension_numbers<[1], [0], [0], [1], [0, 0, 1, 1], [], []>} : vector<64x512xbf16>, vector<512x128xbf16>, vector<64x128xf32> -> vector<64x128xf32>
    %191 = arith.truncf %185 : vector<64x4xf32> to vector<64x4xbf16>
    %cst_104 = arith.constant dense<0.000000e+00> : vector<64x128xf32>
    %192 = tpu.matmul %191, %64, %cst_104 {dimension_numbers = #tpu.dot_dimension_numbers<[1], [0], [0], [1], [0, 0, 1, 1], [], []>} : vector<64x4xbf16>, vector<4x128xbf16>, vector<64x128xf32> -> vector<64x128xf32>
    %193 = tpu.reciprocal %192 {approx = true} : vector<64x128xf32> -> vector<64x128xf32>
    %194 = arith.mulf %190, %193 : vector<64x128xf32>
    %c1_105 = arith.constant 1 : index
    %c0_106 = arith.constant 0 : index
    %c0_107 = arith.constant 0 : index
    %195 = vector.load %arg8[%c1_105, %c0_106, %c0_107] : memref<2x128x32xbf16, #tpu.memory_space<vmem>>, vector<1x128x32xbf16>
    %196 = vector.shape_cast %195 : vector<1x128x32xbf16> to vector<128x32xbf16>
    %197 = arith.truncf %194 : vector<64x128xf32> to vector<64x128xbf16>
    %cst_108 = arith.constant dense<0.000000e+00> : vector<64x32xf32>
    %198 = tpu.matmul %197, %196, %cst_108 {dimension_numbers = #tpu.dot_dimension_numbers<[1], [0], [0], [1], [0, 0, 1, 1], [], []>} : vector<64x128xbf16>, vector<128x32xbf16>, vector<64x32xf32> -> vector<64x32xf32>
    %199 = arith.addf %148, %198 : vector<64x32xf32>
    %c1_109 = arith.constant 1 : index
    %c0_110 = arith.constant 0 : index
    %c0_111 = arith.constant 0 : index
    %200 = vector.load %arg9[%c1_109, %c0_110, %c0_111] : memref<2x1x32xf32, #tpu.memory_space<vmem>>, vector<1x1x32xf32>
    %201 = vector.shape_cast %200 : vector<1x1x32xf32> to vector<1x32xf32>
    %202 = vector.broadcast %201 : vector<1x32xf32> to vector<64x32xf32>
    %203 = arith.addf %199, %202 : vector<64x32xf32>
    %c1_112 = arith.constant 1 : index
    %c0_113 = arith.constant 0 : index
    %c0_114 = arith.constant 0 : index
    %204 = vector.load %arg10[%c1_112, %c0_113, %c0_114] : memref<2x32x32xbf16, #tpu.memory_space<vmem>>, vector<1x32x32xbf16>
    %205 = vector.shape_cast %204 : vector<1x32x32xbf16> to vector<32x32xbf16>
    %206 = arith.truncf %203 : vector<64x32xf32> to vector<64x32xbf16>
    %cst_115 = arith.constant dense<0.000000e+00> : vector<64x32xf32>
    %207 = tpu.matmul %206, %205, %cst_115 {dimension_numbers = #tpu.dot_dimension_numbers<[1], [0], [0], [1], [0, 0, 1, 1], [], []>} : vector<64x32xbf16>, vector<32x32xbf16>, vector<64x32xf32> -> vector<64x32xf32>
    %c1_116 = arith.constant 1 : index
    %c0_117 = arith.constant 0 : index
    %c0_118 = arith.constant 0 : index
    %208 = vector.load %arg11[%c1_116, %c0_117, %c0_118] : memref<2x1x32xf32, #tpu.memory_space<vmem>>, vector<1x1x32xf32>
    %209 = vector.shape_cast %208 : vector<1x1x32xf32> to vector<1x32xf32>
    %210 = vector.broadcast %209 : vector<1x32xf32> to vector<64x32xf32>
    %211 = arith.addf %207, %210 : vector<64x32xf32>
    %cst_119 = arith.constant 0.000000e+00 : f32
    %212 = vector.broadcast %cst_119 : f32 to vector<64x32xf32>
    %213 = arith.maximumf %211, %212 : vector<64x32xf32>
    %c1_120 = arith.constant 1 : index
    %c0_121 = arith.constant 0 : index
    %c0_122 = arith.constant 0 : index
    %214 = vector.load %arg12[%c1_120, %c0_121, %c0_122] : memref<2x32x32xbf16, #tpu.memory_space<vmem>>, vector<1x32x32xbf16>
    %215 = vector.shape_cast %214 : vector<1x32x32xbf16> to vector<32x32xbf16>
    %216 = arith.truncf %213 : vector<64x32xf32> to vector<64x32xbf16>
    %cst_123 = arith.constant dense<0.000000e+00> : vector<64x32xf32>
    %217 = tpu.matmul %216, %215, %cst_123 {dimension_numbers = #tpu.dot_dimension_numbers<[1], [0], [0], [1], [0, 0, 1, 1], [], []>} : vector<64x32xbf16>, vector<32x32xbf16>, vector<64x32xf32> -> vector<64x32xf32>
    %c1_124 = arith.constant 1 : index
    %c0_125 = arith.constant 0 : index
    %c0_126 = arith.constant 0 : index
    %218 = vector.load %arg13[%c1_124, %c0_125, %c0_126] : memref<2x1x32xf32, #tpu.memory_space<vmem>>, vector<1x1x32xf32>
    %219 = vector.shape_cast %218 : vector<1x1x32xf32> to vector<1x32xf32>
    %220 = vector.broadcast %219 : vector<1x32xf32> to vector<64x32xf32>
    %221 = arith.addf %217, %220 : vector<64x32xf32>
    %cst_127 = arith.constant 0.000000e+00 : f32
    %222 = vector.broadcast %cst_127 : f32 to vector<64x32xf32>
    %223 = arith.maximumf %221, %222 : vector<64x32xf32>
    %c1_128 = arith.constant 1 : index
    %c0_129 = arith.constant 0 : index
    %c0_130 = arith.constant 0 : index
    %224 = vector.load %arg14[%c1_128, %c0_129, %c0_130] : memref<2x32x32xbf16, #tpu.memory_space<vmem>>, vector<1x32x32xbf16>
    %225 = vector.shape_cast %224 : vector<1x32x32xbf16> to vector<32x32xbf16>
    %226 = arith.truncf %223 : vector<64x32xf32> to vector<64x32xbf16>
    %cst_131 = arith.constant dense<0.000000e+00> : vector<64x32xf32>
    %227 = tpu.matmul %226, %225, %cst_131 {dimension_numbers = #tpu.dot_dimension_numbers<[1], [0], [0], [1], [0, 0, 1, 1], [], []>} : vector<64x32xbf16>, vector<32x32xbf16>, vector<64x32xf32> -> vector<64x32xf32>
    %228 = arith.addf %203, %227 : vector<64x32xf32>
    %c1_132 = arith.constant 1 : index
    %c0_133 = arith.constant 0 : index
    %c0_134 = arith.constant 0 : index
    %229 = vector.load %arg15[%c1_132, %c0_133, %c0_134] : memref<2x1x32xf32, #tpu.memory_space<vmem>>, vector<1x1x32xf32>
    %230 = vector.shape_cast %229 : vector<1x1x32xf32> to vector<1x32xf32>
    %231 = vector.broadcast %230 : vector<1x32xf32> to vector<64x32xf32>
    %232 = arith.addf %228, %231 : vector<64x32xf32>
    %c0_135 = arith.constant 0 : index
    %c0_136 = arith.constant 0 : index
    %233 = vector.load %arg16[%c0_135, %c0_136] : memref<32x16xbf16, #tpu.memory_space<vmem>>, vector<32x16xbf16>
    %234 = arith.truncf %232 : vector<64x32xf32> to vector<64x32xbf16>
    %cst_137 = arith.constant dense<0.000000e+00> : vector<64x16xf32>
    %235 = tpu.matmul %234, %233, %cst_137 {dimension_numbers = #tpu.dot_dimension_numbers<[1], [0], [0], [1], [0, 0, 1, 1], [], []>} : vector<64x32xbf16>, vector<32x16xbf16>, vector<64x16xf32> -> vector<64x16xf32>
    %c0_138 = arith.constant 0 : index
    %c0_139 = arith.constant 0 : index
    %236 = vector.load %arg17[%c0_138, %c0_139] : memref<1x16xf32, #tpu.memory_space<vmem>>, vector<1x16xf32>
    %237 = vector.broadcast %236 : vector<1x16xf32> to vector<64x16xf32>
    %238 = arith.addf %235, %237 : vector<64x16xf32>
    %c0_140 = arith.constant 0 : index
    %c0_141 = arith.constant 0 : index
    %239 = vector.load %arg18[%c0_140, %c0_141] : memref<64x16xf32, #tpu.memory_space<vmem>>, vector<64x16xf32>
    tpu.vector_store %arg18[%c0_140, %c0_141], %238 {strides = array<i32>} : memref<64x16xf32, #tpu.memory_space<vmem>>, vector<64x16xf32>,
    return
  }
}

</mosaic_0001>

<llo_original>
// kernel: decoder_forward.1
$region0: #{decoder_forward.1}
  #allocation0 [shape = 'u32[]', space=smem, size = 0x4, offset = 0x4, fixed_abs, tag = 'smem constant byte address 0x4 - core index']
  #allocation1 [shape = 'u32[144,128]{1,0:T(1,128)}', space=vmem, size = 0x12000, scoped, tag = 'internal scratch']
  %s0 = inlined_call_operand.vmem [shape: f32[64,32], index: 0, kind: input, shape index: {}]
  %s1 = inlined_call_operand.vmem [shape: s32[512,1], index: 1, kind: input, shape index: {}]
  %s2 = inlined_call_operand.vmem [shape: bf16[512,16], index: 2, kind: input, shape index: {}]
  %s3 = inlined_call_operand.vmem [shape: bf16[2,32,64], index: 3, kind: input, shape index: {}]
  %s4 = inlined_call_operand.vmem [shape: f32[2,1,64], index: 4, kind: input, shape index: {}]
  %s5 = inlined_call_operand.vmem [shape: bf16[2,32,192], index: 5, kind: input, shape index: {}]
  %s6 = inlined_call_operand.vmem [shape: bf16[2,16,192], index: 6, kind: input, shape index: {}]
  %s7 = inlined_call_operand.vmem [shape: f32[2,1,192], index: 7, kind: input, shape index: {}]
  %s8 = inlined_call_operand.vmem [shape: bf16[2,128,32], index: 8, kind: input, shape index: {}]
  %s9 = inlined_call_operand.vmem [shape: f32[2,1,32], index: 9, kind: input, shape index: {}]
  %s10 = inlined_call_operand.vmem [shape: bf16[2,32,32], index: 10, kind: input, shape index: {}]
  %s11 = inlined_call_operand.vmem [shape: f32[2,1,32], index: 11, kind: input, shape index: {}]
  %s12 = inlined_call_operand.vmem [shape: bf16[2,32,32], index: 12, kind: input, shape index: {}]
  %s13 = inlined_call_operand.vmem [shape: f32[2,1,32], index: 13, kind: input, shape index: {}]
  %s14 = inlined_call_operand.vmem [shape: bf16[2,32,32], index: 14, kind: input, shape index: {}]
  %s15 = inlined_call_operand.vmem [shape: f32[2,1,32], index: 15, kind: input, shape index: {}]
  %s16 = inlined_call_operand.vmem [shape: bf16[32,16], index: 16, kind: input, shape index: {}]
  %s17 = inlined_call_operand.vmem [shape: f32[1,16], index: 17, kind: input, shape index: {}]
  %s18 = inlined_call_operand.vmem [shape: f32[64,16], index: 18, kind: output, shape index: {}]
  %s19 = sld [smem:[#allocation0]]
  $region82: #{decoder_forward.1} parent=0
    _
  %s21 = ssub.s32 1, %s19
  %s22 = scalar_select 0, %s21, %s19
  // Predicated region
  $region2: #{decoder_forward.1} parent=0 // pred_check
    _
  $region3: #{decoder_forward.1} parent=0 // pred_check_branch
    %24 = sbr.rel (0) target = $region5
  $region4: #{decoder_forward.1} parent=0 // pred_region
    _
  $region5: #{decoder_forward.1} parent=0 // pred_fallthru
    _
  // Predicated region
  $region6: #{decoder_forward.1} parent=0 // pred_check
    _
  $region7: #{decoder_forward.1} parent=0 // pred_check_branch
    %26 = sbr.rel (0) target = $region9
  $region8: #{decoder_forward.1} parent=0 // pred_region
    _
  $region9: #{decoder_forward.1} parent=0 // pred_fallthru
    _
  // Predicated region
  $region10: #{decoder_forward.1} parent=0 // pred_check
    _
  $region11: #{decoder_forward.1} parent=0 // pred_check_branch
    %28 = sbr.rel (0) target = $region13
  $region12: #{decoder_forward.1} parent=0 // pred_region
    _
  $region13: #{decoder_forward.1} parent=0 // pred_fallthru
    _
  // Predicated region
  $region14: #{decoder_forward.1} parent=0 // pred_check
    _
  $region15: #{decoder_forward.1} parent=0 // pred_check_branch
    %30 = sbr.rel (0) target = $region17
  $region16: #{decoder_forward.1} parent=0 // pred_region
    _
  $region17: #{decoder_forward.1} parent=0 // pred_fallthru
    _
  // Predicated region
  $region18: #{decoder_forward.1} parent=0 // pred_check
    _
  $region19: #{decoder_forward.1} parent=0 // pred_check_branch
    %32 = sbr.rel (0) target = $region21
  $region20: #{decoder_forward.1} parent=0 // pred_region
    _
  $region21: #{decoder_forward.1} parent=0 // pred_fallthru
    _
  // Predicated region
  $region22: #{decoder_forward.1} parent=0 // pred_check
    _
  $region23: #{decoder_forward.1} parent=0 // pred_check_branch
    %34 = sbr.rel (0) target = $region25
  $region24: #{decoder_forward.1} parent=0 // pred_region
    _
  $region25: #{decoder_forward.1} parent=0 // pred_fallthru
    _
  // Predicated region
  $region26: #{decoder_forward.1} parent=0 // pred_check
    _
  $region27: #{decoder_forward.1} parent=0 // pred_check_branch
    %36 = sbr.rel (0) target = $region29
  $region28: #{decoder_forward.1} parent=0 // pred_region
    _
  $region29: #{decoder_forward.1} parent=0 // pred_fallthru
    _
  // Predicated region
  $region30: #{decoder_forward.1} parent=0 // pred_check
    _
  $region31: #{decoder_forward.1} parent=0 // pred_check_branch
    %38 = sbr.rel (0) target = $region33
  $region32: #{decoder_forward.1} parent=0 // pred_region
    _
  $region33: #{decoder_forward.1} parent=0 // pred_fallthru
    _
  // Predicated region
  $region34: #{decoder_forward.1} parent=0 // pred_check
    _
  $region35: #{decoder_forward.1} parent=0 // pred_check_branch
    %40 = sbr.rel (0) target = $region37
  $region36: #{decoder_forward.1} parent=0 // pred_region
    _
  $region37: #{decoder_forward.1} parent=0 // pred_fallthru
    _
  // Predicated region
  $region38: #{decoder_forward.1} parent=0 // pred_check
    _
  $region39: #{decoder_forward.1} parent=0 // pred_check_branch
    %42 = sbr.rel (0) target = $region41
  $region40: #{decoder_forward.1} parent=0 // pred_region
    _
  $region41: #{decoder_forward.1} parent=0 // pred_fallthru
    _
  // Predicated region
  $region42: #{decoder_forward.1} parent=0 // pred_check
    _
  $region43: #{decoder_forward.1} parent=0 // pred_check_branch
    %44 = sbr.rel (0) target = $region45
  $region44: #{decoder_forward.1} parent=0 // pred_region
    _
  $region45: #{decoder_forward.1} parent=0 // pred_fallthru
    _
  // Predicated region
  $region46: #{decoder_forward.1} parent=0 // pred_check
    _
  $region47: #{decoder_forward.1} parent=0 // pred_check_branch
    %46 = sbr.rel (0) target = $region49
  $region48: #{decoder_forward.1} parent=0 // pred_region
    _
  $region49: #{decoder_forward.1} parent=0 // pred_fallthru
    _
  // Predicated region
  $region50: #{decoder_forward.1} parent=0 // pred_check
    _
  $region51: #{decoder_forward.1} parent=0 // pred_check_branch
    %48 = sbr.rel (0) target = $region53
  $region52: #{decoder_forward.1} parent=0 // pred_region
    _
  $region53: #{decoder_forward.1} parent=0 // pred_fallthru
    _
  // Predicated region
  $region54: #{decoder_forward.1} parent=0 // pred_check
    _
  $region55: #{decoder_forward.1} parent=0 // pred_check_branch
    %50 = sbr.rel (0) target = $region57
  $region56: #{decoder_forward.1} parent=0 // pred_region
    _
  $region57: #{decoder_forward.1} parent=0 // pred_fallthru
    _
  // Predicated region
  $region58: #{decoder_forward.1} parent=0 // pred_check
    _
  $region59: #{decoder_forward.1} parent=0 // pred_check_branch
    %52 = sbr.rel (0) target = $region61
  $region60: #{decoder_forward.1} parent=0 // pred_region
    _
  $region61: #{decoder_forward.1} parent=0 // pred_fallthru
    _
  // Predicated region
  $region62: #{decoder_forward.1} parent=0 // pred_check
    _
  $region63: #{decoder_forward.1} parent=0 // pred_check_branch
    %54 = sbr.rel (0) target = $region65
  $region64: #{decoder_forward.1} parent=0 // pred_region
    _
  $region65: #{decoder_forward.1} parent=0 // pred_fallthru
    _
  // Predicated region
  $region66: #{decoder_forward.1} parent=0 // pred_check
    _
  $region67: #{decoder_forward.1} parent=0 // pred_check_branch
    %56 = sbr.rel (0) target = $region69
  $region68: #{decoder_forward.1} parent=0 // pred_region
    _
  $region69: #{decoder_forward.1} parent=0 // pred_fallthru
    _
  // Predicated region
  $region70: #{decoder_forward.1} parent=0 // pred_check
    _
  $region71: #{decoder_forward.1} parent=0 // pred_check_branch
    %58 = sbr.rel (0) target = $region73
  $region72: #{decoder_forward.1} parent=0 // pred_region
    _
  $region73: #{decoder_forward.1} parent=0 // pred_fallthru
    _
  %v60 = vld [vmem:[%s0] sm:$0xff]
  %v61 = vld [vmem:[%s0 + $0x8] sm:$0xff]
  %v62 = vld [vmem:[%s0 + $0x10] sm:$0xff]
  %v63 = vld [vmem:[%s0 + $0x18] sm:$0xff]
  %v64 = vld [vmem:[%s0 + $0x20] sm:$0xff]
  %v65 = vld [vmem:[%s0 + $0x28] sm:$0xff]
  %v66 = vld [vmem:[%s0 + $0x30] sm:$0xff]
  %v67 = vld [vmem:[%s0 + $0x38] sm:$0xff]
  %v68 = vld [vmem:[%s1] sm:$0xff]
  %v69 = vld [vmem:[%s1 + $0x8] sm:$0xff]
  %v70 = vld [vmem:[%s1 + $0x10] sm:$0xff]
  %v71 = vld [vmem:[%s1 + $0x18] sm:$0xff]
  %v72 = vld [vmem:[%s1 + $0x20] sm:$0xff]
  %v73 = vld [vmem:[%s1 + $0x28] sm:$0xff]
  %v74 = vld [vmem:[%s1 + $0x30] sm:$0xff]
  %v75 = vld [vmem:[%s1 + $0x38] sm:$0xff]
  %v76 = vld [vmem:[%s1 + $0x40] sm:$0xff]
  %v77 = vld [vmem:[%s1 + $0x48] sm:$0xff]
  %v78 = vld [vmem:[%s1 + $0x50] sm:$0xff]
  %v79 = vld [vmem:[%s1 + $0x58] sm:$0xff]
  %v80 = vld [vmem:[%s1 + $0x60] sm:$0xff]
  %v81 = vld [vmem:[%s1 + $0x68] sm:$0xff]
  %v82 = vld [vmem:[%s1 + $0x70] sm:$0xff]
  %v83 = vld [vmem:[%s1 + $0x78] sm:$0xff]
  %v84 = vld [vmem:[%s1 + $0x80] sm:$0xff]
  %v85 = vld [vmem:[%s1 + $0x88] sm:$0xff]
  %v86 = vld [vmem:[%s1 + $0x90] sm:$0xff]
  %v87 = vld [vmem:[%s1 + $0x98] sm:$0xff]
  %v88 = vld [vmem:[%s1 + $0xa0] sm:$0xff]
  %v89 = vld [vmem:[%s1 + $0xa8] sm:$0xff]
  %v90 = vld [vmem:[%s1 + $0xb0] sm:$0xff]
  %v91 = vld [vmem:[%s1 + $0xb8] sm:$0xff]
  %v92 = vld [vmem:[%s1 + $0xc0] sm:$0xff]
  %v93 = vld [vmem:[%s1 + $0xc8] sm:$0xff]
  %v94 = vld [vmem:[%s1 + $0xd0] sm:$0xff]
  %v95 = vld [vmem:[%s1 + $0xd8] sm:$0xff]
  %v96 = vld [vmem:[%s1 + $0xe0] sm:$0xff]
  %v97 = vld [vmem:[%s1 + $0xe8] sm:$0xff]
  %v98 = vld [vmem:[%s1 + $0xf0] sm:$0xff]
  %v99 = vld [vmem:[%s1 + $0xf8] sm:$0xff]
  %v100 = vld [vmem:[%s1 + $0x100] sm:$0xff]
  %v101 = vld [vmem:[%s1 + $0x108] sm:$0xff]
  %v102 = vld [vmem:[%s1 + $0x110] sm:$0xff]
  %v103 = vld [vmem:[%s1 + $0x118] sm:$0xff]
  %v104 = vld [vmem:[%s1 + $0x120] sm:$0xff]
  %v105 = vld [vmem:[%s1 + $0x128] sm:$0xff]
  %v106 = vld [vmem:[%s1 + $0x130] sm:$0xff]
  %v107 = vld [vmem:[%s1 + $0x138] sm:$0xff]
  %v108 = vld [vmem:[%s1 + $0x140] sm:$0xff]
  %v109 = vld [vmem:[%s1 + $0x148] sm:$0xff]
  %v110 = vld [vmem:[%s1 + $0x150] sm:$0xff]
  %v111 = vld [vmem:[%s1 + $0x158] sm:$0xff]
  %v112 = vld [vmem:[%s1 + $0x160] sm:$0xff]
  %v113 = vld [vmem:[%s1 + $0x168] sm:$0xff]
  %v114 = vld [vmem:[%s1 + $0x170] sm:$0xff]
  %v115 = vld [vmem:[%s1 + $0x178] sm:$0xff]
  %v116 = vld [vmem:[%s1 + $0x180] sm:$0xff]
  %v117 = vld [vmem:[%s1 + $0x188] sm:$0xff]
  %v118 = vld [vmem:[%s1 + $0x190] sm:$0xff]
  %v119 = vld [vmem:[%s1 + $0x198] sm:$0xff]
  %v120 = vld [vmem:[%s1 + $0x1a0] sm:$0xff]
  %v121 = vld [vmem:[%s1 + $0x1a8] sm:$0xff]
  %v122 = vld [vmem:[%s1 + $0x1b0] sm:$0xff]
  %v123 = vld [vmem:[%s1 + $0x1b8] sm:$0xff]
  %v124 = vld [vmem:[%s1 + $0x1c0] sm:$0xff]
  %v125 = vld [vmem:[%s1 + $0x1c8] sm:$0xff]
  %v126 = vld [vmem:[%s1 + $0x1d0] sm:$0xff]
  %v127 = vld [vmem:[%s1 + $0x1d8] sm:$0xff]
  %v128 = vld [vmem:[%s1 + $0x1e0] sm:$0xff]
  %v129 = vld [vmem:[%s1 + $0x1e8] sm:$0xff]
  %v130 = vld [vmem:[%s1 + $0x1f0] sm:$0xff]
  %v131 = vld [vmem:[%s1 + $0x1f8] sm:$0xff]
  %v132 = vld [vmem:[%s2] sm:$0xf]
  %v133 = vld [vmem:[%s2 + $0x4] sm:$0xf]
  %v134 = vld [vmem:[%s2 + $0x8] sm:$0xf]
  %v135 = vld [vmem:[%s2 + $0xc] sm:$0xf]
  %v136 = vld [vmem:[%s2 + $0x10] sm:$0xf]
  %v137 = vld [vmem:[%s2 + $0x14] sm:$0xf]
  %v138 = vld [vmem:[%s2 + $0x18] sm:$0xf]
  %v139 = vld [vmem:[%s2 + $0x1c] sm:$0xf]
  %v140 = vld [vmem:[%s2 + $0x20] sm:$0xf]
  %v141 = vld [vmem:[%s2 + $0x24] sm:$0xf]
  %v142 = vld [vmem:[%s2 + $0x28] sm:$0xf]
  %v143 = vld [vmem:[%s2 + $0x2c] sm:$0xf]
  %v144 = vld [vmem:[%s2 + $0x30] sm:$0xf]
  %v145 = vld [vmem:[%s2 + $0x34] sm:$0xf]
  %v146 = vld [vmem:[%s2 + $0x38] sm:$0xf]
  %v147 = vld [vmem:[%s2 + $0x3c] sm:$0xf]
  %v148 = vld [vmem:[%s2 + $0x40] sm:$0xf]
  %v149 = vld [vmem:[%s2 + $0x44] sm:$0xf]
  %v150 = vld [vmem:[%s2 + $0x48] sm:$0xf]
  %v151 = vld [vmem:[%s2 + $0x4c] sm:$0xf]
  %v152 = vld [vmem:[%s2 + $0x50] sm:$0xf]
  %v153 = vld [vmem:[%s2 + $0x54] sm:$0xf]
  %v154 = vld [vmem:[%s2 + $0x58] sm:$0xf]
  %v155 = vld [vmem:[%s2 + $0x5c] sm:$0xf]
  %v156 = vld [vmem:[%s2 + $0x60] sm:$0xf]
  %v157 = vld [vmem:[%s2 + $0x64] sm:$0xf]
  %v158 = vld [vmem:[%s2 + $0x68] sm:$0xf]
  %v159 = vld [vmem:[%s2 + $0x6c] sm:$0xf]
  %v160 = vld [vmem:[%s2 + $0x70] sm:$0xf]
  %v161 = vld [vmem:[%s2 + $0x74] sm:$0xf]
  %v162 = vld [vmem:[%s2 + $0x78] sm:$0xf]
  %v163 = vld [vmem:[%s2 + $0x7c] sm:$0xf]
  %v164 = vld [vmem:[%s2 + $0x80] sm:$0xf]
  %v165 = vld [vmem:[%s2 + $0x84] sm:$0xf]
  %v166 = vld [vmem:[%s2 + $0x88] sm:$0xf]
  %v167 = vld [vmem:[%s2 + $0x8c] sm:$0xf]
  %v168 = vld [vmem:[%s2 + $0x90] sm:$0xf]
  %v169 = vld [vmem:[%s2 + $0x94] sm:$0xf]
  %v170 = vld [vmem:[%s2 + $0x98] sm:$0xf]
  %v171 = vld [vmem:[%s2 + $0x9c] sm:$0xf]
  %v172 = vld [vmem:[%s2 + $0xa0] sm:$0xf]
  %v173 = vld [vmem:[%s2 + $0xa4] sm:$0xf]
  %v174 = vld [vmem:[%s2 + $0xa8] sm:$0xf]
  %v175 = vld [vmem:[%s2 + $0xac] sm:$0xf]
  %v176 = vld [vmem:[%s2 + $0xb0] sm:$0xf]
  %v177 = vld [vmem:[%s2 + $0xb4] sm:$0xf]
  %v178 = vld [vmem:[%s2 + $0xb8] sm:$0xf]
  %v179 = vld [vmem:[%s2 + $0xbc] sm:$0xf]
  %v180 = vld [vmem:[%s2 + $0xc0] sm:$0xf]
  %v181 = vld [vmem:[%s2 + $0xc4] sm:$0xf]
  %v182 = vld [vmem:[%s2 + $0xc8] sm:$0xf]
  %v183 = vld [vmem:[%s2 + $0xcc] sm:$0xf]
  %v184 = vld [vmem:[%s2 + $0xd0] sm:$0xf]
  %v185 = vld [vmem:[%s2 + $0xd4] sm:$0xf]
  %v186 = vld [vmem:[%s2 + $0xd8] sm:$0xf]
  %v187 = vld [vmem:[%s2 + $0xdc] sm:$0xf]
  %v188 = vld [vmem:[%s2 + $0xe0] sm:$0xf]
  %v189 = vld [vmem:[%s2 + $0xe4] sm:$0xf]
  %v190 = vld [vmem:[%s2 + $0xe8] sm:$0xf]
  %v191 = vld [vmem:[%s2 + $0xec] sm:$0xf]
  %v192 = vld [vmem:[%s2 + $0xf0] sm:$0xf]
  %v193 = vld [vmem:[%s2 + $0xf4] sm:$0xf]
  %v194 = vld [vmem:[%s2 + $0xf8] sm:$0xf]
  %v195 = vld [vmem:[%s2 + $0xfc] sm:$0xf]
  %v196 = vlaneseq
  %v197 = vshrl.u32 %v196, 7
  %v198 = vadd.s32 %v197, 8
  %v199 = vadd.s32 %v197, 16
  %v200 = vadd.s32 %v197, 24
  %v201 = vadd.s32 %v197, 32
  %v202 = vadd.s32 %v197, 40
  %v203 = vadd.s32 %v197, 48
  %v204 = vadd.s32 %v197, 56
  %v205 = vadd.s32 %v197, 64
  %v206 = vadd.s32 %v197, 72
  %v207 = vadd.s32 %v197, 80
  %v208 = vadd.s32 %v197, 88
  %v209 = vadd.s32 %v197, 96
  %v210 = vadd.s32 %v197, 104
  %v211 = vadd.s32 %v197, 112
  %v212 = vadd.s32 %v197, 120
  %v213 = vadd.s32 %v197, 128
  %v214 = vadd.s32 %v197, 136
  %v215 = vadd.s32 %v197, 144
  %v216 = vadd.s32 %v197, 152
  %v217 = vadd.s32 %v197, 160
  %v218 = vadd.s32 %v197, 168
  %v219 = vadd.s32 %v197, 176
  %v220 = vadd.s32 %v197, 184
  %v221 = vadd.s32 %v197, 192
  %v222 = vadd.s32 %v197, 200
  %v223 = vadd.s32 %v197, 208
  %v224 = vadd.s32 %v197, 216
  %v225 = vadd.s32 %v197, 224
  %v226 = vadd.s32 %v197, 232
  %v227 = vadd.s32 %v197, 240
  %v228 = vadd.s32 %v197, 248
  %v229 = vadd.s32 %v197, 256
  %v230 = vadd.s32 %v197, 264
  %v231 = vadd.s32 %v197, 272
  %v232 = vadd.s32 %v197, 280
  %v233 = vadd.s32 %v197, 288
  %v234 = vadd.s32 %v197, 296
  %v235 = vadd.s32 %v197, 304
  %v236 = vadd.s32 %v197, 312
  %v237 = vadd.s32 %v197, 320
  %v238 = vadd.s32 %v197, 328
  %v239 = vadd.s32 %v197, 336
  %v240 = vadd.s32 %v197, 344
  %v241 = vadd.s32 %v197, 352
  %v242 = vadd.s32 %v197, 360
  %v243 = vadd.s32 %v197, 368
  %v244 = vadd.s32 %v197, 376
  %v245 = vadd.s32 %v197, 384
  %v246 = vadd.s32 %v197, 392
  %v247 = vadd.s32 %v197, 400
  %v248 = vadd.s32 %v197, 408
  %v249 = vadd.s32 %v197, 416
  %v250 = vadd.s32 %v197, 424
  %v251 = vadd.s32 %v197, 432
  %v252 = vadd.s32 %v197, 440
  %v253 = vadd.s32 %v197, 448
  %v254 = vadd.s32 %v197, 456
  %v255 = vadd.s32 %v197, 464
  %v256 = vadd.s32 %v197, 472
  %v257 = vadd.s32 %v197, 480
  %v258 = vadd.s32 %v197, 488
  %v259 = vadd.s32 %v197, 496
  %v260 = vadd.s32 %v197, 504
  %v261 = vlaneseq
  %v262 = vand.u32 %v261, 127
  %263 = vset.pattern.permute.xlu0 0
  %264 = vperm.xlu0 %263, %v68
  %v265 = vpop.permute.xlu0 %264
  %266 = vset.pattern.permute.xlu0 0
  %267 = vperm.xlu0 %266, %v69
  %v268 = vpop.permute.xlu0 %267
  %269 = vset.pattern.permute.xlu0 0
  %270 = vperm.xlu0 %269, %v70
  %v271 = vpop.permute.xlu0 %270
  %272 = vset.pattern.permute.xlu0 0
  %273 = vperm.xlu0 %272, %v71
  %v274 = vpop.permute.xlu0 %273
  %275 = vset.pattern.permute.xlu0 0
  %276 = vperm.xlu0 %275, %v72
  %v277 = vpop.permute.xlu0 %276
  %278 = vset.pattern.permute.xlu0 0
  %279 = vperm.xlu0 %278, %v73
  %v280 = vpop.permute.xlu0 %279
  %281 = vset.pattern.permute.xlu0 0
  %282 = vperm.xlu0 %281, %v74
  %v283 = vpop.permute.xlu0 %282
  %284 = vset.pattern.permute.xlu0 0
  %285 = vperm.xlu0 %284, %v75
  %v286 = vpop.permute.xlu0 %285
  %287 = vset.pattern.permute.xlu0 0
  %288 = vperm.xlu0 %287, %v76
  %v289 = vpop.permute.xlu0 %288
  %290 = vset.pattern.permute.xlu0 0
  %291 = vperm.xlu0 %290, %v77
  %v292 = vpop.permute.xlu0 %291
  %293 = vset.pattern.permute.xlu0 0
  %294 = vperm.xlu0 %293, %v78
  %v295 = vpop.permute.xlu0 %294
  %296 = vset.pattern.permute.xlu0 0
  %297 = vperm.xlu0 %296, %v79
  %v298 = vpop.permute.xlu0 %297
  %299 = vset.pattern.permute.xlu0 0
  %300 = vperm.xlu0 %299, %v80
  %v301 = vpop.permute.xlu0 %300
  %302 = vset.pattern.permute.xlu0 0
  %303 = vperm.xlu0 %302, %v81
  %v304 = vpop.permute.xlu0 %303
  %305 = vset.pattern.permute.xlu0 0
  %306 = vperm.xlu0 %305, %v82
  %v307 = vpop.permute.xlu0 %306
  %308 = vset.pattern.permute.xlu0 0
  %309 = vperm.xlu0 %308, %v83
  %v310 = vpop.permute.xlu0 %309
  %311 = vset.pattern.permute.xlu0 0
  %312 = vperm.xlu0 %311, %v84
  %v313 = vpop.permute.xlu0 %312
  %314 = vset.pattern.permute.xlu0 0
  %315 = vperm.xlu0 %314, %v85
  %v316 = vpop.permute.xlu0 %315
  %317 = vset.pattern.permute.xlu0 0
  %318 = vperm.xlu0 %317, %v86
  %v319 = vpop.permute.xlu0 %318
  %320 = vset.pattern.permute.xlu0 0
  %321 = vperm.xlu0 %320, %v87
  %v322 = vpop.permute.xlu0 %321
  %323 = vset.pattern.permute.xlu0 0
  %324 = vperm.xlu0 %323, %v88
  %v325 = vpop.permute.xlu0 %324
  %326 = vset.pattern.permute.xlu0 0
  %327 = vperm.xlu0 %326, %v89
  %v328 = vpop.permute.xlu0 %327
  %329 = vset.pattern.permute.xlu0 0
  %330 = vperm.xlu0 %329, %v90
  %v331 = vpop.permute.xlu0 %330
  %332 = vset.pattern.permute.xlu0 0
  %333 = vperm.xlu0 %332, %v91
  %v334 = vpop.permute.xlu0 %333
  %335 = vset.pattern.permute.xlu0 0
  %336 = vperm.xlu0 %335, %v92
  %v337 = vpop.permute.xlu0 %336
  %338 = vset.pattern.permute.xlu0 0
  %339 = vperm.xlu0 %338, %v93
  %v340 = vpop.permute.xlu0 %339
  %341 = vset.pattern.permute.xlu0 0
  %342 = vperm.xlu0 %341, %v94
  %v343 = vpop.permute.xlu0 %342
  %344 = vset.pattern.permute.xlu0 0
  %345 = vperm.xlu0 %344, %v95
  %v346 = vpop.permute.xlu0 %345
  %347 = vset.pattern.permute.xlu0 0
  %348 = vperm.xlu0 %347, %v96
  %v349 = vpop.permute.xlu0 %348
  %350 = vset.pattern.permute.xlu0 0
  %351 = vperm.xlu0 %350, %v97
  %v352 = vpop.permute.xlu0 %351
  %353 = vset.pattern.permute.xlu0 0
  %354 = vperm.xlu0 %353, %v98
  %v355 = vpop.permute.xlu0 %354
  %356 = vset.pattern.permute.xlu0 0
  %357 = vperm.xlu0 %356, %v99
  %v358 = vpop.permute.xlu0 %357
  %359 = vset.pattern.permute.xlu0 0
  %360 = vperm.xlu0 %359, %v100
  %v361 = vpop.permute.xlu0 %360
  %362 = vset.pattern.permute.xlu0 0
  %363 = vperm.xlu0 %362, %v101
  %v364 = vpop.permute.xlu0 %363
  %365 = vset.pattern.permute.xlu0 0
  %366 = vperm.xlu0 %365, %v102
  %v367 = vpop.permute.xlu0 %366
  %368 = vset.pattern.permute.xlu0 0
  %369 = vperm.xlu0 %368, %v103
  %v370 = vpop.permute.xlu0 %369
  %371 = vset.pattern.permute.xlu0 0
  %372 = vperm.xlu0 %371, %v104
  %v373 = vpop.permute.xlu0 %372
  %374 = vset.pattern.permute.xlu0 0
  %375 = vperm.xlu0 %374, %v105
  %v376 = vpop.permute.xlu0 %375
  %377 = vset.pattern.permute.xlu0 0
  %378 = vperm.xlu0 %377, %v106
  %v379 = vpop.permute.xlu0 %378
  %380 = vset.pattern.permute.xlu0 0
  %381 = vperm.xlu0 %380, %v107
  %v382 = vpop.permute.xlu0 %381
  %383 = vset.pattern.permute.xlu0 0
  %384 = vperm.xlu0 %383, %v108
  %v385 = vpop.permute.xlu0 %384
  %386 = vset.pattern.permute.xlu0 0
  %387 = vperm.xlu0 %386, %v109
  %v388 = vpop.permute.xlu0 %387
  %389 = vset.pattern.permute.xlu0 0
  %390 = vperm.xlu0 %389, %v110
  %v391 = vpop.permute.xlu0 %390
  %392 = vset.pattern.permute.xlu0 0
  %393 = vperm.xlu0 %392, %v111
  %v394 = vpop.permute.xlu0 %393
  %395 = vset.pattern.permute.xlu0 0
  %396 = vperm.xlu0 %395, %v112
  %v397 = vpop.permute.xlu0 %396
  %398 = vset.pattern.permute.xlu0 0
  %399 = vperm.xlu0 %398, %v113
  %v400 = vpop.permute.xlu0 %399
  %401 = vset.pattern.permute.xlu0 0
  %402 = vperm.xlu0 %401, %v114
  %v403 = vpop.permute.xlu0 %402
  %404 = vset.pattern.permute.xlu0 0
  %405 = vperm.xlu0 %404, %v115
  %v406 = vpop.permute.xlu0 %405
  %407 = vset.pattern.permute.xlu0 0
  %408 = vperm.xlu0 %407, %v116
  %v409 = vpop.permute.xlu0 %408
  %410 = vset.pattern.permute.xlu0 0
  %411 = vperm.xlu0 %410, %v117
  %v412 = vpop.permute.xlu0 %411
  %413 = vset.pattern.permute.xlu0 0
  %414 = vperm.xlu0 %413, %v118
  %v415 = vpop.permute.xlu0 %414
  %416 = vset.pattern.permute.xlu0 0
  %417 = vperm.xlu0 %416, %v119
  %v418 = vpop.permute.xlu0 %417
  %419 = vset.pattern.permute.xlu0 0
  %420 = vperm.xlu0 %419, %v120
  %v421 = vpop.permute.xlu0 %420
  %422 = vset.pattern.permute.xlu0 0
  %423 = vperm.xlu0 %422, %v121
  %v424 = vpop.permute.xlu0 %423
  %425 = vset.pattern.permute.xlu0 0
  %426 = vperm.xlu0 %425, %v122
  %v427 = vpop.permute.xlu0 %426
  %428 = vset.pattern.permute.xlu0 0
  %429 = vperm.xlu0 %428, %v123
  %v430 = vpop.permute.xlu0 %429
  %431 = vset.pattern.permute.xlu0 0
  %432 = vperm.xlu0 %431, %v124
  %v433 = vpop.permute.xlu0 %432
  %434 = vset.pattern.permute.xlu0 0
  %435 = vperm.xlu0 %434, %v125
  %v436 = vpop.permute.xlu0 %435
  %437 = vset.pattern.permute.xlu0 0
  %438 = vperm.xlu0 %437, %v126
  %v439 = vpop.permute.xlu0 %438
  %440 = vset.pattern.permute.xlu0 0
  %441 = vperm.xlu0 %440, %v127
  %v442 = vpop.permute.xlu0 %441
  %443 = vset.pattern.permute.xlu0 0
  %444 = vperm.xlu0 %443, %v128
  %v445 = vpop.permute.xlu0 %444
  %446 = vset.pattern.permute.xlu0 0
  %447 = vperm.xlu0 %446, %v129
  %v448 = vpop.permute.xlu0 %447
  %449 = vset.pattern.permute.xlu0 0
  %450 = vperm.xlu0 %449, %v130
  %v451 = vpop.permute.xlu0 %450
  %452 = vset.pattern.permute.xlu0 0
  %453 = vperm.xlu0 %452, %v131
  %v454 = vpop.permute.xlu0 %453
  %vm455 = vcmp.eq.s32.totalorder %v265, %v262
  %vm456 = vcmp.eq.s32.totalorder %v268, %v262
  %vm457 = vcmp.eq.s32.totalorder %v271, %v262
  %vm458 = vcmp.eq.s32.totalorder %v274, %v262
  %vm459 = vcmp.eq.s32.totalorder %v277, %v262
  %vm460 = vcmp.eq.s32.totalorder %v280, %v262
  %vm461 = vcmp.eq.s32.totalorder %v283, %v262
  %vm462 = vcmp.eq.s32.totalorder %v286, %v262
  %vm463 = vcmp.eq.s32.totalorder %v289, %v262
  %vm464 = vcmp.eq.s32.totalorder %v292, %v262
  %vm465 = vcmp.eq.s32.totalorder %v295, %v262
  %vm466 = vcmp.eq.s32.totalorder %v298, %v262
  %vm467 = vcmp.eq.s32.totalorder %v301, %v262
  %vm468 = vcmp.eq.s32.totalorder %v304, %v262
  %vm469 = vcmp.eq.s32.totalorder %v307, %v262
  %vm470 = vcmp.eq.s32.totalorder %v310, %v262
  %vm471 = vcmp.eq.s32.totalorder %v313, %v262
  %vm472 = vcmp.eq.s32.totalorder %v316, %v262
  %vm473 = vcmp.eq.s32.totalorder %v319, %v262
  %vm474 = vcmp.eq.s32.totalorder %v322, %v262
  %vm475 = vcmp.eq.s32.totalorder %v325, %v262
  %vm476 = vcmp.eq.s32.totalorder %v328, %v262
  %vm477 = vcmp.eq.s32.totalorder %v331, %v262
  %vm478 = vcmp.eq.s32.totalorder %v334, %v262
  %vm479 = vcmp.eq.s32.totalorder %v337, %v262
  %vm480 = vcmp.eq.s32.totalorder %v340, %v262
  %vm481 = vcmp.eq.s32.totalorder %v343, %v262
  %vm482 = vcmp.eq.s32.totalorder %v346, %v262
  %vm483 = vcmp.eq.s32.totalorder %v349, %v262
  %vm484 = vcmp.eq.s32.totalorder %v352, %v262
  %vm485 = vcmp.eq.s32.totalorder %v355, %v262
  %vm486 = vcmp.eq.s32.totalorder %v358, %v262
  %vm487 = vcmp.eq.s32.totalorder %v361, %v262
  %vm488 = vcmp.eq.s32.totalorder %v364, %v262
  %vm489 = vcmp.eq.s32.totalorder %v367, %v262
  %vm490 = vcmp.eq.s32.totalorder %v370, %v262
  %vm491 = vcmp.eq.s32.totalorder %v373, %v262
  %vm492 = vcmp.eq.s32.totalorder %v376, %v262
  %vm493 = vcmp.eq.s32.totalorder %v379, %v262
  %vm494 = vcmp.eq.s32.totalorder %v382, %v262
  %vm495 = vcmp.eq.s32.totalorder %v385, %v262
  %vm496 = vcmp.eq.s32.totalorder %v388, %v262
  %vm497 = vcmp.eq.s32.totalorder %v391, %v262
  %vm498 = vcmp.eq.s32.totalorder %v394, %v262
  %vm499 = vcmp.eq.s32.totalorder %v397, %v262
  %vm500 = vcmp.eq.s32.totalorder %v400, %v262
  %vm501 = vcmp.eq.s32.totalorder %v403, %v262
  %vm502 = vcmp.eq.s32.totalorder %v406, %v262
  %vm503 = vcmp.eq.s32.totalorder %v409, %v262
  %vm504 = vcmp.eq.s32.totalorder %v412, %v262
  %vm505 = vcmp.eq.s32.totalorder %v415, %v262
  %vm506 = vcmp.eq.s32.totalorder %v418, %v262
  %vm507 = vcmp.eq.s32.totalorder %v421, %v262
  %vm508 = vcmp.eq.s32.totalorder %v424, %v262
  %vm509 = vcmp.eq.s32.totalorder %v427, %v262
  %vm510 = vcmp.eq.s32.totalorder %v430, %v262
  %vm511 = vcmp.eq.s32.totalorder %v433, %v262
  %vm512 = vcmp.eq.s32.totalorder %v436, %v262
  %vm513 = vcmp.eq.s32.totalorder %v439, %v262
  %vm514 = vcmp.eq.s32.totalorder %v442, %v262
  %vm515 = vcmp.eq.s32.totalorder %v445, %v262
  %vm516 = vcmp.eq.s32.totalorder %v448, %v262
  %vm517 = vcmp.eq.s32.totalorder %v451, %v262
  %vm518 = vcmp.eq.s32.totalorder %v454, %v262
  %v519 = vsel %vm455, 1.0, 0.0
  %v520 = vsel %vm456, 1.0, 0.0
  %v521 = vsel %vm457, 1.0, 0.0
  %v522 = vsel %vm458, 1.0, 0.0
  %v523 = vsel %vm459, 1.0, 0.0
  %v524 = vsel %vm460, 1.0, 0.0
  %v525 = vsel %vm461, 1.0, 0.0
  %v526 = vsel %vm462, 1.0, 0.0
  %v527 = vsel %vm463, 1.0, 0.0
  %v528 = vsel %vm464, 1.0, 0.0
  %v529 = vsel %vm465, 1.0, 0.0
  %v530 = vsel %vm466, 1.0, 0.0
  %v531 = vsel %vm467, 1.0, 0.0
  %v532 = vsel %vm468, 1.0, 0.0
  %v533 = vsel %vm469, 1.0, 0.0
  %v534 = vsel %vm470, 1.0, 0.0
  %v535 = vsel %vm471, 1.0, 0.0
  %v536 = vsel %vm472, 1.0, 0.0
  %v537 = vsel %vm473, 1.0, 0.0
  %v538 = vsel %vm474, 1.0, 0.0
  %v539 = vsel %vm475, 1.0, 0.0
  %v540 = vsel %vm476, 1.0, 0.0
  %v541 = vsel %vm477, 1.0, 0.0
  %v542 = vsel %vm478, 1.0, 0.0
  %v543 = vsel %vm479, 1.0, 0.0
  %v544 = vsel %vm480, 1.0, 0.0
  %v545 = vsel %vm481, 1.0, 0.0
  %v546 = vsel %vm482, 1.0, 0.0
  %v547 = vsel %vm483, 1.0, 0.0
  %v548 = vsel %vm484, 1.0, 0.0
  %v549 = vsel %vm485, 1.0, 0.0
  %v550 = vsel %vm486, 1.0, 0.0
  %v551 = vsel %vm487, 1.0, 0.0
  %v552 = vsel %vm488, 1.0, 0.0
  %v553 = vsel %vm489, 1.0, 0.0
  %v554 = vsel %vm490, 1.0, 0.0
  %v555 = vsel %vm491, 1.0, 0.0
  %v556 = vsel %vm492, 1.0, 0.0
  %v557 = vsel %vm493, 1.0, 0.0
  %v558 = vsel %vm494, 1.0, 0.0
  %v559 = vsel %vm495, 1.0, 0.0
  %v560 = vsel %vm496, 1.0, 0.0
  %v561 = vsel %vm497, 1.0, 0.0
  %v562 = vsel %vm498, 1.0, 0.0
  %v563 = vsel %vm499, 1.0, 0.0
  %v564 = vsel %vm500, 1.0, 0.0
  %v565 = vsel %vm501, 1.0, 0.0
  %v566 = vsel %vm502, 1.0, 0.0
  %v567 = vsel %vm503, 1.0, 0.0
  %v568 = vsel %vm504, 1.0, 0.0
  %v569 = vsel %vm505, 1.0, 0.0
  %v570 = vsel %vm506, 1.0, 0.0
  %v571 = vsel %vm507, 1.0, 0.0
  %v572 = vsel %vm508, 1.0, 0.0
  %v573 = vsel %vm509, 1.0, 0.0
  %v574 = vsel %vm510, 1.0, 0.0
  %v575 = vsel %vm511, 1.0, 0.0
  %v576 = vsel %vm512, 1.0, 0.0
  %v577 = vsel %vm513, 1.0, 0.0
  %v578 = vsel %vm514, 1.0, 0.0
  %v579 = vsel %vm515, 1.0, 0.0
  %v580 = vsel %vm516, 1.0, 0.0
  %v581 = vsel %vm517, 1.0, 0.0
  %v582 = vsel %vm518, 1.0, 0.0
  %v583 = vpack.c.bf16 %v520, %v519
  %v584 = vpack.c.bf16 %v522, %v521
  %v585 = vpack.c.bf16 %v524, %v523
  %v586 = vpack.c.bf16 %v526, %v525
  %v587 = vpack.c.bf16 %v528, %v527
  %v588 = vpack.c.bf16 %v530, %v529
  %v589 = vpack.c.bf16 %v532, %v531
  %v590 = vpack.c.bf16 %v534, %v533
  %v591 = vpack.c.bf16 %v536, %v535
  %v592 = vpack.c.bf16 %v538, %v537
  %v593 = vpack.c.bf16 %v540, %v539
  %v594 = vpack.c.bf16 %v542, %v541
  %v595 = vpack.c.bf16 %v544, %v543
  %v596 = vpack.c.bf16 %v546, %v545
  %v597 = vpack.c.bf16 %v548, %v547
  %v598 = vpack.c.bf16 %v550, %v549
  %v599 = vpack.c.bf16 %v552, %v551
  %v600 = vpack.c.bf16 %v554, %v553
  %v601 = vpack.c.bf16 %v556, %v555
  %v602 = vpack.c.bf16 %v558, %v557
  %v603 = vpack.c.bf16 %v560, %v559
  %v604 = vpack.c.bf16 %v562, %v561
  %v605 = vpack.c.bf16 %v564, %v563
  %v606 = vpack.c.bf16 %v566, %v565
  %v607 = vpack.c.bf16 %v568, %v567
  %v608 = vpack.c.bf16 %v570, %v569
  %v609 = vpack.c.bf16 %v572, %v571
  %v610 = vpack.c.bf16 %v574, %v573
  %v611 = vpack.c.bf16 %v576, %v575
  %v612 = vpack.c.bf16 %v578, %v577
  %v613 = vpack.c.bf16 %v580, %v579
  %v614 = vpack.c.bf16 %v582, %v581
  %v615 = vmul.u32 %v262, 8
  %v616 = vsub.s32 %v197, %v615
  %v617 = vsub.s32 %v198, %v615
  %v618 = vsub.s32 %v199, %v615
  %v619 = vsub.s32 %v200, %v615
  %v620 = vsub.s32 %v201, %v615
  %v621 = vsub.s32 %v202, %v615
  %v622 = vsub.s32 %v203, %v615
  %v623 = vsub.s32 %v204, %v615
  %v624 = vsub.s32 %v205, %v615
  %v625 = vsub.s32 %v206, %v615
  %v626 = vsub.s32 %v207, %v615
  %v627 = vsub.s32 %v208, %v615
  %v628 = vsub.s32 %v209, %v615
  %v629 = vsub.s32 %v210, %v615
  %v630 = vsub.s32 %v211, %v615
  %v631 = vsub.s32 %v212, %v615
  %v632 = vsub.s32 %v213, %v615
  %v633 = vsub.s32 %v214, %v615
  %v634 = vsub.s32 %v215, %v615
  %v635 = vsub.s32 %v216, %v615
  %v636 = vsub.s32 %v217, %v615
  %v637 = vsub.s32 %v218, %v615
  %v638 = vsub.s32 %v219, %v615
  %v639 = vsub.s32 %v220, %v615
  %v640 = vsub.s32 %v221, %v615
  %v641 = vsub.s32 %v222, %v615
  %v642 = vsub.s32 %v223, %v615
  %v643 = vsub.s32 %v224, %v615
  %v644 = vsub.s32 %v225, %v615
  %v645 = vsub.s32 %v226, %v615
  %v646 = vsub.s32 %v227, %v615
  %v647 = vsub.s32 %v228, %v615
  %v648 = vsub.s32 %v229, %v615
  %v649 = vsub.s32 %v230, %v615
  %v650 = vsub.s32 %v231, %v615
  %v651 = vsub.s32 %v232, %v615
  %v652 = vsub.s32 %v233, %v615
  %v653 = vsub.s32 %v234, %v615
  %v654 = vsub.s32 %v235, %v615
  %v655 = vsub.s32 %v236, %v615
  %v656 = vsub.s32 %v237, %v615
  %v657 = vsub.s32 %v238, %v615
  %v658 = vsub.s32 %v239, %v615
  %v659 = vsub.s32 %v240, %v615
  %v660 = vsub.s32 %v241, %v615
  %v661 = vsub.s32 %v242, %v615
  %v662 = vsub.s32 %v243, %v615
  %v663 = vsub.s32 %v244, %v615
  %v664 = vsub.s32 %v245, %v615
  %v665 = vsub.s32 %v246, %v615
  %v666 = vsub.s32 %v247, %v615
  %v667 = vsub.s32 %v248, %v615
  %v668 = vsub.s32 %v249, %v615
  %v669 = vsub.s32 %v250, %v615
  %v670 = vsub.s32 %v251, %v615
  %v671 = vsub.s32 %v252, %v615
  %v672 = vsub.s32 %v253, %v615
  %v673 = vsub.s32 %v254, %v615
  %v674 = vsub.s32 %v255, %v615
  %v675 = vsub.s32 %v256, %v615
  %v676 = vsub.s32 %v257, %v615
  %v677 = vsub.s32 %v258, %v615
  %v678 = vsub.s32 %v259, %v615
  %v679 = vsub.s32 %v260, %v615
  %vm680 = vcmp.ge.s32.totalorder %v616, 0
  %vm681 = vcmp.ge.s32.totalorder %v617, 0
  %vm682 = vcmp.ge.s32.totalorder %v618, 0
  %vm683 = vcmp.ge.s32.totalorder %v619, 0
  %vm684 = vcmp.ge.s32.totalorder %v620, 0
  %vm685 = vcmp.ge.s32.totalorder %v621, 0
  %vm686 = vcmp.ge.s32.totalorder %v622, 0
  %vm687 = vcmp.ge.s32.totalorder %v623, 0
  %vm688 = vcmp.ge.s32.totalorder %v624, 0
  %vm689 = vcmp.ge.s32.totalorder %v625, 0
  %vm690 = vcmp.ge.s32.totalorder %v626, 0
  %vm691 = vcmp.ge.s32.totalorder %v627, 0
  %vm692 = vcmp.ge.s32.totalorder %v628, 0
  %vm693 = vcmp.ge.s32.totalorder %v629, 0
  %vm694 = vcmp.ge.s32.totalorder %v630, 0
  %vm695 = vcmp.ge.s32.totalorder %v631, 0
  %vm696 = vcmp.ge.s32.totalorder %v632, 0
  %vm697 = vcmp.ge.s32.totalorder %v633, 0
  %vm698 = vcmp.ge.s32.totalorder %v634, 0
  %vm699 = vcmp.ge.s32.totalorder %v635, 0
  %vm700 = vcmp.ge.s32.totalorder %v636, 0
  %vm701 = vcmp.ge.s32.totalorder %v637, 0
  %vm702 = vcmp.ge.s32.totalorder %v638, 0
  %vm703 = vcmp.ge.s32.totalorder %v639, 0
  %vm704 = vcmp.ge.s32.totalorder %v640, 0
  %vm705 = vcmp.ge.s32.totalorder %v641, 0
  %vm706 = vcmp.ge.s32.totalorder %v642, 0
  %vm707 = vcmp.ge.s32.totalorder %v643, 0
  %vm708 = vcmp.ge.s32.totalorder %v644, 0
  %vm709 = vcmp.ge.s32.totalorder %v645, 0
  %vm710 = vcmp.ge.s32.totalorder %v646, 0
  %vm711 = vcmp.ge.s32.totalorder %v647, 0
  %vm712 = vcmp.ge.s32.totalorder %v648, 0
  %vm713 = vcmp.ge.s32.totalorder %v649, 0
  %vm714 = vcmp.ge.s32.totalorder %v650, 0
  %vm715 = vcmp.ge.s32.totalorder %v651, 0
  %vm716 = vcmp.ge.s32.totalorder %v652, 0
  %vm717 = vcmp.ge.s32.totalorder %v653, 0
  %vm718 = vcmp.ge.s32.totalorder %v654, 0
  %vm719 = vcmp.ge.s32.totalorder %v655, 0
  %vm720 = vcmp.ge.s32.totalorder %v656, 0
  %vm721 = vcmp.ge.s32.totalorder %v657, 0
  %vm722 = vcmp.ge.s32.totalorder %v658, 0
  %vm723 = vcmp.ge.s32.totalorder %v659, 0
  %vm724 = vcmp.ge.s32.totalorder %v660, 0
  %vm725 = vcmp.ge.s32.totalorder %v661, 0
  %vm726 = vcmp.ge.s32.totalorder %v662, 0
  %vm727 = vcmp.ge.s32.totalorder %v663, 0
  %vm728 = vcmp.ge.s32.totalorder %v664, 0
  %vm729 = vcmp.ge.s32.totalorder %v665, 0
  %vm730 = vcmp.ge.s32.totalorder %v666, 0
  %vm731 = vcmp.ge.s32.totalorder %v667, 0
  %vm732 = vcmp.ge.s32.totalorder %v668, 0
  %vm733 = vcmp.ge.s32.totalorder %v669, 0
  %vm734 = vcmp.ge.s32.totalorder %v670, 0
  %vm735 = vcmp.ge.s32.totalorder %v671, 0
  %vm736 = vcmp.ge.s32.totalorder %v672, 0
  %vm737 = vcmp.ge.s32.totalorder %v673, 0
  %vm738 = vcmp.ge.s32.totalorder %v674, 0
  %vm739 = vcmp.ge.s32.totalorder %v675, 0
  %vm740 = vcmp.ge.s32.totalorder %v676, 0
  %vm741 = vcmp.ge.s32.totalorder %v677, 0
  %vm742 = vcmp.ge.s32.totalorder %v678, 0
  %vm743 = vcmp.ge.s32.totalorder %v679, 0
  %vm744 = vcmp.lt.s32.totalorder %v616, 8
  %vm745 = vcmp.lt.s32.totalorder %v617, 8
  %vm746 = vcmp.lt.s32.totalorder %v618, 8
  %vm747 = vcmp.lt.s32.totalorder %v619, 8
  %vm748 = vcmp.lt.s32.totalorder %v620, 8
  %vm749 = vcmp.lt.s32.totalorder %v621, 8
  %vm750 = vcmp.lt.s32.totalorder %v622, 8
  %vm751 = vcmp.lt.s32.totalorder %v623, 8
  %vm752 = vcmp.lt.s32.totalorder %v624, 8
  %vm753 = vcmp.lt.s32.totalorder %v625, 8
  %vm754 = vcmp.lt.s32.totalorder %v626, 8
  %vm755 = vcmp.lt.s32.totalorder %v627, 8
  %vm756 = vcmp.lt.s32.totalorder %v628, 8
  %vm757 = vcmp.lt.s32.totalorder %v629, 8
  %vm758 = vcmp.lt.s32.totalorder %v630, 8
  %vm759 = vcmp.lt.s32.totalorder %v631, 8
  %vm760 = vcmp.lt.s32.totalorder %v632, 8
  %vm761 = vcmp.lt.s32.totalorder %v633, 8
  %vm762 = vcmp.lt.s32.totalorder %v634, 8
  %vm763 = vcmp.lt.s32.totalorder %v635, 8
  %vm764 = vcmp.lt.s32.totalorder %v636, 8
  %vm765 = vcmp.lt.s32.totalorder %v637, 8
  %vm766 = vcmp.lt.s32.totalorder %v638, 8
  %vm767 = vcmp.lt.s32.totalorder %v639, 8
  %vm768 = vcmp.lt.s32.totalorder %v640, 8
  %vm769 = vcmp.lt.s32.totalorder %v641, 8
  %vm770 = vcmp.lt.s32.totalorder %v642, 8
  %vm771 = vcmp.lt.s32.totalorder %v643, 8
  %vm772 = vcmp.lt.s32.totalorder %v644, 8
  %vm773 = vcmp.lt.s32.totalorder %v645, 8
  %vm774 = vcmp.lt.s32.totalorder %v646, 8
  %vm775 = vcmp.lt.s32.totalorder %v647, 8
  %vm776 = vcmp.lt.s32.totalorder %v648, 8
  %vm777 = vcmp.lt.s32.totalorder %v649, 8
  %vm778 = vcmp.lt.s32.totalorder %v650, 8
  %vm779 = vcmp.lt.s32.totalorder %v651, 8
  %vm780 = vcmp.lt.s32.totalorder %v652, 8
  %vm781 = vcmp.lt.s32.totalorder %v653, 8
  %vm782 = vcmp.lt.s32.totalorder %v654, 8
  %vm783 = vcmp.lt.s32.totalorder %v655, 8
  %vm784 = vcmp.lt.s32.totalorder %v656, 8
  %vm785 = vcmp.lt.s32.totalorder %v657, 8
  %vm786 = vcmp.lt.s32.totalorder %v658, 8
  %vm787 = vcmp.lt.s32.totalorder %v659, 8
  %vm788 = vcmp.lt.s32.totalorder %v660, 8
  %vm789 = vcmp.lt.s32.totalorder %v661, 8
  %vm790 = vcmp.lt.s32.totalorder %v662, 8
  %vm791 = vcmp.lt.s32.totalorder %v663, 8
  %vm792 = vcmp.lt.s32.totalorder %v664, 8
  %vm793 = vcmp.lt.s32.totalorder %v665, 8
  %vm794 = vcmp.lt.s32.totalorder %v666, 8
  %vm795 = vcmp.lt.s32.totalorder %v667, 8
  %vm796 = vcmp.lt.s32.totalorder %v668, 8
  %vm797 = vcmp.lt.s32.totalorder %v669, 8
  %vm798 = vcmp.lt.s32.totalorder %v670, 8
  %vm799 = vcmp.lt.s32.totalorder %v671, 8
  %vm800 = vcmp.lt.s32.totalorder %v672, 8
  %vm801 = vcmp.lt.s32.totalorder %v673, 8
  %vm802 = vcmp.lt.s32.totalorder %v674, 8
  %vm803 = vcmp.lt.s32.totalorder %v675, 8
  %vm804 = vcmp.lt.s32.totalorder %v676, 8
  %vm805 = vcmp.lt.s32.totalorder %v677, 8
  %vm806 = vcmp.lt.s32.totalorder %v678, 8
  %vm807 = vcmp.lt.s32.totalorder %v679, 8
  %vm808 = vmand %vm680, %vm744
  %vm809 = vmand %vm681, %vm745
  %vm810 = vmand %vm682, %vm746
  %vm811 = vmand %vm683, %vm747
  %vm812 = vmand %vm684, %vm748
  %vm813 = vmand %vm685, %vm749
  %vm814 = vmand %vm686, %vm750
  %vm815 = vmand %vm687, %vm751
  %vm816 = vmand %vm688, %vm752
  %vm817 = vmand %vm689, %vm753
  %vm818 = vmand %vm690, %vm754
  %vm819 = vmand %vm691, %vm755
  %vm820 = vmand %vm692, %vm756
  %vm821 = vmand %vm693, %vm757
  %vm822 = vmand %vm694, %vm758
  %vm823 = vmand %vm695, %vm759
  %vm824 = vmand %vm696, %vm760
  %vm825 = vmand %vm697, %vm761
  %vm826 = vmand %vm698, %vm762
  %vm827 = vmand %vm699, %vm763
  %vm828 = vmand %vm700, %vm764
  %vm829 = vmand %vm701, %vm765
  %vm830 = vmand %vm702, %vm766
  %vm831 = vmand %vm703, %vm767
  %vm832 = vmand %vm704, %vm768
  %vm833 = vmand %vm705, %vm769
  %vm834 = vmand %vm706, %vm770
  %vm835 = vmand %vm707, %vm771
  %vm836 = vmand %vm708, %vm772
  %vm837 = vmand %vm709, %vm773
  %vm838 = vmand %vm710, %vm774
  %vm839 = vmand %vm711, %vm775
  %vm840 = vmand %vm712, %vm776
  %vm841 = vmand %vm713, %vm777
  %vm842 = vmand %vm714, %vm778
  %vm843 = vmand %vm715, %vm779
  %vm844 = vmand %vm716, %vm780
  %vm845 = vmand %vm717, %vm781
  %vm846 = vmand %vm718, %vm782
  %vm847 = vmand %vm719, %vm783
  %vm848 = vmand %vm720, %vm784
  %vm849 = vmand %vm721, %vm785
  %vm850 = vmand %vm722, %vm786
  %vm851 = vmand %vm723, %vm787
  %vm852 = vmand %vm724, %vm788
  %vm853 = vmand %vm725, %vm789
  %vm854 = vmand %vm726, %vm790
  %vm855 = vmand %vm727, %vm791
  %vm856 = vmand %vm728, %vm792
  %vm857 = vmand %vm729, %vm793
  %vm858 = vmand %vm730, %vm794
  %vm859 = vmand %vm731, %vm795
  %vm860 = vmand %vm732, %vm796
  %vm861 = vmand %vm733, %vm797
  %vm862 = vmand %vm734, %vm798
  %vm863 = vmand %vm735, %vm799
  %vm864 = vmand %vm736, %vm800
  %vm865 = vmand %vm737, %vm801
  %vm866 = vmand %vm738, %vm802
  %vm867 = vmand %vm739, %vm803
  %vm868 = vmand %vm740, %vm804
  %vm869 = vmand %vm741, %vm805
  %vm870 = vmand %vm742, %vm806
  %vm871 = vmand %vm743, %vm807
  %v872 = vsel %vm808, 1.0, 0.0
  %v873 = vsel %vm809, 1.0, 0.0
  %v874 = vsel %vm810, 1.0, 0.0
  %v875 = vsel %vm811, 1.0, 0.0
  %v876 = vsel %vm812, 1.0, 0.0
  %v877 = vsel %vm813, 1.0, 0.0
  %v878 = vsel %vm814, 1.0, 0.0
  %v879 = vsel %vm815, 1.0, 0.0
  %v880 = vsel %vm816, 1.0, 0.0
  %v881 = vsel %vm817, 1.0, 0.0
  %v882 = vsel %vm818, 1.0, 0.0
  %v883 = vsel %vm819, 1.0, 0.0
  %v884 = vsel %vm820, 1.0, 0.0
  %v885 = vsel %vm821, 1.0, 0.0
  %v886 = vsel %vm822, 1.0, 0.0
  %v887 = vsel %vm823, 1.0, 0.0
  %v888 = vsel %vm824, 1.0, 0.0
  %v889 = vsel %vm825, 1.0, 0.0
  %v890 = vsel %vm826, 1.0, 0.0
  %v891 = vsel %vm827, 1.0, 0.0
  %v892 = vsel %vm828, 1.0, 0.0
  %v893 = vsel %vm829, 1.0, 0.0
  %v894 = vsel %vm830, 1.0, 0.0
  %v895 = vsel %vm831, 1.0, 0.0
  %v896 = vsel %vm832, 1.0, 0.0
  %v897 = vsel %vm833, 1.0, 0.0
  %v898 = vsel %vm834, 1.0, 0.0
  %v899 = vsel %vm835, 1.0, 0.0
  %v900 = vsel %vm836, 1.0, 0.0
  %v901 = vsel %vm837, 1.0, 0.0
  %v902 = vsel %vm838, 1.0, 0.0
  %v903 = vsel %vm839, 1.0, 0.0
  %v904 = vsel %vm840, 1.0, 0.0
  %v905 = vsel %vm841, 1.0, 0.0
  %v906 = vsel %vm842, 1.0, 0.0
  %v907 = vsel %vm843, 1.0, 0.0
  %v908 = vsel %vm844, 1.0, 0.0
  %v909 = vsel %vm845, 1.0, 0.0
  %v910 = vsel %vm846, 1.0, 0.0
  %v911 = vsel %vm847, 1.0, 0.0
  %v912 = vsel %vm848, 1.0, 0.0
  %v913 = vsel %vm849, 1.0, 0.0
  %v914 = vsel %vm850, 1.0, 0.0
  %v915 = vsel %vm851, 1.0, 0.0
  %v916 = vsel %vm852, 1.0, 0.0
  %v917 = vsel %vm853, 1.0, 0.0
  %v918 = vsel %vm854, 1.0, 0.0
  %v919 = vsel %vm855, 1.0, 0.0
  %v920 = vsel %vm856, 1.0, 0.0
  %v921 = vsel %vm857, 1.0, 0.0
  %v922 = vsel %vm858, 1.0, 0.0
  %v923 = vsel %vm859, 1.0, 0.0
  %v924 = vsel %vm860, 1.0, 0.0
  %v925 = vsel %vm861, 1.0, 0.0
  %v926 = vsel %vm862, 1.0, 0.0
  %v927 = vsel %vm863, 1.0, 0.0
  %v928 = vsel %vm864, 1.0, 0.0
  %v929 = vsel %vm865, 1.0, 0.0
  %v930 = vsel %vm866, 1.0, 0.0
  %v931 = vsel %vm867, 1.0, 0.0
  %v932 = vsel %vm868, 1.0, 0.0
  %v933 = vsel %vm869, 1.0, 0.0
  %v934 = vsel %vm870, 1.0, 0.0
  %v935 = vsel %vm871, 1.0, 0.0
  %v936 = vpack.c.bf16 %v873, %v872
  %v937 = vpack.c.bf16 %v875, %v874
  %v938 = vpack.c.bf16 %v877, %v876
  %v939 = vpack.c.bf16 %v879, %v878
  %v940 = vpack.c.bf16 %v881, %v880
  %v941 = vpack.c.bf16 %v883, %v882
  %v942 = vpack.c.bf16 %v885, %v884
  %v943 = vpack.c.bf16 %v887, %v886
  %v944 = vpack.c.bf16 %v889, %v888
  %v945 = vpack.c.bf16 %v891, %v890
  %v946 = vpack.c.bf16 %v893, %v892
  %v947 = vpack.c.bf16 %v895, %v894
  %v948 = vpack.c.bf16 %v897, %v896
  %v949 = vpack.c.bf16 %v899, %v898
  %v950 = vpack.c.bf16 %v901, %v900
  %v951 = vpack.c.bf16 %v903, %v902
  %v952 = vpack.c.bf16 %v905, %v904
  %v953 = vpack.c.bf16 %v907, %v906
  %v954 = vpack.c.bf16 %v909, %v908
  %v955 = vpack.c.bf16 %v911, %v910
  %v956 = vpack.c.bf16 %v913, %v912
  %v957 = vpack.c.bf16 %v915, %v914
  %v958 = vpack.c.bf16 %v917, %v916
  %v959 = vpack.c.bf16 %v919, %v918
  %v960 = vpack.c.bf16 %v921, %v920
  %v961 = vpack.c.bf16 %v923, %v922
  %v962 = vpack.c.bf16 %v925, %v924
  %v963 = vpack.c.bf16 %v927, %v926
  %v964 = vpack.c.bf16 %v929, %v928
  %v965 = vpack.c.bf16 %v931, %v930
  %v966 = vpack.c.bf16 %v933, %v932
  %v967 = vpack.c.bf16 %v935, %v934
  %v968 = vadd.s32 %v262, 128
  %v969 = vadd.s32 %v262, 256
  %v970 = vadd.s32 %v262, 384
  %v971 = vmul.u32 %v197, 8
  %v972 = vmul.u32 %v198, 8
  %v973 = vmul.u32 %v199, 8
  %v974 = vmul.u32 %v200, 8
  %v975 = vmul.u32 %v201, 8
  %v976 = vmul.u32 %v202, 8
  %v977 = vmul.u32 %v203, 8
  %v978 = vmul.u32 %v204, 8
  %v979 = vsub.s32 %v262, %v971
  %v980 = vsub.s32 %v968, %v971
  %v981 = vsub.s32 %v969, %v971
  %v982 = vsub.s32 %v970, %v971
  %v983 = vsub.s32 %v262, %v972
  %v984 = vsub.s32 %v968, %v972
  %v985 = vsub.s32 %v969, %v972
  %v986 = vsub.s32 %v970, %v972
  %v987 = vsub.s32 %v262, %v973
  %v988 = vsub.s32 %v968, %v973
  %v989 = vsub.s32 %v969, %v973
  %v990 = vsub.s32 %v970, %v973
  %v991 = vsub.s32 %v262, %v974
  %v992 = vsub.s32 %v968, %v974
  %v993 = vsub.s32 %v969, %v974
  %v994 = vsub.s32 %v970, %v974
  %v995 = vsub.s32 %v262, %v975
  %v996 = vsub.s32 %v968, %v975
  %v997 = vsub.s32 %v969, %v975
  %v998 = vsub.s32 %v970, %v975
  %v999 = vsub.s32 %v262, %v976
  %v1000 = vsub.s32 %v968, %v976
  %v1001 = vsub.s32 %v969, %v976
  %v1002 = vsub.s32 %v970, %v976
  %v1003 = vsub.s32 %v262, %v977
  %v1004 = vsub.s32 %v968, %v977
  %v1005 = vsub.s32 %v969, %v977
  %v1006 = vsub.s32 %v970, %v977
  %v1007 = vsub.s32 %v262, %v978
  %v1008 = vsub.s32 %v968, %v978
  %v1009 = vsub.s32 %v969, %v978
  %v1010 = vsub.s32 %v970, %v978
  %vm1011 = vcmp.ge.s32.totalorder %v979, 0
  %vm1012 = vcmp.ge.s32.totalorder %v980, 0
  %vm1013 = vcmp.ge.s32.totalorder %v981, 0
  %vm1014 = vcmp.ge.s32.totalorder %v982, 0
  %vm1015 = vcmp.ge.s32.totalorder %v983, 0
  %vm1016 = vcmp.ge.s32.totalorder %v984, 0
  %vm1017 = vcmp.ge.s32.totalorder %v985, 0
  %vm1018 = vcmp.ge.s32.totalorder %v986, 0
  %vm1019 = vcmp.ge.s32.totalorder %v987, 0
  %vm1020 = vcmp.ge.s32.totalorder %v988, 0
  %vm1021 = vcmp.ge.s32.totalorder %v989, 0
  %vm1022 = vcmp.ge.s32.totalorder %v990, 0
  %vm1023 = vcmp.ge.s32.totalorder %v991, 0
  %vm1024 = vcmp.ge.s32.totalorder %v992, 0
  %vm1025 = vcmp.ge.s32.totalorder %v993, 0
  %vm1026 = vcmp.ge.s32.totalorder %v994, 0
  %vm1027 = vcmp.ge.s32.totalorder %v995, 0
  %vm1028 = vcmp.ge.s32.totalorder %v996, 0
  %vm1029 = vcmp.ge.s32.totalorder %v997, 0
  %vm1030 = vcmp.ge.s32.totalorder %v998, 0
  %vm1031 = vcmp.ge.s32.totalorder %v999, 0
  %vm1032 = vcmp.ge.s32.totalorder %v1000, 0
  %vm1033 = vcmp.ge.s32.totalorder %v1001, 0
  %vm1034 = vcmp.ge.s32.totalorder %v1002, 0
  %vm1035 = vcmp.ge.s32.totalorder %v1003, 0
  %vm1036 = vcmp.ge.s32.totalorder %v1004, 0
  %vm1037 = vcmp.ge.s32.totalorder %v1005, 0
  %vm1038 = vcmp.ge.s32.totalorder %v1006, 0
  %vm1039 = vcmp.ge.s32.totalorder %v1007, 0
  %vm1040 = vcmp.ge.s32.totalorder %v1008, 0
  %vm1041 = vcmp.ge.s32.totalorder %v1009, 0
  %vm1042 = vcmp.ge.s32.totalorder %v1010, 0
  %vm1043 = vcmp.lt.s32.totalorder %v979, 8
  %vm1044 = vcmp.lt.s32.totalorder %v980, 8
  %vm1045 = vcmp.lt.s32.totalorder %v981, 8
  %vm1046 = vcmp.lt.s32.totalorder %v982, 8
  %vm1047 = vcmp.lt.s32.totalorder %v983, 8
  %vm1048 = vcmp.lt.s32.totalorder %v984, 8
  %vm1049 = vcmp.lt.s32.totalorder %v985, 8
  %vm1050 = vcmp.lt.s32.totalorder %v986, 8
  %vm1051 = vcmp.lt.s32.totalorder %v987, 8
  %vm1052 = vcmp.lt.s32.totalorder %v988, 8
  %vm1053 = vcmp.lt.s32.totalorder %v989, 8
  %vm1054 = vcmp.lt.s32.totalorder %v990, 8
  %vm1055 = vcmp.lt.s32.totalorder %v991, 8
  %vm1056 = vcmp.lt.s32.totalorder %v992, 8
  %vm1057 = vcmp.lt.s32.totalorder %v993, 8
  %vm1058 = vcmp.lt.s32.totalorder %v994, 8
  %vm1059 = vcmp.lt.s32.totalorder %v995, 8
  %vm1060 = vcmp.lt.s32.totalorder %v996, 8
  %vm1061 = vcmp.lt.s32.totalorder %v997, 8
  %vm1062 = vcmp.lt.s32.totalorder %v998, 8
  %vm1063 = vcmp.lt.s32.totalorder %v999, 8
  %vm1064 = vcmp.lt.s32.totalorder %v1000, 8
  %vm1065 = vcmp.lt.s32.totalorder %v1001, 8
  %vm1066 = vcmp.lt.s32.totalorder %v1002, 8
  %vm1067 = vcmp.lt.s32.totalorder %v1003, 8
  %vm1068 = vcmp.lt.s32.totalorder %v1004, 8
  %vm1069 = vcmp.lt.s32.totalorder %v1005, 8
  %vm1070 = vcmp.lt.s32.totalorder %v1006, 8
  %vm1071 = vcmp.lt.s32.totalorder %v1007, 8
  %vm1072 = vcmp.lt.s32.totalorder %v1008, 8
  %vm1073 = vcmp.lt.s32.totalorder %v1009, 8
  %vm1074 = vcmp.lt.s32.totalorder %v1010, 8
  %vm1075 = vmand %vm1011, %vm1043
  %vm1076 = vmand %vm1012, %vm1044
  %vm1077 = vmand %vm1013, %vm1045
  %vm1078 = vmand %vm1014, %vm1046
  %vm1079 = vmand %vm1015, %vm1047
  %vm1080 = vmand %vm1016, %vm1048
  %vm1081 = vmand %vm1017, %vm1049
  %vm1082 = vmand %vm1018, %vm1050
  %vm1083 = vmand %vm1019, %vm1051
  %vm1084 = vmand %vm1020, %vm1052
  %vm1085 = vmand %vm1021, %vm1053
  %vm1086 = vmand %vm1022, %vm1054
  %vm1087 = vmand %vm1023, %vm1055
  %vm1088 = vmand %vm1024, %vm1056
  %vm1089 = vmand %vm1025, %vm1057
  %vm1090 = vmand %vm1026, %vm1058
  %vm1091 = vmand %vm1027, %vm1059
  %vm1092 = vmand %vm1028, %vm1060
  %vm1093 = vmand %vm1029, %vm1061
  %vm1094 = vmand %vm1030, %vm1062
  %vm1095 = vmand %vm1031, %vm1063
  %vm1096 = vmand %vm1032, %vm1064
  %vm1097 = vmand %vm1033, %vm1065
  %vm1098 = vmand %vm1034, %vm1066
  %vm1099 = vmand %vm1035, %vm1067
  %vm1100 = vmand %vm1036, %vm1068
  %vm1101 = vmand %vm1037, %vm1069
  %vm1102 = vmand %vm1038, %vm1070
  %vm1103 = vmand %vm1039, %vm1071
  %vm1104 = vmand %vm1040, %vm1072
  %vm1105 = vmand %vm1041, %vm1073
  %vm1106 = vmand %vm1042, %vm1074
  %v1107 = vsel %vm1075, 1.0, 0.0
  %v1108 = vsel %vm1076, 1.0, 0.0
  %v1109 = vsel %vm1077, 1.0, 0.0
  %v1110 = vsel %vm1078, 1.0, 0.0
  %v1111 = vsel %vm1079, 1.0, 0.0
  %v1112 = vsel %vm1080, 1.0, 0.0
  %v1113 = vsel %vm1081, 1.0, 0.0
  %v1114 = vsel %vm1082, 1.0, 0.0
  %v1115 = vsel %vm1083, 1.0, 0.0
  %v1116 = vsel %vm1084, 1.0, 0.0
  %v1117 = vsel %vm1085, 1.0, 0.0
  %v1118 = vsel %vm1086, 1.0, 0.0
  %v1119 = vsel %vm1087, 1.0, 0.0
  %v1120 = vsel %vm1088, 1.0, 0.0
  %v1121 = vsel %vm1089, 1.0, 0.0
  %v1122 = vsel %vm1090, 1.0, 0.0
  %v1123 = vsel %vm1091, 1.0, 0.0
  %v1124 = vsel %vm1092, 1.0, 0.0
  %v1125 = vsel %vm1093, 1.0, 0.0
  %v1126 = vsel %vm1094, 1.0, 0.0
  %v1127 = vsel %vm1095, 1.0, 0.0
  %v1128 = vsel %vm1096, 1.0, 0.0
  %v1129 = vsel %vm1097, 1.0, 0.0
  %v1130 = vsel %vm1098, 1.0, 0.0
  %v1131 = vsel %vm1099, 1.0, 0.0
  %v1132 = vsel %vm1100, 1.0, 0.0
  %v1133 = vsel %vm1101, 1.0, 0.0
  %v1134 = vsel %vm1102, 1.0, 0.0
  %v1135 = vsel %vm1103, 1.0, 0.0
  %v1136 = vsel %vm1104, 1.0, 0.0
  %v1137 = vsel %vm1105, 1.0, 0.0
  %v1138 = vsel %vm1106, 1.0, 0.0
  %v1139 = vpack.c.bf16 %v1111, %v1107
  %v1140 = vpack.c.bf16 %v1112, %v1108
  %v1141 = vpack.c.bf16 %v1113, %v1109
  %v1142 = vpack.c.bf16 %v1114, %v1110
  %v1143 = vpack.c.bf16 %v1119, %v1115
  %v1144 = vpack.c.bf16 %v1120, %v1116
  %v1145 = vpack.c.bf16 %v1121, %v1117
  %v1146 = vpack.c.bf16 %v1122, %v1118
  %v1147 = vpack.c.bf16 %v1127, %v1123
  %v1148 = vpack.c.bf16 %v1128, %v1124
  %v1149 = vpack.c.bf16 %v1129, %v1125
  %v1150 = vpack.c.bf16 %v1130, %v1126
  %v1151 = vpack.c.bf16 %v1135, %v1131
  %v1152 = vpack.c.bf16 %v1136, %v1132
  %v1153 = vpack.c.bf16 %v1137, %v1133
  %v1154 = vpack.c.bf16 %v1138, %v1134
  %v1155 = vmul.u32 %v262, 16
  %v1156 = vsub.s32 %v197, %v1155
  %v1157 = vsub.s32 %v198, %v1155
  %v1158 = vsub.s32 %v199, %v1155
  %v1159 = vsub.s32 %v200, %v1155
  %v1160 = vsub.s32 %v201, %v1155
  %v1161 = vsub.s32 %v202, %v1155
  %v1162 = vsub.s32 %v203, %v1155
  %v1163 = vsub.s32 %v204, %v1155
  %vm1164 = vcmp.ge.s32.totalorder %v1156, 0
  %vm1165 = vcmp.ge.s32.totalorder %v1157, 0
  %vm1166 = vcmp.ge.s32.totalorder %v1158, 0
  %vm1167 = vcmp.ge.s32.totalorder %v1159, 0
  %vm1168 = vcmp.ge.s32.totalorder %v1160, 0
  %vm1169 = vcmp.ge.s32.totalorder %v1161, 0
  %vm1170 = vcmp.ge.s32.totalorder %v1162, 0
  %vm1171 = vcmp.ge.s32.totalorder %v1163, 0
  %vm1172 = vcmp.lt.s32.totalorder %v1156, 16
  %vm1173 = vcmp.lt.s32.totalorder %v1157, 16
  %vm1174 = vcmp.lt.s32.totalorder %v1158, 16
  %vm1175 = vcmp.lt.s32.totalorder %v1159, 16
  %vm1176 = vcmp.lt.s32.totalorder %v1160, 16
  %vm1177 = vcmp.lt.s32.totalorder %v1161, 16
  %vm1178 = vcmp.lt.s32.totalorder %v1162, 16
  %vm1179 = vcmp.lt.s32.totalorder %v1163, 16
  %vm1180 = vmand %vm1164, %vm1172
  %vm1181 = vmand %vm1165, %vm1173
  %vm1182 = vmand %vm1166, %vm1174
  %vm1183 = vmand %vm1167, %vm1175
  %vm1184 = vmand %vm1168, %vm1176
  %vm1185 = vmand %vm1169, %vm1177
  %vm1186 = vmand %vm1170, %vm1178
  %vm1187 = vmand %vm1171, %vm1179
  %v1188 = vsel %vm1180, 1.0, 0.0
  %v1189 = vsel %vm1181, 1.0, 0.0
  %v1190 = vsel %vm1182, 1.0, 0.0
  %v1191 = vsel %vm1183, 1.0, 0.0
  %v1192 = vsel %vm1184, 1.0, 0.0
  %v1193 = vsel %vm1185, 1.0, 0.0
  %v1194 = vsel %vm1186, 1.0, 0.0
  %v1195 = vsel %vm1187, 1.0, 0.0
  %v1196 = vpack.c.bf16 %v1189, %v1188
  %v1197 = vpack.c.bf16 %v1191, %v1190
  %v1198 = vpack.c.bf16 %v1193, %v1192
  %v1199 = vpack.c.bf16 %v1195, %v1194
  %v1200 = vmul.u32 %v197, 32
  %v1201 = vsub.s32 %v262, %v1200
  %vm1202 = vcmp.ge.s32.totalorder %v1201, 0
  %vm1203 = vcmp.lt.s32.totalorder %v1201, 32
  %vm1204 = vmand %vm1202, %vm1203
  %v1205 = vsel %vm1204, 1.0, 0.0
  %v1206 = vpack.c.bf16 %v1205, %v1205
  %v1207 = vld [vmem:[%s3] sm:$0xf]
  %v1208 = vld [vmem:[%s3 + $0x4] sm:$0xf]
  %v1209 = vld [vmem:[%s3 + $0x8] sm:$0xf]
  %v1210 = vld [vmem:[%s3 + $0xc] sm:$0xf]
  %v1211 = vpack.c.bf16 %v61, %v60
  %v1212 = vpack.c.bf16 %v63, %v62
  %v1213 = vpack.c.bf16 %v65, %v64
  %v1214 = vpack.c.bf16 %v67, %v66
  %v1215 = vld [vmem:[%s4] sm:$0x1]
  %v1217 = vlaneseq
  %v1218 = vshrl.u32 %v1217, 7
  %v1219 = vsub.s32 0, %v1218
  %v1220 = vrot.slane %v1215, %v1219
  %v1226 = vunpack.c.l.b16 %v1207
  %v1227 = vunpack.c.l.b16 %v1208
  %v1228 = vunpack.c.l.b16 %v1209
  %v1229 = vunpack.c.l.b16 %v1210
  %v1230 = vpack.c.b16 %v1227, %v1226
  %v1231 = vpack.c.b16 %v1229, %v1228
  %vm1234 = vcmask 261120
  %v1236 = vsel %vm1234, %v1211, 0
  %v1239 = vsel %vm1234, %v1212, 0
  %v1242 = vsel %vm1234, %v1213, 0
  %v1245 = vsel %vm1234, %v1214, 0
  %1247 = vmatprep.subr.bf16.mxu0 0
  %1248 = vmatpush1.bf16.msra.mxu0 %v1230
  %1249 = vmatprep.subr.bf16.mxu0 0
  %1250 = vmatpush1.bf16.msra.mxu0 %v1231
  %1251 = vmatprep.subr.bf16.mxu0 0
  %1252 = vmatpush1.bf16.msra.mxu0 0
  %1253 = vmatprep.subr.bf16.mxu0 0
  %1254 = vmatpush1.bf16.msra.mxu0 0
  %1255 = vmatprep.subr.bf16.mxu0 0
  %1256 = vmatpush1.bf16.msra.mxu0 0
  %1257 = vmatprep.subr.bf16.mxu0 0
  %1258 = vmatpush1.bf16.msra.mxu0 0
  %1259 = vmatprep.subr.bf16.mxu0 0
  %1260 = vmatpush1.bf16.msra.mxu0 0
  %1261 = vmatprep.subr.bf16.mxu0 0
  %1262 = vmatpush1.bf16.msra.mxu0 0
  %1263 = vmatprep.subr.bf16.mxu0 0
  %1264 = vmatpush1.bf16.msra.mxu0 0
  %1265 = vmatprep.subr.bf16.mxu0 0
  %1266 = vmatpush1.bf16.msra.mxu0 0
  %1267 = vmatprep.subr.bf16.mxu0 0
  %1268 = vmatpush1.bf16.msra.mxu0 0
  %1269 = vmatprep.subr.bf16.mxu0 0
  %1270 = vmatpush1.bf16.msra.mxu0 0
  %1271 = vmatprep.subr.bf16.mxu0 0
  %1272 = vmatpush1.bf16.msra.mxu0 0
  %1273 = vmatprep.subr.bf16.mxu0 0
  %1274 = vmatpush1.bf16.msra.mxu0 0
  %1275 = vmatprep.subr.bf16.mxu0 0
  %1276 = vmatpush1.bf16.msra.mxu0 0
  %1277 = vmatprep.subr.bf16.mxu0 0
  %1278 = vmatpush1.bf16.msra.mxu0 0
  %1279 = vmatprep.mubr.bf16.mxu0 0
  %1280 = vmatmul.mubr.bf16.gmra.mrb[0].mxu0 %v1236
  %v1281 = vpop.f32.mrb[0].mxu0
  %v1282 = vadd.f32 %v1220, %v1281
  %v1283 = vpop.f32.mrb[0].mxu0
  %v1284 = vpop.f32.mrb[0].mxu0
  %v1285 = vadd.f32 %v1220, %v1284
  %v1286 = vpop.f32.mrb[0].mxu0
  %1287 = vmatprep.mubr.bf16.mxu0 0
  %1288 = vmatmul.mubr.bf16.gmra.mrb[0].mxu0 %v1239
  %v1289 = vpop.f32.mrb[0].mxu0
  %v1290 = vadd.f32 %v1220, %v1289
  %v1291 = vpop.f32.mrb[0].mxu0
  %v1292 = vpop.f32.mrb[0].mxu0
  %v1293 = vadd.f32 %v1220, %v1292
  %v1294 = vpop.f32.mrb[0].mxu0
  %1295 = vmatprep.mubr.bf16.mxu0 0
  %1296 = vmatmul.mubr.bf16.gmra.mrb[0].mxu0 %v1242
  %v1297 = vpop.f32.mrb[0].mxu0
  %v1298 = vadd.f32 %v1220, %v1297
  %v1299 = vpop.f32.mrb[0].mxu0
  %v1300 = vpop.f32.mrb[0].mxu0
  %v1301 = vadd.f32 %v1220, %v1300
  %v1302 = vpop.f32.mrb[0].mxu0
  %1303 = vmatprep.mubr.bf16.mxu0 0
  %1304 = vmatmul.mubr.bf16.gmra.mrb[0].mxu0 %v1245
  %v1305 = vpop.f32.mrb[0].mxu0
  %v1306 = vadd.f32 %v1220, %v1305
  %v1307 = vpop.f32.mrb[0].mxu0
  %v1308 = vpop.f32.mrb[0].mxu0
  %v1309 = vadd.f32 %v1220, %v1308
  %v1310 = vpop.f32.mrb[0].mxu0
  %1311 = vdwg.mxu0
  %v1312 = vld [vmem:[%s5] sm:$0xff]
  %v1313 = vld [vmem:[%s5 + $0x8] sm:$0xff]
  %v1314 = vld [vmem:[%s5 + $0x10] sm:$0xff]
  %v1315 = vld [vmem:[%s5 + $0x18] sm:$0xff]
  %v1320 = vunpack.c.l.b16 %v1312
  %v1321 = vunpack.c.h.b16 %v1312
  %v1322 = vunpack.c.l.b16 %v1313
  %v1323 = vunpack.c.h.b16 %v1313
  %v1324 = vunpack.c.l.b16 %v1314
  %v1325 = vunpack.c.h.b16 %v1314
  %v1326 = vunpack.c.l.b16 %v1315
  %v1327 = vunpack.c.h.b16 %v1315
  %v1328 = vpack.c.b16 %v1322, %v1320
  %v1329 = vpack.c.b16 %v1323, %v1321
  %v1330 = vpack.c.b16 %v1326, %v1324
  %v1331 = vpack.c.b16 %v1327, %v1325
  %1336 = vmatprep.subr.bf16.mxu0 %v1329
  %1337 = vmatpush1.bf16.msra.mxu0 %v1328
  %1338 = vmatprep.subr.bf16.mxu0 %v1331
  %1339 = vmatpush1.bf16.msra.mxu0 %v1330
  %1340 = vmatprep.subr.bf16.mxu0 0
  %1341 = vmatpush1.bf16.msra.mxu0 0
  %1342 = vmatprep.subr.bf16.mxu0 0
  %1343 = vmatpush1.bf16.msra.mxu0 0
  %1344 = vmatprep.subr.bf16.mxu0 0
  %1345 = vmatpush1.bf16.msra.mxu0 0
  %1346 = vmatprep.subr.bf16.mxu0 0
  %1347 = vmatpush1.bf16.msra.mxu0 0
  %1348 = vmatprep.subr.bf16.mxu0 0
  %1349 = vmatpush1.bf16.msra.mxu0 0
  %1350 = vmatprep.subr.bf16.mxu0 0
  %1351 = vmatpush1.bf16.msra.mxu0 0
  %1352 = vmatprep.subr.bf16.mxu0 0
  %1353 = vmatpush1.bf16.msra.mxu0 0
  %1354 = vmatprep.subr.bf16.mxu0 0
  %1355 = vmatpush1.bf16.msra.mxu0 0
  %1356 = vmatprep.subr.bf16.mxu0 0
  %1357 = vmatpush1.bf16.msra.mxu0 0
  %1358 = vmatprep.subr.bf16.mxu0 0
  %1359 = vmatpush1.bf16.msra.mxu0 0
  %1360 = vmatprep.subr.bf16.mxu0 0
  %1361 = vmatpush1.bf16.msra.mxu0 0
  %1362 = vmatprep.subr.bf16.mxu0 0
  %1363 = vmatpush1.bf16.msra.mxu0 0
  %1364 = vmatprep.subr.bf16.mxu0 0
  %1365 = vmatpush1.bf16.msra.mxu0 0
  %1366 = vmatprep.subr.bf16.mxu0 0
  %1367 = vmatpush1.bf16.msra.mxu0 0
  %1368 = vmatprep.mubr.bf16.mxu0 0
  %1369 = vmatmul.mubr.bf16.gmra.mrb[0].mxu0 %v1236
  %v1370 = vpop.f32.mrb[0].mxu0
  %v1371 = vadd.f32 0.0, %v1370
  %v1372 = vpop.f32.mrb[0].mxu0
  %v1373 = vadd.f32 0.0, %v1372
  %v1374 = vpop.f32.mrb[0].mxu0
  %v1375 = vadd.f32 0.0, %v1374
  %v1376 = vpop.f32.mrb[0].mxu0
  %v1377 = vadd.f32 0.0, %v1376
  %1378 = vmatprep.mubr.bf16.mxu0 0
  %1379 = vmatmul.mubr.bf16.gmra.mrb[0].mxu0 %v1239
  %v1380 = vpop.f32.mrb[0].mxu0
  %v1381 = vadd.f32 0.0, %v1380
  %v1382 = vpop.f32.mrb[0].mxu0
  %v1383 = vadd.f32 0.0, %v1382
  %v1384 = vpop.f32.mrb[0].mxu0
  %v1385 = vadd.f32 0.0, %v1384
  %v1386 = vpop.f32.mrb[0].mxu0
  %v1387 = vadd.f32 0.0, %v1386
  %1388 = vmatprep.mubr.bf16.mxu0 0
  %1389 = vmatmul.mubr.bf16.gmra.mrb[0].mxu0 %v1242
  %v1390 = vpop.f32.mrb[0].mxu0
  %v1391 = vadd.f32 0.0, %v1390
  %v1392 = vpop.f32.mrb[0].mxu0
  %v1393 = vadd.f32 0.0, %v1392
  %v1394 = vpop.f32.mrb[0].mxu0
  %v1395 = vadd.f32 0.0, %v1394
  %v1396 = vpop.f32.mrb[0].mxu0
  %v1397 = vadd.f32 0.0, %v1396
  %1398 = vmatprep.mubr.bf16.mxu0 0
  %1399 = vmatmul.mubr.bf16.gmra.mrb[0].mxu0 %v1245
  %v1400 = vpop.f32.mrb[0].mxu0
  %v1401 = vadd.f32 0.0, %v1400
  %v1402 = vpop.f32.mrb[0].mxu0
  %v1403 = vadd.f32 0.0, %v1402
  %v1404 = vpop.f32.mrb[0].mxu0
  %v1405 = vadd.f32 0.0, %v1404
  %v1406 = vpop.f32.mrb[0].mxu0
  %v1407 = vadd.f32 0.0, %v1406
  %1408 = vdwg.mxu0
  %v1409 = vpack.c.bf16 %v1375, %v1371
  %v1410 = vpack.c.bf16 %v1377, %v1373
  %v1411 = vpack.c.bf16 %v1385, %v1381
  %v1412 = vpack.c.bf16 %v1387, %v1383
  %v1413 = vpack.c.bf16 %v1395, %v1391
  %v1414 = vpack.c.bf16 %v1397, %v1393
  %v1415 = vpack.c.bf16 %v1405, %v1401
  %v1416 = vpack.c.bf16 %v1407, %v1403
  %v1417 = vld [vmem:[%s6] sm:$0xff]
  %v1418 = vld [vmem:[%s6 + $0x8] sm:$0xff]
  %v1483 = vunpack.c.l.b16 %v132
  %v1484 = vunpack.c.l.b16 %v133
  %v1485 = vunpack.c.l.b16 %v134
  %v1486 = vunpack.c.l.b16 %v135
  %v1487 = vunpack.c.l.b16 %v136
  %v1488 = vunpack.c.l.b16 %v137
  %v1489 = vunpack.c.l.b16 %v138
  %v1490 = vunpack.c.l.b16 %v139
  %v1491 = vunpack.c.l.b16 %v140
  %v1492 = vunpack.c.l.b16 %v141
  %v1493 = vunpack.c.l.b16 %v142
  %v1494 = vunpack.c.l.b16 %v143
  %v1495 = vunpack.c.l.b16 %v144
  %v1496 = vunpack.c.l.b16 %v145
  %v1497 = vunpack.c.l.b16 %v146
  %v1498 = vunpack.c.l.b16 %v147
  %v1499 = vunpack.c.l.b16 %v148
  %v1500 = vunpack.c.l.b16 %v149
  %v1501 = vunpack.c.l.b16 %v150
  %v1502 = vunpack.c.l.b16 %v151
  %v1503 = vunpack.c.l.b16 %v152
  %v1504 = vunpack.c.l.b16 %v153
  %v1505 = vunpack.c.l.b16 %v154
  %v1506 = vunpack.c.l.b16 %v155
  %v1507 = vunpack.c.l.b16 %v156
  %v1508 = vunpack.c.l.b16 %v157
  %v1509 = vunpack.c.l.b16 %v158
  %v1510 = vunpack.c.l.b16 %v159
  %v1511 = vunpack.c.l.b16 %v160
  %v1512 = vunpack.c.l.b16 %v161
  %v1513 = vunpack.c.l.b16 %v162
  %v1514 = vunpack.c.l.b16 %v163
  %v1515 = vunpack.c.l.b16 %v164
  %v1516 = vunpack.c.l.b16 %v165
  %v1517 = vunpack.c.l.b16 %v166
  %v1518 = vunpack.c.l.b16 %v167
  %v1519 = vunpack.c.l.b16 %v168
  %v1520 = vunpack.c.l.b16 %v169
  %v1521 = vunpack.c.l.b16 %v170
  %v1522 = vunpack.c.l.b16 %v171
  %v1523 = vunpack.c.l.b16 %v172
  %v1524 = vunpack.c.l.b16 %v173
  %v1525 = vunpack.c.l.b16 %v174
  %v1526 = vunpack.c.l.b16 %v175
  %v1527 = vunpack.c.l.b16 %v176
  %v1528 = vunpack.c.l.b16 %v177
  %v1529 = vunpack.c.l.b16 %v178
  %v1530 = vunpack.c.l.b16 %v179
  %v1531 = vunpack.c.l.b16 %v180
  %v1532 = vunpack.c.l.b16 %v181
  %v1533 = vunpack.c.l.b16 %v182
  %v1534 = vunpack.c.l.b16 %v183
  %v1535 = vunpack.c.l.b16 %v184
  %v1536 = vunpack.c.l.b16 %v185
  %v1537 = vunpack.c.l.b16 %v186
  %v1538 = vunpack.c.l.b16 %v187
  %v1539 = vunpack.c.l.b16 %v188
  %v1540 = vunpack.c.l.b16 %v189
  %v1541 = vunpack.c.l.b16 %v190
  %v1542 = vunpack.c.l.b16 %v191
  %v1543 = vunpack.c.l.b16 %v192
  %v1544 = vunpack.c.l.b16 %v193
  %v1545 = vunpack.c.l.b16 %v194
  %v1546 = vunpack.c.l.b16 %v195
  %v1547 = vpack.c.b16 %v1484, %v1483
  %v1548 = vpack.c.b16 %v1486, %v1485
  %v1549 = vpack.c.b16 %v1488, %v1487
  %v1550 = vpack.c.b16 %v1490, %v1489
  %v1551 = vpack.c.b16 %v1492, %v1491
  %v1552 = vpack.c.b16 %v1494, %v1493
  %v1553 = vpack.c.b16 %v1496, %v1495
  %v1554 = vpack.c.b16 %v1498, %v1497
  %v1555 = vpack.c.b16 %v1500, %v1499
  %v1556 = vpack.c.b16 %v1502, %v1501
  %v1557 = vpack.c.b16 %v1504, %v1503
  %v1558 = vpack.c.b16 %v1506, %v1505
  %v1559 = vpack.c.b16 %v1508, %v1507
  %v1560 = vpack.c.b16 %v1510, %v1509
  %v1561 = vpack.c.b16 %v1512, %v1511
  %v1562 = vpack.c.b16 %v1514, %v1513
  %v1563 = vpack.c.b16 %v1516, %v1515
  %v1564 = vpack.c.b16 %v1518, %v1517
  %v1565 = vpack.c.b16 %v1520, %v1519
  %v1566 = vpack.c.b16 %v1522, %v1521
  %v1567 = vpack.c.b16 %v1524, %v1523
  %v1568 = vpack.c.b16 %v1526, %v1525
  %v1569 = vpack.c.b16 %v1528, %v1527
  %v1570 = vpack.c.b16 %v1530, %v1529
  %v1571 = vpack.c.b16 %v1532, %v1531
  %v1572 = vpack.c.b16 %v1534, %v1533
  %v1573 = vpack.c.b16 %v1536, %v1535
  %v1574 = vpack.c.b16 %v1538, %v1537
  %v1575 = vpack.c.b16 %v1540, %v1539
  %v1576 = vpack.c.b16 %v1542, %v1541
  %v1577 = vpack.c.b16 %v1544, %v1543
  %v1578 = vpack.c.b16 %v1546, %v1545
  %v1581 = vunpack.c.l.b16 %v1417
  %v1582 = vunpack.c.h.b16 %v1417
  %v1583 = vunpack.c.l.b16 %v1418
  %v1584 = vunpack.c.h.b16 %v1418
  %v1585 = vpack.c.b16 %v1583, %v1581
  %v1586 = vpack.c.b16 %v1584, %v1582
  %vm1589 = vcmask 130048
  %v1591 = vsel %vm1589, %v1547, 0
  %v1594 = vsel %vm1589, %v1548, 0
  %v1597 = vsel %vm1589, %v1549, 0
  %v1600 = vsel %vm1589, %v1550, 0
  %v1603 = vsel %vm1589, %v1551, 0
  %v1606 = vsel %vm1589, %v1552, 0
  %v1609 = vsel %vm1589, %v1553, 0
  %v1612 = vsel %vm1589, %v1554, 0
  %v1615 = vsel %vm1589, %v1555, 0
  %v1618 = vsel %vm1589, %v1556, 0
  %v1621 = vsel %vm1589, %v1557, 0
  %v1624 = vsel %vm1589, %v1558, 0
  %v1627 = vsel %vm1589, %v1559, 0
  %v1630 = vsel %vm1589, %v1560, 0
  %v1633 = vsel %vm1589, %v1561, 0
  %v1636 = vsel %vm1589, %v1562, 0
  %v1639 = vsel %vm1589, %v1563, 0
  %v1642 = vsel %vm1589, %v1564, 0
  %v1645 = vsel %vm1589, %v1565, 0
  %v1648 = vsel %vm1589, %v1566, 0
  %v1651 = vsel %vm1589, %v1567, 0
  %v1654 = vsel %vm1589, %v1568, 0
  %v1657 = vsel %vm1589, %v1569, 0
  %v1660 = vsel %vm1589, %v1570, 0
  %v1663 = vsel %vm1589, %v1571, 0
  %v1666 = vsel %vm1589, %v1572, 0
  %v1669 = vsel %vm1589, %v1573, 0
  %v1672 = vsel %vm1589, %v1574, 0
  %v1675 = vsel %vm1589, %v1575, 0
  %v1678 = vsel %vm1589, %v1576, 0
  %v1681 = vsel %vm1589, %v1577, 0
  %v1684 = vsel %vm1589, %v1578, 0
  %1686 = vmatprep.subr.bf16.mxu0 %v1586
  %1687 = vmatpush1.bf16.msra.mxu0 %v1585
  %1688 = vmatprep.subr.bf16.mxu0 0
  %1689 = vmatpush1.bf16.msra.mxu0 0
  %1690 = vmatprep.subr.bf16.mxu0 0
  %1691 = vmatpush1.bf16.msra.mxu0 0
  %1692 = vmatprep.subr.bf16.mxu0 0
  %1693 = vmatpush1.bf16.msra.mxu0 0
  %1694 = vmatprep.subr.bf16.mxu0 0
  %1695 = vmatpush1.bf16.msra.mxu0 0
  %1696 = vmatprep.subr.bf16.mxu0 0
  %1697 = vmatpush1.bf16.msra.mxu0 0
  %1698 = vmatprep.subr.bf16.mxu0 0
  %1699 = vmatpush1.bf16.msra.mxu0 0
  %1700 = vmatprep.subr.bf16.mxu0 0
  %1701 = vmatpush1.bf16.msra.mxu0 0
  %1702 = vmatprep.subr.bf16.mxu0 0
  %1703 = vmatpush1.bf16.msra.mxu0 0
  %1704 = vmatprep.subr.bf16.mxu0 0
  %1705 = vmatpush1.bf16.msra.mxu0 0
  %1706 = vmatprep.subr.bf16.mxu0 0
  %1707 = vmatpush1.bf16.msra.mxu0 0
  %1708 = vmatprep.subr.bf16.mxu0 0
  %1709 = vmatpush1.bf16.msra.mxu0 0
  %1710 = vmatprep.subr.bf16.mxu0 0
  %1711 = vmatpush1.bf16.msra.mxu0 0
  %1712 = vmatprep.subr.bf16.mxu0 0
  %1713 = vmatpush1.bf16.msra.mxu0 0
  %1714 = vmatprep.subr.bf16.mxu0 0
  %1715 = vmatpush1.bf16.msra.mxu0 0
  %1716 = vmatprep.subr.bf16.mxu0 0
  %1717 = vmatpush1.bf16.msra.mxu0 0
  %1718 = vmatprep.mubr.bf16.mxu0 0
  %1719 = vmatmul.mubr.bf16.gmra.mrb[0].mxu0 %v1591
  %v1720 = vpop.f32.mrb[0].mxu0
  %v1721 = vadd.f32 0.0, %v1720
  %v1722 = vpop.f32.mrb[0].mxu0
  %v1723 = vadd.f32 0.0, %v1722
  %v1724 = vpop.f32.mrb[0].mxu0
  %v1725 = vadd.f32 0.0, %v1724
  %v1726 = vpop.f32.mrb[0].mxu0
  %v1727 = vadd.f32 0.0, %v1726
  %1728 = vmatprep.mubr.bf16.mxu0 0
  %1729 = vmatmul.mubr.bf16.gmra.mrb[0].mxu0 %v1594
  %v1730 = vpop.f32.mrb[0].mxu0
  %v1731 = vadd.f32 0.0, %v1730
  %v1732 = vpop.f32.mrb[0].mxu0
  %v1733 = vadd.f32 0.0, %v1732
  %v1734 = vpop.f32.mrb[0].mxu0
  %v1735 = vadd.f32 0.0, %v1734
  %v1736 = vpop.f32.mrb[0].mxu0
  %v1737 = vadd.f32 0.0, %v1736
  %1738 = vmatprep.mubr.bf16.mxu0 0
  %1739 = vmatmul.mubr.bf16.gmra.mrb[0].mxu0 %v1597
  %v1740 = vpop.f32.mrb[0].mxu0
  %v1741 = vadd.f32 0.0, %v1740
  %v1742 = vpop.f32.mrb[0].mxu0
  %v1743 = vadd.f32 0.0, %v1742
  %v1744 = vpop.f32.mrb[0].mxu0
  %v1745 = vadd.f32 0.0, %v1744
  %v1746 = vpop.f32.mrb[0].mxu0
  %v1747 = vadd.f32 0.0, %v1746
  %1748 = vmatprep.mubr.bf16.mxu0 0
  %1749 = vmatmul.mubr.bf16.gmra.mrb[0].mxu0 %v1600
  %v1750 = vpop.f32.mrb[0].mxu0
  %v1751 = vadd.f32 0.0, %v1750
  %v1752 = vpop.f32.mrb[0].mxu0
  %v1753 = vadd.f32 0.0, %v1752
  %v1754 = vpop.f32.mrb[0].mxu0
  %v1755 = vadd.f32 0.0, %v1754
  %v1756 = vpop.f32.mrb[0].mxu0
  %v1757 = vadd.f32 0.0, %v1756
  %1758 = vmatprep.mubr.bf16.mxu0 0
  %1759 = vmatmul.mubr.bf16.gmra.mrb[0].mxu0 %v1603
  %v1760 = vpop.f32.mrb[0].mxu0
  %v1761 = vadd.f32 0.0, %v1760
  %v1762 = vpop.f32.mrb[0].mxu0
  %v1763 = vadd.f32 0.0, %v1762
  %v1764 = vpop.f32.mrb[0].mxu0
  %v1765 = vadd.f32 0.0, %v1764
  %v1766 = vpop.f32.mrb[0].mxu0
  %v1767 = vadd.f32 0.0, %v1766
  %1768 = vmatprep.mubr.bf16.mxu0 0
  %1769 = vmatmul.mubr.bf16.gmra.mrb[0].mxu0 %v1606
  %v1770 = vpop.f32.mrb[0].mxu0
  %v1771 = vadd.f32 0.0, %v1770
  %v1772 = vpop.f32.mrb[0].mxu0
  %v1773 = vadd.f32 0.0, %v1772
  %v1774 = vpop.f32.mrb[0].mxu0
  %v1775 = vadd.f32 0.0, %v1774
  %v1776 = vpop.f32.mrb[0].mxu0
  %v1777 = vadd.f32 0.0, %v1776
  %1778 = vmatprep.mubr.bf16.mxu0 0
  %1779 = vmatmul.mubr.bf16.gmra.mrb[0].mxu0 %v1609
  %v1780 = vpop.f32.mrb[0].mxu0
  %v1781 = vadd.f32 0.0, %v1780
  %v1782 = vpop.f32.mrb[0].mxu0
  %v1783 = vadd.f32 0.0, %v1782
  %v1784 = vpop.f32.mrb[0].mxu0
  %v1785 = vadd.f32 0.0, %v1784
  %v1786 = vpop.f32.mrb[0].mxu0
  %v1787 = vadd.f32 0.0, %v1786
  %1788 = vmatprep.mubr.bf16.mxu0 0
  %1789 = vmatmul.mubr.bf16.gmra.mrb[0].mxu0 %v1612
  %v1790 = vpop.f32.mrb[0].mxu0
  %v1791 = vadd.f32 0.0, %v1790
  %v1792 = vpop.f32.mrb[0].mxu0
  %v1793 = vadd.f32 0.0, %v1792
  %v1794 = vpop.f32.mrb[0].mxu0
  %v1795 = vadd.f32 0.0, %v1794
  %v1796 = vpop.f32.mrb[0].mxu0
  %v1797 = vadd.f32 0.0, %v1796
  %1798 = vmatprep.mubr.bf16.mxu0 0
  %1799 = vmatmul.mubr.bf16.gmra.mrb[0].mxu0 %v1615
  %v1800 = vpop.f32.mrb[0].mxu0
  %v1801 = vadd.f32 0.0, %v1800
  %v1802 = vpop.f32.mrb[0].mxu0
  %v1803 = vadd.f32 0.0, %v1802
  %v1804 = vpop.f32.mrb[0].mxu0
  %v1805 = vadd.f32 0.0, %v1804
  %v1806 = vpop.f32.mrb[0].mxu0
  %v1807 = vadd.f32 0.0, %v1806
  %1808 = vmatprep.mubr.bf16.mxu0 0
  %1809 = vmatmul.mubr.bf16.gmra.mrb[0].mxu0 %v1618
  %v1810 = vpop.f32.mrb[0].mxu0
  %v1811 = vadd.f32 0.0, %v1810
  %v1812 = vpop.f32.mrb[0].mxu0
  %v1813 = vadd.f32 0.0, %v1812
  %v1814 = vpop.f32.mrb[0].mxu0
  %v1815 = vadd.f32 0.0, %v1814
  %v1816 = vpop.f32.mrb[0].mxu0
  %v1817 = vadd.f32 0.0, %v1816
  %1818 = vmatprep.mubr.bf16.mxu0 0
  %1819 = vmatmul.mubr.bf16.gmra.mrb[0].mxu0 %v1621
  %v1820 = vpop.f32.mrb[0].mxu0
  %v1821 = vadd.f32 0.0, %v1820
  %v1822 = vpop.f32.mrb[0].mxu0
  %v1823 = vadd.f32 0.0, %v1822
  %v1824 = vpop.f32.mrb[0].mxu0
  %v1825 = vadd.f32 0.0, %v1824
  %v1826 = vpop.f32.mrb[0].mxu0
  %v1827 = vadd.f32 0.0, %v1826
  %1828 = vmatprep.mubr.bf16.mxu0 0
  %1829 = vmatmul.mubr.bf16.gmra.mrb[0].mxu0 %v1624
  %v1830 = vpop.f32.mrb[0].mxu0
  %v1831 = vadd.f32 0.0, %v1830
  %v1832 = vpop.f32.mrb[0].mxu0
  %v1833 = vadd.f32 0.0, %v1832
  %v1834 = vpop.f32.mrb[0].mxu0
  %v1835 = vadd.f32 0.0, %v1834
  %v1836 = vpop.f32.mrb[0].mxu0
  %v1837 = vadd.f32 0.0, %v1836
  %1838 = vmatprep.mubr.bf16.mxu0 0
  %1839 = vmatmul.mubr.bf16.gmra.mrb[0].mxu0 %v1627
  %v1840 = vpop.f32.mrb[0].mxu0
  %v1841 = vadd.f32 0.0, %v1840
  %v1842 = vpop.f32.mrb[0].mxu0
  %v1843 = vadd.f32 0.0, %v1842
  %v1844 = vpop.f32.mrb[0].mxu0
  %v1845 = vadd.f32 0.0, %v1844
  %v1846 = vpop.f32.mrb[0].mxu0
  %v1847 = vadd.f32 0.0, %v1846
  %1848 = vmatprep.mubr.bf16.mxu0 0
  %1849 = vmatmul.mubr.bf16.gmra.mrb[0].mxu0 %v1630
  %v1850 = vpop.f32.mrb[0].mxu0
  %v1851 = vadd.f32 0.0, %v1850
  %v1852 = vpop.f32.mrb[0].mxu0
  %v1853 = vadd.f32 0.0, %v1852
  %v1854 = vpop.f32.mrb[0].mxu0
  %v1855 = vadd.f32 0.0, %v1854
  %v1856 = vpop.f32.mrb[0].mxu0
  %v1857 = vadd.f32 0.0, %v1856
  %1858 = vmatprep.mubr.bf16.mxu0 0
  %1859 = vmatmul.mubr.bf16.gmra.mrb[0].mxu0 %v1633
  %v1860 = vpop.f32.mrb[0].mxu0
  %v1861 = vadd.f32 0.0, %v1860
  %v1862 = vpop.f32.mrb[0].mxu0
  %v1863 = vadd.f32 0.0, %v1862
  %v1864 = vpop.f32.mrb[0].mxu0
  %v1865 = vadd.f32 0.0, %v1864
  %v1866 = vpop.f32.mrb[0].mxu0
  %v1867 = vadd.f32 0.0, %v1866
  %1868 = vmatprep.mubr.bf16.mxu0 0
  %1869 = vmatmul.mubr.bf16.gmra.mrb[0].mxu0 %v1636
  %v1870 = vpop.f32.mrb[0].mxu0
  %v1871 = vadd.f32 0.0, %v1870
  %v1872 = vpop.f32.mrb[0].mxu0
  %v1873 = vadd.f32 0.0, %v1872
  %v1874 = vpop.f32.mrb[0].mxu0
  %v1875 = vadd.f32 0.0, %v1874
  %v1876 = vpop.f32.mrb[0].mxu0
  %v1877 = vadd.f32 0.0, %v1876
  %1878 = vmatprep.mubr.bf16.mxu0 0
  %1879 = vmatmul.mubr.bf16.gmra.mrb[0].mxu0 %v1639
  %v1880 = vpop.f32.mrb[0].mxu0
  %v1881 = vadd.f32 0.0, %v1880
  %v1882 = vpop.f32.mrb[0].mxu0
  %v1883 = vadd.f32 0.0, %v1882
  %v1884 = vpop.f32.mrb[0].mxu0
  %v1885 = vadd.f32 0.0, %v1884
  %v1886 = vpop.f32.mrb[0].mxu0
  %v1887 = vadd.f32 0.0, %v1886
  %1888 = vmatprep.mubr.bf16.mxu0 0
  %1889 = vmatmul.mubr.bf16.gmra.mrb[0].mxu0 %v1642
  %v1890 = vpop.f32.mrb[0].mxu0
  %v1891 = vadd.f32 0.0, %v1890
  %v1892 = vpop.f32.mrb[0].mxu0
  %v1893 = vadd.f32 0.0, %v1892
  %v1894 = vpop.f32.mrb[0].mxu0
  %v1895 = vadd.f32 0.0, %v1894
  %v1896 = vpop.f32.mrb[0].mxu0
  %v1897 = vadd.f32 0.0, %v1896
  %1898 = vmatprep.mubr.bf16.mxu0 0
  %1899 = vmatmul.mubr.bf16.gmra.mrb[0].mxu0 %v1645
  %v1900 = vpop.f32.mrb[0].mxu0
  %v1901 = vadd.f32 0.0, %v1900
  %v1902 = vpop.f32.mrb[0].mxu0
  %v1903 = vadd.f32 0.0, %v1902
  %v1904 = vpop.f32.mrb[0].mxu0
  %v1905 = vadd.f32 0.0, %v1904
  %v1906 = vpop.f32.mrb[0].mxu0
  %v1907 = vadd.f32 0.0, %v1906
  %1908 = vmatprep.mubr.bf16.mxu0 0
  %1909 = vmatmul.mubr.bf16.gmra.mrb[0].mxu0 %v1648
  %v1910 = vpop.f32.mrb[0].mxu0
  %v1911 = vadd.f32 0.0, %v1910
  %v1912 = vpop.f32.mrb[0].mxu0
  %v1913 = vadd.f32 0.0, %v1912
  %v1914 = vpop.f32.mrb[0].mxu0
  %v1915 = vadd.f32 0.0, %v1914
  %v1916 = vpop.f32.mrb[0].mxu0
  %v1917 = vadd.f32 0.0, %v1916
  %1918 = vmatprep.mubr.bf16.mxu0 0
  %1919 = vmatmul.mubr.bf16.gmra.mrb[0].mxu0 %v1651
  %v1920 = vpop.f32.mrb[0].mxu0
  %v1921 = vadd.f32 0.0, %v1920
  %v1922 = vpop.f32.mrb[0].mxu0
  %v1923 = vadd.f32 0.0, %v1922
  %v1924 = vpop.f32.mrb[0].mxu0
  %v1925 = vadd.f32 0.0, %v1924
  %v1926 = vpop.f32.mrb[0].mxu0
  %v1927 = vadd.f32 0.0, %v1926
  %1928 = vmatprep.mubr.bf16.mxu0 0
  %1929 = vmatmul.mubr.bf16.gmra.mrb[0].mxu0 %v1654
  %v1930 = vpop.f32.mrb[0].mxu0
  %v1931 = vadd.f32 0.0, %v1930
  %v1932 = vpop.f32.mrb[0].mxu0
  %v1933 = vadd.f32 0.0, %v1932
  %v1934 = vpop.f32.mrb[0].mxu0
  %v1935 = vadd.f32 0.0, %v1934
  %v1936 = vpop.f32.mrb[0].mxu0
  %v1937 = vadd.f32 0.0, %v1936
  %1938 = vmatprep.mubr.bf16.mxu0 0
  %1939 = vmatmul.mubr.bf16.gmra.mrb[0].mxu0 %v1657
  %v1940 = vpop.f32.mrb[0].mxu0
  %v1941 = vadd.f32 0.0, %v1940
  %v1942 = vpop.f32.mrb[0].mxu0
  %v1943 = vadd.f32 0.0, %v1942
  %v1944 = vpop.f32.mrb[0].mxu0
  %v1945 = vadd.f32 0.0, %v1944
  %v1946 = vpop.f32.mrb[0].mxu0
  %v1947 = vadd.f32 0.0, %v1946
  %1948 = vmatprep.mubr.bf16.mxu0 0
  %1949 = vmatmul.mubr.bf16.gmra.mrb[0].mxu0 %v1660
  %v1950 = vpop.f32.mrb[0].mxu0
  %v1951 = vadd.f32 0.0, %v1950
  %v1952 = vpop.f32.mrb[0].mxu0
  %v1953 = vadd.f32 0.0, %v1952
  %v1954 = vpop.f32.mrb[0].mxu0
  %v1955 = vadd.f32 0.0, %v1954
  %v1956 = vpop.f32.mrb[0].mxu0
  %v1957 = vadd.f32 0.0, %v1956
  %1958 = vmatprep.mubr.bf16.mxu0 0
  %1959 = vmatmul.mubr.bf16.gmra.mrb[0].mxu0 %v1663
  %v1960 = vpop.f32.mrb[0].mxu0
  %v1961 = vadd.f32 0.0, %v1960
  %v1962 = vpop.f32.mrb[0].mxu0
  %v1963 = vadd.f32 0.0, %v1962
  %v1964 = vpop.f32.mrb[0].mxu0
  %v1965 = vadd.f32 0.0, %v1964
  %v1966 = vpop.f32.mrb[0].mxu0
  %v1967 = vadd.f32 0.0, %v1966
  %1968 = vmatprep.mubr.bf16.mxu0 0
  %1969 = vmatmul.mubr.bf16.gmra.mrb[0].mxu0 %v1666
  %v1970 = vpop.f32.mrb[0].mxu0
  %v1971 = vadd.f32 0.0, %v1970
  %v1972 = vpop.f32.mrb[0].mxu0
  %v1973 = vadd.f32 0.0, %v1972
  %v1974 = vpop.f32.mrb[0].mxu0
  %v1975 = vadd.f32 0.0, %v1974
  %v1976 = vpop.f32.mrb[0].mxu0
  %v1977 = vadd.f32 0.0, %v1976
  %1978 = vmatprep.mubr.bf16.mxu0 0
  %1979 = vmatmul.mubr.bf16.gmra.mrb[0].mxu0 %v1669
  %v1980 = vpop.f32.mrb[0].mxu0
  %v1981 = vadd.f32 0.0, %v1980
  %v1982 = vpop.f32.mrb[0].mxu0
  %v1983 = vadd.f32 0.0, %v1982
  %v1984 = vpop.f32.mrb[0].mxu0
  %v1985 = vadd.f32 0.0, %v1984
  %v1986 = vpop.f32.mrb[0].mxu0
  %v1987 = vadd.f32 0.0, %v1986
  %1988 = vmatprep.mubr.bf16.mxu0 0
  %1989 = vmatmul.mubr.bf16.gmra.mrb[0].mxu0 %v1672
  %v1990 = vpop.f32.mrb[0].mxu0
  %v1991 = vadd.f32 0.0, %v1990
  %v1992 = vpop.f32.mrb[0].mxu0
  %v1993 = vadd.f32 0.0, %v1992
  %v1994 = vpop.f32.mrb[0].mxu0
  %v1995 = vadd.f32 0.0, %v1994
  %v1996 = vpop.f32.mrb[0].mxu0
  %v1997 = vadd.f32 0.0, %v1996
  %1998 = vmatprep.mubr.bf16.mxu0 0
  %1999 = vmatmul.mubr.bf16.gmra.mrb[0].mxu0 %v1675
  %v2000 = vpop.f32.mrb[0].mxu0
  %v2001 = vadd.f32 0.0, %v2000
  %v2002 = vpop.f32.mrb[0].mxu0
  %v2003 = vadd.f32 0.0, %v2002
  %v2004 = vpop.f32.mrb[0].mxu0
  %v2005 = vadd.f32 0.0, %v2004
  %v2006 = vpop.f32.mrb[0].mxu0
  %v2007 = vadd.f32 0.0, %v2006
  %2008 = vmatprep.mubr.bf16.mxu0 0
  %2009 = vmatmul.mubr.bf16.gmra.mrb[0].mxu0 %v1678
  %v2010 = vpop.f32.mrb[0].mxu0
  %v2011 = vadd.f32 0.0, %v2010
  %v2012 = vpop.f32.mrb[0].mxu0
  %v2013 = vadd.f32 0.0, %v2012
  %v2014 = vpop.f32.mrb[0].mxu0
  %v2015 = vadd.f32 0.0, %v2014
  %v2016 = vpop.f32.mrb[0].mxu0
  %v2017 = vadd.f32 0.0, %v2016
  %2018 = vmatprep.mubr.bf16.mxu0 0
  %2019 = vmatmul.mubr.bf16.gmra.mrb[0].mxu0 %v1681
  %v2020 = vpop.f32.mrb[0].mxu0
  %v2021 = vadd.f32 0.0, %v2020
  %v2022 = vpop.f32.mrb[0].mxu0
  %v2023 = vadd.f32 0.0, %v2022
  %v2024 = vpop.f32.mrb[0].mxu0
  %v2025 = vadd.f32 0.0, %v2024
  %v2026 = vpop.f32.mrb[0].mxu0
  %v2027 = vadd.f32 0.0, %v2026
  %2028 = vmatprep.mubr.bf16.mxu0 0
  %2029 = vmatmul.mubr.bf16.gmra.mrb[0].mxu0 %v1684
  %v2030 = vpop.f32.mrb[0].mxu0
  %v2031 = vadd.f32 0.0, %v2030
  %v2032 = vpop.f32.mrb[0].mxu0
  %v2033 = vadd.f32 0.0, %v2032
  %v2034 = vpop.f32.mrb[0].mxu0
  %v2035 = vadd.f32 0.0, %v2034
  %v2036 = vpop.f32.mrb[0].mxu0
  %v2037 = vadd.f32 0.0, %v2036
  %2038 = vdwg.mxu0
  %vm2039 = vcmask 523264
  %v2041 = vsel %vm2039, %v583, 0
  %v2044 = vsel %vm2039, %v584, 0
  %v2047 = vsel %vm2039, %v585, 0
  %v2050 = vsel %vm2039, %v586, 0
  %v2053 = vsel %vm2039, %v587, 0
  %v2056 = vsel %vm2039, %v588, 0
  %v2059 = vsel %vm2039, %v589, 0
  %v2062 = vsel %vm2039, %v590, 0
  %v2065 = vsel %vm2039, %v591, 0
  %v2068 = vsel %vm2039, %v592, 0
  %v2071 = vsel %vm2039, %v593, 0
  %v2074 = vsel %vm2039, %v594, 0
  %v2077 = vsel %vm2039, %v595, 0
  %v2080 = vsel %vm2039, %v596, 0
  %v2083 = vsel %vm2039, %v597, 0
  %v2086 = vsel %vm2039, %v598, 0
  %v2089 = vsel %vm2039, %v599, 0
  %v2092 = vsel %vm2039, %v600, 0
  %v2095 = vsel %vm2039, %v601, 0
  %v2098 = vsel %vm2039, %v602, 0
  %v2101 = vsel %vm2039, %v603, 0
  %v2104 = vsel %vm2039, %v604, 0
  %v2107 = vsel %vm2039, %v605, 0
  %v2110 = vsel %vm2039, %v606, 0
  %v2113 = vsel %vm2039, %v607, 0
  %v2116 = vsel %vm2039, %v608, 0
  %v2119 = vsel %vm2039, %v609, 0
  %v2122 = vsel %vm2039, %v610, 0
  %v2125 = vsel %vm2039, %v611, 0
  %v2128 = vsel %vm2039, %v612, 0
  %v2131 = vsel %vm2039, %v613, 0
  %v2134 = vsel %vm2039, %v614, 0
  %2136 = vmatprep.subr.bf16.mxu0 %v1410
  %2137 = vmatpush1.bf16.msra.mxu0 %v1409
  %2138 = vmatprep.subr.bf16.mxu0 %v1412
  %2139 = vmatpush1.bf16.msra.mxu0 %v1411
  %2140 = vmatprep.subr.bf16.mxu0 %v1414
  %2141 = vmatpush1.bf16.msra.mxu0 %v1413
  %2142 = vmatprep.subr.bf16.mxu0 %v1416
  %2143 = vmatpush1.bf16.msra.mxu0 %v1415
  %2144 = vmatprep.subr.bf16.mxu0 0
  %2145 = vmatpush1.bf16.msra.mxu0 0
  %2146 = vmatprep.subr.bf16.mxu0 0
  %2147 = vmatpush1.bf16.msra.mxu0 0
  %2148 = vmatprep.subr.bf16.mxu0 0
  %2149 = vmatpush1.bf16.msra.mxu0 0
  %2150 = vmatprep.subr.bf16.mxu0 0
  %2151 = vmatpush1.bf16.msra.mxu0 0
  %2152 = vmatprep.subr.bf16.mxu0 0
  %2153 = vmatpush1.bf16.msra.mxu0 0
  %2154 = vmatprep.subr.bf16.mxu0 0
  %2155 = vmatpush1.bf16.msra.mxu0 0
  %2156 = vmatprep.subr.bf16.mxu0 0
  %2157 = vmatpush1.bf16.msra.mxu0 0
  %2158 = vmatprep.subr.bf16.mxu0 0
  %2159 = vmatpush1.bf16.msra.mxu0 0
  %2160 = vmatprep.subr.bf16.mxu0 0
  %2161 = vmatpush1.bf16.msra.mxu0 0
  %2162 = vmatprep.subr.bf16.mxu0 0
  %2163 = vmatpush1.bf16.msra.mxu0 0
  %2164 = vmatprep.subr.bf16.mxu0 0
  %2165 = vmatpush1.bf16.msra.mxu0 0
  %2166 = vmatprep.subr.bf16.mxu0 0
  %2167 = vmatpush1.bf16.msra.mxu0 0
  %2168 = vmatprep.mubr.bf16.mxu0 0
  %2169 = vmatmul.mubr.bf16.gmra.mrb[0].mxu0 %v2041
  %v2170 = vpop.f32.mrb[0].mxu0
  %v2171 = vadd.f32 %v1721, %v2170
  %v2172 = vpop.f32.mrb[0].mxu0
  %v2173 = vadd.f32 %v1723, %v2172
  %v2174 = vpop.f32.mrb[0].mxu0
  %v2175 = vadd.f32 %v1725, %v2174
  %v2176 = vpop.f32.mrb[0].mxu0
  %v2177 = vadd.f32 %v1727, %v2176
  %2178 = vmatprep.mubr.bf16.mxu0 0
  %2179 = vmatmul.mubr.bf16.gmra.mrb[0].mxu0 %v2044
  %v2180 = vpop.f32.mrb[0].mxu0
  %v2181 = vadd.f32 %v1731, %v2180
  %v2182 = vpop.f32.mrb[0].mxu0
  %v2183 = vadd.f32 %v1733, %v2182
  %v2184 = vpop.f32.mrb[0].mxu0
  %v2185 = vadd.f32 %v1735, %v2184
  %v2186 = vpop.f32.mrb[0].mxu0
  %v2187 = vadd.f32 %v1737, %v2186
  %2188 = vmatprep.mubr.bf16.mxu0 0
  %2189 = vmatmul.mubr.bf16.gmra.mrb[0].mxu0 %v2047
  %v2190 = vpop.f32.mrb[0].mxu0
  %v2191 = vadd.f32 %v1741, %v2190
  %v2192 = vpop.f32.mrb[0].mxu0
  %v2193 = vadd.f32 %v1743, %v2192
  %v2194 = vpop.f32.mrb[0].mxu0
  %v2195 = vadd.f32 %v1745, %v2194
  %v2196 = vpop.f32.mrb[0].mxu0
  %v2197 = vadd.f32 %v1747, %v2196
  %2198 = vmatprep.mubr.bf16.mxu0 0
  %2199 = vmatmul.mubr.bf16.gmra.mrb[0].mxu0 %v2050
  %v2200 = vpop.f32.mrb[0].mxu0
  %v2201 = vadd.f32 %v1751, %v2200
  %v2202 = vpop.f32.mrb[0].mxu0
  %v2203 = vadd.f32 %v1753, %v2202
  %v2204 = vpop.f32.mrb[0].mxu0
  %v2205 = vadd.f32 %v1755, %v2204
  %v2206 = vpop.f32.mrb[0].mxu0
  %v2207 = vadd.f32 %v1757, %v2206
  %2208 = vmatprep.mubr.bf16.mxu0 0
  %2209 = vmatmul.mubr.bf16.gmra.mrb[0].mxu0 %v2053
  %v2210 = vpop.f32.mrb[0].mxu0
  %v2211 = vadd.f32 %v1761, %v2210
  %v2212 = vpop.f32.mrb[0].mxu0
  %v2213 = vadd.f32 %v1763, %v2212
  %v2214 = vpop.f32.mrb[0].mxu0
  %v2215 = vadd.f32 %v1765, %v2214
  %v2216 = vpop.f32.mrb[0].mxu0
  %v2217 = vadd.f32 %v1767, %v2216
  %2218 = vmatprep.mubr.bf16.mxu0 0
  %2219 = vmatmul.mubr.bf16.gmra.mrb[0].mxu0 %v2056
  %v2220 = vpop.f32.mrb[0].mxu0
  %v2221 = vadd.f32 %v1771, %v2220
  %v2222 = vpop.f32.mrb[0].mxu0
  %v2223 = vadd.f32 %v1773, %v2222
  %v2224 = vpop.f32.mrb[0].mxu0
  %v2225 = vadd.f32 %v1775, %v2224
  %v2226 = vpop.f32.mrb[0].mxu0
  %v2227 = vadd.f32 %v1777, %v2226
  %2228 = vmatprep.mubr.bf16.mxu0 0
  %2229 = vmatmul.mubr.bf16.gmra.mrb[0].mxu0 %v2059
  %v2230 = vpop.f32.mrb[0].mxu0
  %v2231 = vadd.f32 %v1781, %v2230
  %v2232 = vpop.f32.mrb[0].mxu0
  %v2233 = vadd.f32 %v1783, %v2232
  %v2234 = vpop.f32.mrb[0].mxu0
  %v2235 = vadd.f32 %v1785, %v2234
  %v2236 = vpop.f32.mrb[0].mxu0
  %v2237 = vadd.f32 %v1787, %v2236
  %2238 = vmatprep.mubr.bf16.mxu0 0
  %2239 = vmatmul.mubr.bf16.gmra.mrb[0].mxu0 %v2062
  %v2240 = vpop.f32.mrb[0].mxu0
  %v2241 = vadd.f32 %v1791, %v2240
  %v2242 = vpop.f32.mrb[0].mxu0
  %v2243 = vadd.f32 %v1793, %v2242
  %v2244 = vpop.f32.mrb[0].mxu0
  %v2245 = vadd.f32 %v1795, %v2244
  %v2246 = vpop.f32.mrb[0].mxu0
  %v2247 = vadd.f32 %v1797, %v2246
  %2248 = vmatprep.mubr.bf16.mxu0 0
  %2249 = vmatmul.mubr.bf16.gmra.mrb[0].mxu0 %v2065
  %v2250 = vpop.f32.mrb[0].mxu0
  %v2251 = vadd.f32 %v1801, %v2250
  %v2252 = vpop.f32.mrb[0].mxu0
  %v2253 = vadd.f32 %v1803, %v2252
  %v2254 = vpop.f32.mrb[0].mxu0
  %v2255 = vadd.f32 %v1805, %v2254
  %v2256 = vpop.f32.mrb[0].mxu0
  %v2257 = vadd.f32 %v1807, %v2256
  %2258 = vmatprep.mubr.bf16.mxu0 0
  %2259 = vmatmul.mubr.bf16.gmra.mrb[0].mxu0 %v2068
  %v2260 = vpop.f32.mrb[0].mxu0
  %v2261 = vadd.f32 %v1811, %v2260
  %v2262 = vpop.f32.mrb[0].mxu0
  %v2263 = vadd.f32 %v1813, %v2262
  %v2264 = vpop.f32.mrb[0].mxu0
  %v2265 = vadd.f32 %v1815, %v2264
  %v2266 = vpop.f32.mrb[0].mxu0
  %v2267 = vadd.f32 %v1817, %v2266
  %2268 = vmatprep.mubr.bf16.mxu0 0
  %2269 = vmatmul.mubr.bf16.gmra.mrb[0].mxu0 %v2071
  %v2270 = vpop.f32.mrb[0].mxu0
  %v2271 = vadd.f32 %v1821, %v2270
  %v2272 = vpop.f32.mrb[0].mxu0
  %v2273 = vadd.f32 %v1823, %v2272
  %v2274 = vpop.f32.mrb[0].mxu0
  %v2275 = vadd.f32 %v1825, %v2274
  %v2276 = vpop.f32.mrb[0].mxu0
  %v2277 = vadd.f32 %v1827, %v2276
  %2278 = vmatprep.mubr.bf16.mxu0 0
  %2279 = vmatmul.mubr.bf16.gmra.mrb[0].mxu0 %v2074
  %v2280 = vpop.f32.mrb[0].mxu0
  %v2281 = vadd.f32 %v1831, %v2280
  %v2282 = vpop.f32.mrb[0].mxu0
  %v2283 = vadd.f32 %v1833, %v2282
  %v2284 = vpop.f32.mrb[0].mxu0
  %v2285 = vadd.f32 %v1835, %v2284
  %v2286 = vpop.f32.mrb[0].mxu0
  %v2287 = vadd.f32 %v1837, %v2286
  %2288 = vmatprep.mubr.bf16.mxu0 0
  %2289 = vmatmul.mubr.bf16.gmra.mrb[0].mxu0 %v2077
  %v2290 = vpop.f32.mrb[0].mxu0
  %v2291 = vadd.f32 %v1841, %v2290
  %v2292 = vpop.f32.mrb[0].mxu0
  %v2293 = vadd.f32 %v1843, %v2292
  %v2294 = vpop.f32.mrb[0].mxu0
  %v2295 = vadd.f32 %v1845, %v2294
  %v2296 = vpop.f32.mrb[0].mxu0
  %v2297 = vadd.f32 %v1847, %v2296
  %2298 = vmatprep.mubr.bf16.mxu0 0
  %2299 = vmatmul.mubr.bf16.gmra.mrb[0].mxu0 %v2080
  %v2300 = vpop.f32.mrb[0].mxu0
  %v2301 = vadd.f32 %v1851, %v2300
  %v2302 = vpop.f32.mrb[0].mxu0
  %v2303 = vadd.f32 %v1853, %v2302
  %v2304 = vpop.f32.mrb[0].mxu0
  %v2305 = vadd.f32 %v1855, %v2304
  %v2306 = vpop.f32.mrb[0].mxu0
  %v2307 = vadd.f32 %v1857, %v2306
  %2308 = vmatprep.mubr.bf16.mxu0 0
  %2309 = vmatmul.mubr.bf16.gmra.mrb[0].mxu0 %v2083
  %v2310 = vpop.f32.mrb[0].mxu0
  %v2311 = vadd.f32 %v1861, %v2310
  %v2312 = vpop.f32.mrb[0].mxu0
  %v2313 = vadd.f32 %v1863, %v2312
  %v2314 = vpop.f32.mrb[0].mxu0
  %v2315 = vadd.f32 %v1865, %v2314
  %v2316 = vpop.f32.mrb[0].mxu0
  %v2317 = vadd.f32 %v1867, %v2316
  %2318 = vmatprep.mubr.bf16.mxu0 0
  %2319 = vmatmul.mubr.bf16.gmra.mrb[0].mxu0 %v2086
  %v2320 = vpop.f32.mrb[0].mxu0
  %v2321 = vadd.f32 %v1871, %v2320
  %v2322 = vpop.f32.mrb[0].mxu0
  %v2323 = vadd.f32 %v1873, %v2322
  %v2324 = vpop.f32.mrb[0].mxu0
  %v2325 = vadd.f32 %v1875, %v2324
  %v2326 = vpop.f32.mrb[0].mxu0
  %v2327 = vadd.f32 %v1877, %v2326
  %2328 = vmatprep.mubr.bf16.mxu0 0
  %2329 = vmatmul.mubr.bf16.gmra.mrb[0].mxu0 %v2089
  %v2330 = vpop.f32.mrb[0].mxu0
  %v2331 = vadd.f32 %v1881, %v2330
  %v2332 = vpop.f32.mrb[0].mxu0
  %v2333 = vadd.f32 %v1883, %v2332
  %v2334 = vpop.f32.mrb[0].mxu0
  %v2335 = vadd.f32 %v1885, %v2334
  %v2336 = vpop.f32.mrb[0].mxu0
  %v2337 = vadd.f32 %v1887, %v2336
  %2338 = vmatprep.mubr.bf16.mxu0 0
  %2339 = vmatmul.mubr.bf16.gmra.mrb[0].mxu0 %v2092
  %v2340 = vpop.f32.mrb[0].mxu0
  %v2341 = vadd.f32 %v1891, %v2340
  %v2342 = vpop.f32.mrb[0].mxu0
  %v2343 = vadd.f32 %v1893, %v2342
  %v2344 = vpop.f32.mrb[0].mxu0
  %v2345 = vadd.f32 %v1895, %v2344
  %v2346 = vpop.f32.mrb[0].mxu0
  %v2347 = vadd.f32 %v1897, %v2346
  %2348 = vmatprep.mubr.bf16.mxu0 0
  %2349 = vmatmul.mubr.bf16.gmra.mrb[0].mxu0 %v2095
  %v2350 = vpop.f32.mrb[0].mxu0
  %v2351 = vadd.f32 %v1901, %v2350
  %v2352 = vpop.f32.mrb[0].mxu0
  %v2353 = vadd.f32 %v1903, %v2352
  %v2354 = vpop.f32.mrb[0].mxu0
  %v2355 = vadd.f32 %v1905, %v2354
  %v2356 = vpop.f32.mrb[0].mxu0
  %v2357 = vadd.f32 %v1907, %v2356
  %2358 = vmatprep.mubr.bf16.mxu0 0
  %2359 = vmatmul.mubr.bf16.gmra.mrb[0].mxu0 %v2098
  %v2360 = vpop.f32.mrb[0].mxu0
  %v2361 = vadd.f32 %v1911, %v2360
  %v2362 = vpop.f32.mrb[0].mxu0
  %v2363 = vadd.f32 %v1913, %v2362
  %v2364 = vpop.f32.mrb[0].mxu0
  %v2365 = vadd.f32 %v1915, %v2364
  %v2366 = vpop.f32.mrb[0].mxu0
  %v2367 = vadd.f32 %v1917, %v2366
  %2368 = vmatprep.mubr.bf16.mxu0 0
  %2369 = vmatmul.mubr.bf16.gmra.mrb[0].mxu0 %v2101
  %v2370 = vpop.f32.mrb[0].mxu0
  %v2371 = vadd.f32 %v1921, %v2370
  %v2372 = vpop.f32.mrb[0].mxu0
  %v2373 = vadd.f32 %v1923, %v2372
  %v2374 = vpop.f32.mrb[0].mxu0
  %v2375 = vadd.f32 %v1925, %v2374
  %v2376 = vpop.f32.mrb[0].mxu0
  %v2377 = vadd.f32 %v1927, %v2376
  %2378 = vmatprep.mubr.bf16.mxu0 0
  %2379 = vmatmul.mubr.bf16.gmra.mrb[0].mxu0 %v2104
  %v2380 = vpop.f32.mrb[0].mxu0
  %v2381 = vadd.f32 %v1931, %v2380
  %v2382 = vpop.f32.mrb[0].mxu0
  %v2383 = vadd.f32 %v1933, %v2382
  %v2384 = vpop.f32.mrb[0].mxu0
  %v2385 = vadd.f32 %v1935, %v2384
  %v2386 = vpop.f32.mrb[0].mxu0
  %v2387 = vadd.f32 %v1937, %v2386
  %2388 = vmatprep.mubr.bf16.mxu0 0
  %2389 = vmatmul.mubr.bf16.gmra.mrb[0].mxu0 %v2107
  %v2390 = vpop.f32.mrb[0].mxu0
  %v2391 = vadd.f32 %v1941, %v2390
  %v2392 = vpop.f32.mrb[0].mxu0
  %v2393 = vadd.f32 %v1943, %v2392
  %v2394 = vpop.f32.mrb[0].mxu0
  %v2395 = vadd.f32 %v1945, %v2394
  %v2396 = vpop.f32.mrb[0].mxu0
  %v2397 = vadd.f32 %v1947, %v2396
  %2398 = vmatprep.mubr.bf16.mxu0 0
  %2399 = vmatmul.mubr.bf16.gmra.mrb[0].mxu0 %v2110
  %v2400 = vpop.f32.mrb[0].mxu0
  %v2401 = vadd.f32 %v1951, %v2400
  %v2402 = vpop.f32.mrb[0].mxu0
  %v2403 = vadd.f32 %v1953, %v2402
  %v2404 = vpop.f32.mrb[0].mxu0
  %v2405 = vadd.f32 %v1955, %v2404
  %v2406 = vpop.f32.mrb[0].mxu0
  %v2407 = vadd.f32 %v1957, %v2406
  %2408 = vmatprep.mubr.bf16.mxu0 0
  %2409 = vmatmul.mubr.bf16.gmra.mrb[0].mxu0 %v2113
  %v2410 = vpop.f32.mrb[0].mxu0
  %v2411 = vadd.f32 %v1961, %v2410
  %v2412 = vpop.f32.mrb[0].mxu0
  %v2413 = vadd.f32 %v1963, %v2412
  %v2414 = vpop.f32.mrb[0].mxu0
  %v2415 = vadd.f32 %v1965, %v2414
  %v2416 = vpop.f32.mrb[0].mxu0
  %v2417 = vadd.f32 %v1967, %v2416
  %2418 = vmatprep.mubr.bf16.mxu0 0
  %2419 = vmatmul.mubr.bf16.gmra.mrb[0].mxu0 %v2116
  %v2420 = vpop.f32.mrb[0].mxu0
  %v2421 = vadd.f32 %v1971, %v2420
  %v2422 = vpop.f32.mrb[0].mxu0
  %v2423 = vadd.f32 %v1973, %v2422
  %v2424 = vpop.f32.mrb[0].mxu0
  %v2425 = vadd.f32 %v1975, %v2424
  %v2426 = vpop.f32.mrb[0].mxu0
  %v2427 = vadd.f32 %v1977, %v2426
  %2428 = vmatprep.mubr.bf16.mxu0 0
  %2429 = vmatmul.mubr.bf16.gmra.mrb[0].mxu0 %v2119
  %v2430 = vpop.f32.mrb[0].mxu0
  %v2431 = vadd.f32 %v1981, %v2430
  %v2432 = vpop.f32.mrb[0].mxu0
  %v2433 = vadd.f32 %v1983, %v2432
  %v2434 = vpop.f32.mrb[0].mxu0
  %v2435 = vadd.f32 %v1985, %v2434
  %v2436 = vpop.f32.mrb[0].mxu0
  %v2437 = vadd.f32 %v1987, %v2436
  %2438 = vmatprep.mubr.bf16.mxu0 0
  %2439 = vmatmul.mubr.bf16.gmra.mrb[0].mxu0 %v2122
  %v2440 = vpop.f32.mrb[0].mxu0
  %v2441 = vadd.f32 %v1991, %v2440
  %v2442 = vpop.f32.mrb[0].mxu0
  %v2443 = vadd.f32 %v1993, %v2442
  %v2444 = vpop.f32.mrb[0].mxu0
  %v2445 = vadd.f32 %v1995, %v2444
  %v2446 = vpop.f32.mrb[0].mxu0
  %v2447 = vadd.f32 %v1997, %v2446
  %2448 = vmatprep.mubr.bf16.mxu0 0
  %2449 = vmatmul.mubr.bf16.gmra.mrb[0].mxu0 %v2125
  %v2450 = vpop.f32.mrb[0].mxu0
  %v2451 = vadd.f32 %v2001, %v2450
  %v2452 = vpop.f32.mrb[0].mxu0
  %v2453 = vadd.f32 %v2003, %v2452
  %v2454 = vpop.f32.mrb[0].mxu0
  %v2455 = vadd.f32 %v2005, %v2454
  %v2456 = vpop.f32.mrb[0].mxu0
  %v2457 = vadd.f32 %v2007, %v2456
  %2458 = vmatprep.mubr.bf16.mxu0 0
  %2459 = vmatmul.mubr.bf16.gmra.mrb[0].mxu0 %v2128
  %v2460 = vpop.f32.mrb[0].mxu0
  %v2461 = vadd.f32 %v2011, %v2460
  %v2462 = vpop.f32.mrb[0].mxu0
  %v2463 = vadd.f32 %v2013, %v2462
  %v2464 = vpop.f32.mrb[0].mxu0
  %v2465 = vadd.f32 %v2015, %v2464
  %v2466 = vpop.f32.mrb[0].mxu0
  %v2467 = vadd.f32 %v2017, %v2466
  %2468 = vmatprep.mubr.bf16.mxu0 0
  %2469 = vmatmul.mubr.bf16.gmra.mrb[0].mxu0 %v2131
  %v2470 = vpop.f32.mrb[0].mxu0
  %v2471 = vadd.f32 %v2021, %v2470
  %v2472 = vpop.f32.mrb[0].mxu0
  %v2473 = vadd.f32 %v2023, %v2472
  %v2474 = vpop.f32.mrb[0].mxu0
  %v2475 = vadd.f32 %v2025, %v2474
  %v2476 = vpop.f32.mrb[0].mxu0
  %v2477 = vadd.f32 %v2027, %v2476
  %2478 = vmatprep.mubr.bf16.mxu0 0
  %2479 = vmatmul.mubr.bf16.gmra.mrb[0].mxu0 %v2134
  %v2480 = vpop.f32.mrb[0].mxu0
  %v2481 = vadd.f32 %v2031, %v2480
  %v2482 = vpop.f32.mrb[0].mxu0
  %v2483 = vadd.f32 %v2033, %v2482
  %v2484 = vpop.f32.mrb[0].mxu0
  %v2485 = vadd.f32 %v2035, %v2484
  %v2486 = vpop.f32.mrb[0].mxu0
  %v2487 = vadd.f32 %v2037, %v2486
  %2488 = vdwg.mxu0
  %v2489 = vld [vmem:[%s7] sm:$0x3]
  %v2491 = vlaneseq
  %v2492 = vshrl.u32 %v2491, 7
  %v2493 = vsub.s32 0, %v2492
  %v2494 = vrot.slane %v2489, %v2493
  %v2495 = vlaneseq
  %v2496 = vshrl.u32 %v2495, 7
  %v2497 = vsub.s32 1, %v2496
  %v2498 = vrot.slane %v2489, %v2497
  %v2501 = vadd.f32 %v2171, %v2494
  %v2502 = vadd.f32 %v2173, %v2498
  %v2503 = vadd.f32 %v2175, %v2494
  %v2504 = vadd.f32 %v2177, %v2498
  %v2505 = vadd.f32 %v2181, %v2494
  %v2506 = vadd.f32 %v2183, %v2498
  %v2507 = vadd.f32 %v2185, %v2494
  %v2508 = vadd.f32 %v2187, %v2498
  %v2509 = vadd.f32 %v2191, %v2494
  %v2510 = vadd.f32 %v2193, %v2498
  %v2511 = vadd.f32 %v2195, %v2494
  %v2512 = vadd.f32 %v2197, %v2498
  %v2513 = vadd.f32 %v2201, %v2494
  %v2514 = vadd.f32 %v2203, %v2498
  %v2515 = vadd.f32 %v2205, %v2494
  %v2516 = vadd.f32 %v2207, %v2498
  %v2517 = vadd.f32 %v2211, %v2494
  %v2518 = vadd.f32 %v2213, %v2498
  %v2519 = vadd.f32 %v2215, %v2494
  %v2520 = vadd.f32 %v2217, %v2498
  %v2521 = vadd.f32 %v2221, %v2494
  %v2522 = vadd.f32 %v2223, %v2498
  %v2523 = vadd.f32 %v2225, %v2494
  %v2524 = vadd.f32 %v2227, %v2498
  %v2525 = vadd.f32 %v2231, %v2494
  %v2526 = vadd.f32 %v2233, %v2498
  %v2527 = vadd.f32 %v2235, %v2494
  %v2528 = vadd.f32 %v2237, %v2498
  %v2529 = vadd.f32 %v2241, %v2494
  %v2530 = vadd.f32 %v2243, %v2498
  %v2531 = vadd.f32 %v2245, %v2494
  %v2532 = vadd.f32 %v2247, %v2498
  %v2533 = vadd.f32 %v2251, %v2494
  %v2534 = vadd.f32 %v2253, %v2498
  %v2535 = vadd.f32 %v2255, %v2494
  %v2536 = vadd.f32 %v2257, %v2498
  %v2537 = vadd.f32 %v2261, %v2494
  %v2538 = vadd.f32 %v2263, %v2498
  %v2539 = vadd.f32 %v2265, %v2494
  %v2540 = vadd.f32 %v2267, %v2498
  %v2541 = vadd.f32 %v2271, %v2494
  %v2542 = vadd.f32 %v2273, %v2498
  %v2543 = vadd.f32 %v2275, %v2494
  %v2544 = vadd.f32 %v2277, %v2498
  %v2545 = vadd.f32 %v2281, %v2494
  %v2546 = vadd.f32 %v2283, %v2498
  %v2547 = vadd.f32 %v2285, %v2494
  %v2548 = vadd.f32 %v2287, %v2498
  %v2549 = vadd.f32 %v2291, %v2494
  %v2550 = vadd.f32 %v2293, %v2498
  %v2551 = vadd.f32 %v2295, %v2494
  %v2552 = vadd.f32 %v2297, %v2498
  %v2553 = vadd.f32 %v2301, %v2494
  %v2554 = vadd.f32 %v2303, %v2498
  %v2555 = vadd.f32 %v2305, %v2494
  %v2556 = vadd.f32 %v2307, %v2498
  %v2557 = vadd.f32 %v2311, %v2494
  %v2558 = vadd.f32 %v2313, %v2498
  %v2559 = vadd.f32 %v2315, %v2494
  %v2560 = vadd.f32 %v2317, %v2498
  %v2561 = vadd.f32 %v2321, %v2494
  %v2562 = vadd.f32 %v2323, %v2498
  %v2563 = vadd.f32 %v2325, %v2494
  %v2564 = vadd.f32 %v2327, %v2498
  %v2565 = vadd.f32 %v2331, %v2494
  %v2566 = vadd.f32 %v2333, %v2498
  %v2567 = vadd.f32 %v2335, %v2494
  %v2568 = vadd.f32 %v2337, %v2498
  %v2569 = vadd.f32 %v2341, %v2494
  %v2570 = vadd.f32 %v2343, %v2498
  %v2571 = vadd.f32 %v2345, %v2494
  %v2572 = vadd.f32 %v2347, %v2498
  %v2573 = vadd.f32 %v2351, %v2494
  %v2574 = vadd.f32 %v2353, %v2498
  %v2575 = vadd.f32 %v2355, %v2494
  %v2576 = vadd.f32 %v2357, %v2498
  %v2577 = vadd.f32 %v2361, %v2494
  %v2578 = vadd.f32 %v2363, %v2498
  %v2579 = vadd.f32 %v2365, %v2494
  %v2580 = vadd.f32 %v2367, %v2498
  %v2581 = vadd.f32 %v2371, %v2494
  %v2582 = vadd.f32 %v2373, %v2498
  %v2583 = vadd.f32 %v2375, %v2494
  %v2584 = vadd.f32 %v2377, %v2498
  %v2585 = vadd.f32 %v2381, %v2494
  %v2586 = vadd.f32 %v2383, %v2498
  %v2587 = vadd.f32 %v2385, %v2494
  %v2588 = vadd.f32 %v2387, %v2498
  %v2589 = vadd.f32 %v2391, %v2494
  %v2590 = vadd.f32 %v2393, %v2498
  %v2591 = vadd.f32 %v2395, %v2494
  %v2592 = vadd.f32 %v2397, %v2498
  %v2593 = vadd.f32 %v2401, %v2494
  %v2594 = vadd.f32 %v2403, %v2498
  %v2595 = vadd.f32 %v2405, %v2494
  %v2596 = vadd.f32 %v2407, %v2498
  %v2597 = vadd.f32 %v2411, %v2494
  %v2598 = vadd.f32 %v2413, %v2498
  %v2599 = vadd.f32 %v2415, %v2494
  %v2600 = vadd.f32 %v2417, %v2498
  %v2601 = vadd.f32 %v2421, %v2494
  %v2602 = vadd.f32 %v2423, %v2498
  %v2603 = vadd.f32 %v2425, %v2494
  %v2604 = vadd.f32 %v2427, %v2498
  %v2605 = vadd.f32 %v2431, %v2494
  %v2606 = vadd.f32 %v2433, %v2498
  %v2607 = vadd.f32 %v2435, %v2494
  %v2608 = vadd.f32 %v2437, %v2498
  %v2609 = vadd.f32 %v2441, %v2494
  %v2610 = vadd.f32 %v2443, %v2498
  %v2611 = vadd.f32 %v2445, %v2494
  %v2612 = vadd.f32 %v2447, %v2498
  %v2613 = vadd.f32 %v2451, %v2494
  %v2614 = vadd.f32 %v2453, %v2498
  %v2615 = vadd.f32 %v2455, %v2494
  %v2616 = vadd.f32 %v2457, %v2498
  %v2617 = vadd.f32 %v2461, %v2494
  %v2618 = vadd.f32 %v2463, %v2498
  %v2619 = vadd.f32 %v2465, %v2494
  %v2620 = vadd.f32 %v2467, %v2498
  %v2621 = vadd.f32 %v2471, %v2494
  %v2622 = vadd.f32 %v2473, %v2498
  %v2623 = vadd.f32 %v2475, %v2494
  %v2624 = vadd.f32 %v2477, %v2498
  %v2625 = vadd.f32 %v2481, %v2494
  %v2626 = vadd.f32 %v2483, %v2498
  %v2627 = vadd.f32 %v2485, %v2494
  %v2628 = vadd.f32 %v2487, %v2498
  %v2629 = vpack.c.bf16 %v1285, %v1282
  %v2630 = vpack.c.bf16 %v1293, %v1290
  %v2631 = vpack.c.bf16 %v1301, %v1298
  %v2632 = vpack.c.bf16 %v1309, %v1306
  %v2634 = vsel %vm2039, %v936, 0
  %v2637 = vsel %vm2039, %v937, 0
  %v2640 = vsel %vm2039, %v938, 0
  %v2643 = vsel %vm2039, %v939, 0
  %v2646 = vsel %vm2039, %v940, 0
  %v2649 = vsel %vm2039, %v941, 0
  %v2652 = vsel %vm2039, %v942, 0
  %v2655 = vsel %vm2039, %v943, 0
  %v2658 = vsel %vm2039, %v944, 0
  %v2661 = vsel %vm2039, %v945, 0
  %v2664 = vsel %vm2039, %v946, 0
  %v2667 = vsel %vm2039, %v947, 0
  %v2670 = vsel %vm2039, %v948, 0
  %v2673 = vsel %vm2039, %v949, 0
  %v2676 = vsel %vm2039, %v950, 0
  %v2679 = vsel %vm2039, %v951, 0
  %v2682 = vsel %vm2039, %v952, 0
  %v2685 = vsel %vm2039, %v953, 0
  %v2688 = vsel %vm2039, %v954, 0
  %v2691 = vsel %vm2039, %v955, 0
  %v2694 = vsel %vm2039, %v956, 0
  %v2697 = vsel %vm2039, %v957, 0
  %v2700 = vsel %vm2039, %v958, 0
  %v2703 = vsel %vm2039, %v959, 0
  %v2706 = vsel %vm2039, %v960, 0
  %v2709 = vsel %vm2039, %v961, 0
  %v2712 = vsel %vm2039, %v962, 0
  %v2715 = vsel %vm2039, %v963, 0
  %v2718 = vsel %vm2039, %v964, 0
  %v2721 = vsel %vm2039, %v965, 0
  %v2724 = vsel %vm2039, %v966, 0
  %v2727 = vsel %vm2039, %v967, 0
  %2729 = vmatprep.subr.bf16.mxu0 0
  %2730 = vmatpush1.bf16.msra.mxu0 %v2629
  %2731 = vmatprep.subr.bf16.mxu0 0
  %2732 = vmatpush1.bf16.msra.mxu0 %v2630
  %2733 = vmatprep.subr.bf16.mxu0 0
  %2734 = vmatpush1.bf16.msra.mxu0 %v2631
  %2735 = vmatprep.subr.bf16.mxu0 0
  %2736 = vmatpush1.bf16.msra.mxu0 %v2632
  %2737 = vmatprep.subr.bf16.mxu0 0
  %2738 = vmatpush1.bf16.msra.mxu0 0
  %2739 = vmatprep.subr.bf16.mxu0 0
  %2740 = vmatpush1.bf16.msra.mxu0 0
  %2741 = vmatprep.subr.bf16.mxu0 0
  %2742 = vmatpush1.bf16.msra.mxu0 0
  %2743 = vmatprep.subr.bf16.mxu0 0
  %2744 = vmatpush1.bf16.msra.mxu0 0
  %2745 = vmatprep.subr.bf16.mxu0 0
  %2746 = vmatpush1.bf16.msra.mxu0 0
  %2747 = vmatprep.subr.bf16.mxu0 0
  %2748 = vmatpush1.bf16.msra.mxu0 0
  %2749 = vmatprep.subr.bf16.mxu0 0
  %2750 = vmatpush1.bf16.msra.mxu0 0
  %2751 = vmatprep.subr.bf16.mxu0 0
  %2752 = vmatpush1.bf16.msra.mxu0 0
  %2753 = vmatprep.subr.bf16.mxu0 0
  %2754 = vmatpush1.bf16.msra.mxu0 0
  %2755 = vmatprep.subr.bf16.mxu0 0
  %2756 = vmatpush1.bf16.msra.mxu0 0
  %2757 = vmatprep.subr.bf16.mxu0 0
  %2758 = vmatpush1.bf16.msra.mxu0 0
  %2759 = vmatprep.subr.bf16.mxu0 0
  %2760 = vmatpush1.bf16.msra.mxu0 0
  %2761 = vmatprep.mubr.bf16.mxu0 0
  %2762 = vmatmul.mubr.bf16.gmra.mrb[0].mxu0 %v2634
  %v2763 = vpop.f32.mrb[0].mxu0
  %v2764 = vadd.f32 0.0, %v2763
  %v2765 = vpop.f32.mrb[0].mxu0
  %v2766 = vpop.f32.mrb[0].mxu0
  %v2767 = vadd.f32 0.0, %v2766
  %v2768 = vpop.f32.mrb[0].mxu0
  %2769 = vmatprep.mubr.bf16.mxu0 0
  %2770 = vmatmul.mubr.bf16.gmra.mrb[0].mxu0 %v2637
  %v2771 = vpop.f32.mrb[0].mxu0
  %v2772 = vadd.f32 0.0, %v2771
  %v2773 = vpop.f32.mrb[0].mxu0
  %v2774 = vpop.f32.mrb[0].mxu0
  %v2775 = vadd.f32 0.0, %v2774
  %v2776 = vpop.f32.mrb[0].mxu0
  %2777 = vmatprep.mubr.bf16.mxu0 0
  %2778 = vmatmul.mubr.bf16.gmra.mrb[0].mxu0 %v2640
  %v2779 = vpop.f32.mrb[0].mxu0
  %v2780 = vadd.f32 0.0, %v2779
  %v2781 = vpop.f32.mrb[0].mxu0
  %v2782 = vpop.f32.mrb[0].mxu0
  %v2783 = vadd.f32 0.0, %v2782
  %v2784 = vpop.f32.mrb[0].mxu0
  %2785 = vmatprep.mubr.bf16.mxu0 0
  %2786 = vmatmul.mubr.bf16.gmra.mrb[0].mxu0 %v2643
  %v2787 = vpop.f32.mrb[0].mxu0
  %v2788 = vadd.f32 0.0, %v2787
  %v2789 = vpop.f32.mrb[0].mxu0
  %v2790 = vpop.f32.mrb[0].mxu0
  %v2791 = vadd.f32 0.0, %v2790
  %v2792 = vpop.f32.mrb[0].mxu0
  %2793 = vmatprep.mubr.bf16.mxu0 0
  %2794 = vmatmul.mubr.bf16.gmra.mrb[0].mxu0 %v2646
  %v2795 = vpop.f32.mrb[0].mxu0
  %v2796 = vadd.f32 0.0, %v2795
  %v2797 = vpop.f32.mrb[0].mxu0
  %v2798 = vpop.f32.mrb[0].mxu0
  %v2799 = vadd.f32 0.0, %v2798
  %v2800 = vpop.f32.mrb[0].mxu0
  %2801 = vmatprep.mubr.bf16.mxu0 0
  %2802 = vmatmul.mubr.bf16.gmra.mrb[0].mxu0 %v2649
  %v2803 = vpop.f32.mrb[0].mxu0
  %v2804 = vadd.f32 0.0, %v2803
  %v2805 = vpop.f32.mrb[0].mxu0
  %v2806 = vpop.f32.mrb[0].mxu0
  %v2807 = vadd.f32 0.0, %v2806
  %v2808 = vpop.f32.mrb[0].mxu0
  %2809 = vmatprep.mubr.bf16.mxu0 0
  %2810 = vmatmul.mubr.bf16.gmra.mrb[0].mxu0 %v2652
  %v2811 = vpop.f32.mrb[0].mxu0
  %v2812 = vadd.f32 0.0, %v2811
  %v2813 = vpop.f32.mrb[0].mxu0
  %v2814 = vpop.f32.mrb[0].mxu0
  %v2815 = vadd.f32 0.0, %v2814
  %v2816 = vpop.f32.mrb[0].mxu0
  %2817 = vmatprep.mubr.bf16.mxu0 0
  %2818 = vmatmul.mubr.bf16.gmra.mrb[0].mxu0 %v2655
  %v2819 = vpop.f32.mrb[0].mxu0
  %v2820 = vadd.f32 0.0, %v2819
  %v2821 = vpop.f32.mrb[0].mxu0
  %v2822 = vpop.f32.mrb[0].mxu0
  %v2823 = vadd.f32 0.0, %v2822
  %v2824 = vpop.f32.mrb[0].mxu0
  %2825 = vmatprep.mubr.bf16.mxu0 0
  %2826 = vmatmul.mubr.bf16.gmra.mrb[0].mxu0 %v2658
  %v2827 = vpop.f32.mrb[0].mxu0
  %v2828 = vadd.f32 0.0, %v2827
  %v2829 = vpop.f32.mrb[0].mxu0
  %v2830 = vpop.f32.mrb[0].mxu0
  %v2831 = vadd.f32 0.0, %v2830
  %v2832 = vpop.f32.mrb[0].mxu0
  %2833 = vmatprep.mubr.bf16.mxu0 0
  %2834 = vmatmul.mubr.bf16.gmra.mrb[0].mxu0 %v2661
  %v2835 = vpop.f32.mrb[0].mxu0
  %v2836 = vadd.f32 0.0, %v2835
  %v2837 = vpop.f32.mrb[0].mxu0
  %v2838 = vpop.f32.mrb[0].mxu0
  %v2839 = vadd.f32 0.0, %v2838
  %v2840 = vpop.f32.mrb[0].mxu0
  %2841 = vmatprep.mubr.bf16.mxu0 0
  %2842 = vmatmul.mubr.bf16.gmra.mrb[0].mxu0 %v2664
  %v2843 = vpop.f32.mrb[0].mxu0
  %v2844 = vadd.f32 0.0, %v2843
  %v2845 = vpop.f32.mrb[0].mxu0
  %v2846 = vpop.f32.mrb[0].mxu0
  %v2847 = vadd.f32 0.0, %v2846
  %v2848 = vpop.f32.mrb[0].mxu0
  %2849 = vmatprep.mubr.bf16.mxu0 0
  %2850 = vmatmul.mubr.bf16.gmra.mrb[0].mxu0 %v2667
  %v2851 = vpop.f32.mrb[0].mxu0
  %v2852 = vadd.f32 0.0, %v2851
  %v2853 = vpop.f32.mrb[0].mxu0
  %v2854 = vpop.f32.mrb[0].mxu0
  %v2855 = vadd.f32 0.0, %v2854
  %v2856 = vpop.f32.mrb[0].mxu0
  %2857 = vmatprep.mubr.bf16.mxu0 0
  %2858 = vmatmul.mubr.bf16.gmra.mrb[0].mxu0 %v2670
  %v2859 = vpop.f32.mrb[0].mxu0
  %v2860 = vadd.f32 0.0, %v2859
  %v2861 = vpop.f32.mrb[0].mxu0
  %v2862 = vpop.f32.mrb[0].mxu0
  %v2863 = vadd.f32 0.0, %v2862
  %v2864 = vpop.f32.mrb[0].mxu0
  %2865 = vmatprep.mubr.bf16.mxu0 0
  %2866 = vmatmul.mubr.bf16.gmra.mrb[0].mxu0 %v2673
  %v2867 = vpop.f32.mrb[0].mxu0
  %v2868 = vadd.f32 0.0, %v2867
  %v2869 = vpop.f32.mrb[0].mxu0
  %v2870 = vpop.f32.mrb[0].mxu0
  %v2871 = vadd.f32 0.0, %v2870
  %v2872 = vpop.f32.mrb[0].mxu0
  %2873 = vmatprep.mubr.bf16.mxu0 0
  %2874 = vmatmul.mubr.bf16.gmra.mrb[0].mxu0 %v2676
  %v2875 = vpop.f32.mrb[0].mxu0
  %v2876 = vadd.f32 0.0, %v2875
  %v2877 = vpop.f32.mrb[0].mxu0
  %v2878 = vpop.f32.mrb[0].mxu0
  %v2879 = vadd.f32 0.0, %v2878
  %v2880 = vpop.f32.mrb[0].mxu0
  %2881 = vmatprep.mubr.bf16.mxu0 0
  %2882 = vmatmul.mubr.bf16.gmra.mrb[0].mxu0 %v2679
  %v2883 = vpop.f32.mrb[0].mxu0
  %v2884 = vadd.f32 0.0, %v2883
  %v2885 = vpop.f32.mrb[0].mxu0
  %v2886 = vpop.f32.mrb[0].mxu0
  %v2887 = vadd.f32 0.0, %v2886
  %v2888 = vpop.f32.mrb[0].mxu0
  %2889 = vmatprep.mubr.bf16.mxu0 0
  %2890 = vmatmul.mubr.bf16.gmra.mrb[0].mxu0 %v2682
  %v2891 = vpop.f32.mrb[0].mxu0
  %v2892 = vadd.f32 0.0, %v2891
  %v2893 = vpop.f32.mrb[0].mxu0
  %v2894 = vpop.f32.mrb[0].mxu0
  %v2895 = vadd.f32 0.0, %v2894
  %v2896 = vpop.f32.mrb[0].mxu0
  %2897 = vmatprep.mubr.bf16.mxu0 0
  %2898 = vmatmul.mubr.bf16.gmra.mrb[0].mxu0 %v2685
  %v2899 = vpop.f32.mrb[0].mxu0
  %v2900 = vadd.f32 0.0, %v2899
  %v2901 = vpop.f32.mrb[0].mxu0
  %v2902 = vpop.f32.mrb[0].mxu0
  %v2903 = vadd.f32 0.0, %v2902
  %v2904 = vpop.f32.mrb[0].mxu0
  %2905 = vmatprep.mubr.bf16.mxu0 0
  %2906 = vmatmul.mubr.bf16.gmra.mrb[0].mxu0 %v2688
  %v2907 = vpop.f32.mrb[0].mxu0
  %v2908 = vadd.f32 0.0, %v2907
  %v2909 = vpop.f32.mrb[0].mxu0
  %v2910 = vpop.f32.mrb[0].mxu0
  %v2911 = vadd.f32 0.0, %v2910
  %v2912 = vpop.f32.mrb[0].mxu0
  %2913 = vmatprep.mubr.bf16.mxu0 0
  %2914 = vmatmul.mubr.bf16.gmra.mrb[0].mxu0 %v2691
  %v2915 = vpop.f32.mrb[0].mxu0
  %v2916 = vadd.f32 0.0, %v2915
  %v2917 = vpop.f32.mrb[0].mxu0
  %v2918 = vpop.f32.mrb[0].mxu0
  %v2919 = vadd.f32 0.0, %v2918
  %v2920 = vpop.f32.mrb[0].mxu0
  %2921 = vmatprep.mubr.bf16.mxu0 0
  %2922 = vmatmul.mubr.bf16.gmra.mrb[0].mxu0 %v2694
  %v2923 = vpop.f32.mrb[0].mxu0
  %v2924 = vadd.f32 0.0, %v2923
  %v2925 = vpop.f32.mrb[0].mxu0
  %v2926 = vpop.f32.mrb[0].mxu0
  %v2927 = vadd.f32 0.0, %v2926
  %v2928 = vpop.f32.mrb[0].mxu0
  %2929 = vmatprep.mubr.bf16.mxu0 0
  %2930 = vmatmul.mubr.bf16.gmra.mrb[0].mxu0 %v2697
  %v2931 = vpop.f32.mrb[0].mxu0
  %v2932 = vadd.f32 0.0, %v2931
  %v2933 = vpop.f32.mrb[0].mxu0
  %v2934 = vpop.f32.mrb[0].mxu0
  %v2935 = vadd.f32 0.0, %v2934
  %v2936 = vpop.f32.mrb[0].mxu0
  %2937 = vmatprep.mubr.bf16.mxu0 0
  %2938 = vmatmul.mubr.bf16.gmra.mrb[0].mxu0 %v2700
  %v2939 = vpop.f32.mrb[0].mxu0
  %v2940 = vadd.f32 0.0, %v2939
  %v2941 = vpop.f32.mrb[0].mxu0
  %v2942 = vpop.f32.mrb[0].mxu0
  %v2943 = vadd.f32 0.0, %v2942
  %v2944 = vpop.f32.mrb[0].mxu0
  %2945 = vmatprep.mubr.bf16.mxu0 0
  %2946 = vmatmul.mubr.bf16.gmra.mrb[0].mxu0 %v2703
  %v2947 = vpop.f32.mrb[0].mxu0
  %v2948 = vadd.f32 0.0, %v2947
  %v2949 = vpop.f32.mrb[0].mxu0
  %v2950 = vpop.f32.mrb[0].mxu0
  %v2951 = vadd.f32 0.0, %v2950
  %v2952 = vpop.f32.mrb[0].mxu0
  %2953 = vmatprep.mubr.bf16.mxu0 0
  %2954 = vmatmul.mubr.bf16.gmra.mrb[0].mxu0 %v2706
  %v2955 = vpop.f32.mrb[0].mxu0
  %v2956 = vadd.f32 0.0, %v2955
  %v2957 = vpop.f32.mrb[0].mxu0
  %v2958 = vpop.f32.mrb[0].mxu0
  %v2959 = vadd.f32 0.0, %v2958
  %v2960 = vpop.f32.mrb[0].mxu0
  %2961 = vmatprep.mubr.bf16.mxu0 0
  %2962 = vmatmul.mubr.bf16.gmra.mrb[0].mxu0 %v2709
  %v2963 = vpop.f32.mrb[0].mxu0
  %v2964 = vadd.f32 0.0, %v2963
  %v2965 = vpop.f32.mrb[0].mxu0
  %v2966 = vpop.f32.mrb[0].mxu0
  %v2967 = vadd.f32 0.0, %v2966
  %v2968 = vpop.f32.mrb[0].mxu0
  %2969 = vmatprep.mubr.bf16.mxu0 0
  %2970 = vmatmul.mubr.bf16.gmra.mrb[0].mxu0 %v2712
  %v2971 = vpop.f32.mrb[0].mxu0
  %v2972 = vadd.f32 0.0, %v2971
  %v2973 = vpop.f32.mrb[0].mxu0
  %v2974 = vpop.f32.mrb[0].mxu0
  %v2975 = vadd.f32 0.0, %v2974
  %v2976 = vpop.f32.mrb[0].mxu0
  %2977 = vmatprep.mubr.bf16.mxu0 0
  %2978 = vmatmul.mubr.bf16.gmra.mrb[0].mxu0 %v2715
  %v2979 = vpop.f32.mrb[0].mxu0
  %v2980 = vadd.f32 0.0, %v2979
  %v2981 = vpop.f32.mrb[0].mxu0
  %v2982 = vpop.f32.mrb[0].mxu0
  %v2983 = vadd.f32 0.0, %v2982
  %v2984 = vpop.f32.mrb[0].mxu0
  %2985 = vmatprep.mubr.bf16.mxu0 0
  %2986 = vmatmul.mubr.bf16.gmra.mrb[0].mxu0 %v2718
  %v2987 = vpop.f32.mrb[0].mxu0
  %v2988 = vadd.f32 0.0, %v2987
  %v2989 = vpop.f32.mrb[0].mxu0
  %v2990 = vpop.f32.mrb[0].mxu0
  %v2991 = vadd.f32 0.0, %v2990
  %v2992 = vpop.f32.mrb[0].mxu0
  %2993 = vmatprep.mubr.bf16.mxu0 0
  %2994 = vmatmul.mubr.bf16.gmra.mrb[0].mxu0 %v2721
  %v2995 = vpop.f32.mrb[0].mxu0
  %v2996 = vadd.f32 0.0, %v2995
  %v2997 = vpop.f32.mrb[0].mxu0
  %v2998 = vpop.f32.mrb[0].mxu0
  %v2999 = vadd.f32 0.0, %v2998
  %v3000 = vpop.f32.mrb[0].mxu0
  %3001 = vmatprep.mubr.bf16.mxu0 0
  %3002 = vmatmul.mubr.bf16.gmra.mrb[0].mxu0 %v2724
  %v3003 = vpop.f32.mrb[0].mxu0
  %v3004 = vadd.f32 0.0, %v3003
  %v3005 = vpop.f32.mrb[0].mxu0
  %v3006 = vpop.f32.mrb[0].mxu0
  %v3007 = vadd.f32 0.0, %v3006
  %v3008 = vpop.f32.mrb[0].mxu0
  %3009 = vmatprep.mubr.bf16.mxu0 0
  %3010 = vmatmul.mubr.bf16.gmra.mrb[0].mxu0 %v2727
  %v3011 = vpop.f32.mrb[0].mxu0
  %v3012 = vadd.f32 0.0, %v3011
  %v3013 = vpop.f32.mrb[0].mxu0
  %v3014 = vpop.f32.mrb[0].mxu0
  %v3015 = vadd.f32 0.0, %v3014
  %v3016 = vpop.f32.mrb[0].mxu0
  %3017 = vdwg.mxu0
  %v3018 = vmul.f32 %v2764, %v2502
  %v3019 = vmul.f32 %v2767, %v2504
  %v3020 = vmul.f32 %v2772, %v2506
  %v3021 = vmul.f32 %v2775, %v2508
  %v3022 = vmul.f32 %v2780, %v2510
  %v3023 = vmul.f32 %v2783, %v2512
  %v3024 = vmul.f32 %v2788, %v2514
  %v3025 = vmul.f32 %v2791, %v2516
  %v3026 = vmul.f32 %v2796, %v2518
  %v3027 = vmul.f32 %v2799, %v2520
  %v3028 = vmul.f32 %v2804, %v2522
  %v3029 = vmul.f32 %v2807, %v2524
  %v3030 = vmul.f32 %v2812, %v2526
  %v3031 = vmul.f32 %v2815, %v2528
  %v3032 = vmul.f32 %v2820, %v2530
  %v3033 = vmul.f32 %v2823, %v2532
  %v3034 = vmul.f32 %v2828, %v2534
  %v3035 = vmul.f32 %v2831, %v2536
  %v3036 = vmul.f32 %v2836, %v2538
  %v3037 = vmul.f32 %v2839, %v2540
  %v3038 = vmul.f32 %v2844, %v2542
  %v3039 = vmul.f32 %v2847, %v2544
  %v3040 = vmul.f32 %v2852, %v2546
  %v3041 = vmul.f32 %v2855, %v2548
  %v3042 = vmul.f32 %v2860, %v2550
  %v3043 = vmul.f32 %v2863, %v2552
  %v3044 = vmul.f32 %v2868, %v2554
  %v3045 = vmul.f32 %v2871, %v2556
  %v3046 = vmul.f32 %v2876, %v2558
  %v3047 = vmul.f32 %v2879, %v2560
  %v3048 = vmul.f32 %v2884, %v2562
  %v3049 = vmul.f32 %v2887, %v2564
  %v3050 = vmul.f32 %v2892, %v2566
  %v3051 = vmul.f32 %v2895, %v2568
  %v3052 = vmul.f32 %v2900, %v2570
  %v3053 = vmul.f32 %v2903, %v2572
  %v3054 = vmul.f32 %v2908, %v2574
  %v3055 = vmul.f32 %v2911, %v2576
  %v3056 = vmul.f32 %v2916, %v2578
  %v3057 = vmul.f32 %v2919, %v2580
  %v3058 = vmul.f32 %v2924, %v2582
  %v3059 = vmul.f32 %v2927, %v2584
  %v3060 = vmul.f32 %v2932, %v2586
  %v3061 = vmul.f32 %v2935, %v2588
  %v3062 = vmul.f32 %v2940, %v2590
  %v3063 = vmul.f32 %v2943, %v2592
  %v3064 = vmul.f32 %v2948, %v2594
  %v3065 = vmul.f32 %v2951, %v2596
  %v3066 = vmul.f32 %v2956, %v2598
  %v3067 = vmul.f32 %v2959, %v2600
  %v3068 = vmul.f32 %v2964, %v2602
  %v3069 = vmul.f32 %v2967, %v2604
  %v3070 = vmul.f32 %v2972, %v2606
  %v3071 = vmul.f32 %v2975, %v2608
  %v3072 = vmul.f32 %v2980, %v2610
  %v3073 = vmul.f32 %v2983, %v2612
  %v3074 = vmul.f32 %v2988, %v2614
  %v3075 = vmul.f32 %v2991, %v2616
  %v3076 = vmul.f32 %v2996, %v2618
  %v3077 = vmul.f32 %v2999, %v2620
  %v3078 = vmul.f32 %v3004, %v2622
  %v3079 = vmul.f32 %v3007, %v2624
  %v3080 = vmul.f32 %v3012, %v2626
  %v3081 = vmul.f32 %v3015, %v2628
  %v3082 = vpack.c.bf16 %v3019, %v3018
  %v3083 = vpack.c.bf16 %v3021, %v3020
  %v3084 = vpack.c.bf16 %v3023, %v3022
  %v3085 = vpack.c.bf16 %v3025, %v3024
  %v3086 = vpack.c.bf16 %v3027, %v3026
  %v3087 = vpack.c.bf16 %v3029, %v3028
  %v3088 = vpack.c.bf16 %v3031, %v3030
  %v3089 = vpack.c.bf16 %v3033, %v3032
  %v3090 = vpack.c.bf16 %v3035, %v3034
  %v3091 = vpack.c.bf16 %v3037, %v3036
  %v3092 = vpack.c.bf16 %v3039, %v3038
  %v3093 = vpack.c.bf16 %v3041, %v3040
  %v3094 = vpack.c.bf16 %v3043, %v3042
  %v3095 = vpack.c.bf16 %v3045, %v3044
  %v3096 = vpack.c.bf16 %v3047, %v3046
  %v3097 = vpack.c.bf16 %v3049, %v3048
  %v3098 = vpack.c.bf16 %v3051, %v3050
  %v3099 = vpack.c.bf16 %v3053, %v3052
  %v3100 = vpack.c.bf16 %v3055, %v3054
  %v3101 = vpack.c.bf16 %v3057, %v3056
  %v3102 = vpack.c.bf16 %v3059, %v3058
  %v3103 = vpack.c.bf16 %v3061, %v3060
  %v3104 = vpack.c.bf16 %v3063, %v3062
  %v3105 = vpack.c.bf16 %v3065, %v3064
  %v3106 = vpack.c.bf16 %v3067, %v3066
  %v3107 = vpack.c.bf16 %v3069, %v3068
  %v3108 = vpack.c.bf16 %v3071, %v3070
  %v3109 = vpack.c.bf16 %v3073, %v3072
  %v3110 = vpack.c.bf16 %v3075, %v3074
  %v3111 = vpack.c.bf16 %v3077, %v3076
  %v3112 = vpack.c.bf16 %v3079, %v3078
  %v3113 = vpack.c.bf16 %v3081, %v3080
  %v3115 = vsel %vm2039, %v3082, 0
  %v3118 = vsel %vm2039, %v3083, 0
  %v3121 = vsel %vm2039, %v3084, 0
  %v3124 = vsel %vm2039, %v3085, 0
  %v3127 = vsel %vm2039, %v3086, 0
  %v3130 = vsel %vm2039, %v3087, 0
  %v3133 = vsel %vm2039, %v3088, 0
  %v3136 = vsel %vm2039, %v3089, 0
  %v3139 = vsel %vm2039, %v3090, 0
  %v3142 = vsel %vm2039, %v3091, 0
  %v3145 = vsel %vm2039, %v3092, 0
  %v3148 = vsel %vm2039, %v3093, 0
  %v3151 = vsel %vm2039, %v3094, 0
  %v3154 = vsel %vm2039, %v3095, 0
  %v3157 = vsel %vm2039, %v3096, 0
  %v3160 = vsel %vm2039, %v3097, 0
  %v3163 = vsel %vm2039, %v3098, 0
  %v3166 = vsel %vm2039, %v3099, 0
  %v3169 = vsel %vm2039, %v3100, 0
  %v3172 = vsel %vm2039, %v3101, 0
  %v3175 = vsel %vm2039, %v3102, 0
  %v3178 = vsel %vm2039, %v3103, 0
  %v3181 = vsel %vm2039, %v3104, 0
  %v3184 = vsel %vm2039, %v3105, 0
  %v3187 = vsel %vm2039, %v3106, 0
  %v3190 = vsel %vm2039, %v3107, 0
  %v3193 = vsel %vm2039, %v3108, 0
  %v3196 = vsel %vm2039, %v3109, 0
  %v3199 = vsel %vm2039, %v3110, 0
  %v3202 = vsel %vm2039, %v3111, 0
  %v3205 = vsel %vm2039, %v3112, 0
  %v3208 = vsel %vm2039, %v3113, 0
  %3210 = vmatprep.subr.bf16.mxu0 0
  %3211 = vmatpush1.bf16.msra.mxu0 %v1196
  %3212 = vmatprep.subr.bf16.mxu0 0
  %3213 = vmatpush1.bf16.msra.mxu0 %v1197
  %3214 = vmatprep.subr.bf16.mxu0 0
  %3215 = vmatpush1.bf16.msra.mxu0 %v1198
  %3216 = vmatprep.subr.bf16.mxu0 0
  %3217 = vmatpush1.bf16.msra.mxu0 %v1199
  %3218 = vmatprep.subr.bf16.mxu0 0
  %3219 = vmatpush1.bf16.msra.mxu0 0
  %3220 = vmatprep.subr.bf16.mxu0 0
  %3221 = vmatpush1.bf16.msra.mxu0 0
  %3222 = vmatprep.subr.bf16.mxu0 0
  %3223 = vmatpush1.bf16.msra.mxu0 0
  %3224 = vmatprep.subr.bf16.mxu0 0
  %3225 = vmatpush1.bf16.msra.mxu0 0
  %3226 = vmatprep.subr.bf16.mxu0 0
  %3227 = vmatpush1.bf16.msra.mxu0 0
  %3228 = vmatprep.subr.bf16.mxu0 0
  %3229 = vmatpush1.bf16.msra.mxu0 0
  %3230 = vmatprep.subr.bf16.mxu0 0
  %3231 = vmatpush1.bf16.msra.mxu0 0
  %3232 = vmatprep.subr.bf16.mxu0 0
  %3233 = vmatpush1.bf16.msra.mxu0 0
  %3234 = vmatprep.subr.bf16.mxu0 0
  %3235 = vmatpush1.bf16.msra.mxu0 0
  %3236 = vmatprep.subr.bf16.mxu0 0
  %3237 = vmatpush1.bf16.msra.mxu0 0
  %3238 = vmatprep.subr.bf16.mxu0 0
  %3239 = vmatpush1.bf16.msra.mxu0 0
  %3240 = vmatprep.subr.bf16.mxu0 0
  %3241 = vmatpush1.bf16.msra.mxu0 0
  %3242 = vmatprep.mubr.bf16.mxu0 0
  %3243 = vmatmul.mubr.bf16.gmra.mrb[0].mxu0 %v3115
  %v3244 = vpop.f32.mrb[0].mxu0
  %v3245 = vadd.f32 0.0, %v3244
  %v3246 = vpop.f32.mrb[0].mxu0
  %v3247 = vpop.f32.mrb[0].mxu0
  %v3248 = vadd.f32 0.0, %v3247
  %v3249 = vpop.f32.mrb[0].mxu0
  %3250 = vmatprep.mubr.bf16.mxu0 0
  %3251 = vmatmul.mubr.bf16.gmra.mrb[0].mxu0 %v3118
  %v3252 = vpop.f32.mrb[0].mxu0
  %v3253 = vadd.f32 0.0, %v3252
  %v3254 = vpop.f32.mrb[0].mxu0
  %v3255 = vpop.f32.mrb[0].mxu0
  %v3256 = vadd.f32 0.0, %v3255
  %v3257 = vpop.f32.mrb[0].mxu0
  %3258 = vmatprep.mubr.bf16.mxu0 0
  %3259 = vmatmul.mubr.bf16.gmra.mrb[0].mxu0 %v3121
  %v3260 = vpop.f32.mrb[0].mxu0
  %v3261 = vadd.f32 0.0, %v3260
  %v3262 = vpop.f32.mrb[0].mxu0
  %v3263 = vpop.f32.mrb[0].mxu0
  %v3264 = vadd.f32 0.0, %v3263
  %v3265 = vpop.f32.mrb[0].mxu0
  %3266 = vmatprep.mubr.bf16.mxu0 0
  %3267 = vmatmul.mubr.bf16.gmra.mrb[0].mxu0 %v3124
  %v3268 = vpop.f32.mrb[0].mxu0
  %v3269 = vadd.f32 0.0, %v3268
  %v3270 = vpop.f32.mrb[0].mxu0
  %v3271 = vpop.f32.mrb[0].mxu0
  %v3272 = vadd.f32 0.0, %v3271
  %v3273 = vpop.f32.mrb[0].mxu0
  %3274 = vmatprep.mubr.bf16.mxu0 0
  %3275 = vmatmul.mubr.bf16.gmra.mrb[0].mxu0 %v3127
  %v3276 = vpop.f32.mrb[0].mxu0
  %v3277 = vadd.f32 0.0, %v3276
  %v3278 = vpop.f32.mrb[0].mxu0
  %v3279 = vpop.f32.mrb[0].mxu0
  %v3280 = vadd.f32 0.0, %v3279
  %v3281 = vpop.f32.mrb[0].mxu0
  %3282 = vmatprep.mubr.bf16.mxu0 0
  %3283 = vmatmul.mubr.bf16.gmra.mrb[0].mxu0 %v3130
  %v3284 = vpop.f32.mrb[0].mxu0
  %v3285 = vadd.f32 0.0, %v3284
  %v3286 = vpop.f32.mrb[0].mxu0
  %v3287 = vpop.f32.mrb[0].mxu0
  %v3288 = vadd.f32 0.0, %v3287
  %v3289 = vpop.f32.mrb[0].mxu0
  %3290 = vmatprep.mubr.bf16.mxu0 0
  %3291 = vmatmul.mubr.bf16.gmra.mrb[0].mxu0 %v3133
  %v3292 = vpop.f32.mrb[0].mxu0
  %v3293 = vadd.f32 0.0, %v3292
  %v3294 = vpop.f32.mrb[0].mxu0
  %v3295 = vpop.f32.mrb[0].mxu0
  %v3296 = vadd.f32 0.0, %v3295
  %v3297 = vpop.f32.mrb[0].mxu0
  %3298 = vmatprep.mubr.bf16.mxu0 0
  %3299 = vmatmul.mubr.bf16.gmra.mrb[0].mxu0 %v3136
  %v3300 = vpop.f32.mrb[0].mxu0
  %v3301 = vadd.f32 0.0, %v3300
  %v3302 = vpop.f32.mrb[0].mxu0
  %v3303 = vpop.f32.mrb[0].mxu0
  %v3304 = vadd.f32 0.0, %v3303
  %v3305 = vpop.f32.mrb[0].mxu0
  %3306 = vmatprep.mubr.bf16.mxu0 0
  %3307 = vmatmul.mubr.bf16.gmra.mrb[0].mxu0 %v3139
  %v3308 = vpop.f32.mrb[0].mxu0
  %v3309 = vadd.f32 0.0, %v3308
  %v3310 = vpop.f32.mrb[0].mxu0
  %v3311 = vpop.f32.mrb[0].mxu0
  %v3312 = vadd.f32 0.0, %v3311
  %v3313 = vpop.f32.mrb[0].mxu0
  %3314 = vmatprep.mubr.bf16.mxu0 0
  %3315 = vmatmul.mubr.bf16.gmra.mrb[0].mxu0 %v3142
  %v3316 = vpop.f32.mrb[0].mxu0
  %v3317 = vadd.f32 0.0, %v3316
  %v3318 = vpop.f32.mrb[0].mxu0
  %v3319 = vpop.f32.mrb[0].mxu0
  %v3320 = vadd.f32 0.0, %v3319
  %v3321 = vpop.f32.mrb[0].mxu0
  %3322 = vmatprep.mubr.bf16.mxu0 0
  %3323 = vmatmul.mubr.bf16.gmra.mrb[0].mxu0 %v3145
  %v3324 = vpop.f32.mrb[0].mxu0
  %v3325 = vadd.f32 0.0, %v3324
  %v3326 = vpop.f32.mrb[0].mxu0
  %v3327 = vpop.f32.mrb[0].mxu0
  %v3328 = vadd.f32 0.0, %v3327
  %v3329 = vpop.f32.mrb[0].mxu0
  %3330 = vmatprep.mubr.bf16.mxu0 0
  %3331 = vmatmul.mubr.bf16.gmra.mrb[0].mxu0 %v3148
  %v3332 = vpop.f32.mrb[0].mxu0
  %v3333 = vadd.f32 0.0, %v3332
  %v3334 = vpop.f32.mrb[0].mxu0
  %v3335 = vpop.f32.mrb[0].mxu0
  %v3336 = vadd.f32 0.0, %v3335
  %v3337 = vpop.f32.mrb[0].mxu0
  %3338 = vmatprep.mubr.bf16.mxu0 0
  %3339 = vmatmul.mubr.bf16.gmra.mrb[0].mxu0 %v3151
  %v3340 = vpop.f32.mrb[0].mxu0
  %v3341 = vadd.f32 0.0, %v3340
  %v3342 = vpop.f32.mrb[0].mxu0
  %v3343 = vpop.f32.mrb[0].mxu0
  %v3344 = vadd.f32 0.0, %v3343
  %v3345 = vpop.f32.mrb[0].mxu0
  %3346 = vmatprep.mubr.bf16.mxu0 0
  %3347 = vmatmul.mubr.bf16.gmra.mrb[0].mxu0 %v3154
  %v3348 = vpop.f32.mrb[0].mxu0
  %v3349 = vadd.f32 0.0, %v3348
  %v3350 = vpop.f32.mrb[0].mxu0
  %v3351 = vpop.f32.mrb[0].mxu0
  %v3352 = vadd.f32 0.0, %v3351
  %v3353 = vpop.f32.mrb[0].mxu0
  %3354 = vmatprep.mubr.bf16.mxu0 0
  %3355 = vmatmul.mubr.bf16.gmra.mrb[0].mxu0 %v3157
  %v3356 = vpop.f32.mrb[0].mxu0
  %v3357 = vadd.f32 0.0, %v3356
  %v3358 = vpop.f32.mrb[0].mxu0
  %v3359 = vpop.f32.mrb[0].mxu0
  %v3360 = vadd.f32 0.0, %v3359
  %v3361 = vpop.f32.mrb[0].mxu0
  %3362 = vmatprep.mubr.bf16.mxu0 0
  %3363 = vmatmul.mubr.bf16.gmra.mrb[0].mxu0 %v3160
  %v3364 = vpop.f32.mrb[0].mxu0
  %v3365 = vadd.f32 0.0, %v3364
  %v3366 = vpop.f32.mrb[0].mxu0
  %v3367 = vpop.f32.mrb[0].mxu0
  %v3368 = vadd.f32 0.0, %v3367
  %v3369 = vpop.f32.mrb[0].mxu0
  %3370 = vmatprep.mubr.bf16.mxu0 0
  %3371 = vmatmul.mubr.bf16.gmra.mrb[0].mxu0 %v3163
  %v3372 = vpop.f32.mrb[0].mxu0
  %v3373 = vadd.f32 0.0, %v3372
  %v3374 = vpop.f32.mrb[0].mxu0
  %v3375 = vpop.f32.mrb[0].mxu0
  %v3376 = vadd.f32 0.0, %v3375
  %v3377 = vpop.f32.mrb[0].mxu0
  %3378 = vmatprep.mubr.bf16.mxu0 0
  %3379 = vmatmul.mubr.bf16.gmra.mrb[0].mxu0 %v3166
  %v3380 = vpop.f32.mrb[0].mxu0
  %v3381 = vadd.f32 0.0, %v3380
  %v3382 = vpop.f32.mrb[0].mxu0
  %v3383 = vpop.f32.mrb[0].mxu0
  %v3384 = vadd.f32 0.0, %v3383
  %v3385 = vpop.f32.mrb[0].mxu0
  %3386 = vmatprep.mubr.bf16.mxu0 0
  %3387 = vmatmul.mubr.bf16.gmra.mrb[0].mxu0 %v3169
  %v3388 = vpop.f32.mrb[0].mxu0
  %v3389 = vadd.f32 0.0, %v3388
  %v3390 = vpop.f32.mrb[0].mxu0
  %v3391 = vpop.f32.mrb[0].mxu0
  %v3392 = vadd.f32 0.0, %v3391
  %v3393 = vpop.f32.mrb[0].mxu0
  %3394 = vmatprep.mubr.bf16.mxu0 0
  %3395 = vmatmul.mubr.bf16.gmra.mrb[0].mxu0 %v3172
  %v3396 = vpop.f32.mrb[0].mxu0
  %v3397 = vadd.f32 0.0, %v3396
  %v3398 = vpop.f32.mrb[0].mxu0
  %v3399 = vpop.f32.mrb[0].mxu0
  %v3400 = vadd.f32 0.0, %v3399
  %v3401 = vpop.f32.mrb[0].mxu0
  %3402 = vmatprep.mubr.bf16.mxu0 0
  %3403 = vmatmul.mubr.bf16.gmra.mrb[0].mxu0 %v3175
  %v3404 = vpop.f32.mrb[0].mxu0
  %v3405 = vadd.f32 0.0, %v3404
  %v3406 = vpop.f32.mrb[0].mxu0
  %v3407 = vpop.f32.mrb[0].mxu0
  %v3408 = vadd.f32 0.0, %v3407
  %v3409 = vpop.f32.mrb[0].mxu0
  %3410 = vmatprep.mubr.bf16.mxu0 0
  %3411 = vmatmul.mubr.bf16.gmra.mrb[0].mxu0 %v3178
  %v3412 = vpop.f32.mrb[0].mxu0
  %v3413 = vadd.f32 0.0, %v3412
  %v3414 = vpop.f32.mrb[0].mxu0
  %v3415 = vpop.f32.mrb[0].mxu0
  %v3416 = vadd.f32 0.0, %v3415
  %v3417 = vpop.f32.mrb[0].mxu0
  %3418 = vmatprep.mubr.bf16.mxu0 0
  %3419 = vmatmul.mubr.bf16.gmra.mrb[0].mxu0 %v3181
  %v3420 = vpop.f32.mrb[0].mxu0
  %v3421 = vadd.f32 0.0, %v3420
  %v3422 = vpop.f32.mrb[0].mxu0
  %v3423 = vpop.f32.mrb[0].mxu0
  %v3424 = vadd.f32 0.0, %v3423
  %v3425 = vpop.f32.mrb[0].mxu0
  %3426 = vmatprep.mubr.bf16.mxu0 0
  %3427 = vmatmul.mubr.bf16.gmra.mrb[0].mxu0 %v3184
  %v3428 = vpop.f32.mrb[0].mxu0
  %v3429 = vadd.f32 0.0, %v3428
  %v3430 = vpop.f32.mrb[0].mxu0
  %v3431 = vpop.f32.mrb[0].mxu0
  %v3432 = vadd.f32 0.0, %v3431
  %v3433 = vpop.f32.mrb[0].mxu0
  %3434 = vmatprep.mubr.bf16.mxu0 0
  %3435 = vmatmul.mubr.bf16.gmra.mrb[0].mxu0 %v3187
  %v3436 = vpop.f32.mrb[0].mxu0
  %v3437 = vadd.f32 0.0, %v3436
  %v3438 = vpop.f32.mrb[0].mxu0
  %v3439 = vpop.f32.mrb[0].mxu0
  %v3440 = vadd.f32 0.0, %v3439
  %v3441 = vpop.f32.mrb[0].mxu0
  %3442 = vmatprep.mubr.bf16.mxu0 0
  %3443 = vmatmul.mubr.bf16.gmra.mrb[0].mxu0 %v3190
  %v3444 = vpop.f32.mrb[0].mxu0
  %v3445 = vadd.f32 0.0, %v3444
  %v3446 = vpop.f32.mrb[0].mxu0
  %v3447 = vpop.f32.mrb[0].mxu0
  %v3448 = vadd.f32 0.0, %v3447
  %v3449 = vpop.f32.mrb[0].mxu0
  %3450 = vmatprep.mubr.bf16.mxu0 0
  %3451 = vmatmul.mubr.bf16.gmra.mrb[0].mxu0 %v3193
  %v3452 = vpop.f32.mrb[0].mxu0
  %v3453 = vadd.f32 0.0, %v3452
  %v3454 = vpop.f32.mrb[0].mxu0
  %v3455 = vpop.f32.mrb[0].mxu0
  %v3456 = vadd.f32 0.0, %v3455
  %v3457 = vpop.f32.mrb[0].mxu0
  %3458 = vmatprep.mubr.bf16.mxu0 0
  %3459 = vmatmul.mubr.bf16.gmra.mrb[0].mxu0 %v3196
  %v3460 = vpop.f32.mrb[0].mxu0
  %v3461 = vadd.f32 0.0, %v3460
  %v3462 = vpop.f32.mrb[0].mxu0
  %v3463 = vpop.f32.mrb[0].mxu0
  %v3464 = vadd.f32 0.0, %v3463
  %v3465 = vpop.f32.mrb[0].mxu0
  %3466 = vmatprep.mubr.bf16.mxu0 0
  %3467 = vmatmul.mubr.bf16.gmra.mrb[0].mxu0 %v3199
  %v3468 = vpop.f32.mrb[0].mxu0
  %v3469 = vadd.f32 0.0, %v3468
  %v3470 = vpop.f32.mrb[0].mxu0
  %v3471 = vpop.f32.mrb[0].mxu0
  %v3472 = vadd.f32 0.0, %v3471
  %v3473 = vpop.f32.mrb[0].mxu0
  %3474 = vmatprep.mubr.bf16.mxu0 0
  %3475 = vmatmul.mubr.bf16.gmra.mrb[0].mxu0 %v3202
  %v3476 = vpop.f32.mrb[0].mxu0
  %v3477 = vadd.f32 0.0, %v3476
  %v3478 = vpop.f32.mrb[0].mxu0
  %v3479 = vpop.f32.mrb[0].mxu0
  %v3480 = vadd.f32 0.0, %v3479
  %v3481 = vpop.f32.mrb[0].mxu0
  %3482 = vmatprep.mubr.bf16.mxu0 0
  %3483 = vmatmul.mubr.bf16.gmra.mrb[0].mxu0 %v3205
  %v3484 = vpop.f32.mrb[0].mxu0
  %v3485 = vadd.f32 0.0, %v3484
  %v3486 = vpop.f32.mrb[0].mxu0
  %v3487 = vpop.f32.mrb[0].mxu0
  %v3488 = vadd.f32 0.0, %v3487
  %v3489 = vpop.f32.mrb[0].mxu0
  %3490 = vmatprep.mubr.bf16.mxu0 0
  %3491 = vmatmul.mubr.bf16.gmra.mrb[0].mxu0 %v3208
  %v3492 = vpop.f32.mrb[0].mxu0
  %v3493 = vadd.f32 0.0, %v3492
  %v3494 = vpop.f32.mrb[0].mxu0
  %v3495 = vpop.f32.mrb[0].mxu0
  %v3496 = vadd.f32 0.0, %v3495
  %v3497 = vpop.f32.mrb[0].mxu0
  %3498 = vdwg.mxu0
  %vm3499 = vcmask 31744
  %v3500 = vsel %vm3499, %v3245, -inf
  %v3501 = vrot.slane %v3500, 4
  %v3502 = vmax.f32 %v3500, %v3501
  %v3503 = vrot.slane %v3502, 2
  %v3504 = vmax.f32 %v3502, %v3503
  %v3505 = vrot.slane %v3504, 1
  %v3506 = vmax.f32 %v3504, %v3505
  %v3507 = vsel %vm3499, %v3248, -inf
  %v3508 = vrot.slane %v3507, 4
  %v3509 = vmax.f32 %v3507, %v3508
  %v3510 = vrot.slane %v3509, 2
  %v3511 = vmax.f32 %v3509, %v3510
  %v3512 = vrot.slane %v3511, 1
  %v3513 = vmax.f32 %v3511, %v3512
  %v3514 = vsel %vm3499, %v3253, -inf
  %v3515 = vrot.slane %v3514, 4
  %v3516 = vmax.f32 %v3514, %v3515
  %v3517 = vrot.slane %v3516, 2
  %v3518 = vmax.f32 %v3516, %v3517
  %v3519 = vrot.slane %v3518, 1
  %v3520 = vmax.f32 %v3518, %v3519
  %v3521 = vsel %vm3499, %v3256, -inf
  %v3522 = vrot.slane %v3521, 4
  %v3523 = vmax.f32 %v3521, %v3522
  %v3524 = vrot.slane %v3523, 2
  %v3525 = vmax.f32 %v3523, %v3524
  %v3526 = vrot.slane %v3525, 1
  %v3527 = vmax.f32 %v3525, %v3526
  %v3528 = vsel %vm3499, %v3261, -inf
  %v3529 = vrot.slane %v3528, 4
  %v3530 = vmax.f32 %v3528, %v3529
  %v3531 = vrot.slane %v3530, 2
  %v3532 = vmax.f32 %v3530, %v3531
  %v3533 = vrot.slane %v3532, 1
  %v3534 = vmax.f32 %v3532, %v3533
  %v3535 = vsel %vm3499, %v3264, -inf
  %v3536 = vrot.slane %v3535, 4
  %v3537 = vmax.f32 %v3535, %v3536
  %v3538 = vrot.slane %v3537, 2
  %v3539 = vmax.f32 %v3537, %v3538
  %v3540 = vrot.slane %v3539, 1
  %v3541 = vmax.f32 %v3539, %v3540
  %v3542 = vsel %vm3499, %v3269, -inf
  %v3543 = vrot.slane %v3542, 4
  %v3544 = vmax.f32 %v3542, %v3543
  %v3545 = vrot.slane %v3544, 2
  %v3546 = vmax.f32 %v3544, %v3545
  %v3547 = vrot.slane %v3546, 1
  %v3548 = vmax.f32 %v3546, %v3547
  %v3549 = vsel %vm3499, %v3272, -inf
  %v3550 = vrot.slane %v3549, 4
  %v3551 = vmax.f32 %v3549, %v3550
  %v3552 = vrot.slane %v3551, 2
  %v3553 = vmax.f32 %v3551, %v3552
  %v3554 = vrot.slane %v3553, 1
  %v3555 = vmax.f32 %v3553, %v3554
  %v3556 = vsel %vm3499, %v3277, -inf
  %v3557 = vrot.slane %v3556, 4
  %v3558 = vmax.f32 %v3556, %v3557
  %v3559 = vrot.slane %v3558, 2
  %v3560 = vmax.f32 %v3558, %v3559
  %v3561 = vrot.slane %v3560, 1
  %v3562 = vmax.f32 %v3560, %v3561
  %v3563 = vsel %vm3499, %v3280, -inf
  %v3564 = vrot.slane %v3563, 4
  %v3565 = vmax.f32 %v3563, %v3564
  %v3566 = vrot.slane %v3565, 2
  %v3567 = vmax.f32 %v3565, %v3566
  %v3568 = vrot.slane %v3567, 1
  %v3569 = vmax.f32 %v3567, %v3568
  %v3570 = vsel %vm3499, %v3285, -inf
  %v3571 = vrot.slane %v3570, 4
  %v3572 = vmax.f32 %v3570, %v3571
  %v3573 = vrot.slane %v3572, 2
  %v3574 = vmax.f32 %v3572, %v3573
  %v3575 = vrot.slane %v3574, 1
  %v3576 = vmax.f32 %v3574, %v3575
  %v3577 = vsel %vm3499, %v3288, -inf
  %v3578 = vrot.slane %v3577, 4
  %v3579 = vmax.f32 %v3577, %v3578
  %v3580 = vrot.slane %v3579, 2
  %v3581 = vmax.f32 %v3579, %v3580
  %v3582 = vrot.slane %v3581, 1
  %v3583 = vmax.f32 %v3581, %v3582
  %v3584 = vsel %vm3499, %v3293, -inf
  %v3585 = vrot.slane %v3584, 4
  %v3586 = vmax.f32 %v3584, %v3585
  %v3587 = vrot.slane %v3586, 2
  %v3588 = vmax.f32 %v3586, %v3587
  %v3589 = vrot.slane %v3588, 1
  %v3590 = vmax.f32 %v3588, %v3589
  %v3591 = vsel %vm3499, %v3296, -inf
  %v3592 = vrot.slane %v3591, 4
  %v3593 = vmax.f32 %v3591, %v3592
  %v3594 = vrot.slane %v3593, 2
  %v3595 = vmax.f32 %v3593, %v3594
  %v3596 = vrot.slane %v3595, 1
  %v3597 = vmax.f32 %v3595, %v3596
  %v3598 = vsel %vm3499, %v3301, -inf
  %v3599 = vrot.slane %v3598, 4
  %v3600 = vmax.f32 %v3598, %v3599
  %v3601 = vrot.slane %v3600, 2
  %v3602 = vmax.f32 %v3600, %v3601
  %v3603 = vrot.slane %v3602, 1
  %v3604 = vmax.f32 %v3602, %v3603
  %v3605 = vsel %vm3499, %v3304, -inf
  %v3606 = vrot.slane %v3605, 4
  %v3607 = vmax.f32 %v3605, %v3606
  %v3608 = vrot.slane %v3607, 2
  %v3609 = vmax.f32 %v3607, %v3608
  %v3610 = vrot.slane %v3609, 1
  %v3611 = vmax.f32 %v3609, %v3610
  %v3612 = vsel %vm3499, %v3309, -inf
  %v3613 = vrot.slane %v3612, 4
  %v3614 = vmax.f32 %v3612, %v3613
  %v3615 = vrot.slane %v3614, 2
  %v3616 = vmax.f32 %v3614, %v3615
  %v3617 = vrot.slane %v3616, 1
  %v3618 = vmax.f32 %v3616, %v3617
  %v3619 = vsel %vm3499, %v3312, -inf
  %v3620 = vrot.slane %v3619, 4
  %v3621 = vmax.f32 %v3619, %v3620
  %v3622 = vrot.slane %v3621, 2
  %v3623 = vmax.f32 %v3621, %v3622
  %v3624 = vrot.slane %v3623, 1
  %v3625 = vmax.f32 %v3623, %v3624
  %v3626 = vsel %vm3499, %v3317, -inf
  %v3627 = vrot.slane %v3626, 4
  %v3628 = vmax.f32 %v3626, %v3627
  %v3629 = vrot.slane %v3628, 2
  %v3630 = vmax.f32 %v3628, %v3629
  %v3631 = vrot.slane %v3630, 1
  %v3632 = vmax.f32 %v3630, %v3631
  %v3633 = vsel %vm3499, %v3320, -inf
  %v3634 = vrot.slane %v3633, 4
  %v3635 = vmax.f32 %v3633, %v3634
  %v3636 = vrot.slane %v3635, 2
  %v3637 = vmax.f32 %v3635, %v3636
  %v3638 = vrot.slane %v3637, 1
  %v3639 = vmax.f32 %v3637, %v3638
  %v3640 = vsel %vm3499, %v3325, -inf
  %v3641 = vrot.slane %v3640, 4
  %v3642 = vmax.f32 %v3640, %v3641
  %v3643 = vrot.slane %v3642, 2
  %v3644 = vmax.f32 %v3642, %v3643
  %v3645 = vrot.slane %v3644, 1
  %v3646 = vmax.f32 %v3644, %v3645
  %v3647 = vsel %vm3499, %v3328, -inf
  %v3648 = vrot.slane %v3647, 4
  %v3649 = vmax.f32 %v3647, %v3648
  %v3650 = vrot.slane %v3649, 2
  %v3651 = vmax.f32 %v3649, %v3650
  %v3652 = vrot.slane %v3651, 1
  %v3653 = vmax.f32 %v3651, %v3652
  %v3654 = vsel %vm3499, %v3333, -inf
  %v3655 = vrot.slane %v3654, 4
  %v3656 = vmax.f32 %v3654, %v3655
  %v3657 = vrot.slane %v3656, 2
  %v3658 = vmax.f32 %v3656, %v3657
  %v3659 = vrot.slane %v3658, 1
  %v3660 = vmax.f32 %v3658, %v3659
  %v3661 = vsel %vm3499, %v3336, -inf
  %v3662 = vrot.slane %v3661, 4
  %v3663 = vmax.f32 %v3661, %v3662
  %v3664 = vrot.slane %v3663, 2
  %v3665 = vmax.f32 %v3663, %v3664
  %v3666 = vrot.slane %v3665, 1
  %v3667 = vmax.f32 %v3665, %v3666
  %v3668 = vsel %vm3499, %v3341, -inf
  %v3669 = vrot.slane %v3668, 4
  %v3670 = vmax.f32 %v3668, %v3669
  %v3671 = vrot.slane %v3670, 2
  %v3672 = vmax.f32 %v3670, %v3671
  %v3673 = vrot.slane %v3672, 1
  %v3674 = vmax.f32 %v3672, %v3673
  %v3675 = vsel %vm3499, %v3344, -inf
  %v3676 = vrot.slane %v3675, 4
  %v3677 = vmax.f32 %v3675, %v3676
  %v3678 = vrot.slane %v3677, 2
  %v3679 = vmax.f32 %v3677, %v3678
  %v3680 = vrot.slane %v3679, 1
  %v3681 = vmax.f32 %v3679, %v3680
  %v3682 = vsel %vm3499, %v3349, -inf
  %v3683 = vrot.slane %v3682, 4
  %v3684 = vmax.f32 %v3682, %v3683
  %v3685 = vrot.slane %v3684, 2
  %v3686 = vmax.f32 %v3684, %v3685
  %v3687 = vrot.slane %v3686, 1
  %v3688 = vmax.f32 %v3686, %v3687
  %v3689 = vsel %vm3499, %v3352, -inf
  %v3690 = vrot.slane %v3689, 4
  %v3691 = vmax.f32 %v3689, %v3690
  %v3692 = vrot.slane %v3691, 2
  %v3693 = vmax.f32 %v3691, %v3692
  %v3694 = vrot.slane %v3693, 1
  %v3695 = vmax.f32 %v3693, %v3694
  %v3696 = vsel %vm3499, %v3357, -inf
  %v3697 = vrot.slane %v3696, 4
  %v3698 = vmax.f32 %v3696, %v3697
  %v3699 = vrot.slane %v3698, 2
  %v3700 = vmax.f32 %v3698, %v3699
  %v3701 = vrot.slane %v3700, 1
  %v3702 = vmax.f32 %v3700, %v3701
  %v3703 = vsel %vm3499, %v3360, -inf
  %v3704 = vrot.slane %v3703, 4
  %v3705 = vmax.f32 %v3703, %v3704
  %v3706 = vrot.slane %v3705, 2
  %v3707 = vmax.f32 %v3705, %v3706
  %v3708 = vrot.slane %v3707, 1
  %v3709 = vmax.f32 %v3707, %v3708
  %v3710 = vsel %vm3499, %v3365, -inf
  %v3711 = vrot.slane %v3710, 4
  %v3712 = vmax.f32 %v3710, %v3711
  %v3713 = vrot.slane %v3712, 2
  %v3714 = vmax.f32 %v3712, %v3713
  %v3715 = vrot.slane %v3714, 1
  %v3716 = vmax.f32 %v3714, %v3715
  %v3717 = vsel %vm3499, %v3368, -inf
  %v3718 = vrot.slane %v3717, 4
  %v3719 = vmax.f32 %v3717, %v3718
  %v3720 = vrot.slane %v3719, 2
  %v3721 = vmax.f32 %v3719, %v3720
  %v3722 = vrot.slane %v3721, 1
  %v3723 = vmax.f32 %v3721, %v3722
  %v3724 = vsel %vm3499, %v3373, -inf
  %v3725 = vrot.slane %v3724, 4
  %v3726 = vmax.f32 %v3724, %v3725
  %v3727 = vrot.slane %v3726, 2
  %v3728 = vmax.f32 %v3726, %v3727
  %v3729 = vrot.slane %v3728, 1
  %v3730 = vmax.f32 %v3728, %v3729
  %v3731 = vsel %vm3499, %v3376, -inf
  %v3732 = vrot.slane %v3731, 4
  %v3733 = vmax.f32 %v3731, %v3732
  %v3734 = vrot.slane %v3733, 2
  %v3735 = vmax.f32 %v3733, %v3734
  %v3736 = vrot.slane %v3735, 1
  %v3737 = vmax.f32 %v3735, %v3736
  %v3738 = vsel %vm3499, %v3381, -inf
  %v3739 = vrot.slane %v3738, 4
  %v3740 = vmax.f32 %v3738, %v3739
  %v3741 = vrot.slane %v3740, 2
  %v3742 = vmax.f32 %v3740, %v3741
  %v3743 = vrot.slane %v3742, 1
  %v3744 = vmax.f32 %v3742, %v3743
  %v3745 = vsel %vm3499, %v3384, -inf
  %v3746 = vrot.slane %v3745, 4
  %v3747 = vmax.f32 %v3745, %v3746
  %v3748 = vrot.slane %v3747, 2
  %v3749 = vmax.f32 %v3747, %v3748
  %v3750 = vrot.slane %v3749, 1
  %v3751 = vmax.f32 %v3749, %v3750
  %v3752 = vsel %vm3499, %v3389, -inf
  %v3753 = vrot.slane %v3752, 4
  %v3754 = vmax.f32 %v3752, %v3753
  %v3755 = vrot.slane %v3754, 2
  %v3756 = vmax.f32 %v3754, %v3755
  %v3757 = vrot.slane %v3756, 1
  %v3758 = vmax.f32 %v3756, %v3757
  %v3759 = vsel %vm3499, %v3392, -inf
  %v3760 = vrot.slane %v3759, 4
  %v3761 = vmax.f32 %v3759, %v3760
  %v3762 = vrot.slane %v3761, 2
  %v3763 = vmax.f32 %v3761, %v3762
  %v3764 = vrot.slane %v3763, 1
  %v3765 = vmax.f32 %v3763, %v3764
  %v3766 = vsel %vm3499, %v3397, -inf
  %v3767 = vrot.slane %v3766, 4
  %v3768 = vmax.f32 %v3766, %v3767
  %v3769 = vrot.slane %v3768, 2
  %v3770 = vmax.f32 %v3768, %v3769
  %v3771 = vrot.slane %v3770, 1
  %v3772 = vmax.f32 %v3770, %v3771
  %v3773 = vsel %vm3499, %v3400, -inf
  %v3774 = vrot.slane %v3773, 4
  %v3775 = vmax.f32 %v3773, %v3774
  %v3776 = vrot.slane %v3775, 2
  %v3777 = vmax.f32 %v3775, %v3776
  %v3778 = vrot.slane %v3777, 1
  %v3779 = vmax.f32 %v3777, %v3778
  %v3780 = vsel %vm3499, %v3405, -inf
  %v3781 = vrot.slane %v3780, 4
  %v3782 = vmax.f32 %v3780, %v3781
  %v3783 = vrot.slane %v3782, 2
  %v3784 = vmax.f32 %v3782, %v3783
  %v3785 = vrot.slane %v3784, 1
  %v3786 = vmax.f32 %v3784, %v3785
  %v3787 = vsel %vm3499, %v3408, -inf
  %v3788 = vrot.slane %v3787, 4
  %v3789 = vmax.f32 %v3787, %v3788
  %v3790 = vrot.slane %v3789, 2
  %v3791 = vmax.f32 %v3789, %v3790
  %v3792 = vrot.slane %v3791, 1
  %v3793 = vmax.f32 %v3791, %v3792
  %v3794 = vsel %vm3499, %v3413, -inf
  %v3795 = vrot.slane %v3794, 4
  %v3796 = vmax.f32 %v3794, %v3795
  %v3797 = vrot.slane %v3796, 2
  %v3798 = vmax.f32 %v3796, %v3797
  %v3799 = vrot.slane %v3798, 1
  %v3800 = vmax.f32 %v3798, %v3799
  %v3801 = vsel %vm3499, %v3416, -inf
  %v3802 = vrot.slane %v3801, 4
  %v3803 = vmax.f32 %v3801, %v3802
  %v3804 = vrot.slane %v3803, 2
  %v3805 = vmax.f32 %v3803, %v3804
  %v3806 = vrot.slane %v3805, 1
  %v3807 = vmax.f32 %v3805, %v3806
  %v3808 = vsel %vm3499, %v3421, -inf
  %v3809 = vrot.slane %v3808, 4
  %v3810 = vmax.f32 %v3808, %v3809
  %v3811 = vrot.slane %v3810, 2
  %v3812 = vmax.f32 %v3810, %v3811
  %v3813 = vrot.slane %v3812, 1
  %v3814 = vmax.f32 %v3812, %v3813
  %v3815 = vsel %vm3499, %v3424, -inf
  %v3816 = vrot.slane %v3815, 4
  %v3817 = vmax.f32 %v3815, %v3816
  %v3818 = vrot.slane %v3817, 2
  %v3819 = vmax.f32 %v3817, %v3818
  %v3820 = vrot.slane %v3819, 1
  %v3821 = vmax.f32 %v3819, %v3820
  %v3822 = vsel %vm3499, %v3429, -inf
  %v3823 = vrot.slane %v3822, 4
  %v3824 = vmax.f32 %v3822, %v3823
  %v3825 = vrot.slane %v3824, 2
  %v3826 = vmax.f32 %v3824, %v3825
  %v3827 = vrot.slane %v3826, 1
  %v3828 = vmax.f32 %v3826, %v3827
  %v3829 = vsel %vm3499, %v3432, -inf
  %v3830 = vrot.slane %v3829, 4
  %v3831 = vmax.f32 %v3829, %v3830
  %v3832 = vrot.slane %v3831, 2
  %v3833 = vmax.f32 %v3831, %v3832
  %v3834 = vrot.slane %v3833, 1
  %v3835 = vmax.f32 %v3833, %v3834
  %v3836 = vsel %vm3499, %v3437, -inf
  %v3837 = vrot.slane %v3836, 4
  %v3838 = vmax.f32 %v3836, %v3837
  %v3839 = vrot.slane %v3838, 2
  %v3840 = vmax.f32 %v3838, %v3839
  %v3841 = vrot.slane %v3840, 1
  %v3842 = vmax.f32 %v3840, %v3841
  %v3843 = vsel %vm3499, %v3440, -inf
  %v3844 = vrot.slane %v3843, 4
  %v3845 = vmax.f32 %v3843, %v3844
  %v3846 = vrot.slane %v3845, 2
  %v3847 = vmax.f32 %v3845, %v3846
  %v3848 = vrot.slane %v3847, 1
  %v3849 = vmax.f32 %v3847, %v3848
  %v3850 = vsel %vm3499, %v3445, -inf
  %v3851 = vrot.slane %v3850, 4
  %v3852 = vmax.f32 %v3850, %v3851
  %v3853 = vrot.slane %v3852, 2
  %v3854 = vmax.f32 %v3852, %v3853
  %v3855 = vrot.slane %v3854, 1
  %v3856 = vmax.f32 %v3854, %v3855
  %v3857 = vsel %vm3499, %v3448, -inf
  %v3858 = vrot.slane %v3857, 4
  %v3859 = vmax.f32 %v3857, %v3858
  %v3860 = vrot.slane %v3859, 2
  %v3861 = vmax.f32 %v3859, %v3860
  %v3862 = vrot.slane %v3861, 1
  %v3863 = vmax.f32 %v3861, %v3862
  %v3864 = vsel %vm3499, %v3453, -inf
  %v3865 = vrot.slane %v3864, 4
  %v3866 = vmax.f32 %v3864, %v3865
  %v3867 = vrot.slane %v3866, 2
  %v3868 = vmax.f32 %v3866, %v3867
  %v3869 = vrot.slane %v3868, 1
  %v3870 = vmax.f32 %v3868, %v3869
  %v3871 = vsel %vm3499, %v3456, -inf
  %v3872 = vrot.slane %v3871, 4
  %v3873 = vmax.f32 %v3871, %v3872
  %v3874 = vrot.slane %v3873, 2
  %v3875 = vmax.f32 %v3873, %v3874
  %v3876 = vrot.slane %v3875, 1
  %v3877 = vmax.f32 %v3875, %v3876
  %v3878 = vsel %vm3499, %v3461, -inf
  %v3879 = vrot.slane %v3878, 4
  %v3880 = vmax.f32 %v3878, %v3879
  %v3881 = vrot.slane %v3880, 2
  %v3882 = vmax.f32 %v3880, %v3881
  %v3883 = vrot.slane %v3882, 1
  %v3884 = vmax.f32 %v3882, %v3883
  %v3885 = vsel %vm3499, %v3464, -inf
  %v3886 = vrot.slane %v3885, 4
  %v3887 = vmax.f32 %v3885, %v3886
  %v3888 = vrot.slane %v3887, 2
  %v3889 = vmax.f32 %v3887, %v3888
  %v3890 = vrot.slane %v3889, 1
  %v3891 = vmax.f32 %v3889, %v3890
  %v3892 = vsel %vm3499, %v3469, -inf
  %v3893 = vrot.slane %v3892, 4
  %v3894 = vmax.f32 %v3892, %v3893
  %v3895 = vrot.slane %v3894, 2
  %v3896 = vmax.f32 %v3894, %v3895
  %v3897 = vrot.slane %v3896, 1
  %v3898 = vmax.f32 %v3896, %v3897
  %v3899 = vsel %vm3499, %v3472, -inf
  %v3900 = vrot.slane %v3899, 4
  %v3901 = vmax.f32 %v3899, %v3900
  %v3902 = vrot.slane %v3901, 2
  %v3903 = vmax.f32 %v3901, %v3902
  %v3904 = vrot.slane %v3903, 1
  %v3905 = vmax.f32 %v3903, %v3904
  %v3906 = vsel %vm3499, %v3477, -inf
  %v3907 = vrot.slane %v3906, 4
  %v3908 = vmax.f32 %v3906, %v3907
  %v3909 = vrot.slane %v3908, 2
  %v3910 = vmax.f32 %v3908, %v3909
  %v3911 = vrot.slane %v3910, 1
  %v3912 = vmax.f32 %v3910, %v3911
  %v3913 = vsel %vm3499, %v3480, -inf
  %v3914 = vrot.slane %v3913, 4
  %v3915 = vmax.f32 %v3913, %v3914
  %v3916 = vrot.slane %v3915, 2
  %v3917 = vmax.f32 %v3915, %v3916
  %v3918 = vrot.slane %v3917, 1
  %v3919 = vmax.f32 %v3917, %v3918
  %v3920 = vsel %vm3499, %v3485, -inf
  %v3921 = vrot.slane %v3920, 4
  %v3922 = vmax.f32 %v3920, %v3921
  %v3923 = vrot.slane %v3922, 2
  %v3924 = vmax.f32 %v3922, %v3923
  %v3925 = vrot.slane %v3924, 1
  %v3926 = vmax.f32 %v3924, %v3925
  %v3927 = vsel %vm3499, %v3488, -inf
  %v3928 = vrot.slane %v3927, 4
  %v3929 = vmax.f32 %v3927, %v3928
  %v3930 = vrot.slane %v3929, 2
  %v3931 = vmax.f32 %v3929, %v3930
  %v3932 = vrot.slane %v3931, 1
  %v3933 = vmax.f32 %v3931, %v3932
  %v3934 = vsel %vm3499, %v3493, -inf
  %v3935 = vrot.slane %v3934, 4
  %v3936 = vmax.f32 %v3934, %v3935
  %v3937 = vrot.slane %v3936, 2
  %v3938 = vmax.f32 %v3936, %v3937
  %v3939 = vrot.slane %v3938, 1
  %v3940 = vmax.f32 %v3938, %v3939
  %v3941 = vsel %vm3499, %v3496, -inf
  %v3942 = vrot.slane %v3941, 4
  %v3943 = vmax.f32 %v3941, %v3942
  %v3944 = vrot.slane %v3943, 2
  %v3945 = vmax.f32 %v3943, %v3944
  %v3946 = vrot.slane %v3945, 1
  %v3947 = vmax.f32 %v3945, %v3946
  %v3948 = vpack.c.bf16 %v3506, %v3506
  %v3949 = vpack.c.bf16 %v3513, %v3513
  %v3950 = vpack.c.bf16 %v3520, %v3520
  %v3951 = vpack.c.bf16 %v3527, %v3527
  %v3952 = vpack.c.bf16 %v3534, %v3534
  %v3953 = vpack.c.bf16 %v3541, %v3541
  %v3954 = vpack.c.bf16 %v3548, %v3548
  %v3955 = vpack.c.bf16 %v3555, %v3555
  %v3956 = vpack.c.bf16 %v3562, %v3562
  %v3957 = vpack.c.bf16 %v3569, %v3569
  %v3958 = vpack.c.bf16 %v3576, %v3576
  %v3959 = vpack.c.bf16 %v3583, %v3583
  %v3960 = vpack.c.bf16 %v3590, %v3590
  %v3961 = vpack.c.bf16 %v3597, %v3597
  %v3962 = vpack.c.bf16 %v3604, %v3604
  %v3963 = vpack.c.bf16 %v3611, %v3611
  %v3964 = vpack.c.bf16 %v3618, %v3618
  %v3965 = vpack.c.bf16 %v3625, %v3625
  %v3966 = vpack.c.bf16 %v3632, %v3632
  %v3967 = vpack.c.bf16 %v3639, %v3639
  %v3968 = vpack.c.bf16 %v3646, %v3646
  %v3969 = vpack.c.bf16 %v3653, %v3653
  %v3970 = vpack.c.bf16 %v3660, %v3660
  %v3971 = vpack.c.bf16 %v3667, %v3667
  %v3972 = vpack.c.bf16 %v3674, %v3674
  %v3973 = vpack.c.bf16 %v3681, %v3681
  %v3974 = vpack.c.bf16 %v3688, %v3688
  %v3975 = vpack.c.bf16 %v3695, %v3695
  %v3976 = vpack.c.bf16 %v3702, %v3702
  %v3977 = vpack.c.bf16 %v3709, %v3709
  %v3978 = vpack.c.bf16 %v3716, %v3716
  %v3979 = vpack.c.bf16 %v3723, %v3723
  %v3980 = vpack.c.bf16 %v3730, %v3730
  %v3981 = vpack.c.bf16 %v3737, %v3737
  %v3982 = vpack.c.bf16 %v3744, %v3744
  %v3983 = vpack.c.bf16 %v3751, %v3751
  %v3984 = vpack.c.bf16 %v3758, %v3758
  %v3985 = vpack.c.bf16 %v3765, %v3765
  %v3986 = vpack.c.bf16 %v3772, %v3772
  %v3987 = vpack.c.bf16 %v3779, %v3779
  %v3988 = vpack.c.bf16 %v3786, %v3786
  %v3989 = vpack.c.bf16 %v3793, %v3793
  %v3990 = vpack.c.bf16 %v3800, %v3800
  %v3991 = vpack.c.bf16 %v3807, %v3807
  %v3992 = vpack.c.bf16 %v3814, %v3814
  %v3993 = vpack.c.bf16 %v3821, %v3821
  %v3994 = vpack.c.bf16 %v3828, %v3828
  %v3995 = vpack.c.bf16 %v3835, %v3835
  %v3996 = vpack.c.bf16 %v3842, %v3842
  %v3997 = vpack.c.bf16 %v3849, %v3849
  %v3998 = vpack.c.bf16 %v3856, %v3856
  %v3999 = vpack.c.bf16 %v3863, %v3863
  %v4000 = vpack.c.bf16 %v3870, %v3870
  %v4001 = vpack.c.bf16 %v3877, %v3877
  %v4002 = vpack.c.bf16 %v3884, %v3884
  %v4003 = vpack.c.bf16 %v3891, %v3891
  %v4004 = vpack.c.bf16 %v3898, %v3898
  %v4005 = vpack.c.bf16 %v3905, %v3905
  %v4006 = vpack.c.bf16 %v3912, %v3912
  %v4007 = vpack.c.bf16 %v3919, %v3919
  %v4008 = vpack.c.bf16 %v3926, %v3926
  %v4009 = vpack.c.bf16 %v3933, %v3933
  %v4010 = vpack.c.bf16 %v3940, %v3940
  %v4011 = vpack.c.bf16 %v3947, %v3947
  %v4076 = vunpack.c.l.b16 %v3948
  %v4077 = vunpack.c.l.b16 %v3949
  %v4078 = vunpack.c.l.b16 %v3950
  %v4079 = vunpack.c.l.b16 %v3951
  %v4080 = vunpack.c.l.b16 %v3952
  %v4081 = vunpack.c.l.b16 %v3953
  %v4082 = vunpack.c.l.b16 %v3954
  %v4083 = vunpack.c.l.b16 %v3955
  %v4084 = vunpack.c.l.b16 %v3956
  %v4085 = vunpack.c.l.b16 %v3957
  %v4086 = vunpack.c.l.b16 %v3958
  %v4087 = vunpack.c.l.b16 %v3959
  %v4088 = vunpack.c.l.b16 %v3960
  %v4089 = vunpack.c.l.b16 %v3961
  %v4090 = vunpack.c.l.b16 %v3962
  %v4091 = vunpack.c.l.b16 %v3963
  %v4092 = vunpack.c.l.b16 %v3964
  %v4093 = vunpack.c.l.b16 %v3965
  %v4094 = vunpack.c.l.b16 %v3966
  %v4095 = vunpack.c.l.b16 %v3967
  %v4096 = vunpack.c.l.b16 %v3968
  %v4097 = vunpack.c.l.b16 %v3969
  %v4098 = vunpack.c.l.b16 %v3970
  %v4099 = vunpack.c.l.b16 %v3971
  %v4100 = vunpack.c.l.b16 %v3972
  %v4101 = vunpack.c.l.b16 %v3973
  %v4102 = vunpack.c.l.b16 %v3974
  %v4103 = vunpack.c.l.b16 %v3975
  %v4104 = vunpack.c.l.b16 %v3976
  %v4105 = vunpack.c.l.b16 %v3977
  %v4106 = vunpack.c.l.b16 %v3978
  %v4107 = vunpack.c.l.b16 %v3979
  %v4108 = vunpack.c.l.b16 %v3980
  %v4109 = vunpack.c.l.b16 %v3981
  %v4110 = vunpack.c.l.b16 %v3982
  %v4111 = vunpack.c.l.b16 %v3983
  %v4112 = vunpack.c.l.b16 %v3984
  %v4113 = vunpack.c.l.b16 %v3985
  %v4114 = vunpack.c.l.b16 %v3986
  %v4115 = vunpack.c.l.b16 %v3987
  %v4116 = vunpack.c.l.b16 %v3988
  %v4117 = vunpack.c.l.b16 %v3989
  %v4118 = vunpack.c.l.b16 %v3990
  %v4119 = vunpack.c.l.b16 %v3991
  %v4120 = vunpack.c.l.b16 %v3992
  %v4121 = vunpack.c.l.b16 %v3993
  %v4122 = vunpack.c.l.b16 %v3994
  %v4123 = vunpack.c.l.b16 %v3995
  %v4124 = vunpack.c.l.b16 %v3996
  %v4125 = vunpack.c.l.b16 %v3997
  %v4126 = vunpack.c.l.b16 %v3998
  %v4127 = vunpack.c.l.b16 %v3999
  %v4128 = vunpack.c.l.b16 %v4000
  %v4129 = vunpack.c.l.b16 %v4001
  %v4130 = vunpack.c.l.b16 %v4002
  %v4131 = vunpack.c.l.b16 %v4003
  %v4132 = vunpack.c.l.b16 %v4004
  %v4133 = vunpack.c.l.b16 %v4005
  %v4134 = vunpack.c.l.b16 %v4006
  %v4135 = vunpack.c.l.b16 %v4007
  %v4136 = vunpack.c.l.b16 %v4008
  %v4137 = vunpack.c.l.b16 %v4009
  %v4138 = vunpack.c.l.b16 %v4010
  %v4139 = vunpack.c.l.b16 %v4011
  %vm4140 = vcmask 1041409
  %v4141 = vsel %vm4140, %v4077, %v4076
  %vm4142 = vcmask 1042434
  %v4143 = vsel %vm4142, %v4078, %v4141
  %vm4144 = vcmask 1043459
  %v4145 = vsel %vm4144, %v4079, %v4143
  %vm4146 = vcmask 1044484
  %v4147 = vsel %vm4146, %v4080, %v4145
  %vm4148 = vcmask 1045509
  %v4149 = vsel %vm4148, %v4081, %v4147
  %vm4150 = vcmask 1046534
  %v4151 = vsel %vm4150, %v4082, %v4149
  %vm4152 = vcmask 1047559
  %v4153 = vsel %vm4152, %v4083, %v4151
  %v4154 = vsel %vm4140, %v4085, %v4084
  %v4155 = vsel %vm4142, %v4086, %v4154
  %v4156 = vsel %vm4144, %v4087, %v4155
  %v4157 = vsel %vm4146, %v4088, %v4156
  %v4158 = vsel %vm4148, %v4089, %v4157
  %v4159 = vsel %vm4150, %v4090, %v4158
  %v4160 = vsel %vm4152, %v4091, %v4159
  %v4161 = vsel %vm4140, %v4093, %v4092
  %v4162 = vsel %vm4142, %v4094, %v4161
  %v4163 = vsel %vm4144, %v4095, %v4162
  %v4164 = vsel %vm4146, %v4096, %v4163
  %v4165 = vsel %vm4148, %v4097, %v4164
  %v4166 = vsel %vm4150, %v4098, %v4165
  %v4167 = vsel %vm4152, %v4099, %v4166
  %v4168 = vsel %vm4140, %v4101, %v4100
  %v4169 = vsel %vm4142, %v4102, %v4168
  %v4170 = vsel %vm4144, %v4103, %v4169
  %v4171 = vsel %vm4146, %v4104, %v4170
  %v4172 = vsel %vm4148, %v4105, %v4171
  %v4173 = vsel %vm4150, %v4106, %v4172
  %v4174 = vsel %vm4152, %v4107, %v4173
  %v4175 = vsel %vm4140, %v4109, %v4108
  %v4176 = vsel %vm4142, %v4110, %v4175
  %v4177 = vsel %vm4144, %v4111, %v4176
  %v4178 = vsel %vm4146, %v4112, %v4177
  %v4179 = vsel %vm4148, %v4113, %v4178
  %v4180 = vsel %vm4150, %v4114, %v4179
  %v4181 = vsel %vm4152, %v4115, %v4180
  %v4182 = vsel %vm4140, %v4117, %v4116
  %v4183 = vsel %vm4142, %v4118, %v4182
  %v4184 = vsel %vm4144, %v4119, %v4183
  %v4185 = vsel %vm4146, %v4120, %v4184
  %v4186 = vsel %vm4148, %v4121, %v4185
  %v4187 = vsel %vm4150, %v4122, %v4186
  %v4188 = vsel %vm4152, %v4123, %v4187
  %v4189 = vsel %vm4140, %v4125, %v4124
  %v4190 = vsel %vm4142, %v4126, %v4189
  %v4191 = vsel %vm4144, %v4127, %v4190
  %v4192 = vsel %vm4146, %v4128, %v4191
  %v4193 = vsel %vm4148, %v4129, %v4192
  %v4194 = vsel %vm4150, %v4130, %v4193
  %v4195 = vsel %vm4152, %v4131, %v4194
  %v4196 = vsel %vm4140, %v4133, %v4132
  %v4197 = vsel %vm4142, %v4134, %v4196
  %v4198 = vsel %vm4144, %v4135, %v4197
  %v4199 = vsel %vm4146, %v4136, %v4198
  %v4200 = vsel %vm4148, %v4137, %v4199
  %v4201 = vsel %vm4150, %v4138, %v4200
  %v4202 = vsel %vm4152, %v4139, %v4201
  %v4203 = vpack.c.b16 %v4160, %v4153
  %v4204 = vpack.c.b16 %v4174, %v4167
  %v4205 = vpack.c.b16 %v4188, %v4181
  %v4206 = vpack.c.b16 %v4202, %v4195
  %4211 = vmatprep.subr.bf16.mxu0 0
  %4212 = vmatpush1.bf16.msra.mxu0 %v4203
  %4213 = vmatprep.subr.bf16.mxu0 0
  %4214 = vmatpush1.bf16.msra.mxu0 %v4204
  %4215 = vmatprep.subr.bf16.mxu0 0
  %4216 = vmatpush1.bf16.msra.mxu0 %v4205
  %4217 = vmatprep.subr.bf16.mxu0 0
  %4218 = vmatpush1.bf16.msra.mxu0 %v4206
  %4219 = vmatprep.subr.bf16.mxu0 0
  %4220 = vmatpush1.bf16.msra.mxu0 0
  %4221 = vmatprep.subr.bf16.mxu0 0
  %4222 = vmatpush1.bf16.msra.mxu0 0
  %4223 = vmatprep.subr.bf16.mxu0 0
  %4224 = vmatpush1.bf16.msra.mxu0 0
  %4225 = vmatprep.subr.bf16.mxu0 0
  %4226 = vmatpush1.bf16.msra.mxu0 0
  %4227 = vmatprep.subr.bf16.mxu0 0
  %4228 = vmatpush1.bf16.msra.mxu0 0
  %4229 = vmatprep.subr.bf16.mxu0 0
  %4230 = vmatpush1.bf16.msra.mxu0 0
  %4231 = vmatprep.subr.bf16.mxu0 0
  %4232 = vmatpush1.bf16.msra.mxu0 0
  %4233 = vmatprep.subr.bf16.mxu0 0
  %4234 = vmatpush1.bf16.msra.mxu0 0
  %4235 = vmatprep.subr.bf16.mxu0 0
  %4236 = vmatpush1.bf16.msra.mxu0 0
  %4237 = vmatprep.subr.bf16.mxu0 0
  %4238 = vmatpush1.bf16.msra.mxu0 0
  %4239 = vmatprep.subr.bf16.mxu0 0
  %4240 = vmatpush1.bf16.msra.mxu0 0
  %4241 = vmatprep.subr.bf16.mxu0 0
  %4242 = vmatpush1.bf16.msra.mxu0 0
  %4243 = vmatprep.mubr.bf16.mxu0 0
  %4244 = vmatmul.mubr.bf16.gmra.mrb[0].mxu0 %v2634
  %v4245 = vpop.f32.mrb[0].mxu0
  %v4246 = vadd.f32 0.0, %v4245
  %v4247 = vpop.f32.mrb[0].mxu0
  %v4248 = vpop.f32.mrb[0].mxu0
  %v4249 = vadd.f32 0.0, %v4248
  %v4250 = vpop.f32.mrb[0].mxu0
  %4251 = vmatprep.mubr.bf16.mxu0 0
  %4252 = vmatmul.mubr.bf16.gmra.mrb[0].mxu0 %v2637
  %v4253 = vpop.f32.mrb[0].mxu0
  %v4254 = vadd.f32 0.0, %v4253
  %v4255 = vpop.f32.mrb[0].mxu0
  %v4256 = vpop.f32.mrb[0].mxu0
  %v4257 = vadd.f32 0.0, %v4256
  %v4258 = vpop.f32.mrb[0].mxu0
  %4259 = vmatprep.mubr.bf16.mxu0 0
  %4260 = vmatmul.mubr.bf16.gmra.mrb[0].mxu0 %v2640
  %v4261 = vpop.f32.mrb[0].mxu0
  %v4262 = vadd.f32 0.0, %v4261
  %v4263 = vpop.f32.mrb[0].mxu0
  %v4264 = vpop.f32.mrb[0].mxu0
  %v4265 = vadd.f32 0.0, %v4264
  %v4266 = vpop.f32.mrb[0].mxu0
  %4267 = vmatprep.mubr.bf16.mxu0 0
  %4268 = vmatmul.mubr.bf16.gmra.mrb[0].mxu0 %v2643
  %v4269 = vpop.f32.mrb[0].mxu0
  %v4270 = vadd.f32 0.0, %v4269
  %v4271 = vpop.f32.mrb[0].mxu0
  %v4272 = vpop.f32.mrb[0].mxu0
  %v4273 = vadd.f32 0.0, %v4272
  %v4274 = vpop.f32.mrb[0].mxu0
  %4275 = vmatprep.mubr.bf16.mxu0 0
  %4276 = vmatmul.mubr.bf16.gmra.mrb[0].mxu0 %v2646
  %v4277 = vpop.f32.mrb[0].mxu0
  %v4278 = vadd.f32 0.0, %v4277
  %v4279 = vpop.f32.mrb[0].mxu0
  %v4280 = vpop.f32.mrb[0].mxu0
  %v4281 = vadd.f32 0.0, %v4280
  %v4282 = vpop.f32.mrb[0].mxu0
  %4283 = vmatprep.mubr.bf16.mxu0 0
  %4284 = vmatmul.mubr.bf16.gmra.mrb[0].mxu0 %v2649
  %v4285 = vpop.f32.mrb[0].mxu0
  %v4286 = vadd.f32 0.0, %v4285
  %v4287 = vpop.f32.mrb[0].mxu0
  %v4288 = vpop.f32.mrb[0].mxu0
  %v4289 = vadd.f32 0.0, %v4288
  %v4290 = vpop.f32.mrb[0].mxu0
  %4291 = vmatprep.mubr.bf16.mxu0 0
  %4292 = vmatmul.mubr.bf16.gmra.mrb[0].mxu0 %v2652
  %v4293 = vpop.f32.mrb[0].mxu0
  %v4294 = vadd.f32 0.0, %v4293
  %v4295 = vpop.f32.mrb[0].mxu0
  %v4296 = vpop.f32.mrb[0].mxu0
  %v4297 = vadd.f32 0.0, %v4296
  %v4298 = vpop.f32.mrb[0].mxu0
  %4299 = vmatprep.mubr.bf16.mxu0 0
  %4300 = vmatmul.mubr.bf16.gmra.mrb[0].mxu0 %v2655
  %v4301 = vpop.f32.mrb[0].mxu0
  %v4302 = vadd.f32 0.0, %v4301
  %v4303 = vpop.f32.mrb[0].mxu0
  %v4304 = vpop.f32.mrb[0].mxu0
  %v4305 = vadd.f32 0.0, %v4304
  %v4306 = vpop.f32.mrb[0].mxu0
  %4307 = vmatprep.mubr.bf16.mxu0 0
  %4308 = vmatmul.mubr.bf16.gmra.mrb[0].mxu0 %v2658
  %v4309 = vpop.f32.mrb[0].mxu0
  %v4310 = vadd.f32 0.0, %v4309
  %v4311 = vpop.f32.mrb[0].mxu0
  %v4312 = vpop.f32.mrb[0].mxu0
  %v4313 = vadd.f32 0.0, %v4312
  %v4314 = vpop.f32.mrb[0].mxu0
  %4315 = vmatprep.mubr.bf16.mxu0 0
  %4316 = vmatmul.mubr.bf16.gmra.mrb[0].mxu0 %v2661
  %v4317 = vpop.f32.mrb[0].mxu0
  %v4318 = vadd.f32 0.0, %v4317
  %v4319 = vpop.f32.mrb[0].mxu0
  %v4320 = vpop.f32.mrb[0].mxu0
  %v4321 = vadd.f32 0.0, %v4320
  %v4322 = vpop.f32.mrb[0].mxu0
  %4323 = vmatprep.mubr.bf16.mxu0 0
  %4324 = vmatmul.mubr.bf16.gmra.mrb[0].mxu0 %v2664
  %v4325 = vpop.f32.mrb[0].mxu0
  %v4326 = vadd.f32 0.0, %v4325
  %v4327 = vpop.f32.mrb[0].mxu0
  %v4328 = vpop.f32.mrb[0].mxu0
  %v4329 = vadd.f32 0.0, %v4328
  %v4330 = vpop.f32.mrb[0].mxu0
  %4331 = vmatprep.mubr.bf16.mxu0 0
  %4332 = vmatmul.mubr.bf16.gmra.mrb[0].mxu0 %v2667
  %v4333 = vpop.f32.mrb[0].mxu0
  %v4334 = vadd.f32 0.0, %v4333
  %v4335 = vpop.f32.mrb[0].mxu0
  %v4336 = vpop.f32.mrb[0].mxu0
  %v4337 = vadd.f32 0.0, %v4336
  %v4338 = vpop.f32.mrb[0].mxu0
  %4339 = vmatprep.mubr.bf16.mxu0 0
  %4340 = vmatmul.mubr.bf16.gmra.mrb[0].mxu0 %v2670
  %v4341 = vpop.f32.mrb[0].mxu0
  %v4342 = vadd.f32 0.0, %v4341
  %v4343 = vpop.f32.mrb[0].mxu0
  %v4344 = vpop.f32.mrb[0].mxu0
  %v4345 = vadd.f32 0.0, %v4344
  %v4346 = vpop.f32.mrb[0].mxu0
  %4347 = vmatprep.mubr.bf16.mxu0 0
  %4348 = vmatmul.mubr.bf16.gmra.mrb[0].mxu0 %v2673
  %v4349 = vpop.f32.mrb[0].mxu0
  %v4350 = vadd.f32 0.0, %v4349
  %v4351 = vpop.f32.mrb[0].mxu0
  %v4352 = vpop.f32.mrb[0].mxu0
  %v4353 = vadd.f32 0.0, %v4352
  %v4354 = vpop.f32.mrb[0].mxu0
  %4355 = vmatprep.mubr.bf16.mxu0 0
  %4356 = vmatmul.mubr.bf16.gmra.mrb[0].mxu0 %v2676
  %v4357 = vpop.f32.mrb[0].mxu0
  %v4358 = vadd.f32 0.0, %v4357
  %v4359 = vpop.f32.mrb[0].mxu0
  %v4360 = vpop.f32.mrb[0].mxu0
  %v4361 = vadd.f32 0.0, %v4360
  %v4362 = vpop.f32.mrb[0].mxu0
  %4363 = vmatprep.mubr.bf16.mxu0 0
  %4364 = vmatmul.mubr.bf16.gmra.mrb[0].mxu0 %v2679
  %v4365 = vpop.f32.mrb[0].mxu0
  %v4366 = vadd.f32 0.0, %v4365
  %v4367 = vpop.f32.mrb[0].mxu0
  %v4368 = vpop.f32.mrb[0].mxu0
  %v4369 = vadd.f32 0.0, %v4368
  %v4370 = vpop.f32.mrb[0].mxu0
  %4371 = vmatprep.mubr.bf16.mxu0 0
  %4372 = vmatmul.mubr.bf16.gmra.mrb[0].mxu0 %v2682
  %v4373 = vpop.f32.mrb[0].mxu0
  %v4374 = vadd.f32 0.0, %v4373
  %v4375 = vpop.f32.mrb[0].mxu0
  %v4376 = vpop.f32.mrb[0].mxu0
  %v4377 = vadd.f32 0.0, %v4376
  %v4378 = vpop.f32.mrb[0].mxu0
  %4379 = vmatprep.mubr.bf16.mxu0 0
  %4380 = vmatmul.mubr.bf16.gmra.mrb[0].mxu0 %v2685
  %v4381 = vpop.f32.mrb[0].mxu0
  %v4382 = vadd.f32 0.0, %v4381
  %v4383 = vpop.f32.mrb[0].mxu0
  %v4384 = vpop.f32.mrb[0].mxu0
  %v4385 = vadd.f32 0.0, %v4384
  %v4386 = vpop.f32.mrb[0].mxu0
  %4387 = vmatprep.mubr.bf16.mxu0 0
  %4388 = vmatmul.mubr.bf16.gmra.mrb[0].mxu0 %v2688
  %v4389 = vpop.f32.mrb[0].mxu0
  %v4390 = vadd.f32 0.0, %v4389
  %v4391 = vpop.f32.mrb[0].mxu0
  %v4392 = vpop.f32.mrb[0].mxu0
  %v4393 = vadd.f32 0.0, %v4392
  %v4394 = vpop.f32.mrb[0].mxu0
  %4395 = vmatprep.mubr.bf16.mxu0 0
  %4396 = vmatmul.mubr.bf16.gmra.mrb[0].mxu0 %v2691
  %v4397 = vpop.f32.mrb[0].mxu0
  %v4398 = vadd.f32 0.0, %v4397
  %v4399 = vpop.f32.mrb[0].mxu0
  %v4400 = vpop.f32.mrb[0].mxu0
  %v4401 = vadd.f32 0.0, %v4400
  %v4402 = vpop.f32.mrb[0].mxu0
  %4403 = vmatprep.mubr.bf16.mxu0 0
  %4404 = vmatmul.mubr.bf16.gmra.mrb[0].mxu0 %v2694
  %v4405 = vpop.f32.mrb[0].mxu0
  %v4406 = vadd.f32 0.0, %v4405
  %v4407 = vpop.f32.mrb[0].mxu0
  %v4408 = vpop.f32.mrb[0].mxu0
  %v4409 = vadd.f32 0.0, %v4408
  %v4410 = vpop.f32.mrb[0].mxu0
  %4411 = vmatprep.mubr.bf16.mxu0 0
  %4412 = vmatmul.mubr.bf16.gmra.mrb[0].mxu0 %v2697
  %v4413 = vpop.f32.mrb[0].mxu0
  %v4414 = vadd.f32 0.0, %v4413
  %v4415 = vpop.f32.mrb[0].mxu0
  %v4416 = vpop.f32.mrb[0].mxu0
  %v4417 = vadd.f32 0.0, %v4416
  %v4418 = vpop.f32.mrb[0].mxu0
  %4419 = vmatprep.mubr.bf16.mxu0 0
  %4420 = vmatmul.mubr.bf16.gmra.mrb[0].mxu0 %v2700
  %v4421 = vpop.f32.mrb[0].mxu0
  %v4422 = vadd.f32 0.0, %v4421
  %v4423 = vpop.f32.mrb[0].mxu0
  %v4424 = vpop.f32.mrb[0].mxu0
  %v4425 = vadd.f32 0.0, %v4424
  %v4426 = vpop.f32.mrb[0].mxu0
  %4427 = vmatprep.mubr.bf16.mxu0 0
  %4428 = vmatmul.mubr.bf16.gmra.mrb[0].mxu0 %v2703
  %v4429 = vpop.f32.mrb[0].mxu0
  %v4430 = vadd.f32 0.0, %v4429
  %v4431 = vpop.f32.mrb[0].mxu0
  %v4432 = vpop.f32.mrb[0].mxu0
  %v4433 = vadd.f32 0.0, %v4432
  %v4434 = vpop.f32.mrb[0].mxu0
  %4435 = vmatprep.mubr.bf16.mxu0 0
  %4436 = vmatmul.mubr.bf16.gmra.mrb[0].mxu0 %v2706
  %v4437 = vpop.f32.mrb[0].mxu0
  %v4438 = vadd.f32 0.0, %v4437
  %v4439 = vpop.f32.mrb[0].mxu0
  %v4440 = vpop.f32.mrb[0].mxu0
  %v4441 = vadd.f32 0.0, %v4440
  %v4442 = vpop.f32.mrb[0].mxu0
  %4443 = vmatprep.mubr.bf16.mxu0 0
  %4444 = vmatmul.mubr.bf16.gmra.mrb[0].mxu0 %v2709
  %v4445 = vpop.f32.mrb[0].mxu0
  %v4446 = vadd.f32 0.0, %v4445
  %v4447 = vpop.f32.mrb[0].mxu0
  %v4448 = vpop.f32.mrb[0].mxu0
  %v4449 = vadd.f32 0.0, %v4448
  %v4450 = vpop.f32.mrb[0].mxu0
  %4451 = vmatprep.mubr.bf16.mxu0 0
  %4452 = vmatmul.mubr.bf16.gmra.mrb[0].mxu0 %v2712
  %v4453 = vpop.f32.mrb[0].mxu0
  %v4454 = vadd.f32 0.0, %v4453
  %v4455 = vpop.f32.mrb[0].mxu0
  %v4456 = vpop.f32.mrb[0].mxu0
  %v4457 = vadd.f32 0.0, %v4456
  %v4458 = vpop.f32.mrb[0].mxu0
  %4459 = vmatprep.mubr.bf16.mxu0 0
  %4460 = vmatmul.mubr.bf16.gmra.mrb[0].mxu0 %v2715
  %v4461 = vpop.f32.mrb[0].mxu0
  %v4462 = vadd.f32 0.0, %v4461
  %v4463 = vpop.f32.mrb[0].mxu0
  %v4464 = vpop.f32.mrb[0].mxu0
  %v4465 = vadd.f32 0.0, %v4464
  %v4466 = vpop.f32.mrb[0].mxu0
  %4467 = vmatprep.mubr.bf16.mxu0 0
  %4468 = vmatmul.mubr.bf16.gmra.mrb[0].mxu0 %v2718
  %v4469 = vpop.f32.mrb[0].mxu0
  %v4470 = vadd.f32 0.0, %v4469
  %v4471 = vpop.f32.mrb[0].mxu0
  %v4472 = vpop.f32.mrb[0].mxu0
  %v4473 = vadd.f32 0.0, %v4472
  %v4474 = vpop.f32.mrb[0].mxu0
  %4475 = vmatprep.mubr.bf16.mxu0 0
  %4476 = vmatmul.mubr.bf16.gmra.mrb[0].mxu0 %v2721
  %v4477 = vpop.f32.mrb[0].mxu0
  %v4478 = vadd.f32 0.0, %v4477
  %v4479 = vpop.f32.mrb[0].mxu0
  %v4480 = vpop.f32.mrb[0].mxu0
  %v4481 = vadd.f32 0.0, %v4480
  %v4482 = vpop.f32.mrb[0].mxu0
  %4483 = vmatprep.mubr.bf16.mxu0 0
  %4484 = vmatmul.mubr.bf16.gmra.mrb[0].mxu0 %v2724
  %v4485 = vpop.f32.mrb[0].mxu0
  %v4486 = vadd.f32 0.0, %v4485
  %v4487 = vpop.f32.mrb[0].mxu0
  %v4488 = vpop.f32.mrb[0].mxu0
  %v4489 = vadd.f32 0.0, %v4488
  %v4490 = vpop.f32.mrb[0].mxu0
  %4491 = vmatprep.mubr.bf16.mxu0 0
  %4492 = vmatmul.mubr.bf16.gmra.mrb[0].mxu0 %v2727
  %v4493 = vpop.f32.mrb[0].mxu0
  %v4494 = vadd.f32 0.0, %v4493
  %v4495 = vpop.f32.mrb[0].mxu0
  %v4496 = vpop.f32.mrb[0].mxu0
  %v4497 = vadd.f32 0.0, %v4496
  %v4498 = vpop.f32.mrb[0].mxu0
  %4499 = vdwg.mxu0
  %v4500 = vsub.f32 %v3245, %v4246
  %v4501 = vsub.f32 %v3248, %v4249
  %v4502 = vsub.f32 %v3253, %v4254
  %v4503 = vsub.f32 %v3256, %v4257
  %v4504 = vsub.f32 %v3261, %v4262
  %v4505 = vsub.f32 %v3264, %v4265
  %v4506 = vsub.f32 %v3269, %v4270
  %v4507 = vsub.f32 %v3272, %v4273
  %v4508 = vsub.f32 %v3277, %v4278
  %v4509 = vsub.f32 %v3280, %v4281
  %v4510 = vsub.f32 %v3285, %v4286
  %v4511 = vsub.f32 %v3288, %v4289
  %v4512 = vsub.f32 %v3293, %v4294
  %v4513 = vsub.f32 %v3296, %v4297
  %v4514 = vsub.f32 %v3301, %v4302
  %v4515 = vsub.f32 %v3304, %v4305
  %v4516 = vsub.f32 %v3309, %v4310
  %v4517 = vsub.f32 %v3312, %v4313
  %v4518 = vsub.f32 %v3317, %v4318
  %v4519 = vsub.f32 %v3320, %v4321
  %v4520 = vsub.f32 %v3325, %v4326
  %v4521 = vsub.f32 %v3328, %v4329
  %v4522 = vsub.f32 %v3333, %v4334
  %v4523 = vsub.f32 %v3336, %v4337
  %v4524 = vsub.f32 %v3341, %v4342
  %v4525 = vsub.f32 %v3344, %v4345
  %v4526 = vsub.f32 %v3349, %v4350
  %v4527 = vsub.f32 %v3352, %v4353
  %v4528 = vsub.f32 %v3357, %v4358
  %v4529 = vsub.f32 %v3360, %v4361
  %v4530 = vsub.f32 %v3365, %v4366
  %v4531 = vsub.f32 %v3368, %v4369
  %v4532 = vsub.f32 %v3373, %v4374
  %v4533 = vsub.f32 %v3376, %v4377
  %v4534 = vsub.f32 %v3381, %v4382
  %v4535 = vsub.f32 %v3384, %v4385
  %v4536 = vsub.f32 %v3389, %v4390
  %v4537 = vsub.f32 %v3392, %v4393
  %v4538 = vsub.f32 %v3397, %v4398
  %v4539 = vsub.f32 %v3400, %v4401
  %v4540 = vsub.f32 %v3405, %v4406
  %v4541 = vsub.f32 %v3408, %v4409
  %v4542 = vsub.f32 %v3413, %v4414
  %v4543 = vsub.f32 %v3416, %v4417
  %v4544 = vsub.f32 %v3421, %v4422
  %v4545 = vsub.f32 %v3424, %v4425
  %v4546 = vsub.f32 %v3429, %v4430
  %v4547 = vsub.f32 %v3432, %v4433
  %v4548 = vsub.f32 %v3437, %v4438
  %v4549 = vsub.f32 %v3440, %v4441
  %v4550 = vsub.f32 %v3445, %v4446
  %v4551 = vsub.f32 %v3448, %v4449
  %v4552 = vsub.f32 %v3453, %v4454
  %v4553 = vsub.f32 %v3456, %v4457
  %v4554 = vsub.f32 %v3461, %v4462
  %v4555 = vsub.f32 %v3464, %v4465
  %v4556 = vsub.f32 %v3469, %v4470
  %v4557 = vsub.f32 %v3472, %v4473
  %v4558 = vsub.f32 %v3477, %v4478
  %v4559 = vsub.f32 %v3480, %v4481
  %v4560 = vsub.f32 %v3485, %v4486
  %v4561 = vsub.f32 %v3488, %v4489
  %v4562 = vsub.f32 %v3493, %v4494
  %v4563 = vsub.f32 %v3496, %v4497
  %v4564 = vmul.f32 %v4500, 1.442695
  %v4565 = vpow.pop %v4564
  %v4566 = vmul.f32 %v4501, 1.442695
  %v4567 = vpow.pop %v4566
  %v4568 = vmul.f32 %v4502, 1.442695
  %v4569 = vpow.pop %v4568
  %v4570 = vmul.f32 %v4503, 1.442695
  %v4571 = vpow.pop %v4570
  %v4572 = vmul.f32 %v4504, 1.442695
  %v4573 = vpow.pop %v4572
  %v4574 = vmul.f32 %v4505, 1.442695
  %v4575 = vpow.pop %v4574
  %v4576 = vmul.f32 %v4506, 1.442695
  %v4577 = vpow.pop %v4576
  %v4578 = vmul.f32 %v4507, 1.442695
  %v4579 = vpow.pop %v4578
  %v4580 = vmul.f32 %v4508, 1.442695
  %v4581 = vpow.pop %v4580
  %v4582 = vmul.f32 %v4509, 1.442695
  %v4583 = vpow.pop %v4582
  %v4584 = vmul.f32 %v4510, 1.442695
  %v4585 = vpow.pop %v4584
  %v4586 = vmul.f32 %v4511, 1.442695
  %v4587 = vpow.pop %v4586
  %v4588 = vmul.f32 %v4512, 1.442695
  %v4589 = vpow.pop %v4588
  %v4590 = vmul.f32 %v4513, 1.442695
  %v4591 = vpow.pop %v4590
  %v4592 = vmul.f32 %v4514, 1.442695
  %v4593 = vpow.pop %v4592
  %v4594 = vmul.f32 %v4515, 1.442695
  %v4595 = vpow.pop %v4594
  %v4596 = vmul.f32 %v4516, 1.442695
  %v4597 = vpow.pop %v4596
  %v4598 = vmul.f32 %v4517, 1.442695
  %v4599 = vpow.pop %v4598
  %v4600 = vmul.f32 %v4518, 1.442695
  %v4601 = vpow.pop %v4600
  %v4602 = vmul.f32 %v4519, 1.442695
  %v4603 = vpow.pop %v4602
  %v4604 = vmul.f32 %v4520, 1.442695
  %v4605 = vpow.pop %v4604
  %v4606 = vmul.f32 %v4521, 1.442695
  %v4607 = vpow.pop %v4606
  %v4608 = vmul.f32 %v4522, 1.442695
  %v4609 = vpow.pop %v4608
  %v4610 = vmul.f32 %v4523, 1.442695
  %v4611 = vpow.pop %v4610
  %v4612 = vmul.f32 %v4524, 1.442695
  %v4613 = vpow.pop %v4612
  %v4614 = vmul.f32 %v4525, 1.442695
  %v4615 = vpow.pop %v4614
  %v4616 = vmul.f32 %v4526, 1.442695
  %v4617 = vpow.pop %v4616
  %v4618 = vmul.f32 %v4527, 1.442695
  %v4619 = vpow.pop %v4618
  %v4620 = vmul.f32 %v4528, 1.442695
  %v4621 = vpow.pop %v4620
  %v4622 = vmul.f32 %v4529, 1.442695
  %v4623 = vpow.pop %v4622
  %v4624 = vmul.f32 %v4530, 1.442695
  %v4625 = vpow.pop %v4624
  %v4626 = vmul.f32 %v4531, 1.442695
  %v4627 = vpow.pop %v4626
  %v4628 = vmul.f32 %v4532, 1.442695
  %v4629 = vpow.pop %v4628
  %v4630 = vmul.f32 %v4533, 1.442695
  %v4631 = vpow.pop %v4630
  %v4632 = vmul.f32 %v4534, 1.442695
  %v4633 = vpow.pop %v4632
  %v4634 = vmul.f32 %v4535, 1.442695
  %v4635 = vpow.pop %v4634
  %v4636 = vmul.f32 %v4536, 1.442695
  %v4637 = vpow.pop %v4636
  %v4638 = vmul.f32 %v4537, 1.442695
  %v4639 = vpow.pop %v4638
  %v4640 = vmul.f32 %v4538, 1.442695
  %v4641 = vpow.pop %v4640
  %v4642 = vmul.f32 %v4539, 1.442695
  %v4643 = vpow.pop %v4642
  %v4644 = vmul.f32 %v4540, 1.442695
  %v4645 = vpow.pop %v4644
  %v4646 = vmul.f32 %v4541, 1.442695
  %v4647 = vpow.pop %v4646
  %v4648 = vmul.f32 %v4542, 1.442695
  %v4649 = vpow.pop %v4648
  %v4650 = vmul.f32 %v4543, 1.442695
  %v4651 = vpow.pop %v4650
  %v4652 = vmul.f32 %v4544, 1.442695
  %v4653 = vpow.pop %v4652
  %v4654 = vmul.f32 %v4545, 1.442695
  %v4655 = vpow.pop %v4654
  %v4656 = vmul.f32 %v4546, 1.442695
  %v4657 = vpow.pop %v4656
  %v4658 = vmul.f32 %v4547, 1.442695
  %v4659 = vpow.pop %v4658
  %v4660 = vmul.f32 %v4548, 1.442695
  %v4661 = vpow.pop %v4660
  %v4662 = vmul.f32 %v4549, 1.442695
  %v4663 = vpow.pop %v4662
  %v4664 = vmul.f32 %v4550, 1.442695
  %v4665 = vpow.pop %v4664
  %v4666 = vmul.f32 %v4551, 1.442695
  %v4667 = vpow.pop %v4666
  %v4668 = vmul.f32 %v4552, 1.442695
  %v4669 = vpow.pop %v4668
  %v4670 = vmul.f32 %v4553, 1.442695
  %v4671 = vpow.pop %v4670
  %v4672 = vmul.f32 %v4554, 1.442695
  %v4673 = vpow.pop %v4672
  %v4674 = vmul.f32 %v4555, 1.442695
  %v4675 = vpow.pop %v4674
  %v4676 = vmul.f32 %v4556, 1.442695
  %v4677 = vpow.pop %v4676
  %v4678 = vmul.f32 %v4557, 1.442695
  %v4679 = vpow.pop %v4678
  %v4680 = vmul.f32 %v4558, 1.442695
  %v4681 = vpow.pop %v4680
  %v4682 = vmul.f32 %v4559, 1.442695
  %v4683 = vpow.pop %v4682
  %v4684 = vmul.f32 %v4560, 1.442695
  %v4685 = vpow.pop %v4684
  %v4686 = vmul.f32 %v4561, 1.442695
  %v4687 = vpow.pop %v4686
  %v4688 = vmul.f32 %v4562, 1.442695
  %v4689 = vpow.pop %v4688
  %v4690 = vmul.f32 %v4563, 1.442695
  %v4691 = vpow.pop %v4690
  %v4692 = vpack.c.bf16 %v4567, %v4565
  %v4693 = vpack.c.bf16 %v4571, %v4569
  %v4694 = vpack.c.bf16 %v4575, %v4573
  %v4695 = vpack.c.bf16 %v4579, %v4577
  %v4696 = vpack.c.bf16 %v4583, %v4581
  %v4697 = vpack.c.bf16 %v4587, %v4585
  %v4698 = vpack.c.bf16 %v4591, %v4589
  %v4699 = vpack.c.bf16 %v4595, %v4593
  %v4700 = vpack.c.bf16 %v4599, %v4597
  %v4701 = vpack.c.bf16 %v4603, %v4601
  %v4702 = vpack.c.bf16 %v4607, %v4605
  %v4703 = vpack.c.bf16 %v4611, %v4609
  %v4704 = vpack.c.bf16 %v4615, %v4613
  %v4705 = vpack.c.bf16 %v4619, %v4617
  %v4706 = vpack.c.bf16 %v4623, %v4621
  %v4707 = vpack.c.bf16 %v4627, %v4625
  %v4708 = vpack.c.bf16 %v4631, %v4629
  %v4709 = vpack.c.bf16 %v4635, %v4633
  %v4710 = vpack.c.bf16 %v4639, %v4637
  %v4711 = vpack.c.bf16 %v4643, %v4641
  %v4712 = vpack.c.bf16 %v4647, %v4645
  %v4713 = vpack.c.bf16 %v4651, %v4649
  %v4714 = vpack.c.bf16 %v4655, %v4653
  %v4715 = vpack.c.bf16 %v4659, %v4657
  %v4716 = vpack.c.bf16 %v4663, %v4661
  %v4717 = vpack.c.bf16 %v4667, %v4665
  %v4718 = vpack.c.bf16 %v4671, %v4669
  %v4719 = vpack.c.bf16 %v4675, %v4673
  %v4720 = vpack.c.bf16 %v4679, %v4677
  %v4721 = vpack.c.bf16 %v4683, %v4681
  %v4722 = vpack.c.bf16 %v4687, %v4685
  %v4723 = vpack.c.bf16 %v4691, %v4689
  %4724 = vmatprep.subr.bf16.mxu0 0
  %4725 = vmatpush1.bf16.msra.mxu0 %v4692
  %4726 = vmatprep.subr.bf16.mxu0 0
  %4727 = vmatpush1.bf16.msra.mxu0 %v4693
  %4728 = vmatprep.subr.bf16.mxu0 0
  %4729 = vmatpush1.bf16.msra.mxu0 %v4694
  %4730 = vmatprep.subr.bf16.mxu0 0
  %4731 = vmatpush1.bf16.msra.mxu0 %v4695
  %4732 = vmatprep.subr.bf16.mxu0 0
  %4733 = vmatpush1.bf16.msra.mxu0 %v4696
  %4734 = vmatprep.subr.bf16.mxu0 0
  %4735 = vmatpush1.bf16.msra.mxu0 %v4697
  %4736 = vmatprep.subr.bf16.mxu0 0
  %4737 = vmatpush1.bf16.msra.mxu0 %v4698
  %4738 = vmatprep.subr.bf16.mxu0 0
  %4739 = vmatpush1.bf16.msra.mxu0 %v4699
  %4740 = vmatprep.subr.bf16.mxu0 0
  %4741 = vmatpush1.bf16.msra.mxu0 %v4700
  %4742 = vmatprep.subr.bf16.mxu0 0
  %4743 = vmatpush1.bf16.msra.mxu0 %v4701
  %4744 = vmatprep.subr.bf16.mxu0 0
  %4745 = vmatpush1.bf16.msra.mxu0 %v4702
  %4746 = vmatprep.subr.bf16.mxu0 0
  %4747 = vmatpush1.bf16.msra.mxu0 %v4703
  %4748 = vmatprep.subr.bf16.mxu0 0
  %4749 = vmatpush1.bf16.msra.mxu0 %v4704
  %4750 = vmatprep.subr.bf16.mxu0 0
  %4751 = vmatpush1.bf16.msra.mxu0 %v4705
  %4752 = vmatprep.subr.bf16.mxu0 0
  %4753 = vmatpush1.bf16.msra.mxu0 %v4706
  %4754 = vmatprep.subr.bf16.mxu0 0
  %4755 = vmatpush1.bf16.msra.mxu0 %v4707
  %4756 = vmatprep.mubr.bf16.mxu0 %v1140
  %4757 = vmatmul.mubr.bf16.gmra.mrb[0].mxu0 %v1139
  %v4758 = vpop.f32.mrb[0].mxu0
  %v4759 = vadd.f32 0.0, %v4758
  %v4760 = vpop.f32.mrb[0].mxu0
  %v4761 = vpop.f32.mrb[0].mxu0
  %v4762 = vadd.f32 0.0, %v4761
  %v4763 = vpop.f32.mrb[0].mxu0
  %4764 = vmatprep.mubr.bf16.mxu0 %v1144
  %4765 = vmatmul.mubr.bf16.gmra.mrb[0].mxu0 %v1143
  %v4766 = vpop.f32.mrb[0].mxu0
  %v4767 = vadd.f32 0.0, %v4766
  %v4768 = vpop.f32.mrb[0].mxu0
  %v4769 = vpop.f32.mrb[0].mxu0
  %v4770 = vadd.f32 0.0, %v4769
  %v4771 = vpop.f32.mrb[0].mxu0
  %4772 = vmatprep.mubr.bf16.mxu0 %v1148
  %4773 = vmatmul.mubr.bf16.gmra.mrb[0].mxu0 %v1147
  %v4774 = vpop.f32.mrb[0].mxu0
  %v4775 = vadd.f32 0.0, %v4774
  %v4776 = vpop.f32.mrb[0].mxu0
  %v4777 = vpop.f32.mrb[0].mxu0
  %v4778 = vadd.f32 0.0, %v4777
  %v4779 = vpop.f32.mrb[0].mxu0
  %4780 = vmatprep.mubr.bf16.mxu0 %v1152
  %4781 = vmatmul.mubr.bf16.gmra.mrb[0].mxu0 %v1151
  %v4782 = vpop.f32.mrb[0].mxu0
  %v4783 = vadd.f32 0.0, %v4782
  %v4784 = vpop.f32.mrb[0].mxu0
  %v4785 = vpop.f32.mrb[0].mxu0
  %v4786 = vadd.f32 0.0, %v4785
  %v4787 = vpop.f32.mrb[0].mxu0
  %4788 = vdwg.mxu0
  %4789 = vmatprep.subr.bf16.mxu0 0
  %4790 = vmatpush1.bf16.msra.mxu0 %v4708
  %4791 = vmatprep.subr.bf16.mxu0 0
  %4792 = vmatpush1.bf16.msra.mxu0 %v4709
  %4793 = vmatprep.subr.bf16.mxu0 0
  %4794 = vmatpush1.bf16.msra.mxu0 %v4710
  %4795 = vmatprep.subr.bf16.mxu0 0
  %4796 = vmatpush1.bf16.msra.mxu0 %v4711
  %4797 = vmatprep.subr.bf16.mxu0 0
  %4798 = vmatpush1.bf16.msra.mxu0 %v4712
  %4799 = vmatprep.subr.bf16.mxu0 0
  %4800 = vmatpush1.bf16.msra.mxu0 %v4713
  %4801 = vmatprep.subr.bf16.mxu0 0
  %4802 = vmatpush1.bf16.msra.mxu0 %v4714
  %4803 = vmatprep.subr.bf16.mxu0 0
  %4804 = vmatpush1.bf16.msra.mxu0 %v4715
  %4805 = vmatprep.subr.bf16.mxu0 0
  %4806 = vmatpush1.bf16.msra.mxu0 %v4716
  %4807 = vmatprep.subr.bf16.mxu0 0
  %4808 = vmatpush1.bf16.msra.mxu0 %v4717
  %4809 = vmatprep.subr.bf16.mxu0 0
  %4810 = vmatpush1.bf16.msra.mxu0 %v4718
  %4811 = vmatprep.subr.bf16.mxu0 0
  %4812 = vmatpush1.bf16.msra.mxu0 %v4719
  %4813 = vmatprep.subr.bf16.mxu0 0
  %4814 = vmatpush1.bf16.msra.mxu0 %v4720
  %4815 = vmatprep.subr.bf16.mxu0 0
  %4816 = vmatpush1.bf16.msra.mxu0 %v4721
  %4817 = vmatprep.subr.bf16.mxu0 0
  %4818 = vmatpush1.bf16.msra.mxu0 %v4722
  %4819 = vmatprep.subr.bf16.mxu0 0
  %4820 = vmatpush1.bf16.msra.mxu0 %v4723
  %4821 = vmatprep.mubr.bf16.mxu0 %v1142
  %4822 = vmatmul.mubr.bf16.gmra.mrb[0].mxu0 %v1141
  %v4823 = vpop.f32.mrb[0].mxu0
  %v4824 = vadd.f32 %v4759, %v4823
  %v4825 = vpop.f32.mrb[0].mxu0
  %v4826 = vpop.f32.mrb[0].mxu0
  %v4827 = vadd.f32 %v4762, %v4826
  %v4828 = vpop.f32.mrb[0].mxu0
  %4829 = vmatprep.mubr.bf16.mxu0 %v1146
  %4830 = vmatmul.mubr.bf16.gmra.mrb[0].mxu0 %v1145
  %v4831 = vpop.f32.mrb[0].mxu0
  %v4832 = vadd.f32 %v4767, %v4831
  %v4833 = vpop.f32.mrb[0].mxu0
  %v4834 = vpop.f32.mrb[0].mxu0
  %v4835 = vadd.f32 %v4770, %v4834
  %v4836 = vpop.f32.mrb[0].mxu0
  %4837 = vmatprep.mubr.bf16.mxu0 %v1150
  %4838 = vmatmul.mubr.bf16.gmra.mrb[0].mxu0 %v1149
  %v4839 = vpop.f32.mrb[0].mxu0
  %v4840 = vadd.f32 %v4775, %v4839
  %v4841 = vpop.f32.mrb[0].mxu0
  %v4842 = vpop.f32.mrb[0].mxu0
  %v4843 = vadd.f32 %v4778, %v4842
  %v4844 = vpop.f32.mrb[0].mxu0
  %4845 = vmatprep.mubr.bf16.mxu0 %v1154
  %4846 = vmatmul.mubr.bf16.gmra.mrb[0].mxu0 %v1153
  %v4847 = vpop.f32.mrb[0].mxu0
  %v4848 = vadd.f32 %v4783, %v4847
  %v4849 = vpop.f32.mrb[0].mxu0
  %v4850 = vpop.f32.mrb[0].mxu0
  %v4851 = vadd.f32 %v4786, %v4850
  %v4852 = vpop.f32.mrb[0].mxu0
  %4853 = vdwg.mxu0
  %v4855 = vsel %vm3499, %v4692, 0
  %v4858 = vsel %vm3499, %v4693, 0
  %v4861 = vsel %vm3499, %v4694, 0
  %v4864 = vsel %vm3499, %v4695, 0
  %v4867 = vsel %vm3499, %v4696, 0
  %v4870 = vsel %vm3499, %v4697, 0
  %v4873 = vsel %vm3499, %v4698, 0
  %v4876 = vsel %vm3499, %v4699, 0
  %v4879 = vsel %vm3499, %v4700, 0
  %v4882 = vsel %vm3499, %v4701, 0
  %v4885 = vsel %vm3499, %v4702, 0
  %v4888 = vsel %vm3499, %v4703, 0
  %v4891 = vsel %vm3499, %v4704, 0
  %v4894 = vsel %vm3499, %v4705, 0
  %v4897 = vsel %vm3499, %v4706, 0
  %v4900 = vsel %vm3499, %v4707, 0
  %v4903 = vsel %vm3499, %v4708, 0
  %v4906 = vsel %vm3499, %v4709, 0
  %v4909 = vsel %vm3499, %v4710, 0
  %v4912 = vsel %vm3499, %v4711, 0
  %v4915 = vsel %vm3499, %v4712, 0
  %v4918 = vsel %vm3499, %v4713, 0
  %v4921 = vsel %vm3499, %v4714, 0
  %v4924 = vsel %vm3499, %v4715, 0
  %v4927 = vsel %vm3499, %v4716, 0
  %v4930 = vsel %vm3499, %v4717, 0
  %v4933 = vsel %vm3499, %v4718, 0
  %v4936 = vsel %vm3499, %v4719, 0
  %v4939 = vsel %vm3499, %v4720, 0
  %v4942 = vsel %vm3499, %v4721, 0
  %v4945 = vsel %vm3499, %v4722, 0
  %v4948 = vsel %vm3499, %v4723, 0
  %vm4950 = vcmask 1041408
  %v4952 = vsel %vm4950, %v1206, 0
  %4954 = vmatprep.subr.bf16.mxu0 0
  %4955 = vmatpush1.bf16.msra.mxu0 %v4952
  %4956 = vmatprep.subr.bf16.mxu0 0
  %4957 = vmatpush1.bf16.msra.mxu0 0
  %4958 = vmatprep.subr.bf16.mxu0 0
  %4959 = vmatpush1.bf16.msra.mxu0 0
  %4960 = vmatprep.subr.bf16.mxu0 0
  %4961 = vmatpush1.bf16.msra.mxu0 0
  %4962 = vmatprep.subr.bf16.mxu0 0
  %4963 = vmatpush1.bf16.msra.mxu0 0
  %4964 = vmatprep.subr.bf16.mxu0 0
  %4965 = vmatpush1.bf16.msra.mxu0 0
  %4966 = vmatprep.subr.bf16.mxu0 0
  %4967 = vmatpush1.bf16.msra.mxu0 0
  %4968 = vmatprep.subr.bf16.mxu0 0
  %4969 = vmatpush1.bf16.msra.mxu0 0
  %4970 = vmatprep.subr.bf16.mxu0 0
  %4971 = vmatpush1.bf16.msra.mxu0 0
  %4972 = vmatprep.subr.bf16.mxu0 0
  %4973 = vmatpush1.bf16.msra.mxu0 0
  %4974 = vmatprep.subr.bf16.mxu0 0
  %4975 = vmatpush1.bf16.msra.mxu0 0
  %4976 = vmatprep.subr.bf16.mxu0 0
  %4977 = vmatpush1.bf16.msra.mxu0 0
  %4978 = vmatprep.subr.bf16.mxu0 0
  %4979 = vmatpush1.bf16.msra.mxu0 0
  %4980 = vmatprep.subr.bf16.mxu0 0
  %4981 = vmatpush1.bf16.msra.mxu0 0
  %4982 = vmatprep.subr.bf16.mxu0 0
  %4983 = vmatpush1.bf16.msra.mxu0 0
  %4984 = vmatprep.subr.bf16.mxu0 0
  %4985 = vmatpush1.bf16.msra.mxu0 0
  %4986 = vmatprep.mubr.bf16.mxu0 0
  %4987 = vmatmul.mubr.bf16.gmra.mrb[0].mxu0 %v4855
  %v4988 = vpop.f32.mrb[0].mxu0
  %v4989 = vadd.f32 0.0, %v4988
  %v4990 = vpop.f32.mrb[0].mxu0
  %v4991 = vpop.f32.mrb[0].mxu0
  %v4992 = vadd.f32 0.0, %v4991
  %v4993 = vpop.f32.mrb[0].mxu0
  %4994 = vmatprep.mubr.bf16.mxu0 0
  %4995 = vmatmul.mubr.bf16.gmra.mrb[0].mxu0 %v4858
  %v4996 = vpop.f32.mrb[0].mxu0
  %v4997 = vadd.f32 0.0, %v4996
  %v4998 = vpop.f32.mrb[0].mxu0
  %v4999 = vpop.f32.mrb[0].mxu0
  %v5000 = vadd.f32 0.0, %v4999
  %v5001 = vpop.f32.mrb[0].mxu0
  %5002 = vmatprep.mubr.bf16.mxu0 0
  %5003 = vmatmul.mubr.bf16.gmra.mrb[0].mxu0 %v4861
  %v5004 = vpop.f32.mrb[0].mxu0
  %v5005 = vadd.f32 0.0, %v5004
  %v5006 = vpop.f32.mrb[0].mxu0
  %v5007 = vpop.f32.mrb[0].mxu0
  %v5008 = vadd.f32 0.0, %v5007
  %v5009 = vpop.f32.mrb[0].mxu0
  %5010 = vmatprep.mubr.bf16.mxu0 0
  %5011 = vmatmul.mubr.bf16.gmra.mrb[0].mxu0 %v4864
  %v5012 = vpop.f32.mrb[0].mxu0
  %v5013 = vadd.f32 0.0, %v5012
  %v5014 = vpop.f32.mrb[0].mxu0
  %v5015 = vpop.f32.mrb[0].mxu0
  %v5016 = vadd.f32 0.0, %v5015
  %v5017 = vpop.f32.mrb[0].mxu0
  %5018 = vmatprep.mubr.bf16.mxu0 0
  %5019 = vmatmul.mubr.bf16.gmra.mrb[0].mxu0 %v4867
  %v5020 = vpop.f32.mrb[0].mxu0
  %v5021 = vadd.f32 0.0, %v5020
  %v5022 = vpop.f32.mrb[0].mxu0
  %v5023 = vpop.f32.mrb[0].mxu0
  %v5024 = vadd.f32 0.0, %v5023
  %v5025 = vpop.f32.mrb[0].mxu0
  %5026 = vmatprep.mubr.bf16.mxu0 0
  %5027 = vmatmul.mubr.bf16.gmra.mrb[0].mxu0 %v4870
  %v5028 = vpop.f32.mrb[0].mxu0
  %v5029 = vadd.f32 0.0, %v5028
  %v5030 = vpop.f32.mrb[0].mxu0
  %v5031 = vpop.f32.mrb[0].mxu0
  %v5032 = vadd.f32 0.0, %v5031
  %v5033 = vpop.f32.mrb[0].mxu0
  %5034 = vmatprep.mubr.bf16.mxu0 0
  %5035 = vmatmul.mubr.bf16.gmra.mrb[0].mxu0 %v4873
  %v5036 = vpop.f32.mrb[0].mxu0
  %v5037 = vadd.f32 0.0, %v5036
  %v5038 = vpop.f32.mrb[0].mxu0
  %v5039 = vpop.f32.mrb[0].mxu0
  %v5040 = vadd.f32 0.0, %v5039
  %v5041 = vpop.f32.mrb[0].mxu0
  %5042 = vmatprep.mubr.bf16.mxu0 0
  %5043 = vmatmul.mubr.bf16.gmra.mrb[0].mxu0 %v4876
  %v5044 = vpop.f32.mrb[0].mxu0
  %v5045 = vadd.f32 0.0, %v5044
  %v5046 = vpop.f32.mrb[0].mxu0
  %v5047 = vpop.f32.mrb[0].mxu0
  %v5048 = vadd.f32 0.0, %v5047
  %v5049 = vpop.f32.mrb[0].mxu0
  %5050 = vmatprep.mubr.bf16.mxu0 0
  %5051 = vmatmul.mubr.bf16.gmra.mrb[0].mxu0 %v4879
  %v5052 = vpop.f32.mrb[0].mxu0
  %v5053 = vadd.f32 0.0, %v5052
  %v5054 = vpop.f32.mrb[0].mxu0
  %v5055 = vpop.f32.mrb[0].mxu0
  %v5056 = vadd.f32 0.0, %v5055
  %v5057 = vpop.f32.mrb[0].mxu0
  %5058 = vmatprep.mubr.bf16.mxu0 0
  %5059 = vmatmul.mubr.bf16.gmra.mrb[0].mxu0 %v4882
  %v5060 = vpop.f32.mrb[0].mxu0
  %v5061 = vadd.f32 0.0, %v5060
  %v5062 = vpop.f32.mrb[0].mxu0
  %v5063 = vpop.f32.mrb[0].mxu0
  %v5064 = vadd.f32 0.0, %v5063
  %v5065 = vpop.f32.mrb[0].mxu0
  %5066 = vmatprep.mubr.bf16.mxu0 0
  %5067 = vmatmul.mubr.bf16.gmra.mrb[0].mxu0 %v4885
  %v5068 = vpop.f32.mrb[0].mxu0
  %v5069 = vadd.f32 0.0, %v5068
  %v5070 = vpop.f32.mrb[0].mxu0
  %v5071 = vpop.f32.mrb[0].mxu0
  %v5072 = vadd.f32 0.0, %v5071
  %v5073 = vpop.f32.mrb[0].mxu0
  %5074 = vmatprep.mubr.bf16.mxu0 0
  %5075 = vmatmul.mubr.bf16.gmra.mrb[0].mxu0 %v4888
  %v5076 = vpop.f32.mrb[0].mxu0
  %v5077 = vadd.f32 0.0, %v5076
  %v5078 = vpop.f32.mrb[0].mxu0
  %v5079 = vpop.f32.mrb[0].mxu0
  %v5080 = vadd.f32 0.0, %v5079
  %v5081 = vpop.f32.mrb[0].mxu0
  %5082 = vmatprep.mubr.bf16.mxu0 0
  %5083 = vmatmul.mubr.bf16.gmra.mrb[0].mxu0 %v4891
  %v5084 = vpop.f32.mrb[0].mxu0
  %v5085 = vadd.f32 0.0, %v5084
  %v5086 = vpop.f32.mrb[0].mxu0
  %v5087 = vpop.f32.mrb[0].mxu0
  %v5088 = vadd.f32 0.0, %v5087
  %v5089 = vpop.f32.mrb[0].mxu0
  %5090 = vmatprep.mubr.bf16.mxu0 0
  %5091 = vmatmul.mubr.bf16.gmra.mrb[0].mxu0 %v4894
  %v5092 = vpop.f32.mrb[0].mxu0
  %v5093 = vadd.f32 0.0, %v5092
  %v5094 = vpop.f32.mrb[0].mxu0
  %v5095 = vpop.f32.mrb[0].mxu0
  %v5096 = vadd.f32 0.0, %v5095
  %v5097 = vpop.f32.mrb[0].mxu0
  %5098 = vmatprep.mubr.bf16.mxu0 0
  %5099 = vmatmul.mubr.bf16.gmra.mrb[0].mxu0 %v4897
  %v5100 = vpop.f32.mrb[0].mxu0
  %v5101 = vadd.f32 0.0, %v5100
  %v5102 = vpop.f32.mrb[0].mxu0
  %v5103 = vpop.f32.mrb[0].mxu0
  %v5104 = vadd.f32 0.0, %v5103
  %v5105 = vpop.f32.mrb[0].mxu0
  %5106 = vmatprep.mubr.bf16.mxu0 0
  %5107 = vmatmul.mubr.bf16.gmra.mrb[0].mxu0 %v4900
  %v5108 = vpop.f32.mrb[0].mxu0
  %v5109 = vadd.f32 0.0, %v5108
  %v5110 = vpop.f32.mrb[0].mxu0
  %v5111 = vpop.f32.mrb[0].mxu0
  %v5112 = vadd.f32 0.0, %v5111
  %v5113 = vpop.f32.mrb[0].mxu0
  %5114 = vmatprep.mubr.bf16.mxu0 0
  %5115 = vmatmul.mubr.bf16.gmra.mrb[0].mxu0 %v4903
  %v5116 = vpop.f32.mrb[0].mxu0
  %v5117 = vadd.f32 0.0, %v5116
  %v5118 = vpop.f32.mrb[0].mxu0
  %v5119 = vpop.f32.mrb[0].mxu0
  %v5120 = vadd.f32 0.0, %v5119
  %v5121 = vpop.f32.mrb[0].mxu0
  %5122 = vmatprep.mubr.bf16.mxu0 0
  %5123 = vmatmul.mubr.bf16.gmra.mrb[0].mxu0 %v4906
  %v5124 = vpop.f32.mrb[0].mxu0
  %v5125 = vadd.f32 0.0, %v5124
  %v5126 = vpop.f32.mrb[0].mxu0
  %v5127 = vpop.f32.mrb[0].mxu0
  %v5128 = vadd.f32 0.0, %v5127
  %v5129 = vpop.f32.mrb[0].mxu0
  %5130 = vmatprep.mubr.bf16.mxu0 0
  %5131 = vmatmul.mubr.bf16.gmra.mrb[0].mxu0 %v4909
  %v5132 = vpop.f32.mrb[0].mxu0
  %v5133 = vadd.f32 0.0, %v5132
  %v5134 = vpop.f32.mrb[0].mxu0
  %v5135 = vpop.f32.mrb[0].mxu0
  %v5136 = vadd.f32 0.0, %v5135
  %v5137 = vpop.f32.mrb[0].mxu0
  %5138 = vmatprep.mubr.bf16.mxu0 0
  %5139 = vmatmul.mubr.bf16.gmra.mrb[0].mxu0 %v4912
  %v5140 = vpop.f32.mrb[0].mxu0
  %v5141 = vadd.f32 0.0, %v5140
  %v5142 = vpop.f32.mrb[0].mxu0
  %v5143 = vpop.f32.mrb[0].mxu0
  %v5144 = vadd.f32 0.0, %v5143
  %v5145 = vpop.f32.mrb[0].mxu0
  %5146 = vmatprep.mubr.bf16.mxu0 0
  %5147 = vmatmul.mubr.bf16.gmra.mrb[0].mxu0 %v4915
  %v5148 = vpop.f32.mrb[0].mxu0
  %v5149 = vadd.f32 0.0, %v5148
  %v5150 = vpop.f32.mrb[0].mxu0
  %v5151 = vpop.f32.mrb[0].mxu0
  %v5152 = vadd.f32 0.0, %v5151
  %v5153 = vpop.f32.mrb[0].mxu0
  %5154 = vmatprep.mubr.bf16.mxu0 0
  %5155 = vmatmul.mubr.bf16.gmra.mrb[0].mxu0 %v4918
  %v5156 = vpop.f32.mrb[0].mxu0
  %v5157 = vadd.f32 0.0, %v5156
  %v5158 = vpop.f32.mrb[0].mxu0
  %v5159 = vpop.f32.mrb[0].mxu0
  %v5160 = vadd.f32 0.0, %v5159
  %v5161 = vpop.f32.mrb[0].mxu0
  %5162 = vmatprep.mubr.bf16.mxu0 0
  %5163 = vmatmul.mubr.bf16.gmra.mrb[0].mxu0 %v4921
  %v5164 = vpop.f32.mrb[0].mxu0
  %v5165 = vadd.f32 0.0, %v5164
  %v5166 = vpop.f32.mrb[0].mxu0
  %v5167 = vpop.f32.mrb[0].mxu0
  %v5168 = vadd.f32 0.0, %v5167
  %v5169 = vpop.f32.mrb[0].mxu0
  %5170 = vmatprep.mubr.bf16.mxu0 0
  %5171 = vmatmul.mubr.bf16.gmra.mrb[0].mxu0 %v4924
  %v5172 = vpop.f32.mrb[0].mxu0
  %v5173 = vadd.f32 0.0, %v5172
  %v5174 = vpop.f32.mrb[0].mxu0
  %v5175 = vpop.f32.mrb[0].mxu0
  %v5176 = vadd.f32 0.0, %v5175
  %v5177 = vpop.f32.mrb[0].mxu0
  %5178 = vmatprep.mubr.bf16.mxu0 0
  %5179 = vmatmul.mubr.bf16.gmra.mrb[0].mxu0 %v4927
  %v5180 = vpop.f32.mrb[0].mxu0
  %v5181 = vadd.f32 0.0, %v5180
  %v5182 = vpop.f32.mrb[0].mxu0
  %v5183 = vpop.f32.mrb[0].mxu0
  %v5184 = vadd.f32 0.0, %v5183
  %v5185 = vpop.f32.mrb[0].mxu0
  %5186 = vmatprep.mubr.bf16.mxu0 0
  %5187 = vmatmul.mubr.bf16.gmra.mrb[0].mxu0 %v4930
  %v5188 = vpop.f32.mrb[0].mxu0
  %v5189 = vadd.f32 0.0, %v5188
  %v5190 = vpop.f32.mrb[0].mxu0
  %v5191 = vpop.f32.mrb[0].mxu0
  %v5192 = vadd.f32 0.0, %v5191
  %v5193 = vpop.f32.mrb[0].mxu0
  %5194 = vmatprep.mubr.bf16.mxu0 0
  %5195 = vmatmul.mubr.bf16.gmra.mrb[0].mxu0 %v4933
  %v5196 = vpop.f32.mrb[0].mxu0
  %v5197 = vadd.f32 0.0, %v5196
  %v5198 = vpop.f32.mrb[0].mxu0
  %v5199 = vpop.f32.mrb[0].mxu0
  %v5200 = vadd.f32 0.0, %v5199
  %v5201 = vpop.f32.mrb[0].mxu0
  %5202 = vmatprep.mubr.bf16.mxu0 0
  %5203 = vmatmul.mubr.bf16.gmra.mrb[0].mxu0 %v4936
  %v5204 = vpop.f32.mrb[0].mxu0
  %v5205 = vadd.f32 0.0, %v5204
  %v5206 = vpop.f32.mrb[0].mxu0
  %v5207 = vpop.f32.mrb[0].mxu0
  %v5208 = vadd.f32 0.0, %v5207
  %v5209 = vpop.f32.mrb[0].mxu0
  %5210 = vmatprep.mubr.bf16.mxu0 0
  %5211 = vmatmul.mubr.bf16.gmra.mrb[0].mxu0 %v4939
  %v5212 = vpop.f32.mrb[0].mxu0
  %v5213 = vadd.f32 0.0, %v5212
  %v5214 = vpop.f32.mrb[0].mxu0
  %v5215 = vpop.f32.mrb[0].mxu0
  %v5216 = vadd.f32 0.0, %v5215
  %v5217 = vpop.f32.mrb[0].mxu0
  %5218 = vmatprep.mubr.bf16.mxu0 0
  %5219 = vmatmul.mubr.bf16.gmra.mrb[0].mxu0 %v4942
  %v5220 = vpop.f32.mrb[0].mxu0
  %v5221 = vadd.f32 0.0, %v5220
  %v5222 = vpop.f32.mrb[0].mxu0
  %v5223 = vpop.f32.mrb[0].mxu0
  %v5224 = vadd.f32 0.0, %v5223
  %v5225 = vpop.f32.mrb[0].mxu0
  %5226 = vmatprep.mubr.bf16.mxu0 0
  %5227 = vmatmul.mubr.bf16.gmra.mrb[0].mxu0 %v4945
  %v5228 = vpop.f32.mrb[0].mxu0
  %v5229 = vadd.f32 0.0, %v5228
  %v5230 = vpop.f32.mrb[0].mxu0
  %v5231 = vpop.f32.mrb[0].mxu0
  %v5232 = vadd.f32 0.0, %v5231
  %v5233 = vpop.f32.mrb[0].mxu0
  %5234 = vmatprep.mubr.bf16.mxu0 0
  %5235 = vmatmul.mubr.bf16.gmra.mrb[0].mxu0 %v4948
  %v5236 = vpop.f32.mrb[0].mxu0
  %v5237 = vadd.f32 0.0, %v5236
  %v5238 = vpop.f32.mrb[0].mxu0
  %v5239 = vpop.f32.mrb[0].mxu0
  %v5240 = vadd.f32 0.0, %v5239
  %v5241 = vpop.f32.mrb[0].mxu0
  %5242 = vdwg.mxu0
  %v5243 = vmul.f32 %v4989, %v2501
  %v5244 = vmul.f32 %v4992, %v2503
  %v5245 = vmul.f32 %v4997, %v2505
  %v5246 = vmul.f32 %v5000, %v2507
  %v5247 = vmul.f32 %v5005, %v2509
  %v5248 = vmul.f32 %v5008, %v2511
  %v5249 = vmul.f32 %v5013, %v2513
  %v5250 = vmul.f32 %v5016, %v2515
  %v5251 = vmul.f32 %v5021, %v2517
  %v5252 = vmul.f32 %v5024, %v2519
  %v5253 = vmul.f32 %v5029, %v2521
  %v5254 = vmul.f32 %v5032, %v2523
  %v5255 = vmul.f32 %v5037, %v2525
  %v5256 = vmul.f32 %v5040, %v2527
  %v5257 = vmul.f32 %v5045, %v2529
  %v5258 = vmul.f32 %v5048, %v2531
  %v5259 = vmul.f32 %v5053, %v2533
  %v5260 = vmul.f32 %v5056, %v2535
  %v5261 = vmul.f32 %v5061, %v2537
  %v5262 = vmul.f32 %v5064, %v2539
  %v5263 = vmul.f32 %v5069, %v2541
  %v5264 = vmul.f32 %v5072, %v2543
  %v5265 = vmul.f32 %v5077, %v2545
  %v5266 = vmul.f32 %v5080, %v2547
  %v5267 = vmul.f32 %v5085, %v2549
  %v5268 = vmul.f32 %v5088, %v2551
  %v5269 = vmul.f32 %v5093, %v2553
  %v5270 = vmul.f32 %v5096, %v2555
  %v5271 = vmul.f32 %v5101, %v2557
  %v5272 = vmul.f32 %v5104, %v2559
  %v5273 = vmul.f32 %v5109, %v2561
  %v5274 = vmul.f32 %v5112, %v2563
  %v5275 = vmul.f32 %v5117, %v2565
  %v5276 = vmul.f32 %v5120, %v2567
  %v5277 = vmul.f32 %v5125, %v2569
  %v5278 = vmul.f32 %v5128, %v2571
  %v5279 = vmul.f32 %v5133, %v2573
  %v5280 = vmul.f32 %v5136, %v2575
  %v5281 = vmul.f32 %v5141, %v2577
  %v5282 = vmul.f32 %v5144, %v2579
  %v5283 = vmul.f32 %v5149, %v2581
  %v5284 = vmul.f32 %v5152, %v2583
  %v5285 = vmul.f32 %v5157, %v2585
  %v5286 = vmul.f32 %v5160, %v2587
  %v5287 = vmul.f32 %v5165, %v2589
  %v5288 = vmul.f32 %v5168, %v2591
  %v5289 = vmul.f32 %v5173, %v2593
  %v5290 = vmul.f32 %v5176, %v2595
  %v5291 = vmul.f32 %v5181, %v2597
  %v5292 = vmul.f32 %v5184, %v2599
  %v5293 = vmul.f32 %v5189, %v2601
  %v5294 = vmul.f32 %v5192, %v2603
  %v5295 = vmul.f32 %v5197, %v2605
  %v5296 = vmul.f32 %v5200, %v2607
  %v5297 = vmul.f32 %v5205, %v2609
  %v5298 = vmul.f32 %v5208, %v2611
  %v5299 = vmul.f32 %v5213, %v2613
  %v5300 = vmul.f32 %v5216, %v2615
  %v5301 = vmul.f32 %v5221, %v2617
  %v5302 = vmul.f32 %v5224, %v2619
  %v5303 = vmul.f32 %v5229, %v2621
  %v5304 = vmul.f32 %v5232, %v2623
  %v5305 = vmul.f32 %v5237, %v2625
  %v5306 = vmul.f32 %v5240, %v2627
  %v5307 = vpack.c.bf16 %v5244, %v5243
  %v5308 = vpack.c.bf16 %v5246, %v5245
  %v5309 = vpack.c.bf16 %v5248, %v5247
  %v5310 = vpack.c.bf16 %v5250, %v5249
  %v5311 = vpack.c.bf16 %v5252, %v5251
  %v5312 = vpack.c.bf16 %v5254, %v5253
  %v5313 = vpack.c.bf16 %v5256, %v5255
  %v5314 = vpack.c.bf16 %v5258, %v5257
  %v5315 = vpack.c.bf16 %v5260, %v5259
  %v5316 = vpack.c.bf16 %v5262, %v5261
  %v5317 = vpack.c.bf16 %v5264, %v5263
  %v5318 = vpack.c.bf16 %v5266, %v5265
  %v5319 = vpack.c.bf16 %v5268, %v5267
  %v5320 = vpack.c.bf16 %v5270, %v5269
  %v5321 = vpack.c.bf16 %v5272, %v5271
  %v5322 = vpack.c.bf16 %v5274, %v5273
  %v5323 = vpack.c.bf16 %v5276, %v5275
  %v5324 = vpack.c.bf16 %v5278, %v5277
  %v5325 = vpack.c.bf16 %v5280, %v5279
  %v5326 = vpack.c.bf16 %v5282, %v5281
  %v5327 = vpack.c.bf16 %v5284, %v5283
  %v5328 = vpack.c.bf16 %v5286, %v5285
  %v5329 = vpack.c.bf16 %v5288, %v5287
  %v5330 = vpack.c.bf16 %v5290, %v5289
  %v5331 = vpack.c.bf16 %v5292, %v5291
  %v5332 = vpack.c.bf16 %v5294, %v5293
  %v5333 = vpack.c.bf16 %v5296, %v5295
  %v5334 = vpack.c.bf16 %v5298, %v5297
  %v5335 = vpack.c.bf16 %v5300, %v5299
  %v5336 = vpack.c.bf16 %v5302, %v5301
  %v5337 = vpack.c.bf16 %v5304, %v5303
  %v5338 = vpack.c.bf16 %v5306, %v5305
  %5339 = vmatprep.subr.bf16.mxu0 0
  %5340 = vmatpush1.bf16.msra.mxu0 %v5307
  %5341 = vmatprep.subr.bf16.mxu0 0
  %5342 = vmatpush1.bf16.msra.mxu0 %v5308
  %5343 = vmatprep.subr.bf16.mxu0 0
  %5344 = vmatpush1.bf16.msra.mxu0 %v5309
  %5345 = vmatprep.subr.bf16.mxu0 0
  %5346 = vmatpush1.bf16.msra.mxu0 %v5310
  %5347 = vmatprep.subr.bf16.mxu0 0
  %5348 = vmatpush1.bf16.msra.mxu0 %v5311
  %5349 = vmatprep.subr.bf16.mxu0 0
  %5350 = vmatpush1.bf16.msra.mxu0 %v5312
  %5351 = vmatprep.subr.bf16.mxu0 0
  %5352 = vmatpush1.bf16.msra.mxu0 %v5313
  %5353 = vmatprep.subr.bf16.mxu0 0
  %5354 = vmatpush1.bf16.msra.mxu0 %v5314
  %5355 = vmatprep.subr.bf16.mxu0 0
  %5356 = vmatpush1.bf16.msra.mxu0 %v5315
  %5357 = vmatprep.subr.bf16.mxu0 0
  %5358 = vmatpush1.bf16.msra.mxu0 %v5316
  %5359 = vmatprep.subr.bf16.mxu0 0
  %5360 = vmatpush1.bf16.msra.mxu0 %v5317
  %5361 = vmatprep.subr.bf16.mxu0 0
  %5362 = vmatpush1.bf16.msra.mxu0 %v5318
  %5363 = vmatprep.subr.bf16.mxu0 0
  %5364 = vmatpush1.bf16.msra.mxu0 %v5319
  %5365 = vmatprep.subr.bf16.mxu0 0
  %5366 = vmatpush1.bf16.msra.mxu0 %v5320
  %5367 = vmatprep.subr.bf16.mxu0 0
  %5368 = vmatpush1.bf16.msra.mxu0 %v5321
  %5369 = vmatprep.subr.bf16.mxu0 0
  %5370 = vmatpush1.bf16.msra.mxu0 %v5322
  %5371 = vmatprep.mubr.bf16.mxu0 %v1140
  %5372 = vmatmul.mubr.bf16.gmra.mrb[0].mxu0 %v1139
  %v5373 = vpop.f32.mrb[0].mxu0
  %v5374 = vadd.f32 0.0, %v5373
  %v5375 = vpop.f32.mrb[0].mxu0
  %v5376 = vpop.f32.mrb[0].mxu0
  %v5377 = vadd.f32 0.0, %v5376
  %v5378 = vpop.f32.mrb[0].mxu0
  %5379 = vmatprep.mubr.bf16.mxu0 %v1144
  %5380 = vmatmul.mubr.bf16.gmra.mrb[0].mxu0 %v1143
  %v5381 = vpop.f32.mrb[0].mxu0
  %v5382 = vadd.f32 0.0, %v5381
  %v5383 = vpop.f32.mrb[0].mxu0
  %v5384 = vpop.f32.mrb[0].mxu0
  %v5385 = vadd.f32 0.0, %v5384
  %v5386 = vpop.f32.mrb[0].mxu0
  %5387 = vmatprep.mubr.bf16.mxu0 %v1148
  %5388 = vmatmul.mubr.bf16.gmra.mrb[0].mxu0 %v1147
  %v5389 = vpop.f32.mrb[0].mxu0
  %v5390 = vadd.f32 0.0, %v5389
  %v5391 = vpop.f32.mrb[0].mxu0
  %v5392 = vpop.f32.mrb[0].mxu0
  %v5393 = vadd.f32 0.0, %v5392
  %v5394 = vpop.f32.mrb[0].mxu0
  %5395 = vmatprep.mubr.bf16.mxu0 %v1152
  %5396 = vmatmul.mubr.bf16.gmra.mrb[0].mxu0 %v1151
  %v5397 = vpop.f32.mrb[0].mxu0
  %v5398 = vadd.f32 0.0, %v5397
  %v5399 = vpop.f32.mrb[0].mxu0
  %v5400 = vpop.f32.mrb[0].mxu0
  %v5401 = vadd.f32 0.0, %v5400
  %v5402 = vpop.f32.mrb[0].mxu0
  %5403 = vdwg.mxu0
  %5404 = vmatprep.subr.bf16.mxu0 0
  %5405 = vmatpush1.bf16.msra.mxu0 %v5323
  %5406 = vmatprep.subr.bf16.mxu0 0
  %5407 = vmatpush1.bf16.msra.mxu0 %v5324
  %5408 = vmatprep.subr.bf16.mxu0 0
  %5409 = vmatpush1.bf16.msra.mxu0 %v5325
  %5410 = vmatprep.subr.bf16.mxu0 0
  %5411 = vmatpush1.bf16.msra.mxu0 %v5326
  %5412 = vmatprep.subr.bf16.mxu0 0
  %5413 = vmatpush1.bf16.msra.mxu0 %v5327
  %5414 = vmatprep.subr.bf16.mxu0 0
  %5415 = vmatpush1.bf16.msra.mxu0 %v5328
  %5416 = vmatprep.subr.bf16.mxu0 0
  %5417 = vmatpush1.bf16.msra.mxu0 %v5329
  %5418 = vmatprep.subr.bf16.mxu0 0
  %5419 = vmatpush1.bf16.msra.mxu0 %v5330
  %5420 = vmatprep.subr.bf16.mxu0 0
  %5421 = vmatpush1.bf16.msra.mxu0 %v5331
  %5422 = vmatprep.subr.bf16.mxu0 0
  %5423 = vmatpush1.bf16.msra.mxu0 %v5332
  %5424 = vmatprep.subr.bf16.mxu0 0
  %5425 = vmatpush1.bf16.msra.mxu0 %v5333
  %5426 = vmatprep.subr.bf16.mxu0 0
  %5427 = vmatpush1.bf16.msra.mxu0 %v5334
  %5428 = vmatprep.subr.bf16.mxu0 0
  %5429 = vmatpush1.bf16.msra.mxu0 %v5335
  %5430 = vmatprep.subr.bf16.mxu0 0
  %5431 = vmatpush1.bf16.msra.mxu0 %v5336
  %5432 = vmatprep.subr.bf16.mxu0 0
  %5433 = vmatpush1.bf16.msra.mxu0 %v5337
  %5434 = vmatprep.subr.bf16.mxu0 0
  %5435 = vmatpush1.bf16.msra.mxu0 %v5338
  %5436 = vmatprep.mubr.bf16.mxu0 %v1142
  %5437 = vmatmul.mubr.bf16.gmra.mrb[0].mxu0 %v1141
  %v5438 = vpop.f32.mrb[0].mxu0
  %v5439 = vadd.f32 %v5374, %v5438
  %v5440 = vpop.f32.mrb[0].mxu0
  %v5441 = vpop.f32.mrb[0].mxu0
  %v5442 = vadd.f32 %v5377, %v5441
  %v5443 = vpop.f32.mrb[0].mxu0
  %5444 = vmatprep.mubr.bf16.mxu0 %v1146
  %5445 = vmatmul.mubr.bf16.gmra.mrb[0].mxu0 %v1145
  %v5446 = vpop.f32.mrb[0].mxu0
  %v5447 = vadd.f32 %v5382, %v5446
  %v5448 = vpop.f32.mrb[0].mxu0
  %v5449 = vpop.f32.mrb[0].mxu0
  %v5450 = vadd.f32 %v5385, %v5449
  %v5451 = vpop.f32.mrb[0].mxu0
  %5452 = vmatprep.mubr.bf16.mxu0 %v1150
  %5453 = vmatmul.mubr.bf16.gmra.mrb[0].mxu0 %v1149
  %v5454 = vpop.f32.mrb[0].mxu0
  %v5455 = vadd.f32 %v5390, %v5454
  %v5456 = vpop.f32.mrb[0].mxu0
  %v5457 = vpop.f32.mrb[0].mxu0
  %v5458 = vadd.f32 %v5393, %v5457
  %v5459 = vpop.f32.mrb[0].mxu0
  %5460 = vmatprep.mubr.bf16.mxu0 %v1154
  %5461 = vmatmul.mubr.bf16.gmra.mrb[0].mxu0 %v1153
  %v5462 = vpop.f32.mrb[0].mxu0
  %v5463 = vadd.f32 %v5398, %v5462
  %v5464 = vpop.f32.mrb[0].mxu0
  %v5465 = vpop.f32.mrb[0].mxu0
  %v5466 = vadd.f32 %v5401, %v5465
  %v5467 = vpop.f32.mrb[0].mxu0
  %5468 = vdwg.mxu0
  %v5469 = vpack.c.bf16 %v4827, %v4824
  %v5470 = vpack.c.bf16 %v4835, %v4832
  %v5471 = vpack.c.bf16 %v4843, %v4840
  %v5472 = vpack.c.bf16 %v4851, %v4848
  %v5474 = vsel %vm3499, %v5469, 0
  %v5477 = vsel %vm3499, %v5470, 0
  %v5480 = vsel %vm3499, %v5471, 0
  %v5483 = vsel %vm3499, %v5472, 0
  %5485 = vmatprep.subr.bf16.mxu0 0
  %5486 = vmatpush1.bf16.msra.mxu0 %v4952
  %5487 = vmatprep.subr.bf16.mxu0 0
  %5488 = vmatpush1.bf16.msra.mxu0 0
  %5489 = vmatprep.subr.bf16.mxu0 0
  %5490 = vmatpush1.bf16.msra.mxu0 0
  %5491 = vmatprep.subr.bf16.mxu0 0
  %5492 = vmatpush1.bf16.msra.mxu0 0
  %5493 = vmatprep.subr.bf16.mxu0 0
  %5494 = vmatpush1.bf16.msra.mxu0 0
  %5495 = vmatprep.subr.bf16.mxu0 0
  %5496 = vmatpush1.bf16.msra.mxu0 0
  %5497 = vmatprep.subr.bf16.mxu0 0
  %5498 = vmatpush1.bf16.msra.mxu0 0
  %5499 = vmatprep.subr.bf16.mxu0 0
  %5500 = vmatpush1.bf16.msra.mxu0 0
  %5501 = vmatprep.subr.bf16.mxu0 0
  %5502 = vmatpush1.bf16.msra.mxu0 0
  %5503 = vmatprep.subr.bf16.mxu0 0
  %5504 = vmatpush1.bf16.msra.mxu0 0
  %5505 = vmatprep.subr.bf16.mxu0 0
  %5506 = vmatpush1.bf16.msra.mxu0 0
  %5507 = vmatprep.subr.bf16.mxu0 0
  %5508 = vmatpush1.bf16.msra.mxu0 0
  %5509 = vmatprep.subr.bf16.mxu0 0
  %5510 = vmatpush1.bf16.msra.mxu0 0
  %5511 = vmatprep.subr.bf16.mxu0 0
  %5512 = vmatpush1.bf16.msra.mxu0 0
  %5513 = vmatprep.subr.bf16.mxu0 0
  %5514 = vmatpush1.bf16.msra.mxu0 0
  %5515 = vmatprep.subr.bf16.mxu0 0
  %5516 = vmatpush1.bf16.msra.mxu0 0
  %5517 = vmatprep.mubr.bf16.mxu0 0
  %5518 = vmatmul.mubr.bf16.gmra.mrb[0].mxu0 %v5474
  %v5519 = vpop.f32.mrb[0].mxu0
  %v5520 = vadd.f32 0.0, %v5519
  %v5521 = vpop.f32.mrb[0].mxu0
  %v5522 = vpop.f32.mrb[0].mxu0
  %v5523 = vadd.f32 0.0, %v5522
  %v5524 = vpop.f32.mrb[0].mxu0
  %5525 = vmatprep.mubr.bf16.mxu0 0
  %5526 = vmatmul.mubr.bf16.gmra.mrb[0].mxu0 %v5477
  %v5527 = vpop.f32.mrb[0].mxu0
  %v5528 = vadd.f32 0.0, %v5527
  %v5529 = vpop.f32.mrb[0].mxu0
  %v5530 = vpop.f32.mrb[0].mxu0
  %v5531 = vadd.f32 0.0, %v5530
  %v5532 = vpop.f32.mrb[0].mxu0
  %5533 = vmatprep.mubr.bf16.mxu0 0
  %5534 = vmatmul.mubr.bf16.gmra.mrb[0].mxu0 %v5480
  %v5535 = vpop.f32.mrb[0].mxu0
  %v5536 = vadd.f32 0.0, %v5535
  %v5537 = vpop.f32.mrb[0].mxu0
  %v5538 = vpop.f32.mrb[0].mxu0
  %v5539 = vadd.f32 0.0, %v5538
  %v5540 = vpop.f32.mrb[0].mxu0
  %5541 = vmatprep.mubr.bf16.mxu0 0
  %5542 = vmatmul.mubr.bf16.gmra.mrb[0].mxu0 %v5483
  %v5543 = vpop.f32.mrb[0].mxu0
  %v5544 = vadd.f32 0.0, %v5543
  %v5545 = vpop.f32.mrb[0].mxu0
  %v5546 = vpop.f32.mrb[0].mxu0
  %v5547 = vadd.f32 0.0, %v5546
  %v5548 = vpop.f32.mrb[0].mxu0
  %5549 = vdwg.mxu0
  %v5550 = vrcp.pop %v5520
  %v5551 = vrcp.pop %v5523
  %v5552 = vrcp.pop %v5528
  %v5553 = vrcp.pop %v5531
  %v5554 = vrcp.pop %v5536
  %v5555 = vrcp.pop %v5539
  %v5556 = vrcp.pop %v5544
  %v5557 = vrcp.pop %v5547
  %v5558 = vmul.f32 %v5439, %v5550
  %v5559 = vmul.f32 %v5442, %v5551
  %v5560 = vmul.f32 %v5447, %v5552
  %v5561 = vmul.f32 %v5450, %v5553
  %v5562 = vmul.f32 %v5455, %v5554
  %v5563 = vmul.f32 %v5458, %v5555
  %v5564 = vmul.f32 %v5463, %v5556
  %v5565 = vmul.f32 %v5466, %v5557
  %v5566 = vld [vmem:[%s8] sm:$0xf]
  %v5567 = vld [vmem:[%s8 + $0x4] sm:$0xf]
  %v5568 = vld [vmem:[%s8 + $0x8] sm:$0xf]
  %v5569 = vld [vmem:[%s8 + $0xc] sm:$0xf]
  %v5570 = vld [vmem:[%s8 + $0x10] sm:$0xf]
  %v5571 = vld [vmem:[%s8 + $0x14] sm:$0xf]
  %v5572 = vld [vmem:[%s8 + $0x18] sm:$0xf]
  %v5573 = vld [vmem:[%s8 + $0x1c] sm:$0xf]
  %v5574 = vld [vmem:[%s8 + $0x20] sm:$0xf]
  %v5575 = vld [vmem:[%s8 + $0x24] sm:$0xf]
  %v5576 = vld [vmem:[%s8 + $0x28] sm:$0xf]
  %v5577 = vld [vmem:[%s8 + $0x2c] sm:$0xf]
  %v5578 = vld [vmem:[%s8 + $0x30] sm:$0xf]
  %v5579 = vld [vmem:[%s8 + $0x34] sm:$0xf]
  %v5580 = vld [vmem:[%s8 + $0x38] sm:$0xf]
  %v5581 = vld [vmem:[%s8 + $0x3c] sm:$0xf]
  %v5582 = vpack.c.bf16 %v5559, %v5558
  %v5583 = vpack.c.bf16 %v5561, %v5560
  %v5584 = vpack.c.bf16 %v5563, %v5562
  %v5585 = vpack.c.bf16 %v5565, %v5564
  %v5602 = vunpack.c.l.b16 %v5566
  %v5603 = vunpack.c.l.b16 %v5567
  %v5604 = vunpack.c.l.b16 %v5568
  %v5605 = vunpack.c.l.b16 %v5569
  %v5606 = vunpack.c.l.b16 %v5570
  %v5607 = vunpack.c.l.b16 %v5571
  %v5608 = vunpack.c.l.b16 %v5572
  %v5609 = vunpack.c.l.b16 %v5573
  %v5610 = vunpack.c.l.b16 %v5574
  %v5611 = vunpack.c.l.b16 %v5575
  %v5612 = vunpack.c.l.b16 %v5576
  %v5613 = vunpack.c.l.b16 %v5577
  %v5614 = vunpack.c.l.b16 %v5578
  %v5615 = vunpack.c.l.b16 %v5579
  %v5616 = vunpack.c.l.b16 %v5580
  %v5617 = vunpack.c.l.b16 %v5581
  %v5618 = vpack.c.b16 %v5603, %v5602
  %v5619 = vpack.c.b16 %v5605, %v5604
  %v5620 = vpack.c.b16 %v5607, %v5606
  %v5621 = vpack.c.b16 %v5609, %v5608
  %v5622 = vpack.c.b16 %v5611, %v5610
  %v5623 = vpack.c.b16 %v5613, %v5612
  %v5624 = vpack.c.b16 %v5615, %v5614
  %v5625 = vpack.c.b16 %v5617, %v5616
  %5634 = vmatprep.subr.bf16.mxu0 0
  %5635 = vmatpush1.bf16.msra.mxu0 %v5618
  %5636 = vmatprep.subr.bf16.mxu0 0
  %5637 = vmatpush1.bf16.msra.mxu0 %v5619
  %5638 = vmatprep.subr.bf16.mxu0 0
  %5639 = vmatpush1.bf16.msra.mxu0 %v5620
  %5640 = vmatprep.subr.bf16.mxu0 0
  %5641 = vmatpush1.bf16.msra.mxu0 %v5621
  %5642 = vmatprep.subr.bf16.mxu0 0
  %5643 = vmatpush1.bf16.msra.mxu0 %v5622
  %5644 = vmatprep.subr.bf16.mxu0 0
  %5645 = vmatpush1.bf16.msra.mxu0 %v5623
  %5646 = vmatprep.subr.bf16.mxu0 0
  %5647 = vmatpush1.bf16.msra.mxu0 %v5624
  %5648 = vmatprep.subr.bf16.mxu0 0
  %5649 = vmatpush1.bf16.msra.mxu0 %v5625
  %5650 = vmatprep.subr.bf16.mxu0 0
  %5651 = vmatpush1.bf16.msra.mxu0 0
  %5652 = vmatprep.subr.bf16.mxu0 0
  %5653 = vmatpush1.bf16.msra.mxu0 0
  %5654 = vmatprep.subr.bf16.mxu0 0
  %5655 = vmatpush1.bf16.msra.mxu0 0
  %5656 = vmatprep.subr.bf16.mxu0 0
  %5657 = vmatpush1.bf16.msra.mxu0 0
  %5658 = vmatprep.subr.bf16.mxu0 0
  %5659 = vmatpush1.bf16.msra.mxu0 0
  %5660 = vmatprep.subr.bf16.mxu0 0
  %5661 = vmatpush1.bf16.msra.mxu0 0
  %5662 = vmatprep.subr.bf16.mxu0 0
  %5663 = vmatpush1.bf16.msra.mxu0 0
  %5664 = vmatprep.subr.bf16.mxu0 0
  %5665 = vmatpush1.bf16.msra.mxu0 0
  %5666 = vmatprep.mubr.bf16.mxu0 0
  %5667 = vmatmul.mubr.bf16.gmra.mrb[0].mxu0 %v5582
  %v5668 = vpop.f32.mrb[0].mxu0
  %v5669 = vadd.f32 0.0, %v5668
  %v5670 = vpop.f32.mrb[0].mxu0
  %v5671 = vpop.f32.mrb[0].mxu0
  %v5672 = vadd.f32 0.0, %v5671
  %v5673 = vpop.f32.mrb[0].mxu0
  %5674 = vmatprep.mubr.bf16.mxu0 0
  %5675 = vmatmul.mubr.bf16.gmra.mrb[0].mxu0 %v5583
  %v5676 = vpop.f32.mrb[0].mxu0
  %v5677 = vadd.f32 0.0, %v5676
  %v5678 = vpop.f32.mrb[0].mxu0
  %v5679 = vpop.f32.mrb[0].mxu0
  %v5680 = vadd.f32 0.0, %v5679
  %v5681 = vpop.f32.mrb[0].mxu0
  %5682 = vmatprep.mubr.bf16.mxu0 0
  %5683 = vmatmul.mubr.bf16.gmra.mrb[0].mxu0 %v5584
  %v5684 = vpop.f32.mrb[0].mxu0
  %v5685 = vadd.f32 0.0, %v5684
  %v5686 = vpop.f32.mrb[0].mxu0
  %v5687 = vpop.f32.mrb[0].mxu0
  %v5688 = vadd.f32 0.0, %v5687
  %v5689 = vpop.f32.mrb[0].mxu0
  %5690 = vmatprep.mubr.bf16.mxu0 0
  %5691 = vmatmul.mubr.bf16.gmra.mrb[0].mxu0 %v5585
  %v5692 = vpop.f32.mrb[0].mxu0
  %v5693 = vadd.f32 0.0, %v5692
  %v5694 = vpop.f32.mrb[0].mxu0
  %v5695 = vpop.f32.mrb[0].mxu0
  %v5696 = vadd.f32 0.0, %v5695
  %v5697 = vpop.f32.mrb[0].mxu0
  %5698 = vdwg.mxu0
  %v5699 = vadd.f32 %v60, %v5669
  %v5700 = vadd.f32 %v61, %v5672
  %v5701 = vadd.f32 %v62, %v5677
  %v5702 = vadd.f32 %v63, %v5680
  %v5703 = vadd.f32 %v64, %v5685
  %v5704 = vadd.f32 %v65, %v5688
  %v5705 = vadd.f32 %v66, %v5693
  %v5706 = vadd.f32 %v67, %v5696
  %v5707 = vld [vmem:[%s9] sm:$0x1]
  %v5709 = vlaneseq
  %v5710 = vshrl.u32 %v5709, 7
  %v5711 = vsub.s32 0, %v5710
  %v5712 = vrot.slane %v5707, %v5711
  %v5714 = vadd.f32 %v5699, %v5712
  %v5715 = vadd.f32 %v5700, %v5712
  %v5716 = vadd.f32 %v5701, %v5712
  %v5717 = vadd.f32 %v5702, %v5712
  %v5718 = vadd.f32 %v5703, %v5712
  %v5719 = vadd.f32 %v5704, %v5712
  %v5720 = vadd.f32 %v5705, %v5712
  %v5721 = vadd.f32 %v5706, %v5712
  %v5722 = vld [vmem:[%s10] sm:$0xf]
  %v5723 = vld [vmem:[%s10 + $0x4] sm:$0xf]
  %v5724 = vld [vmem:[%s10 + $0x8] sm:$0xf]
  %v5725 = vld [vmem:[%s10 + $0xc] sm:$0xf]
  %v5726 = vpack.c.bf16 %v5715, %v5714
  %v5727 = vpack.c.bf16 %v5717, %v5716
  %v5728 = vpack.c.bf16 %v5719, %v5718
  %v5729 = vpack.c.bf16 %v5721, %v5720
  %v5730 = vld [vmem:[%s11] sm:$0x1]
  %v5732 = vlaneseq
  %v5733 = vshrl.u32 %v5732, 7
  %v5734 = vsub.s32 0, %v5733
  %v5735 = vrot.slane %v5730, %v5734
  %v5741 = vunpack.c.l.b16 %v5722
  %v5742 = vunpack.c.l.b16 %v5723
  %v5743 = vunpack.c.l.b16 %v5724
  %v5744 = vunpack.c.l.b16 %v5725
  %v5745 = vpack.c.b16 %v5742, %v5741
  %v5746 = vpack.c.b16 %v5744, %v5743
  %v5750 = vsel %vm1234, %v5726, 0
  %v5753 = vsel %vm1234, %v5727, 0
  %v5756 = vsel %vm1234, %v5728, 0
  %v5759 = vsel %vm1234, %v5729, 0
  %5761 = vmatprep.subr.bf16.mxu0 0
  %5762 = vmatpush1.bf16.msra.mxu0 %v5745
  %5763 = vmatprep.subr.bf16.mxu0 0
  %5764 = vmatpush1.bf16.msra.mxu0 %v5746
  %5765 = vmatprep.subr.bf16.mxu0 0
  %5766 = vmatpush1.bf16.msra.mxu0 0
  %5767 = vmatprep.subr.bf16.mxu0 0
  %5768 = vmatpush1.bf16.msra.mxu0 0
  %5769 = vmatprep.subr.bf16.mxu0 0
  %5770 = vmatpush1.bf16.msra.mxu0 0
  %5771 = vmatprep.subr.bf16.mxu0 0
  %5772 = vmatpush1.bf16.msra.mxu0 0
  %5773 = vmatprep.subr.bf16.mxu0 0
  %5774 = vmatpush1.bf16.msra.mxu0 0
  %5775 = vmatprep.subr.bf16.mxu0 0
  %5776 = vmatpush1.bf16.msra.mxu0 0
  %5777 = vmatprep.subr.bf16.mxu0 0
  %5778 = vmatpush1.bf16.msra.mxu0 0
  %5779 = vmatprep.subr.bf16.mxu0 0
  %5780 = vmatpush1.bf16.msra.mxu0 0
  %5781 = vmatprep.subr.bf16.mxu0 0
  %5782 = vmatpush1.bf16.msra.mxu0 0
  %5783 = vmatprep.subr.bf16.mxu0 0
  %5784 = vmatpush1.bf16.msra.mxu0 0
  %5785 = vmatprep.subr.bf16.mxu0 0
  %5786 = vmatpush1.bf16.msra.mxu0 0
  %5787 = vmatprep.subr.bf16.mxu0 0
  %5788 = vmatpush1.bf16.msra.mxu0 0
  %5789 = vmatprep.subr.bf16.mxu0 0
  %5790 = vmatpush1.bf16.msra.mxu0 0
  %5791 = vmatprep.subr.bf16.mxu0 0
  %5792 = vmatpush1.bf16.msra.mxu0 0
  %5793 = vmatprep.mubr.bf16.mxu0 0
  %5794 = vmatmul.mubr.bf16.gmra.mrb[0].mxu0 %v5750
  %v5795 = vpop.f32.mrb[0].mxu0
  %v5796 = vadd.f32 %v5735, %v5795
  %v5797 = vpop.f32.mrb[0].mxu0
  %v5798 = vpop.f32.mrb[0].mxu0
  %v5799 = vadd.f32 %v5735, %v5798
  %v5800 = vpop.f32.mrb[0].mxu0
  %5801 = vmatprep.mubr.bf16.mxu0 0
  %5802 = vmatmul.mubr.bf16.gmra.mrb[0].mxu0 %v5753
  %v5803 = vpop.f32.mrb[0].mxu0
  %v5804 = vadd.f32 %v5735, %v5803
  %v5805 = vpop.f32.mrb[0].mxu0
  %v5806 = vpop.f32.mrb[0].mxu0
  %v5807 = vadd.f32 %v5735, %v5806
  %v5808 = vpop.f32.mrb[0].mxu0
  %5809 = vmatprep.mubr.bf16.mxu0 0
  %5810 = vmatmul.mubr.bf16.gmra.mrb[0].mxu0 %v5756
  %v5811 = vpop.f32.mrb[0].mxu0
  %v5812 = vadd.f32 %v5735, %v5811
  %v5813 = vpop.f32.mrb[0].mxu0
  %v5814 = vpop.f32.mrb[0].mxu0
  %v5815 = vadd.f32 %v5735, %v5814
  %v5816 = vpop.f32.mrb[0].mxu0
  %5817 = vmatprep.mubr.bf16.mxu0 0
  %5818 = vmatmul.mubr.bf16.gmra.mrb[0].mxu0 %v5759
  %v5819 = vpop.f32.mrb[0].mxu0
  %v5820 = vadd.f32 %v5735, %v5819
  %v5821 = vpop.f32.mrb[0].mxu0
  %v5822 = vpop.f32.mrb[0].mxu0
  %v5823 = vadd.f32 %v5735, %v5822
  %v5824 = vpop.f32.mrb[0].mxu0
  %5825 = vdwg.mxu0
  %v5826 = vmax.f32 %v5796, 0.0
  %v5827 = vmax.f32 %v5799, 0.0
  %v5828 = vmax.f32 %v5804, 0.0
  %v5829 = vmax.f32 %v5807, 0.0
  %v5830 = vmax.f32 %v5812, 0.0
  %v5831 = vmax.f32 %v5815, 0.0
  %v5832 = vmax.f32 %v5820, 0.0
  %v5833 = vmax.f32 %v5823, 0.0
  %v5834 = vld [vmem:[%s12] sm:$0xf]
  %v5835 = vld [vmem:[%s12 + $0x4] sm:$0xf]
  %v5836 = vld [vmem:[%s12 + $0x8] sm:$0xf]
  %v5837 = vld [vmem:[%s12 + $0xc] sm:$0xf]
  %v5838 = vpack.c.bf16 %v5827, %v5826
  %v5839 = vpack.c.bf16 %v5829, %v5828
  %v5840 = vpack.c.bf16 %v5831, %v5830
  %v5841 = vpack.c.bf16 %v5833, %v5832
  %v5842 = vld [vmem:[%s13] sm:$0x1]
  %v5844 = vlaneseq
  %v5845 = vshrl.u32 %v5844, 7
  %v5846 = vsub.s32 0, %v5845
  %v5847 = vrot.slane %v5842, %v5846
  %v5853 = vunpack.c.l.b16 %v5834
  %v5854 = vunpack.c.l.b16 %v5835
  %v5855 = vunpack.c.l.b16 %v5836
  %v5856 = vunpack.c.l.b16 %v5837
  %v5857 = vpack.c.b16 %v5854, %v5853
  %v5858 = vpack.c.b16 %v5856, %v5855
  %v5862 = vsel %vm1234, %v5838, 0
  %v5865 = vsel %vm1234, %v5839, 0
  %v5868 = vsel %vm1234, %v5840, 0
  %v5871 = vsel %vm1234, %v5841, 0
  %5873 = vmatprep.subr.bf16.mxu0 0
  %5874 = vmatpush1.bf16.msra.mxu0 %v5857
  %5875 = vmatprep.subr.bf16.mxu0 0
  %5876 = vmatpush1.bf16.msra.mxu0 %v5858
  %5877 = vmatprep.subr.bf16.mxu0 0
  %5878 = vmatpush1.bf16.msra.mxu0 0
  %5879 = vmatprep.subr.bf16.mxu0 0
  %5880 = vmatpush1.bf16.msra.mxu0 0
  %5881 = vmatprep.subr.bf16.mxu0 0
  %5882 = vmatpush1.bf16.msra.mxu0 0
  %5883 = vmatprep.subr.bf16.mxu0 0
  %5884 = vmatpush1.bf16.msra.mxu0 0
  %5885 = vmatprep.subr.bf16.mxu0 0
  %5886 = vmatpush1.bf16.msra.mxu0 0
  %5887 = vmatprep.subr.bf16.mxu0 0
  %5888 = vmatpush1.bf16.msra.mxu0 0
  %5889 = vmatprep.subr.bf16.mxu0 0
  %5890 = vmatpush1.bf16.msra.mxu0 0
  %5891 = vmatprep.subr.bf16.mxu0 0
  %5892 = vmatpush1.bf16.msra.mxu0 0
  %5893 = vmatprep.subr.bf16.mxu0 0
  %5894 = vmatpush1.bf16.msra.mxu0 0
  %5895 = vmatprep.subr.bf16.mxu0 0
  %5896 = vmatpush1.bf16.msra.mxu0 0
  %5897 = vmatprep.subr.bf16.mxu0 0
  %5898 = vmatpush1.bf16.msra.mxu0 0
  %5899 = vmatprep.subr.bf16.mxu0 0
  %5900 = vmatpush1.bf16.msra.mxu0 0
  %5901 = vmatprep.subr.bf16.mxu0 0
  %5902 = vmatpush1.bf16.msra.mxu0 0
  %5903 = vmatprep.subr.bf16.mxu0 0
  %5904 = vmatpush1.bf16.msra.mxu0 0
  %5905 = vmatprep.mubr.bf16.mxu0 0
  %5906 = vmatmul.mubr.bf16.gmra.mrb[0].mxu0 %v5862
  %v5907 = vpop.f32.mrb[0].mxu0
  %v5908 = vadd.f32 %v5847, %v5907
  %v5909 = vpop.f32.mrb[0].mxu0
  %v5910 = vpop.f32.mrb[0].mxu0
  %v5911 = vadd.f32 %v5847, %v5910
  %v5912 = vpop.f32.mrb[0].mxu0
  %5913 = vmatprep.mubr.bf16.mxu0 0
  %5914 = vmatmul.mubr.bf16.gmra.mrb[0].mxu0 %v5865
  %v5915 = vpop.f32.mrb[0].mxu0
  %v5916 = vadd.f32 %v5847, %v5915
  %v5917 = vpop.f32.mrb[0].mxu0
  %v5918 = vpop.f32.mrb[0].mxu0
  %v5919 = vadd.f32 %v5847, %v5918
  %v5920 = vpop.f32.mrb[0].mxu0
  %5921 = vmatprep.mubr.bf16.mxu0 0
  %5922 = vmatmul.mubr.bf16.gmra.mrb[0].mxu0 %v5868
  %v5923 = vpop.f32.mrb[0].mxu0
  %v5924 = vadd.f32 %v5847, %v5923
  %v5925 = vpop.f32.mrb[0].mxu0
  %v5926 = vpop.f32.mrb[0].mxu0
  %v5927 = vadd.f32 %v5847, %v5926
  %v5928 = vpop.f32.mrb[0].mxu0
  %5929 = vmatprep.mubr.bf16.mxu0 0
  %5930 = vmatmul.mubr.bf16.gmra.mrb[0].mxu0 %v5871
  %v5931 = vpop.f32.mrb[0].mxu0
  %v5932 = vadd.f32 %v5847, %v5931
  %v5933 = vpop.f32.mrb[0].mxu0
  %v5934 = vpop.f32.mrb[0].mxu0
  %v5935 = vadd.f32 %v5847, %v5934
  %v5936 = vpop.f32.mrb[0].mxu0
  %5937 = vdwg.mxu0
  %v5938 = vmax.f32 %v5908, 0.0
  %v5939 = vmax.f32 %v5911, 0.0
  %v5940 = vmax.f32 %v5916, 0.0
  %v5941 = vmax.f32 %v5919, 0.0
  %v5942 = vmax.f32 %v5924, 0.0
  %v5943 = vmax.f32 %v5927, 0.0
  %v5944 = vmax.f32 %v5932, 0.0
  %v5945 = vmax.f32 %v5935, 0.0
  %v5946 = vld [vmem:[%s14] sm:$0xf]
  %v5947 = vld [vmem:[%s14 + $0x4] sm:$0xf]
  %v5948 = vld [vmem:[%s14 + $0x8] sm:$0xf]
  %v5949 = vld [vmem:[%s14 + $0xc] sm:$0xf]
  %v5950 = vpack.c.bf16 %v5939, %v5938
  %v5951 = vpack.c.bf16 %v5941, %v5940
  %v5952 = vpack.c.bf16 %v5943, %v5942
  %v5953 = vpack.c.bf16 %v5945, %v5944
  %v5958 = vunpack.c.l.b16 %v5946
  %v5959 = vunpack.c.l.b16 %v5947
  %v5960 = vunpack.c.l.b16 %v5948
  %v5961 = vunpack.c.l.b16 %v5949
  %v5962 = vpack.c.b16 %v5959, %v5958
  %v5963 = vpack.c.b16 %v5961, %v5960
  %v5967 = vsel %vm1234, %v5950, 0
  %v5970 = vsel %vm1234, %v5951, 0
  %v5973 = vsel %vm1234, %v5952, 0
  %v5976 = vsel %vm1234, %v5953, 0
  %5978 = vmatprep.subr.bf16.mxu0 0
  %5979 = vmatpush1.bf16.msra.mxu0 %v5962
  %5980 = vmatprep.subr.bf16.mxu0 0
  %5981 = vmatpush1.bf16.msra.mxu0 %v5963
  %5982 = vmatprep.subr.bf16.mxu0 0
  %5983 = vmatpush1.bf16.msra.mxu0 0
  %5984 = vmatprep.subr.bf16.mxu0 0
  %5985 = vmatpush1.bf16.msra.mxu0 0
  %5986 = vmatprep.subr.bf16.mxu0 0
  %5987 = vmatpush1.bf16.msra.mxu0 0
  %5988 = vmatprep.subr.bf16.mxu0 0
  %5989 = vmatpush1.bf16.msra.mxu0 0
  %5990 = vmatprep.subr.bf16.mxu0 0
  %5991 = vmatpush1.bf16.msra.mxu0 0
  %5992 = vmatprep.subr.bf16.mxu0 0
  %5993 = vmatpush1.bf16.msra.mxu0 0
  %5994 = vmatprep.subr.bf16.mxu0 0
  %5995 = vmatpush1.bf16.msra.mxu0 0
  %5996 = vmatprep.subr.bf16.mxu0 0
  %5997 = vmatpush1.bf16.msra.mxu0 0
  %5998 = vmatprep.subr.bf16.mxu0 0
  %5999 = vmatpush1.bf16.msra.mxu0 0
  %6000 = vmatprep.subr.bf16.mxu0 0
  %6001 = vmatpush1.bf16.msra.mxu0 0
  %6002 = vmatprep.subr.bf16.mxu0 0
  %6003 = vmatpush1.bf16.msra.mxu0 0
  %6004 = vmatprep.subr.bf16.mxu0 0
  %6005 = vmatpush1.bf16.msra.mxu0 0
  %6006 = vmatprep.subr.bf16.mxu0 0
  %6007 = vmatpush1.bf16.msra.mxu0 0
  %6008 = vmatprep.subr.bf16.mxu0 0
  %6009 = vmatpush1.bf16.msra.mxu0 0
  %6010 = vmatprep.mubr.bf16.mxu0 0
  %6011 = vmatmul.mubr.bf16.gmra.mrb[0].mxu0 %v5967
  %v6012 = vpop.f32.mrb[0].mxu0
  %v6013 = vadd.f32 0.0, %v6012
  %v6014 = vpop.f32.mrb[0].mxu0
  %v6015 = vpop.f32.mrb[0].mxu0
  %v6016 = vadd.f32 0.0, %v6015
  %v6017 = vpop.f32.mrb[0].mxu0
  %6018 = vmatprep.mubr.bf16.mxu0 0
  %6019 = vmatmul.mubr.bf16.gmra.mrb[0].mxu0 %v5970
  %v6020 = vpop.f32.mrb[0].mxu0
  %v6021 = vadd.f32 0.0, %v6020
  %v6022 = vpop.f32.mrb[0].mxu0
  %v6023 = vpop.f32.mrb[0].mxu0
  %v6024 = vadd.f32 0.0, %v6023
  %v6025 = vpop.f32.mrb[0].mxu0
  %6026 = vmatprep.mubr.bf16.mxu0 0
  %6027 = vmatmul.mubr.bf16.gmra.mrb[0].mxu0 %v5973
  %v6028 = vpop.f32.mrb[0].mxu0
  %v6029 = vadd.f32 0.0, %v6028
  %v6030 = vpop.f32.mrb[0].mxu0
  %v6031 = vpop.f32.mrb[0].mxu0
  %v6032 = vadd.f32 0.0, %v6031
  %v6033 = vpop.f32.mrb[0].mxu0
  %6034 = vmatprep.mubr.bf16.mxu0 0
  %6035 = vmatmul.mubr.bf16.gmra.mrb[0].mxu0 %v5976
  %v6036 = vpop.f32.mrb[0].mxu0
  %v6037 = vadd.f32 0.0, %v6036
  %v6038 = vpop.f32.mrb[0].mxu0
  %v6039 = vpop.f32.mrb[0].mxu0
  %v6040 = vadd.f32 0.0, %v6039
  %v6041 = vpop.f32.mrb[0].mxu0
  %6042 = vdwg.mxu0
  %v6043 = vadd.f32 %v5714, %v6013
  %v6044 = vadd.f32 %v5715, %v6016
  %v6045 = vadd.f32 %v5716, %v6021
  %v6046 = vadd.f32 %v5717, %v6024
  %v6047 = vadd.f32 %v5718, %v6029
  %v6048 = vadd.f32 %v5719, %v6032
  %v6049 = vadd.f32 %v5720, %v6037
  %v6050 = vadd.f32 %v5721, %v6040
  %v6051 = vld [vmem:[%s15] sm:$0x1]
  %v6053 = vlaneseq
  %v6054 = vshrl.u32 %v6053, 7
  %v6055 = vsub.s32 0, %v6054
  %v6056 = vrot.slane %v6051, %v6055
  %v6058 = vadd.f32 %v6043, %v6056
  %v6059 = vadd.f32 %v6044, %v6056
  %v6060 = vadd.f32 %v6045, %v6056
  %v6061 = vadd.f32 %v6046, %v6056
  %v6062 = vadd.f32 %v6047, %v6056
  %v6063 = vadd.f32 %v6048, %v6056
  %v6064 = vadd.f32 %v6049, %v6056
  %v6065 = vadd.f32 %v6050, %v6056
  %s6066 = scalar_lea.vmem %s3, 16
  %v6067 = vld [vmem:[%s6066] sm:$0xf]
  %v6068 = vld [vmem:[%s6066 + $0x4] sm:$0xf]
  %v6069 = vld [vmem:[%s6066 + $0x8] sm:$0xf]
  %v6070 = vld [vmem:[%s6066 + $0xc] sm:$0xf]
  %v6071 = vpack.c.bf16 %v6059, %v6058
  %v6072 = vpack.c.bf16 %v6061, %v6060
  %v6073 = vpack.c.bf16 %v6063, %v6062
  %v6074 = vpack.c.bf16 %v6065, %v6064
  %s6075 = scalar_lea.vmem %s4, 1
  %v6076 = vld [vmem:[%s6075] sm:$0x1]
  %v6078 = vlaneseq
  %v6079 = vshrl.u32 %v6078, 7
  %v6080 = vsub.s32 0, %v6079
  %v6081 = vrot.slane %v6076, %v6080
  %v6087 = vunpack.c.l.b16 %v6067
  %v6088 = vunpack.c.l.b16 %v6068
  %v6089 = vunpack.c.l.b16 %v6069
  %v6090 = vunpack.c.l.b16 %v6070
  %v6091 = vpack.c.b16 %v6088, %v6087
  %v6092 = vpack.c.b16 %v6090, %v6089
  %v6096 = vsel %vm1234, %v6071, 0
  %v6099 = vsel %vm1234, %v6072, 0
  %v6102 = vsel %vm1234, %v6073, 0
  %v6105 = vsel %vm1234, %v6074, 0
  %6107 = vmatprep.subr.bf16.mxu0 0
  %6108 = vmatpush1.bf16.msra.mxu0 %v6091
  %6109 = vmatprep.subr.bf16.mxu0 0
  %6110 = vmatpush1.bf16.msra.mxu0 %v6092
  %6111 = vmatprep.subr.bf16.mxu0 0
  %6112 = vmatpush1.bf16.msra.mxu0 0
  %6113 = vmatprep.subr.bf16.mxu0 0
  %6114 = vmatpush1.bf16.msra.mxu0 0
  %6115 = vmatprep.subr.bf16.mxu0 0
  %6116 = vmatpush1.bf16.msra.mxu0 0
  %6117 = vmatprep.subr.bf16.mxu0 0
  %6118 = vmatpush1.bf16.msra.mxu0 0
  %6119 = vmatprep.subr.bf16.mxu0 0
  %6120 = vmatpush1.bf16.msra.mxu0 0
  %6121 = vmatprep.subr.bf16.mxu0 0
  %6122 = vmatpush1.bf16.msra.mxu0 0
  %6123 = vmatprep.subr.bf16.mxu0 0
  %6124 = vmatpush1.bf16.msra.mxu0 0
  %6125 = vmatprep.subr.bf16.mxu0 0
  %6126 = vmatpush1.bf16.msra.mxu0 0
  %6127 = vmatprep.subr.bf16.mxu0 0
  %6128 = vmatpush1.bf16.msra.mxu0 0
  %6129 = vmatprep.subr.bf16.mxu0 0
  %6130 = vmatpush1.bf16.msra.mxu0 0
  %6131 = vmatprep.subr.bf16.mxu0 0
  %6132 = vmatpush1.bf16.msra.mxu0 0
  %6133 = vmatprep.subr.bf16.mxu0 0
  %6134 = vmatpush1.bf16.msra.mxu0 0
  %6135 = vmatprep.subr.bf16.mxu0 0
  %6136 = vmatpush1.bf16.msra.mxu0 0
  %6137 = vmatprep.subr.bf16.mxu0 0
  %6138 = vmatpush1.bf16.msra.mxu0 0
  %6139 = vmatprep.mubr.bf16.mxu0 0
  %6140 = vmatmul.mubr.bf16.gmra.mrb[0].mxu0 %v6096
  %v6141 = vpop.f32.mrb[0].mxu0
  %v6142 = vadd.f32 %v6081, %v6141
  %v6143 = vpop.f32.mrb[0].mxu0
  %v6144 = vpop.f32.mrb[0].mxu0
  %v6145 = vadd.f32 %v6081, %v6144
  %v6146 = vpop.f32.mrb[0].mxu0
  %6147 = vmatprep.mubr.bf16.mxu0 0
  %6148 = vmatmul.mubr.bf16.gmra.mrb[0].mxu0 %v6099
  %v6149 = vpop.f32.mrb[0].mxu0
  %v6150 = vadd.f32 %v6081, %v6149
  %v6151 = vpop.f32.mrb[0].mxu0
  %v6152 = vpop.f32.mrb[0].mxu0
  %v6153 = vadd.f32 %v6081, %v6152
  %v6154 = vpop.f32.mrb[0].mxu0
  %6155 = vmatprep.mubr.bf16.mxu0 0
  %6156 = vmatmul.mubr.bf16.gmra.mrb[0].mxu0 %v6102
  %v6157 = vpop.f32.mrb[0].mxu0
  %v6158 = vadd.f32 %v6081, %v6157
  %v6159 = vpop.f32.mrb[0].mxu0
  %v6160 = vpop.f32.mrb[0].mxu0
  %v6161 = vadd.f32 %v6081, %v6160
  %v6162 = vpop.f32.mrb[0].mxu0
  %6163 = vmatprep.mubr.bf16.mxu0 0
  %6164 = vmatmul.mubr.bf16.gmra.mrb[0].mxu0 %v6105
  %v6165 = vpop.f32.mrb[0].mxu0
  %v6166 = vadd.f32 %v6081, %v6165
  %v6167 = vpop.f32.mrb[0].mxu0
  %v6168 = vpop.f32.mrb[0].mxu0
  %v6169 = vadd.f32 %v6081, %v6168
  %v6170 = vpop.f32.mrb[0].mxu0
  %6171 = vdwg.mxu0
  %s6172 = scalar_lea.vmem %s5, 32
  %v6173 = vld [vmem:[%s6172] sm:$0xff]
  %v6174 = vld [vmem:[%s6172 + $0x8] sm:$0xff]
  %v6175 = vld [vmem:[%s6172 + $0x10] sm:$0xff]
  %v6176 = vld [vmem:[%s6172 + $0x18] sm:$0xff]
  %v6181 = vunpack.c.l.b16 %v6173
  %v6182 = vunpack.c.h.b16 %v6173
  %v6183 = vunpack.c.l.b16 %v6174
  %v6184 = vunpack.c.h.b16 %v6174
  %v6185 = vunpack.c.l.b16 %v6175
  %v6186 = vunpack.c.h.b16 %v6175
  %v6187 = vunpack.c.l.b16 %v6176
  %v6188 = vunpack.c.h.b16 %v6176
  %v6189 = vpack.c.b16 %v6183, %v6181
  %v6190 = vpack.c.b16 %v6184, %v6182
  %v6191 = vpack.c.b16 %v6187, %v6185
  %v6192 = vpack.c.b16 %v6188, %v6186
  %6197 = vmatprep.subr.bf16.mxu0 %v6190
  %6198 = vmatpush1.bf16.msra.mxu0 %v6189
  %6199 = vmatprep.subr.bf16.mxu0 %v6192
  %6200 = vmatpush1.bf16.msra.mxu0 %v6191
  %6201 = vmatprep.subr.bf16.mxu0 0
  %6202 = vmatpush1.bf16.msra.mxu0 0
  %6203 = vmatprep.subr.bf16.mxu0 0
  %6204 = vmatpush1.bf16.msra.mxu0 0
  %6205 = vmatprep.subr.bf16.mxu0 0
  %6206 = vmatpush1.bf16.msra.mxu0 0
  %6207 = vmatprep.subr.bf16.mxu0 0
  %6208 = vmatpush1.bf16.msra.mxu0 0
  %6209 = vmatprep.subr.bf16.mxu0 0
  %6210 = vmatpush1.bf16.msra.mxu0 0
  %6211 = vmatprep.subr.bf16.mxu0 0
  %6212 = vmatpush1.bf16.msra.mxu0 0
  %6213 = vmatprep.subr.bf16.mxu0 0
  %6214 = vmatpush1.bf16.msra.mxu0 0
  %6215 = vmatprep.subr.bf16.mxu0 0
  %6216 = vmatpush1.bf16.msra.mxu0 0
  %6217 = vmatprep.subr.bf16.mxu0 0
  %6218 = vmatpush1.bf16.msra.mxu0 0
  %6219 = vmatprep.subr.bf16.mxu0 0
  %6220 = vmatpush1.bf16.msra.mxu0 0
  %6221 = vmatprep.subr.bf16.mxu0 0
  %6222 = vmatpush1.bf16.msra.mxu0 0
  %6223 = vmatprep.subr.bf16.mxu0 0
  %6224 = vmatpush1.bf16.msra.mxu0 0
  %6225 = vmatprep.subr.bf16.mxu0 0
  %6226 = vmatpush1.bf16.msra.mxu0 0
  %6227 = vmatprep.subr.bf16.mxu0 0
  %6228 = vmatpush1.bf16.msra.mxu0 0
  %6229 = vmatprep.mubr.bf16.mxu0 0
  %6230 = vmatmul.mubr.bf16.gmra.mrb[0].mxu0 %v6096
  %v6231 = vpop.f32.mrb[0].mxu0
  %v6232 = vadd.f32 0.0, %v6231
  %v6233 = vpop.f32.mrb[0].mxu0
  %v6234 = vadd.f32 0.0, %v6233
  %v6235 = vpop.f32.mrb[0].mxu0
  %v6236 = vadd.f32 0.0, %v6235
  %v6237 = vpop.f32.mrb[0].mxu0
  %v6238 = vadd.f32 0.0, %v6237
  %6239 = vmatprep.mubr.bf16.mxu0 0
  %6240 = vmatmul.mubr.bf16.gmra.mrb[0].mxu0 %v6099
  %v6241 = vpop.f32.mrb[0].mxu0
  %v6242 = vadd.f32 0.0, %v6241
  %v6243 = vpop.f32.mrb[0].mxu0
  %v6244 = vadd.f32 0.0, %v6243
  %v6245 = vpop.f32.mrb[0].mxu0
  %v6246 = vadd.f32 0.0, %v6245
  %v6247 = vpop.f32.mrb[0].mxu0
  %v6248 = vadd.f32 0.0, %v6247
  %6249 = vmatprep.mubr.bf16.mxu0 0
  %6250 = vmatmul.mubr.bf16.gmra.mrb[0].mxu0 %v6102
  %v6251 = vpop.f32.mrb[0].mxu0
  %v6252 = vadd.f32 0.0, %v6251
  %v6253 = vpop.f32.mrb[0].mxu0
  %v6254 = vadd.f32 0.0, %v6253
  %v6255 = vpop.f32.mrb[0].mxu0
  %v6256 = vadd.f32 0.0, %v6255
  %v6257 = vpop.f32.mrb[0].mxu0
  %v6258 = vadd.f32 0.0, %v6257
  %6259 = vmatprep.mubr.bf16.mxu0 0
  %6260 = vmatmul.mubr.bf16.gmra.mrb[0].mxu0 %v6105
  %v6261 = vpop.f32.mrb[0].mxu0
  %v6262 = vadd.f32 0.0, %v6261
  %v6263 = vpop.f32.mrb[0].mxu0
  %v6264 = vadd.f32 0.0, %v6263
  %v6265 = vpop.f32.mrb[0].mxu0
  %v6266 = vadd.f32 0.0, %v6265
  %v6267 = vpop.f32.mrb[0].mxu0
  %v6268 = vadd.f32 0.0, %v6267
  %6269 = vdwg.mxu0
  %v6270 = vpack.c.bf16 %v6236, %v6232
  %v6271 = vpack.c.bf16 %v6238, %v6234
  %v6272 = vpack.c.bf16 %v6246, %v6242
  %v6273 = vpack.c.bf16 %v6248, %v6244
  %v6274 = vpack.c.bf16 %v6256, %v6252
  %v6275 = vpack.c.bf16 %v6258, %v6254
  %v6276 = vpack.c.bf16 %v6266, %v6262
  %v6277 = vpack.c.bf16 %v6268, %v6264
  %s6278 = scalar_lea.vmem %s6, 16
  %v6279 = vld [vmem:[%s6278] sm:$0xff]
  %v6280 = vld [vmem:[%s6278 + $0x8] sm:$0xff]
  %v6283 = vunpack.c.l.b16 %v6279
  %v6284 = vunpack.c.h.b16 %v6279
  %v6285 = vunpack.c.l.b16 %v6280
  %v6286 = vunpack.c.h.b16 %v6280
  %v6287 = vpack.c.b16 %v6285, %v6283
  %v6288 = vpack.c.b16 %v6286, %v6284
  %6291 = vmatprep.subr.bf16.mxu0 %v6288
  %6292 = vmatpush1.bf16.msra.mxu0 %v6287
  %6293 = vmatprep.subr.bf16.mxu0 0
  %6294 = vmatpush1.bf16.msra.mxu0 0
  %6295 = vmatprep.subr.bf16.mxu0 0
  %6296 = vmatpush1.bf16.msra.mxu0 0
  %6297 = vmatprep.subr.bf16.mxu0 0
  %6298 = vmatpush1.bf16.msra.mxu0 0
  %6299 = vmatprep.subr.bf16.mxu0 0
  %6300 = vmatpush1.bf16.msra.mxu0 0
  %6301 = vmatprep.subr.bf16.mxu0 0
  %6302 = vmatpush1.bf16.msra.mxu0 0
  %6303 = vmatprep.subr.bf16.mxu0 0
  %6304 = vmatpush1.bf16.msra.mxu0 0
  %6305 = vmatprep.subr.bf16.mxu0 0
  %6306 = vmatpush1.bf16.msra.mxu0 0
  %6307 = vmatprep.subr.bf16.mxu0 0
  %6308 = vmatpush1.bf16.msra.mxu0 0
  %6309 = vmatprep.subr.bf16.mxu0 0
  %6310 = vmatpush1.bf16.msra.mxu0 0
  %6311 = vmatprep.subr.bf16.mxu0 0
  %6312 = vmatpush1.bf16.msra.mxu0 0
  %6313 = vmatprep.subr.bf16.mxu0 0
  %6314 = vmatpush1.bf16.msra.mxu0 0
  %6315 = vmatprep.subr.bf16.mxu0 0
  %6316 = vmatpush1.bf16.msra.mxu0 0
  %6317 = vmatprep.subr.bf16.mxu0 0
  %6318 = vmatpush1.bf16.msra.mxu0 0
  %6319 = vmatprep.subr.bf16.mxu0 0
  %6320 = vmatpush1.bf16.msra.mxu0 0
  %6321 = vmatprep.subr.bf16.mxu0 0
  %6322 = vmatpush1.bf16.msra.mxu0 0
  %6323 = vmatprep.mubr.bf16.mxu0 0
  %6324 = vmatmul.mubr.bf16.gmra.mrb[0].mxu0 %v1591
  %v6325 = vpop.f32.mrb[0].mxu0
  %v6326 = vadd.f32 0.0, %v6325
  %v6327 = vpop.f32.mrb[0].mxu0
  %v6328 = vadd.f32 0.0, %v6327
  %v6329 = vpop.f32.mrb[0].mxu0
  %v6330 = vadd.f32 0.0, %v6329
  %v6331 = vpop.f32.mrb[0].mxu0
  %v6332 = vadd.f32 0.0, %v6331
  %6333 = vmatprep.mubr.bf16.mxu0 0
  %6334 = vmatmul.mubr.bf16.gmra.mrb[0].mxu0 %v1594
  %v6335 = vpop.f32.mrb[0].mxu0
  %v6336 = vadd.f32 0.0, %v6335
  %v6337 = vpop.f32.mrb[0].mxu0
  %v6338 = vadd.f32 0.0, %v6337
  %v6339 = vpop.f32.mrb[0].mxu0
  %v6340 = vadd.f32 0.0, %v6339
  %v6341 = vpop.f32.mrb[0].mxu0
  %v6342 = vadd.f32 0.0, %v6341
  %6343 = vmatprep.mubr.bf16.mxu0 0
  %6344 = vmatmul.mubr.bf16.gmra.mrb[0].mxu0 %v1597
  %v6345 = vpop.f32.mrb[0].mxu0
  %v6346 = vadd.f32 0.0, %v6345
  %v6347 = vpop.f32.mrb[0].mxu0
  %v6348 = vadd.f32 0.0, %v6347
  %v6349 = vpop.f32.mrb[0].mxu0
  %v6350 = vadd.f32 0.0, %v6349
  %v6351 = vpop.f32.mrb[0].mxu0
  %v6352 = vadd.f32 0.0, %v6351
  %6353 = vmatprep.mubr.bf16.mxu0 0
  %6354 = vmatmul.mubr.bf16.gmra.mrb[0].mxu0 %v1600
  %v6355 = vpop.f32.mrb[0].mxu0
  %v6356 = vadd.f32 0.0, %v6355
  %v6357 = vpop.f32.mrb[0].mxu0
  %v6358 = vadd.f32 0.0, %v6357
  %v6359 = vpop.f32.mrb[0].mxu0
  %v6360 = vadd.f32 0.0, %v6359
  %v6361 = vpop.f32.mrb[0].mxu0
  %v6362 = vadd.f32 0.0, %v6361
  %6363 = vmatprep.mubr.bf16.mxu0 0
  %6364 = vmatmul.mubr.bf16.gmra.mrb[0].mxu0 %v1603
  %v6365 = vpop.f32.mrb[0].mxu0
  %v6366 = vadd.f32 0.0, %v6365
  %v6367 = vpop.f32.mrb[0].mxu0
  %v6368 = vadd.f32 0.0, %v6367
  %v6369 = vpop.f32.mrb[0].mxu0
  %v6370 = vadd.f32 0.0, %v6369
  %v6371 = vpop.f32.mrb[0].mxu0
  %v6372 = vadd.f32 0.0, %v6371
  %6373 = vmatprep.mubr.bf16.mxu0 0
  %6374 = vmatmul.mubr.bf16.gmra.mrb[0].mxu0 %v1606
  %v6375 = vpop.f32.mrb[0].mxu0
  %v6376 = vadd.f32 0.0, %v6375
  %v6377 = vpop.f32.mrb[0].mxu0
  %v6378 = vadd.f32 0.0, %v6377
  %v6379 = vpop.f32.mrb[0].mxu0
  %v6380 = vadd.f32 0.0, %v6379
  %v6381 = vpop.f32.mrb[0].mxu0
  %v6382 = vadd.f32 0.0, %v6381
  %6383 = vmatprep.mubr.bf16.mxu0 0
  %6384 = vmatmul.mubr.bf16.gmra.mrb[0].mxu0 %v1609
  %v6385 = vpop.f32.mrb[0].mxu0
  %v6386 = vadd.f32 0.0, %v6385
  %v6387 = vpop.f32.mrb[0].mxu0
  %v6388 = vadd.f32 0.0, %v6387
  %v6389 = vpop.f32.mrb[0].mxu0
  %v6390 = vadd.f32 0.0, %v6389
  %v6391 = vpop.f32.mrb[0].mxu0
  %v6392 = vadd.f32 0.0, %v6391
  %6393 = vmatprep.mubr.bf16.mxu0 0
  %6394 = vmatmul.mubr.bf16.gmra.mrb[0].mxu0 %v1612
  %v6395 = vpop.f32.mrb[0].mxu0
  %v6396 = vadd.f32 0.0, %v6395
  %v6397 = vpop.f32.mrb[0].mxu0
  %v6398 = vadd.f32 0.0, %v6397
  %v6399 = vpop.f32.mrb[0].mxu0
  %v6400 = vadd.f32 0.0, %v6399
  %v6401 = vpop.f32.mrb[0].mxu0
  %v6402 = vadd.f32 0.0, %v6401
  %6403 = vmatprep.mubr.bf16.mxu0 0
  %6404 = vmatmul.mubr.bf16.gmra.mrb[0].mxu0 %v1615
  %v6405 = vpop.f32.mrb[0].mxu0
  %v6406 = vadd.f32 0.0, %v6405
  %v6407 = vpop.f32.mrb[0].mxu0
  %v6408 = vadd.f32 0.0, %v6407
  %v6409 = vpop.f32.mrb[0].mxu0
  %v6410 = vadd.f32 0.0, %v6409
  %v6411 = vpop.f32.mrb[0].mxu0
  %v6412 = vadd.f32 0.0, %v6411
  %6413 = vmatprep.mubr.bf16.mxu0 0
  %6414 = vmatmul.mubr.bf16.gmra.mrb[0].mxu0 %v1618
  %v6415 = vpop.f32.mrb[0].mxu0
  %v6416 = vadd.f32 0.0, %v6415
  %v6417 = vpop.f32.mrb[0].mxu0
  %v6418 = vadd.f32 0.0, %v6417
  %v6419 = vpop.f32.mrb[0].mxu0
  %v6420 = vadd.f32 0.0, %v6419
  %v6421 = vpop.f32.mrb[0].mxu0
  %v6422 = vadd.f32 0.0, %v6421
  %6423 = vmatprep.mubr.bf16.mxu0 0
  %6424 = vmatmul.mubr.bf16.gmra.mrb[0].mxu0 %v1621
  %v6425 = vpop.f32.mrb[0].mxu0
  %v6426 = vadd.f32 0.0, %v6425
  %v6427 = vpop.f32.mrb[0].mxu0
  %v6428 = vadd.f32 0.0, %v6427
  %v6429 = vpop.f32.mrb[0].mxu0
  %v6430 = vadd.f32 0.0, %v6429
  %v6431 = vpop.f32.mrb[0].mxu0
  %v6432 = vadd.f32 0.0, %v6431
  %6433 = vmatprep.mubr.bf16.mxu0 0
  %6434 = vmatmul.mubr.bf16.gmra.mrb[0].mxu0 %v1624
  %v6435 = vpop.f32.mrb[0].mxu0
  %v6436 = vadd.f32 0.0, %v6435
  %v6437 = vpop.f32.mrb[0].mxu0
  %v6438 = vadd.f32 0.0, %v6437
  %v6439 = vpop.f32.mrb[0].mxu0
  %v6440 = vadd.f32 0.0, %v6439
  %v6441 = vpop.f32.mrb[0].mxu0
  %v6442 = vadd.f32 0.0, %v6441
  %6443 = vmatprep.mubr.bf16.mxu0 0
  %6444 = vmatmul.mubr.bf16.gmra.mrb[0].mxu0 %v1627
  %v6445 = vpop.f32.mrb[0].mxu0
  %v6446 = vadd.f32 0.0, %v6445
  %v6447 = vpop.f32.mrb[0].mxu0
  %v6448 = vadd.f32 0.0, %v6447
  %v6449 = vpop.f32.mrb[0].mxu0
  %v6450 = vadd.f32 0.0, %v6449
  %v6451 = vpop.f32.mrb[0].mxu0
  %v6452 = vadd.f32 0.0, %v6451
  %6453 = vmatprep.mubr.bf16.mxu0 0
  %6454 = vmatmul.mubr.bf16.gmra.mrb[0].mxu0 %v1630
  %v6455 = vpop.f32.mrb[0].mxu0
  %v6456 = vadd.f32 0.0, %v6455
  %v6457 = vpop.f32.mrb[0].mxu0
  %v6458 = vadd.f32 0.0, %v6457
  %v6459 = vpop.f32.mrb[0].mxu0
  %v6460 = vadd.f32 0.0, %v6459
  %v6461 = vpop.f32.mrb[0].mxu0
  %v6462 = vadd.f32 0.0, %v6461
  %6463 = vmatprep.mubr.bf16.mxu0 0
  %6464 = vmatmul.mubr.bf16.gmra.mrb[0].mxu0 %v1633
  %v6465 = vpop.f32.mrb[0].mxu0
  %v6466 = vadd.f32 0.0, %v6465
  %v6467 = vpop.f32.mrb[0].mxu0
  %v6468 = vadd.f32 0.0, %v6467
  %v6469 = vpop.f32.mrb[0].mxu0
  %v6470 = vadd.f32 0.0, %v6469
  %v6471 = vpop.f32.mrb[0].mxu0
  %v6472 = vadd.f32 0.0, %v6471
  %6473 = vmatprep.mubr.bf16.mxu0 0
  %6474 = vmatmul.mubr.bf16.gmra.mrb[0].mxu0 %v1636
  %v6475 = vpop.f32.mrb[0].mxu0
  %v6476 = vadd.f32 0.0, %v6475
  %v6477 = vpop.f32.mrb[0].mxu0
  %v6478 = vadd.f32 0.0, %v6477
  %v6479 = vpop.f32.mrb[0].mxu0
  %v6480 = vadd.f32 0.0, %v6479
  %v6481 = vpop.f32.mrb[0].mxu0
  %v6482 = vadd.f32 0.0, %v6481
  %6483 = vmatprep.mubr.bf16.mxu0 0
  %6484 = vmatmul.mubr.bf16.gmra.mrb[0].mxu0 %v1639
  %v6485 = vpop.f32.mrb[0].mxu0
  %v6486 = vadd.f32 0.0, %v6485
  %v6487 = vpop.f32.mrb[0].mxu0
  %v6488 = vadd.f32 0.0, %v6487
  %v6489 = vpop.f32.mrb[0].mxu0
  %v6490 = vadd.f32 0.0, %v6489
  %v6491 = vpop.f32.mrb[0].mxu0
  %v6492 = vadd.f32 0.0, %v6491
  %6493 = vmatprep.mubr.bf16.mxu0 0
  %6494 = vmatmul.mubr.bf16.gmra.mrb[0].mxu0 %v1642
  %v6495 = vpop.f32.mrb[0].mxu0
  %v6496 = vadd.f32 0.0, %v6495
  %v6497 = vpop.f32.mrb[0].mxu0
  %v6498 = vadd.f32 0.0, %v6497
  %v6499 = vpop.f32.mrb[0].mxu0
  %v6500 = vadd.f32 0.0, %v6499
  %v6501 = vpop.f32.mrb[0].mxu0
  %v6502 = vadd.f32 0.0, %v6501
  %6503 = vmatprep.mubr.bf16.mxu0 0
  %6504 = vmatmul.mubr.bf16.gmra.mrb[0].mxu0 %v1645
  %v6505 = vpop.f32.mrb[0].mxu0
  %v6506 = vadd.f32 0.0, %v6505
  %v6507 = vpop.f32.mrb[0].mxu0
  %v6508 = vadd.f32 0.0, %v6507
  %v6509 = vpop.f32.mrb[0].mxu0
  %v6510 = vadd.f32 0.0, %v6509
  %v6511 = vpop.f32.mrb[0].mxu0
  %v6512 = vadd.f32 0.0, %v6511
  %6513 = vmatprep.mubr.bf16.mxu0 0
  %6514 = vmatmul.mubr.bf16.gmra.mrb[0].mxu0 %v1648
  %v6515 = vpop.f32.mrb[0].mxu0
  %v6516 = vadd.f32 0.0, %v6515
  %v6517 = vpop.f32.mrb[0].mxu0
  %v6518 = vadd.f32 0.0, %v6517
  %v6519 = vpop.f32.mrb[0].mxu0
  %v6520 = vadd.f32 0.0, %v6519
  %v6521 = vpop.f32.mrb[0].mxu0
  %v6522 = vadd.f32 0.0, %v6521
  %6523 = vmatprep.mubr.bf16.mxu0 0
  %6524 = vmatmul.mubr.bf16.gmra.mrb[0].mxu0 %v1651
  %v6525 = vpop.f32.mrb[0].mxu0
  %v6526 = vadd.f32 0.0, %v6525
  %v6527 = vpop.f32.mrb[0].mxu0
  %v6528 = vadd.f32 0.0, %v6527
  %v6529 = vpop.f32.mrb[0].mxu0
  %v6530 = vadd.f32 0.0, %v6529
  %v6531 = vpop.f32.mrb[0].mxu0
  %v6532 = vadd.f32 0.0, %v6531
  %6533 = vmatprep.mubr.bf16.mxu0 0
  %6534 = vmatmul.mubr.bf16.gmra.mrb[0].mxu0 %v1654
  %v6535 = vpop.f32.mrb[0].mxu0
  %v6536 = vadd.f32 0.0, %v6535
  %v6537 = vpop.f32.mrb[0].mxu0
  %v6538 = vadd.f32 0.0, %v6537
  %v6539 = vpop.f32.mrb[0].mxu0
  %v6540 = vadd.f32 0.0, %v6539
  %v6541 = vpop.f32.mrb[0].mxu0
  %v6542 = vadd.f32 0.0, %v6541
  %6543 = vmatprep.mubr.bf16.mxu0 0
  %6544 = vmatmul.mubr.bf16.gmra.mrb[0].mxu0 %v1657
  %v6545 = vpop.f32.mrb[0].mxu0
  %v6546 = vadd.f32 0.0, %v6545
  %v6547 = vpop.f32.mrb[0].mxu0
  %v6548 = vadd.f32 0.0, %v6547
  %v6549 = vpop.f32.mrb[0].mxu0
  %v6550 = vadd.f32 0.0, %v6549
  %v6551 = vpop.f32.mrb[0].mxu0
  %v6552 = vadd.f32 0.0, %v6551
  %6553 = vmatprep.mubr.bf16.mxu0 0
  %6554 = vmatmul.mubr.bf16.gmra.mrb[0].mxu0 %v1660
  %v6555 = vpop.f32.mrb[0].mxu0
  %v6556 = vadd.f32 0.0, %v6555
  %v6557 = vpop.f32.mrb[0].mxu0
  %v6558 = vadd.f32 0.0, %v6557
  %v6559 = vpop.f32.mrb[0].mxu0
  %v6560 = vadd.f32 0.0, %v6559
  %v6561 = vpop.f32.mrb[0].mxu0
  %v6562 = vadd.f32 0.0, %v6561
  %6563 = vmatprep.mubr.bf16.mxu0 0
  %6564 = vmatmul.mubr.bf16.gmra.mrb[0].mxu0 %v1663
  %v6565 = vpop.f32.mrb[0].mxu0
  %v6566 = vadd.f32 0.0, %v6565
  %v6567 = vpop.f32.mrb[0].mxu0
  %v6568 = vadd.f32 0.0, %v6567
  %v6569 = vpop.f32.mrb[0].mxu0
  %v6570 = vadd.f32 0.0, %v6569
  %v6571 = vpop.f32.mrb[0].mxu0
  %v6572 = vadd.f32 0.0, %v6571
  %6573 = vmatprep.mubr.bf16.mxu0 0
  %6574 = vmatmul.mubr.bf16.gmra.mrb[0].mxu0 %v1666
  %v6575 = vpop.f32.mrb[0].mxu0
  %v6576 = vadd.f32 0.0, %v6575
  %v6577 = vpop.f32.mrb[0].mxu0
  %v6578 = vadd.f32 0.0, %v6577
  %v6579 = vpop.f32.mrb[0].mxu0
  %v6580 = vadd.f32 0.0, %v6579
  %v6581 = vpop.f32.mrb[0].mxu0
  %v6582 = vadd.f32 0.0, %v6581
  %6583 = vmatprep.mubr.bf16.mxu0 0
  %6584 = vmatmul.mubr.bf16.gmra.mrb[0].mxu0 %v1669
  %v6585 = vpop.f32.mrb[0].mxu0
  %v6586 = vadd.f32 0.0, %v6585
  %v6587 = vpop.f32.mrb[0].mxu0
  %v6588 = vadd.f32 0.0, %v6587
  %v6589 = vpop.f32.mrb[0].mxu0
  %v6590 = vadd.f32 0.0, %v6589
  %v6591 = vpop.f32.mrb[0].mxu0
  %v6592 = vadd.f32 0.0, %v6591
  %6593 = vmatprep.mubr.bf16.mxu0 0
  %6594 = vmatmul.mubr.bf16.gmra.mrb[0].mxu0 %v1672
  %v6595 = vpop.f32.mrb[0].mxu0
  %v6596 = vadd.f32 0.0, %v6595
  %v6597 = vpop.f32.mrb[0].mxu0
  %v6598 = vadd.f32 0.0, %v6597
  %v6599 = vpop.f32.mrb[0].mxu0
  %v6600 = vadd.f32 0.0, %v6599
  %v6601 = vpop.f32.mrb[0].mxu0
  %v6602 = vadd.f32 0.0, %v6601
  %6603 = vmatprep.mubr.bf16.mxu0 0
  %6604 = vmatmul.mubr.bf16.gmra.mrb[0].mxu0 %v1675
  %v6605 = vpop.f32.mrb[0].mxu0
  %v6606 = vadd.f32 0.0, %v6605
  %v6607 = vpop.f32.mrb[0].mxu0
  %v6608 = vadd.f32 0.0, %v6607
  %v6609 = vpop.f32.mrb[0].mxu0
  %v6610 = vadd.f32 0.0, %v6609
  %v6611 = vpop.f32.mrb[0].mxu0
  %v6612 = vadd.f32 0.0, %v6611
  %6613 = vmatprep.mubr.bf16.mxu0 0
  %6614 = vmatmul.mubr.bf16.gmra.mrb[0].mxu0 %v1678
  %v6615 = vpop.f32.mrb[0].mxu0
  %v6616 = vadd.f32 0.0, %v6615
  %v6617 = vpop.f32.mrb[0].mxu0
  %v6618 = vadd.f32 0.0, %v6617
  %v6619 = vpop.f32.mrb[0].mxu0
  %v6620 = vadd.f32 0.0, %v6619
  %v6621 = vpop.f32.mrb[0].mxu0
  %v6622 = vadd.f32 0.0, %v6621
  %6623 = vmatprep.mubr.bf16.mxu0 0
  %6624 = vmatmul.mubr.bf16.gmra.mrb[0].mxu0 %v1681
  %v6625 = vpop.f32.mrb[0].mxu0
  %v6626 = vadd.f32 0.0, %v6625
  %v6627 = vpop.f32.mrb[0].mxu0
  %v6628 = vadd.f32 0.0, %v6627
  %v6629 = vpop.f32.mrb[0].mxu0
  %v6630 = vadd.f32 0.0, %v6629
  %v6631 = vpop.f32.mrb[0].mxu0
  %v6632 = vadd.f32 0.0, %v6631
  %6633 = vmatprep.mubr.bf16.mxu0 0
  %6634 = vmatmul.mubr.bf16.gmra.mrb[0].mxu0 %v1684
  %v6635 = vpop.f32.mrb[0].mxu0
  %v6636 = vadd.f32 0.0, %v6635
  %v6637 = vpop.f32.mrb[0].mxu0
  %v6638 = vadd.f32 0.0, %v6637
  %v6639 = vpop.f32.mrb[0].mxu0
  %v6640 = vadd.f32 0.0, %v6639
  %v6641 = vpop.f32.mrb[0].mxu0
  %v6642 = vadd.f32 0.0, %v6641
  %6643 = vdwg.mxu0
  %6644 = vmatprep.subr.bf16.mxu0 %v6271
  %6645 = vmatpush1.bf16.msra.mxu0 %v6270
  %6646 = vmatprep.subr.bf16.mxu0 %v6273
  %6647 = vmatpush1.bf16.msra.mxu0 %v6272
  %6648 = vmatprep.subr.bf16.mxu0 %v6275
  %6649 = vmatpush1.bf16.msra.mxu0 %v6274
  %6650 = vmatprep.subr.bf16.mxu0 %v6277
  %6651 = vmatpush1.bf16.msra.mxu0 %v6276
  %6652 = vmatprep.subr.bf16.mxu0 0
  %6653 = vmatpush1.bf16.msra.mxu0 0
  %6654 = vmatprep.subr.bf16.mxu0 0
  %6655 = vmatpush1.bf16.msra.mxu0 0
  %6656 = vmatprep.subr.bf16.mxu0 0
  %6657 = vmatpush1.bf16.msra.mxu0 0
  %6658 = vmatprep.subr.bf16.mxu0 0
  %6659 = vmatpush1.bf16.msra.mxu0 0
  %6660 = vmatprep.subr.bf16.mxu0 0
  %6661 = vmatpush1.bf16.msra.mxu0 0
  %6662 = vmatprep.subr.bf16.mxu0 0
  %6663 = vmatpush1.bf16.msra.mxu0 0
  %6664 = vmatprep.subr.bf16.mxu0 0
  %6665 = vmatpush1.bf16.msra.mxu0 0
  %6666 = vmatprep.subr.bf16.mxu0 0
  %6667 = vmatpush1.bf16.msra.mxu0 0
  %6668 = vmatprep.subr.bf16.mxu0 0
  %6669 = vmatpush1.bf16.msra.mxu0 0
  %6670 = vmatprep.subr.bf16.mxu0 0
  %6671 = vmatpush1.bf16.msra.mxu0 0
  %6672 = vmatprep.subr.bf16.mxu0 0
  %6673 = vmatpush1.bf16.msra.mxu0 0
  %6674 = vmatprep.subr.bf16.mxu0 0
  %6675 = vmatpush1.bf16.msra.mxu0 0
  %6676 = vmatprep.mubr.bf16.mxu0 0
  %6677 = vmatmul.mubr.bf16.gmra.mrb[0].mxu0 %v2041
  %v6678 = vpop.f32.mrb[0].mxu0
  %v6679 = vadd.f32 %v6326, %v6678
  %v6680 = vpop.f32.mrb[0].mxu0
  %v6681 = vadd.f32 %v6328, %v6680
  %v6682 = vpop.f32.mrb[0].mxu0
  %v6683 = vadd.f32 %v6330, %v6682
  %v6684 = vpop.f32.mrb[0].mxu0
  %v6685 = vadd.f32 %v6332, %v6684
  %6686 = vmatprep.mubr.bf16.mxu0 0
  %6687 = vmatmul.mubr.bf16.gmra.mrb[0].mxu0 %v2044
  %v6688 = vpop.f32.mrb[0].mxu0
  %v6689 = vadd.f32 %v6336, %v6688
  %v6690 = vpop.f32.mrb[0].mxu0
  %v6691 = vadd.f32 %v6338, %v6690
  %v6692 = vpop.f32.mrb[0].mxu0
  %v6693 = vadd.f32 %v6340, %v6692
  %v6694 = vpop.f32.mrb[0].mxu0
  %v6695 = vadd.f32 %v6342, %v6694
  %6696 = vmatprep.mubr.bf16.mxu0 0
  %6697 = vmatmul.mubr.bf16.gmra.mrb[0].mxu0 %v2047
  %v6698 = vpop.f32.mrb[0].mxu0
  %v6699 = vadd.f32 %v6346, %v6698
  %v6700 = vpop.f32.mrb[0].mxu0
  %v6701 = vadd.f32 %v6348, %v6700
  %v6702 = vpop.f32.mrb[0].mxu0
  %v6703 = vadd.f32 %v6350, %v6702
  %v6704 = vpop.f32.mrb[0].mxu0
  %v6705 = vadd.f32 %v6352, %v6704
  %6706 = vmatprep.mubr.bf16.mxu0 0
  %6707 = vmatmul.mubr.bf16.gmra.mrb[0].mxu0 %v2050
  %v6708 = vpop.f32.mrb[0].mxu0
  %v6709 = vadd.f32 %v6356, %v6708
  %v6710 = vpop.f32.mrb[0].mxu0
  %v6711 = vadd.f32 %v6358, %v6710
  %v6712 = vpop.f32.mrb[0].mxu0
  %v6713 = vadd.f32 %v6360, %v6712
  %v6714 = vpop.f32.mrb[0].mxu0
  %v6715 = vadd.f32 %v6362, %v6714
  %6716 = vmatprep.mubr.bf16.mxu0 0
  %6717 = vmatmul.mubr.bf16.gmra.mrb[0].mxu0 %v2053
  %v6718 = vpop.f32.mrb[0].mxu0
  %v6719 = vadd.f32 %v6366, %v6718
  %v6720 = vpop.f32.mrb[0].mxu0
  %v6721 = vadd.f32 %v6368, %v6720
  %v6722 = vpop.f32.mrb[0].mxu0
  %v6723 = vadd.f32 %v6370, %v6722
  %v6724 = vpop.f32.mrb[0].mxu0
  %v6725 = vadd.f32 %v6372, %v6724
  %6726 = vmatprep.mubr.bf16.mxu0 0
  %6727 = vmatmul.mubr.bf16.gmra.mrb[0].mxu0 %v2056
  %v6728 = vpop.f32.mrb[0].mxu0
  %v6729 = vadd.f32 %v6376, %v6728
  %v6730 = vpop.f32.mrb[0].mxu0
  %v6731 = vadd.f32 %v6378, %v6730
  %v6732 = vpop.f32.mrb[0].mxu0
  %v6733 = vadd.f32 %v6380, %v6732
  %v6734 = vpop.f32.mrb[0].mxu0
  %v6735 = vadd.f32 %v6382, %v6734
  %6736 = vmatprep.mubr.bf16.mxu0 0
  %6737 = vmatmul.mubr.bf16.gmra.mrb[0].mxu0 %v2059
  %v6738 = vpop.f32.mrb[0].mxu0
  %v6739 = vadd.f32 %v6386, %v6738
  %v6740 = vpop.f32.mrb[0].mxu0
  %v6741 = vadd.f32 %v6388, %v6740
  %v6742 = vpop.f32.mrb[0].mxu0
  %v6743 = vadd.f32 %v6390, %v6742
  %v6744 = vpop.f32.mrb[0].mxu0
  %v6745 = vadd.f32 %v6392, %v6744
  %6746 = vmatprep.mubr.bf16.mxu0 0
  %6747 = vmatmul.mubr.bf16.gmra.mrb[0].mxu0 %v2062
  %v6748 = vpop.f32.mrb[0].mxu0
  %v6749 = vadd.f32 %v6396, %v6748
  %v6750 = vpop.f32.mrb[0].mxu0
  %v6751 = vadd.f32 %v6398, %v6750
  %v6752 = vpop.f32.mrb[0].mxu0
  %v6753 = vadd.f32 %v6400, %v6752
  %v6754 = vpop.f32.mrb[0].mxu0
  %v6755 = vadd.f32 %v6402, %v6754
  %6756 = vmatprep.mubr.bf16.mxu0 0
  %6757 = vmatmul.mubr.bf16.gmra.mrb[0].mxu0 %v2065
  %v6758 = vpop.f32.mrb[0].mxu0
  %v6759 = vadd.f32 %v6406, %v6758
  %v6760 = vpop.f32.mrb[0].mxu0
  %v6761 = vadd.f32 %v6408, %v6760
  %v6762 = vpop.f32.mrb[0].mxu0
  %v6763 = vadd.f32 %v6410, %v6762
  %v6764 = vpop.f32.mrb[0].mxu0
  %v6765 = vadd.f32 %v6412, %v6764
  %6766 = vmatprep.mubr.bf16.mxu0 0
  %6767 = vmatmul.mubr.bf16.gmra.mrb[0].mxu0 %v2068
  %v6768 = vpop.f32.mrb[0].mxu0
  %v6769 = vadd.f32 %v6416, %v6768
  %v6770 = vpop.f32.mrb[0].mxu0
  %v6771 = vadd.f32 %v6418, %v6770
  %v6772 = vpop.f32.mrb[0].mxu0
  %v6773 = vadd.f32 %v6420, %v6772
  %v6774 = vpop.f32.mrb[0].mxu0
  %v6775 = vadd.f32 %v6422, %v6774
  %6776 = vmatprep.mubr.bf16.mxu0 0
  %6777 = vmatmul.mubr.bf16.gmra.mrb[0].mxu0 %v2071
  %v6778 = vpop.f32.mrb[0].mxu0
  %v6779 = vadd.f32 %v6426, %v6778
  %v6780 = vpop.f32.mrb[0].mxu0
  %v6781 = vadd.f32 %v6428, %v6780
  %v6782 = vpop.f32.mrb[0].mxu0
  %v6783 = vadd.f32 %v6430, %v6782
  %v6784 = vpop.f32.mrb[0].mxu0
  %v6785 = vadd.f32 %v6432, %v6784
  %6786 = vmatprep.mubr.bf16.mxu0 0
  %6787 = vmatmul.mubr.bf16.gmra.mrb[0].mxu0 %v2074
  %v6788 = vpop.f32.mrb[0].mxu0
  %v6789 = vadd.f32 %v6436, %v6788
  %v6790 = vpop.f32.mrb[0].mxu0
  %v6791 = vadd.f32 %v6438, %v6790
  %v6792 = vpop.f32.mrb[0].mxu0
  %v6793 = vadd.f32 %v6440, %v6792
  %v6794 = vpop.f32.mrb[0].mxu0
  %v6795 = vadd.f32 %v6442, %v6794
  %6796 = vmatprep.mubr.bf16.mxu0 0
  %6797 = vmatmul.mubr.bf16.gmra.mrb[0].mxu0 %v2077
  %v6798 = vpop.f32.mrb[0].mxu0
  %v6799 = vadd.f32 %v6446, %v6798
  %v6800 = vpop.f32.mrb[0].mxu0
  %v6801 = vadd.f32 %v6448, %v6800
  %v6802 = vpop.f32.mrb[0].mxu0
  %v6803 = vadd.f32 %v6450, %v6802
  %v6804 = vpop.f32.mrb[0].mxu0
  %v6805 = vadd.f32 %v6452, %v6804
  %6806 = vmatprep.mubr.bf16.mxu0 0
  %6807 = vmatmul.mubr.bf16.gmra.mrb[0].mxu0 %v2080
  %v6808 = vpop.f32.mrb[0].mxu0
  %v6809 = vadd.f32 %v6456, %v6808
  %v6810 = vpop.f32.mrb[0].mxu0
  %v6811 = vadd.f32 %v6458, %v6810
  %v6812 = vpop.f32.mrb[0].mxu0
  %v6813 = vadd.f32 %v6460, %v6812
  %v6814 = vpop.f32.mrb[0].mxu0
  %v6815 = vadd.f32 %v6462, %v6814
  %6816 = vmatprep.mubr.bf16.mxu0 0
  %6817 = vmatmul.mubr.bf16.gmra.mrb[0].mxu0 %v2083
  %v6818 = vpop.f32.mrb[0].mxu0
  %v6819 = vadd.f32 %v6466, %v6818
  %v6820 = vpop.f32.mrb[0].mxu0
  %v6821 = vadd.f32 %v6468, %v6820
  %v6822 = vpop.f32.mrb[0].mxu0
  %v6823 = vadd.f32 %v6470, %v6822
  %v6824 = vpop.f32.mrb[0].mxu0
  %v6825 = vadd.f32 %v6472, %v6824
  %6826 = vmatprep.mubr.bf16.mxu0 0
  %6827 = vmatmul.mubr.bf16.gmra.mrb[0].mxu0 %v2086
  %v6828 = vpop.f32.mrb[0].mxu0
  %v6829 = vadd.f32 %v6476, %v6828
  %v6830 = vpop.f32.mrb[0].mxu0
  %v6831 = vadd.f32 %v6478, %v6830
  %v6832 = vpop.f32.mrb[0].mxu0
  %v6833 = vadd.f32 %v6480, %v6832
  %v6834 = vpop.f32.mrb[0].mxu0
  %v6835 = vadd.f32 %v6482, %v6834
  %6836 = vmatprep.mubr.bf16.mxu0 0
  %6837 = vmatmul.mubr.bf16.gmra.mrb[0].mxu0 %v2089
  %v6838 = vpop.f32.mrb[0].mxu0
  %v6839 = vadd.f32 %v6486, %v6838
  %v6840 = vpop.f32.mrb[0].mxu0
  %v6841 = vadd.f32 %v6488, %v6840
  %v6842 = vpop.f32.mrb[0].mxu0
  %v6843 = vadd.f32 %v6490, %v6842
  %v6844 = vpop.f32.mrb[0].mxu0
  %v6845 = vadd.f32 %v6492, %v6844
  %6846 = vmatprep.mubr.bf16.mxu0 0
  %6847 = vmatmul.mubr.bf16.gmra.mrb[0].mxu0 %v2092
  %v6848 = vpop.f32.mrb[0].mxu0
  %v6849 = vadd.f32 %v6496, %v6848
  %v6850 = vpop.f32.mrb[0].mxu0
  %v6851 = vadd.f32 %v6498, %v6850
  %v6852 = vpop.f32.mrb[0].mxu0
  %v6853 = vadd.f32 %v6500, %v6852
  %v6854 = vpop.f32.mrb[0].mxu0
  %v6855 = vadd.f32 %v6502, %v6854
  %6856 = vmatprep.mubr.bf16.mxu0 0
  %6857 = vmatmul.mubr.bf16.gmra.mrb[0].mxu0 %v2095
  %v6858 = vpop.f32.mrb[0].mxu0
  %v6859 = vadd.f32 %v6506, %v6858
  %v6860 = vpop.f32.mrb[0].mxu0
  %v6861 = vadd.f32 %v6508, %v6860
  %v6862 = vpop.f32.mrb[0].mxu0
  %v6863 = vadd.f32 %v6510, %v6862
  %v6864 = vpop.f32.mrb[0].mxu0
  %v6865 = vadd.f32 %v6512, %v6864
  %6866 = vmatprep.mubr.bf16.mxu0 0
  %6867 = vmatmul.mubr.bf16.gmra.mrb[0].mxu0 %v2098
  %v6868 = vpop.f32.mrb[0].mxu0
  %v6869 = vadd.f32 %v6516, %v6868
  %v6870 = vpop.f32.mrb[0].mxu0
  %v6871 = vadd.f32 %v6518, %v6870
  %v6872 = vpop.f32.mrb[0].mxu0
  %v6873 = vadd.f32 %v6520, %v6872
  %v6874 = vpop.f32.mrb[0].mxu0
  %v6875 = vadd.f32 %v6522, %v6874
  %6876 = vmatprep.mubr.bf16.mxu0 0
  %6877 = vmatmul.mubr.bf16.gmra.mrb[0].mxu0 %v2101
  %v6878 = vpop.f32.mrb[0].mxu0
  %v6879 = vadd.f32 %v6526, %v6878
  %v6880 = vpop.f32.mrb[0].mxu0
  %v6881 = vadd.f32 %v6528, %v6880
  %v6882 = vpop.f32.mrb[0].mxu0
  %v6883 = vadd.f32 %v6530, %v6882
  %v6884 = vpop.f32.mrb[0].mxu0
  %v6885 = vadd.f32 %v6532, %v6884
  %6886 = vmatprep.mubr.bf16.mxu0 0
  %6887 = vmatmul.mubr.bf16.gmra.mrb[0].mxu0 %v2104
  %v6888 = vpop.f32.mrb[0].mxu0
  %v6889 = vadd.f32 %v6536, %v6888
  %v6890 = vpop.f32.mrb[0].mxu0
  %v6891 = vadd.f32 %v6538, %v6890
  %v6892 = vpop.f32.mrb[0].mxu0
  %v6893 = vadd.f32 %v6540, %v6892
  %v6894 = vpop.f32.mrb[0].mxu0
  %v6895 = vadd.f32 %v6542, %v6894
  %6896 = vmatprep.mubr.bf16.mxu0 0
  %6897 = vmatmul.mubr.bf16.gmra.mrb[0].mxu0 %v2107
  %v6898 = vpop.f32.mrb[0].mxu0
  %v6899 = vadd.f32 %v6546, %v6898
  %v6900 = vpop.f32.mrb[0].mxu0
  %v6901 = vadd.f32 %v6548, %v6900
  %v6902 = vpop.f32.mrb[0].mxu0
  %v6903 = vadd.f32 %v6550, %v6902
  %v6904 = vpop.f32.mrb[0].mxu0
  %v6905 = vadd.f32 %v6552, %v6904
  %6906 = vmatprep.mubr.bf16.mxu0 0
  %6907 = vmatmul.mubr.bf16.gmra.mrb[0].mxu0 %v2110
  %v6908 = vpop.f32.mrb[0].mxu0
  %v6909 = vadd.f32 %v6556, %v6908
  %v6910 = vpop.f32.mrb[0].mxu0
  %v6911 = vadd.f32 %v6558, %v6910
  %v6912 = vpop.f32.mrb[0].mxu0
  %v6913 = vadd.f32 %v6560, %v6912
  %v6914 = vpop.f32.mrb[0].mxu0
  %v6915 = vadd.f32 %v6562, %v6914
  %6916 = vmatprep.mubr.bf16.mxu0 0
  %6917 = vmatmul.mubr.bf16.gmra.mrb[0].mxu0 %v2113
  %v6918 = vpop.f32.mrb[0].mxu0
  %v6919 = vadd.f32 %v6566, %v6918
  %v6920 = vpop.f32.mrb[0].mxu0
  %v6921 = vadd.f32 %v6568, %v6920
  %v6922 = vpop.f32.mrb[0].mxu0
  %v6923 = vadd.f32 %v6570, %v6922
  %v6924 = vpop.f32.mrb[0].mxu0
  %v6925 = vadd.f32 %v6572, %v6924
  %6926 = vmatprep.mubr.bf16.mxu0 0
  %6927 = vmatmul.mubr.bf16.gmra.mrb[0].mxu0 %v2116
  %v6928 = vpop.f32.mrb[0].mxu0
  %v6929 = vadd.f32 %v6576, %v6928
  %v6930 = vpop.f32.mrb[0].mxu0
  %v6931 = vadd.f32 %v6578, %v6930
  %v6932 = vpop.f32.mrb[0].mxu0
  %v6933 = vadd.f32 %v6580, %v6932
  %v6934 = vpop.f32.mrb[0].mxu0
  %v6935 = vadd.f32 %v6582, %v6934
  %6936 = vmatprep.mubr.bf16.mxu0 0
  %6937 = vmatmul.mubr.bf16.gmra.mrb[0].mxu0 %v2119
  %v6938 = vpop.f32.mrb[0].mxu0
  %v6939 = vadd.f32 %v6586, %v6938
  %v6940 = vpop.f32.mrb[0].mxu0
  %v6941 = vadd.f32 %v6588, %v6940
  %v6942 = vpop.f32.mrb[0].mxu0
  %v6943 = vadd.f32 %v6590, %v6942
  %v6944 = vpop.f32.mrb[0].mxu0
  %v6945 = vadd.f32 %v6592, %v6944
  %6946 = vmatprep.mubr.bf16.mxu0 0
  %6947 = vmatmul.mubr.bf16.gmra.mrb[0].mxu0 %v2122
  %v6948 = vpop.f32.mrb[0].mxu0
  %v6949 = vadd.f32 %v6596, %v6948
  %v6950 = vpop.f32.mrb[0].mxu0
  %v6951 = vadd.f32 %v6598, %v6950
  %v6952 = vpop.f32.mrb[0].mxu0
  %v6953 = vadd.f32 %v6600, %v6952
  %v6954 = vpop.f32.mrb[0].mxu0
  %v6955 = vadd.f32 %v6602, %v6954
  %6956 = vmatprep.mubr.bf16.mxu0 0
  %6957 = vmatmul.mubr.bf16.gmra.mrb[0].mxu0 %v2125
  %v6958 = vpop.f32.mrb[0].mxu0
  %v6959 = vadd.f32 %v6606, %v6958
  %v6960 = vpop.f32.mrb[0].mxu0
  %v6961 = vadd.f32 %v6608, %v6960
  %v6962 = vpop.f32.mrb[0].mxu0
  %v6963 = vadd.f32 %v6610, %v6962
  %v6964 = vpop.f32.mrb[0].mxu0
  %v6965 = vadd.f32 %v6612, %v6964
  %6966 = vmatprep.mubr.bf16.mxu0 0
  %6967 = vmatmul.mubr.bf16.gmra.mrb[0].mxu0 %v2128
  %v6968 = vpop.f32.mrb[0].mxu0
  %v6969 = vadd.f32 %v6616, %v6968
  %v6970 = vpop.f32.mrb[0].mxu0
  %v6971 = vadd.f32 %v6618, %v6970
  %v6972 = vpop.f32.mrb[0].mxu0
  %v6973 = vadd.f32 %v6620, %v6972
  %v6974 = vpop.f32.mrb[0].mxu0
  %v6975 = vadd.f32 %v6622, %v6974
  %6976 = vmatprep.mubr.bf16.mxu0 0
  %6977 = vmatmul.mubr.bf16.gmra.mrb[0].mxu0 %v2131
  %v6978 = vpop.f32.mrb[0].mxu0
  %v6979 = vadd.f32 %v6626, %v6978
  %v6980 = vpop.f32.mrb[0].mxu0
  %v6981 = vadd.f32 %v6628, %v6980
  %v6982 = vpop.f32.mrb[0].mxu0
  %v6983 = vadd.f32 %v6630, %v6982
  %v6984 = vpop.f32.mrb[0].mxu0
  %v6985 = vadd.f32 %v6632, %v6984
  %6986 = vmatprep.mubr.bf16.mxu0 0
  %6987 = vmatmul.mubr.bf16.gmra.mrb[0].mxu0 %v2134
  %v6988 = vpop.f32.mrb[0].mxu0
  %v6989 = vadd.f32 %v6636, %v6988
  %v6990 = vpop.f32.mrb[0].mxu0
  %v6991 = vadd.f32 %v6638, %v6990
  %v6992 = vpop.f32.mrb[0].mxu0
  %v6993 = vadd.f32 %v6640, %v6992
  %v6994 = vpop.f32.mrb[0].mxu0
  %v6995 = vadd.f32 %v6642, %v6994
  %6996 = vdwg.mxu0
  %s6997 = scalar_lea.vmem %s7, 2
  %v6998 = vld [vmem:[%s6997] sm:$0x3]
  %v7000 = vlaneseq
  %v7001 = vshrl.u32 %v7000, 7
  %v7002 = vsub.s32 0, %v7001
  %v7003 = vrot.slane %v6998, %v7002
  %v7004 = vlaneseq
  %v7005 = vshrl.u32 %v7004, 7
  %v7006 = vsub.s32 1, %v7005
  %v7007 = vrot.slane %v6998, %v7006
  %v7010 = vadd.f32 %v6679, %v7003
  %v7011 = vadd.f32 %v6681, %v7007
  %v7012 = vadd.f32 %v6683, %v7003
  %v7013 = vadd.f32 %v6685, %v7007
  %v7014 = vadd.f32 %v6689, %v7003
  %v7015 = vadd.f32 %v6691, %v7007
  %v7016 = vadd.f32 %v6693, %v7003
  %v7017 = vadd.f32 %v6695, %v7007
  %v7018 = vadd.f32 %v6699, %v7003
  %v7019 = vadd.f32 %v6701, %v7007
  %v7020 = vadd.f32 %v6703, %v7003
  %v7021 = vadd.f32 %v6705, %v7007
  %v7022 = vadd.f32 %v6709, %v7003
  %v7023 = vadd.f32 %v6711, %v7007
  %v7024 = vadd.f32 %v6713, %v7003
  %v7025 = vadd.f32 %v6715, %v7007
  %v7026 = vadd.f32 %v6719, %v7003
  %v7027 = vadd.f32 %v6721, %v7007
  %v7028 = vadd.f32 %v6723, %v7003
  %v7029 = vadd.f32 %v6725, %v7007
  %v7030 = vadd.f32 %v6729, %v7003
  %v7031 = vadd.f32 %v6731, %v7007
  %v7032 = vadd.f32 %v6733, %v7003
  %v7033 = vadd.f32 %v6735, %v7007
  %v7034 = vadd.f32 %v6739, %v7003
  %v7035 = vadd.f32 %v6741, %v7007
  %v7036 = vadd.f32 %v6743, %v7003
  %v7037 = vadd.f32 %v6745, %v7007
  %v7038 = vadd.f32 %v6749, %v7003
  %v7039 = vadd.f32 %v6751, %v7007
  %v7040 = vadd.f32 %v6753, %v7003
  %v7041 = vadd.f32 %v6755, %v7007
  %v7042 = vadd.f32 %v6759, %v7003
  %v7043 = vadd.f32 %v6761, %v7007
  %v7044 = vadd.f32 %v6763, %v7003
  %v7045 = vadd.f32 %v6765, %v7007
  %v7046 = vadd.f32 %v6769, %v7003
  %v7047 = vadd.f32 %v6771, %v7007
  %v7048 = vadd.f32 %v6773, %v7003
  %v7049 = vadd.f32 %v6775, %v7007
  %v7050 = vadd.f32 %v6779, %v7003
  %v7051 = vadd.f32 %v6781, %v7007
  %v7052 = vadd.f32 %v6783, %v7003
  %v7053 = vadd.f32 %v6785, %v7007
  %v7054 = vadd.f32 %v6789, %v7003
  %v7055 = vadd.f32 %v6791, %v7007
  %v7056 = vadd.f32 %v6793, %v7003
  %v7057 = vadd.f32 %v6795, %v7007
  %v7058 = vadd.f32 %v6799, %v7003
  %v7059 = vadd.f32 %v6801, %v7007
  %v7060 = vadd.f32 %v6803, %v7003
  %v7061 = vadd.f32 %v6805, %v7007
  %v7062 = vadd.f32 %v6809, %v7003
  %v7063 = vadd.f32 %v6811, %v7007
  %v7064 = vadd.f32 %v6813, %v7003
  %v7065 = vadd.f32 %v6815, %v7007
  %v7066 = vadd.f32 %v6819, %v7003
  %v7067 = vadd.f32 %v6821, %v7007
  %v7068 = vadd.f32 %v6823, %v7003
  %v7069 = vadd.f32 %v6825, %v7007
  %v7070 = vadd.f32 %v6829, %v7003
  %v7071 = vadd.f32 %v6831, %v7007
  %v7072 = vadd.f32 %v6833, %v7003
  %v7073 = vadd.f32 %v6835, %v7007
  %v7074 = vadd.f32 %v6839, %v7003
  %v7075 = vadd.f32 %v6841, %v7007
  %v7076 = vadd.f32 %v6843, %v7003
  %v7077 = vadd.f32 %v6845, %v7007
  %v7078 = vadd.f32 %v6849, %v7003
  %v7079 = vadd.f32 %v6851, %v7007
  %v7080 = vadd.f32 %v6853, %v7003
  %v7081 = vadd.f32 %v6855, %v7007
  %v7082 = vadd.f32 %v6859, %v7003
  %v7083 = vadd.f32 %v6861, %v7007
  %v7084 = vadd.f32 %v6863, %v7003
  %v7085 = vadd.f32 %v6865, %v7007
  %v7086 = vadd.f32 %v6869, %v7003
  %v7087 = vadd.f32 %v6871, %v7007
  %v7088 = vadd.f32 %v6873, %v7003
  %v7089 = vadd.f32 %v6875, %v7007
  %v7090 = vadd.f32 %v6879, %v7003
  %v7091 = vadd.f32 %v6881, %v7007
  %v7092 = vadd.f32 %v6883, %v7003
  %v7093 = vadd.f32 %v6885, %v7007
  %v7094 = vadd.f32 %v6889, %v7003
  %v7095 = vadd.f32 %v6891, %v7007
  %v7096 = vadd.f32 %v6893, %v7003
  %v7097 = vadd.f32 %v6895, %v7007
  %v7098 = vadd.f32 %v6899, %v7003
  %v7099 = vadd.f32 %v6901, %v7007
  %v7100 = vadd.f32 %v6903, %v7003
  %v7101 = vadd.f32 %v6905, %v7007
  %v7102 = vadd.f32 %v6909, %v7003
  %v7103 = vadd.f32 %v6911, %v7007
  %v7104 = vadd.f32 %v6913, %v7003
  %v7105 = vadd.f32 %v6915, %v7007
  %v7106 = vadd.f32 %v6919, %v7003
  %v7107 = vadd.f32 %v6921, %v7007
  %v7108 = vadd.f32 %v6923, %v7003
  %v7109 = vadd.f32 %v6925, %v7007
  %v7110 = vadd.f32 %v6929, %v7003
  %v7111 = vadd.f32 %v6931, %v7007
  %v7112 = vadd.f32 %v6933, %v7003
  %v7113 = vadd.f32 %v6935, %v7007
  %v7114 = vadd.f32 %v6939, %v7003
  %v7115 = vadd.f32 %v6941, %v7007
  %v7116 = vadd.f32 %v6943, %v7003
  %v7117 = vadd.f32 %v6945, %v7007
  %v7118 = vadd.f32 %v6949, %v7003
  %v7119 = vadd.f32 %v6951, %v7007
  %v7120 = vadd.f32 %v6953, %v7003
  %v7121 = vadd.f32 %v6955, %v7007
  %v7122 = vadd.f32 %v6959, %v7003
  %v7123 = vadd.f32 %v6961, %v7007
  %v7124 = vadd.f32 %v6963, %v7003
  %v7125 = vadd.f32 %v6965, %v7007
  %v7126 = vadd.f32 %v6969, %v7003
  %v7127 = vadd.f32 %v6971, %v7007
  %v7128 = vadd.f32 %v6973, %v7003
  %v7129 = vadd.f32 %v6975, %v7007
  %v7130 = vadd.f32 %v6979, %v7003
  %v7131 = vadd.f32 %v6981, %v7007
  %v7132 = vadd.f32 %v6983, %v7003
  %v7133 = vadd.f32 %v6985, %v7007
  %v7134 = vadd.f32 %v6989, %v7003
  %v7135 = vadd.f32 %v6991, %v7007
  %v7136 = vadd.f32 %v6993, %v7003
  %v7137 = vadd.f32 %v6995, %v7007
  %v7138 = vpack.c.bf16 %v6145, %v6142
  %v7139 = vpack.c.bf16 %v6153, %v6150
  %v7140 = vpack.c.bf16 %v6161, %v6158
  %v7141 = vpack.c.bf16 %v6169, %v6166
  %7142 = vmatprep.subr.bf16.mxu0 0
  %7143 = vmatpush1.bf16.msra.mxu0 %v7138
  %7144 = vmatprep.subr.bf16.mxu0 0
  %7145 = vmatpush1.bf16.msra.mxu0 %v7139
  %7146 = vmatprep.subr.bf16.mxu0 0
  %7147 = vmatpush1.bf16.msra.mxu0 %v7140
  %7148 = vmatprep.subr.bf16.mxu0 0
  %7149 = vmatpush1.bf16.msra.mxu0 %v7141
  %7150 = vmatprep.subr.bf16.mxu0 0
  %7151 = vmatpush1.bf16.msra.mxu0 0
  %7152 = vmatprep.subr.bf16.mxu0 0
  %7153 = vmatpush1.bf16.msra.mxu0 0
  %7154 = vmatprep.subr.bf16.mxu0 0
  %7155 = vmatpush1.bf16.msra.mxu0 0
  %7156 = vmatprep.subr.bf16.mxu0 0
  %7157 = vmatpush1.bf16.msra.mxu0 0
  %7158 = vmatprep.subr.bf16.mxu0 0
  %7159 = vmatpush1.bf16.msra.mxu0 0
  %7160 = vmatprep.subr.bf16.mxu0 0
  %7161 = vmatpush1.bf16.msra.mxu0 0
  %7162 = vmatprep.subr.bf16.mxu0 0
  %7163 = vmatpush1.bf16.msra.mxu0 0
  %7164 = vmatprep.subr.bf16.mxu0 0
  %7165 = vmatpush1.bf16.msra.mxu0 0
  %7166 = vmatprep.subr.bf16.mxu0 0
  %7167 = vmatpush1.bf16.msra.mxu0 0
  %7168 = vmatprep.subr.bf16.mxu0 0
  %7169 = vmatpush1.bf16.msra.mxu0 0
  %7170 = vmatprep.subr.bf16.mxu0 0
  %7171 = vmatpush1.bf16.msra.mxu0 0
  %7172 = vmatprep.subr.bf16.mxu0 0
  %7173 = vmatpush1.bf16.msra.mxu0 0
  %7174 = vmatprep.mubr.bf16.mxu0 0
  %7175 = vmatmul.mubr.bf16.gmra.mrb[0].mxu0 %v2634
  %v7176 = vpop.f32.mrb[0].mxu0
  %v7177 = vadd.f32 0.0, %v7176
  %v7178 = vpop.f32.mrb[0].mxu0
  %v7179 = vpop.f32.mrb[0].mxu0
  %v7180 = vadd.f32 0.0, %v7179
  %v7181 = vpop.f32.mrb[0].mxu0
  %7182 = vmatprep.mubr.bf16.mxu0 0
  %7183 = vmatmul.mubr.bf16.gmra.mrb[0].mxu0 %v2637
  %v7184 = vpop.f32.mrb[0].mxu0
  %v7185 = vadd.f32 0.0, %v7184
  %v7186 = vpop.f32.mrb[0].mxu0
  %v7187 = vpop.f32.mrb[0].mxu0
  %v7188 = vadd.f32 0.0, %v7187
  %v7189 = vpop.f32.mrb[0].mxu0
  %7190 = vmatprep.mubr.bf16.mxu0 0
  %7191 = vmatmul.mubr.bf16.gmra.mrb[0].mxu0 %v2640
  %v7192 = vpop.f32.mrb[0].mxu0
  %v7193 = vadd.f32 0.0, %v7192
  %v7194 = vpop.f32.mrb[0].mxu0
  %v7195 = vpop.f32.mrb[0].mxu0
  %v7196 = vadd.f32 0.0, %v7195
  %v7197 = vpop.f32.mrb[0].mxu0
  %7198 = vmatprep.mubr.bf16.mxu0 0
  %7199 = vmatmul.mubr.bf16.gmra.mrb[0].mxu0 %v2643
  %v7200 = vpop.f32.mrb[0].mxu0
  %v7201 = vadd.f32 0.0, %v7200
  %v7202 = vpop.f32.mrb[0].mxu0
  %v7203 = vpop.f32.mrb[0].mxu0
  %v7204 = vadd.f32 0.0, %v7203
  %v7205 = vpop.f32.mrb[0].mxu0
  %7206 = vmatprep.mubr.bf16.mxu0 0
  %7207 = vmatmul.mubr.bf16.gmra.mrb[0].mxu0 %v2646
  %v7208 = vpop.f32.mrb[0].mxu0
  %v7209 = vadd.f32 0.0, %v7208
  %v7210 = vpop.f32.mrb[0].mxu0
  %v7211 = vpop.f32.mrb[0].mxu0
  %v7212 = vadd.f32 0.0, %v7211
  %v7213 = vpop.f32.mrb[0].mxu0
  %7214 = vmatprep.mubr.bf16.mxu0 0
  %7215 = vmatmul.mubr.bf16.gmra.mrb[0].mxu0 %v2649
  %v7216 = vpop.f32.mrb[0].mxu0
  %v7217 = vadd.f32 0.0, %v7216
  %v7218 = vpop.f32.mrb[0].mxu0
  %v7219 = vpop.f32.mrb[0].mxu0
  %v7220 = vadd.f32 0.0, %v7219
  %v7221 = vpop.f32.mrb[0].mxu0
  %7222 = vmatprep.mubr.bf16.mxu0 0
  %7223 = vmatmul.mubr.bf16.gmra.mrb[0].mxu0 %v2652
  %v7224 = vpop.f32.mrb[0].mxu0
  %v7225 = vadd.f32 0.0, %v7224
  %v7226 = vpop.f32.mrb[0].mxu0
  %v7227 = vpop.f32.mrb[0].mxu0
  %v7228 = vadd.f32 0.0, %v7227
  %v7229 = vpop.f32.mrb[0].mxu0
  %7230 = vmatprep.mubr.bf16.mxu0 0
  %7231 = vmatmul.mubr.bf16.gmra.mrb[0].mxu0 %v2655
  %v7232 = vpop.f32.mrb[0].mxu0
  %v7233 = vadd.f32 0.0, %v7232
  %v7234 = vpop.f32.mrb[0].mxu0
  %v7235 = vpop.f32.mrb[0].mxu0
  %v7236 = vadd.f32 0.0, %v7235
  %v7237 = vpop.f32.mrb[0].mxu0
  %7238 = vmatprep.mubr.bf16.mxu0 0
  %7239 = vmatmul.mubr.bf16.gmra.mrb[0].mxu0 %v2658
  %v7240 = vpop.f32.mrb[0].mxu0
  %v7241 = vadd.f32 0.0, %v7240
  %v7242 = vpop.f32.mrb[0].mxu0
  %v7243 = vpop.f32.mrb[0].mxu0
  %v7244 = vadd.f32 0.0, %v7243
  %v7245 = vpop.f32.mrb[0].mxu0
  %7246 = vmatprep.mubr.bf16.mxu0 0
  %7247 = vmatmul.mubr.bf16.gmra.mrb[0].mxu0 %v2661
  %v7248 = vpop.f32.mrb[0].mxu0
  %v7249 = vadd.f32 0.0, %v7248
  %v7250 = vpop.f32.mrb[0].mxu0
  %v7251 = vpop.f32.mrb[0].mxu0
  %v7252 = vadd.f32 0.0, %v7251
  %v7253 = vpop.f32.mrb[0].mxu0
  %7254 = vmatprep.mubr.bf16.mxu0 0
  %7255 = vmatmul.mubr.bf16.gmra.mrb[0].mxu0 %v2664
  %v7256 = vpop.f32.mrb[0].mxu0
  %v7257 = vadd.f32 0.0, %v7256
  %v7258 = vpop.f32.mrb[0].mxu0
  %v7259 = vpop.f32.mrb[0].mxu0
  %v7260 = vadd.f32 0.0, %v7259
  %v7261 = vpop.f32.mrb[0].mxu0
  %7262 = vmatprep.mubr.bf16.mxu0 0
  %7263 = vmatmul.mubr.bf16.gmra.mrb[0].mxu0 %v2667
  %v7264 = vpop.f32.mrb[0].mxu0
  %v7265 = vadd.f32 0.0, %v7264
  %v7266 = vpop.f32.mrb[0].mxu0
  %v7267 = vpop.f32.mrb[0].mxu0
  %v7268 = vadd.f32 0.0, %v7267
  %v7269 = vpop.f32.mrb[0].mxu0
  %7270 = vmatprep.mubr.bf16.mxu0 0
  %7271 = vmatmul.mubr.bf16.gmra.mrb[0].mxu0 %v2670
  %v7272 = vpop.f32.mrb[0].mxu0
  %v7273 = vadd.f32 0.0, %v7272
  %v7274 = vpop.f32.mrb[0].mxu0
  %v7275 = vpop.f32.mrb[0].mxu0
  %v7276 = vadd.f32 0.0, %v7275
  %v7277 = vpop.f32.mrb[0].mxu0
  %7278 = vmatprep.mubr.bf16.mxu0 0
  %7279 = vmatmul.mubr.bf16.gmra.mrb[0].mxu0 %v2673
  %v7280 = vpop.f32.mrb[0].mxu0
  %v7281 = vadd.f32 0.0, %v7280
  %v7282 = vpop.f32.mrb[0].mxu0
  %v7283 = vpop.f32.mrb[0].mxu0
  %v7284 = vadd.f32 0.0, %v7283
  %v7285 = vpop.f32.mrb[0].mxu0
  %7286 = vmatprep.mubr.bf16.mxu0 0
  %7287 = vmatmul.mubr.bf16.gmra.mrb[0].mxu0 %v2676
  %v7288 = vpop.f32.mrb[0].mxu0
  %v7289 = vadd.f32 0.0, %v7288
  %v7290 = vpop.f32.mrb[0].mxu0
  %v7291 = vpop.f32.mrb[0].mxu0
  %v7292 = vadd.f32 0.0, %v7291
  %v7293 = vpop.f32.mrb[0].mxu0
  %7294 = vmatprep.mubr.bf16.mxu0 0
  %7295 = vmatmul.mubr.bf16.gmra.mrb[0].mxu0 %v2679
  %v7296 = vpop.f32.mrb[0].mxu0
  %v7297 = vadd.f32 0.0, %v7296
  %v7298 = vpop.f32.mrb[0].mxu0
  %v7299 = vpop.f32.mrb[0].mxu0
  %v7300 = vadd.f32 0.0, %v7299
  %v7301 = vpop.f32.mrb[0].mxu0
  %7302 = vmatprep.mubr.bf16.mxu0 0
  %7303 = vmatmul.mubr.bf16.gmra.mrb[0].mxu0 %v2682
  %v7304 = vpop.f32.mrb[0].mxu0
  %v7305 = vadd.f32 0.0, %v7304
  %v7306 = vpop.f32.mrb[0].mxu0
  %v7307 = vpop.f32.mrb[0].mxu0
  %v7308 = vadd.f32 0.0, %v7307
  %v7309 = vpop.f32.mrb[0].mxu0
  %7310 = vmatprep.mubr.bf16.mxu0 0
  %7311 = vmatmul.mubr.bf16.gmra.mrb[0].mxu0 %v2685
  %v7312 = vpop.f32.mrb[0].mxu0
  %v7313 = vadd.f32 0.0, %v7312
  %v7314 = vpop.f32.mrb[0].mxu0
  %v7315 = vpop.f32.mrb[0].mxu0
  %v7316 = vadd.f32 0.0, %v7315
  %v7317 = vpop.f32.mrb[0].mxu0
  %7318 = vmatprep.mubr.bf16.mxu0 0
  %7319 = vmatmul.mubr.bf16.gmra.mrb[0].mxu0 %v2688
  %v7320 = vpop.f32.mrb[0].mxu0
  %v7321 = vadd.f32 0.0, %v7320
  %v7322 = vpop.f32.mrb[0].mxu0
  %v7323 = vpop.f32.mrb[0].mxu0
  %v7324 = vadd.f32 0.0, %v7323
  %v7325 = vpop.f32.mrb[0].mxu0
  %7326 = vmatprep.mubr.bf16.mxu0 0
  %7327 = vmatmul.mubr.bf16.gmra.mrb[0].mxu0 %v2691
  %v7328 = vpop.f32.mrb[0].mxu0
  %v7329 = vadd.f32 0.0, %v7328
  %v7330 = vpop.f32.mrb[0].mxu0
  %v7331 = vpop.f32.mrb[0].mxu0
  %v7332 = vadd.f32 0.0, %v7331
  %v7333 = vpop.f32.mrb[0].mxu0
  %7334 = vmatprep.mubr.bf16.mxu0 0
  %7335 = vmatmul.mubr.bf16.gmra.mrb[0].mxu0 %v2694
  %v7336 = vpop.f32.mrb[0].mxu0
  %v7337 = vadd.f32 0.0, %v7336
  %v7338 = vpop.f32.mrb[0].mxu0
  %v7339 = vpop.f32.mrb[0].mxu0
  %v7340 = vadd.f32 0.0, %v7339
  %v7341 = vpop.f32.mrb[0].mxu0
  %7342 = vmatprep.mubr.bf16.mxu0 0
  %7343 = vmatmul.mubr.bf16.gmra.mrb[0].mxu0 %v2697
  %v7344 = vpop.f32.mrb[0].mxu0
  %v7345 = vadd.f32 0.0, %v7344
  %v7346 = vpop.f32.mrb[0].mxu0
  %v7347 = vpop.f32.mrb[0].mxu0
  %v7348 = vadd.f32 0.0, %v7347
  %v7349 = vpop.f32.mrb[0].mxu0
  %7350 = vmatprep.mubr.bf16.mxu0 0
  %7351 = vmatmul.mubr.bf16.gmra.mrb[0].mxu0 %v2700
  %v7352 = vpop.f32.mrb[0].mxu0
  %v7353 = vadd.f32 0.0, %v7352
  %v7354 = vpop.f32.mrb[0].mxu0
  %v7355 = vpop.f32.mrb[0].mxu0
  %v7356 = vadd.f32 0.0, %v7355
  %v7357 = vpop.f32.mrb[0].mxu0
  %7358 = vmatprep.mubr.bf16.mxu0 0
  %7359 = vmatmul.mubr.bf16.gmra.mrb[0].mxu0 %v2703
  %v7360 = vpop.f32.mrb[0].mxu0
  %v7361 = vadd.f32 0.0, %v7360
  %v7362 = vpop.f32.mrb[0].mxu0
  %v7363 = vpop.f32.mrb[0].mxu0
  %v7364 = vadd.f32 0.0, %v7363
  %v7365 = vpop.f32.mrb[0].mxu0
  %7366 = vmatprep.mubr.bf16.mxu0 0
  %7367 = vmatmul.mubr.bf16.gmra.mrb[0].mxu0 %v2706
  %v7368 = vpop.f32.mrb[0].mxu0
  %v7369 = vadd.f32 0.0, %v7368
  %v7370 = vpop.f32.mrb[0].mxu0
  %v7371 = vpop.f32.mrb[0].mxu0
  %v7372 = vadd.f32 0.0, %v7371
  %v7373 = vpop.f32.mrb[0].mxu0
  %7374 = vmatprep.mubr.bf16.mxu0 0
  %7375 = vmatmul.mubr.bf16.gmra.mrb[0].mxu0 %v2709
  %v7376 = vpop.f32.mrb[0].mxu0
  %v7377 = vadd.f32 0.0, %v7376
  %v7378 = vpop.f32.mrb[0].mxu0
  %v7379 = vpop.f32.mrb[0].mxu0
  %v7380 = vadd.f32 0.0, %v7379
  %v7381 = vpop.f32.mrb[0].mxu0
  %7382 = vmatprep.mubr.bf16.mxu0 0
  %7383 = vmatmul.mubr.bf16.gmra.mrb[0].mxu0 %v2712
  %v7384 = vpop.f32.mrb[0].mxu0
  %v7385 = vadd.f32 0.0, %v7384
  %v7386 = vpop.f32.mrb[0].mxu0
  %v7387 = vpop.f32.mrb[0].mxu0
  %v7388 = vadd.f32 0.0, %v7387
  %v7389 = vpop.f32.mrb[0].mxu0
  %7390 = vmatprep.mubr.bf16.mxu0 0
  %7391 = vmatmul.mubr.bf16.gmra.mrb[0].mxu0 %v2715
  %v7392 = vpop.f32.mrb[0].mxu0
  %v7393 = vadd.f32 0.0, %v7392
  %v7394 = vpop.f32.mrb[0].mxu0
  %v7395 = vpop.f32.mrb[0].mxu0
  %v7396 = vadd.f32 0.0, %v7395
  %v7397 = vpop.f32.mrb[0].mxu0
  %7398 = vmatprep.mubr.bf16.mxu0 0
  %7399 = vmatmul.mubr.bf16.gmra.mrb[0].mxu0 %v2718
  %v7400 = vpop.f32.mrb[0].mxu0
  %v7401 = vadd.f32 0.0, %v7400
  %v7402 = vpop.f32.mrb[0].mxu0
  %v7403 = vpop.f32.mrb[0].mxu0
  %v7404 = vadd.f32 0.0, %v7403
  %v7405 = vpop.f32.mrb[0].mxu0
  %7406 = vmatprep.mubr.bf16.mxu0 0
  %7407 = vmatmul.mubr.bf16.gmra.mrb[0].mxu0 %v2721
  %v7408 = vpop.f32.mrb[0].mxu0
  %v7409 = vadd.f32 0.0, %v7408
  %v7410 = vpop.f32.mrb[0].mxu0
  %v7411 = vpop.f32.mrb[0].mxu0
  %v7412 = vadd.f32 0.0, %v7411
  %v7413 = vpop.f32.mrb[0].mxu0
  %7414 = vmatprep.mubr.bf16.mxu0 0
  %7415 = vmatmul.mubr.bf16.gmra.mrb[0].mxu0 %v2724
  %v7416 = vpop.f32.mrb[0].mxu0
  %v7417 = vadd.f32 0.0, %v7416
  %v7418 = vpop.f32.mrb[0].mxu0
  %v7419 = vpop.f32.mrb[0].mxu0
  %v7420 = vadd.f32 0.0, %v7419
  %v7421 = vpop.f32.mrb[0].mxu0
  %7422 = vmatprep.mubr.bf16.mxu0 0
  %7423 = vmatmul.mubr.bf16.gmra.mrb[0].mxu0 %v2727
  %v7424 = vpop.f32.mrb[0].mxu0
  %v7425 = vadd.f32 0.0, %v7424
  %v7426 = vpop.f32.mrb[0].mxu0
  %v7427 = vpop.f32.mrb[0].mxu0
  %v7428 = vadd.f32 0.0, %v7427
  %v7429 = vpop.f32.mrb[0].mxu0
  %7430 = vdwg.mxu0
  %v7431 = vmul.f32 %v7177, %v7011
  %v7432 = vmul.f32 %v7180, %v7013
  %v7433 = vmul.f32 %v7185, %v7015
  %v7434 = vmul.f32 %v7188, %v7017
  %v7435 = vmul.f32 %v7193, %v7019
  %v7436 = vmul.f32 %v7196, %v7021
  %v7437 = vmul.f32 %v7201, %v7023
  %v7438 = vmul.f32 %v7204, %v7025
  %v7439 = vmul.f32 %v7209, %v7027
  %v7440 = vmul.f32 %v7212, %v7029
  %v7441 = vmul.f32 %v7217, %v7031
  %v7442 = vmul.f32 %v7220, %v7033
  %v7443 = vmul.f32 %v7225, %v7035
  %v7444 = vmul.f32 %v7228, %v7037
  %v7445 = vmul.f32 %v7233, %v7039
  %v7446 = vmul.f32 %v7236, %v7041
  %v7447 = vmul.f32 %v7241, %v7043
  %v7448 = vmul.f32 %v7244, %v7045
  %v7449 = vmul.f32 %v7249, %v7047
  %v7450 = vmul.f32 %v7252, %v7049
  %v7451 = vmul.f32 %v7257, %v7051
  %v7452 = vmul.f32 %v7260, %v7053
  %v7453 = vmul.f32 %v7265, %v7055
  %v7454 = vmul.f32 %v7268, %v7057
  %v7455 = vmul.f32 %v7273, %v7059
  %v7456 = vmul.f32 %v7276, %v7061
  %v7457 = vmul.f32 %v7281, %v7063
  %v7458 = vmul.f32 %v7284, %v7065
  %v7459 = vmul.f32 %v7289, %v7067
  %v7460 = vmul.f32 %v7292, %v7069
  %v7461 = vmul.f32 %v7297, %v7071
  %v7462 = vmul.f32 %v7300, %v7073
  %v7463 = vmul.f32 %v7305, %v7075
  %v7464 = vmul.f32 %v7308, %v7077
  %v7465 = vmul.f32 %v7313, %v7079
  %v7466 = vmul.f32 %v7316, %v7081
  %v7467 = vmul.f32 %v7321, %v7083
  %v7468 = vmul.f32 %v7324, %v7085
  %v7469 = vmul.f32 %v7329, %v7087
  %v7470 = vmul.f32 %v7332, %v7089
  %v7471 = vmul.f32 %v7337, %v7091
  %v7472 = vmul.f32 %v7340, %v7093
  %v7473 = vmul.f32 %v7345, %v7095
  %v7474 = vmul.f32 %v7348, %v7097
  %v7475 = vmul.f32 %v7353, %v7099
  %v7476 = vmul.f32 %v7356, %v7101
  %v7477 = vmul.f32 %v7361, %v7103
  %v7478 = vmul.f32 %v7364, %v7105
  %v7479 = vmul.f32 %v7369, %v7107
  %v7480 = vmul.f32 %v7372, %v7109
  %v7481 = vmul.f32 %v7377, %v7111
  %v7482 = vmul.f32 %v7380, %v7113
  %v7483 = vmul.f32 %v7385, %v7115
  %v7484 = vmul.f32 %v7388, %v7117
  %v7485 = vmul.f32 %v7393, %v7119
  %v7486 = vmul.f32 %v7396, %v7121
  %v7487 = vmul.f32 %v7401, %v7123
  %v7488 = vmul.f32 %v7404, %v7125
  %v7489 = vmul.f32 %v7409, %v7127
  %v7490 = vmul.f32 %v7412, %v7129
  %v7491 = vmul.f32 %v7417, %v7131
  %v7492 = vmul.f32 %v7420, %v7133
  %v7493 = vmul.f32 %v7425, %v7135
  %v7494 = vmul.f32 %v7428, %v7137
  %v7495 = vpack.c.bf16 %v7432, %v7431
  %v7496 = vpack.c.bf16 %v7434, %v7433
  %v7497 = vpack.c.bf16 %v7436, %v7435
  %v7498 = vpack.c.bf16 %v7438, %v7437
  %v7499 = vpack.c.bf16 %v7440, %v7439
  %v7500 = vpack.c.bf16 %v7442, %v7441
  %v7501 = vpack.c.bf16 %v7444, %v7443
  %v7502 = vpack.c.bf16 %v7446, %v7445
  %v7503 = vpack.c.bf16 %v7448, %v7447
  %v7504 = vpack.c.bf16 %v7450, %v7449
  %v7505 = vpack.c.bf16 %v7452, %v7451
  %v7506 = vpack.c.bf16 %v7454, %v7453
  %v7507 = vpack.c.bf16 %v7456, %v7455
  %v7508 = vpack.c.bf16 %v7458, %v7457
  %v7509 = vpack.c.bf16 %v7460, %v7459
  %v7510 = vpack.c.bf16 %v7462, %v7461
  %v7511 = vpack.c.bf16 %v7464, %v7463
  %v7512 = vpack.c.bf16 %v7466, %v7465
  %v7513 = vpack.c.bf16 %v7468, %v7467
  %v7514 = vpack.c.bf16 %v7470, %v7469
  %v7515 = vpack.c.bf16 %v7472, %v7471
  %v7516 = vpack.c.bf16 %v7474, %v7473
  %v7517 = vpack.c.bf16 %v7476, %v7475
  %v7518 = vpack.c.bf16 %v7478, %v7477
  %v7519 = vpack.c.bf16 %v7480, %v7479
  %v7520 = vpack.c.bf16 %v7482, %v7481
  %v7521 = vpack.c.bf16 %v7484, %v7483
  %v7522 = vpack.c.bf16 %v7486, %v7485
  %v7523 = vpack.c.bf16 %v7488, %v7487
  %v7524 = vpack.c.bf16 %v7490, %v7489
  %v7525 = vpack.c.bf16 %v7492, %v7491
  %v7526 = vpack.c.bf16 %v7494, %v7493
  %v7528 = vsel %vm2039, %v7495, 0
  %v7531 = vsel %vm2039, %v7496, 0
  %v7534 = vsel %vm2039, %v7497, 0
  %v7537 = vsel %vm2039, %v7498, 0
  %v7540 = vsel %vm2039, %v7499, 0
  %v7543 = vsel %vm2039, %v7500, 0
  %v7546 = vsel %vm2039, %v7501, 0
  %v7549 = vsel %vm2039, %v7502, 0
  %v7552 = vsel %vm2039, %v7503, 0
  %v7555 = vsel %vm2039, %v7504, 0
  %v7558 = vsel %vm2039, %v7505, 0
  %v7561 = vsel %vm2039, %v7506, 0
  %v7564 = vsel %vm2039, %v7507, 0
  %v7567 = vsel %vm2039, %v7508, 0
  %v7570 = vsel %vm2039, %v7509, 0
  %v7573 = vsel %vm2039, %v7510, 0
  %v7576 = vsel %vm2039, %v7511, 0
  %v7579 = vsel %vm2039, %v7512, 0
  %v7582 = vsel %vm2039, %v7513, 0
  %v7585 = vsel %vm2039, %v7514, 0
  %v7588 = vsel %vm2039, %v7515, 0
  %v7591 = vsel %vm2039, %v7516, 0
  %v7594 = vsel %vm2039, %v7517, 0
  %v7597 = vsel %vm2039, %v7518, 0
  %v7600 = vsel %vm2039, %v7519, 0
  %v7603 = vsel %vm2039, %v7520, 0
  %v7606 = vsel %vm2039, %v7521, 0
  %v7609 = vsel %vm2039, %v7522, 0
  %v7612 = vsel %vm2039, %v7523, 0
  %v7615 = vsel %vm2039, %v7524, 0
  %v7618 = vsel %vm2039, %v7525, 0
  %v7621 = vsel %vm2039, %v7526, 0
  %7623 = vmatprep.subr.bf16.mxu0 0
  %7624 = vmatpush1.bf16.msra.mxu0 %v1196
  %7625 = vmatprep.subr.bf16.mxu0 0
  %7626 = vmatpush1.bf16.msra.mxu0 %v1197
  %7627 = vmatprep.subr.bf16.mxu0 0
  %7628 = vmatpush1.bf16.msra.mxu0 %v1198
  %7629 = vmatprep.subr.bf16.mxu0 0
  %7630 = vmatpush1.bf16.msra.mxu0 %v1199
  %7631 = vmatprep.subr.bf16.mxu0 0
  %7632 = vmatpush1.bf16.msra.mxu0 0
  %7633 = vmatprep.subr.bf16.mxu0 0
  %7634 = vmatpush1.bf16.msra.mxu0 0
  %7635 = vmatprep.subr.bf16.mxu0 0
  %7636 = vmatpush1.bf16.msra.mxu0 0
  %7637 = vmatprep.subr.bf16.mxu0 0
  %7638 = vmatpush1.bf16.msra.mxu0 0
  %7639 = vmatprep.subr.bf16.mxu0 0
  %7640 = vmatpush1.bf16.msra.mxu0 0
  %7641 = vmatprep.subr.bf16.mxu0 0
  %7642 = vmatpush1.bf16.msra.mxu0 0
  %7643 = vmatprep.subr.bf16.mxu0 0
  %7644 = vmatpush1.bf16.msra.mxu0 0
  %7645 = vmatprep.subr.bf16.mxu0 0
  %7646 = vmatpush1.bf16.msra.mxu0 0
  %7647 = vmatprep.subr.bf16.mxu0 0
  %7648 = vmatpush1.bf16.msra.mxu0 0
  %7649 = vmatprep.subr.bf16.mxu0 0
  %7650 = vmatpush1.bf16.msra.mxu0 0
  %7651 = vmatprep.subr.bf16.mxu0 0
  %7652 = vmatpush1.bf16.msra.mxu0 0
  %7653 = vmatprep.subr.bf16.mxu0 0
  %7654 = vmatpush1.bf16.msra.mxu0 0
  %7655 = vmatprep.mubr.bf16.mxu0 0
  %7656 = vmatmul.mubr.bf16.gmra.mrb[0].mxu0 %v7528
  %v7657 = vpop.f32.mrb[0].mxu0
  %v7658 = vadd.f32 0.0, %v7657
  %v7659 = vpop.f32.mrb[0].mxu0
  %v7660 = vpop.f32.mrb[0].mxu0
  %v7661 = vadd.f32 0.0, %v7660
  %v7662 = vpop.f32.mrb[0].mxu0
  %7663 = vmatprep.mubr.bf16.mxu0 0
  %7664 = vmatmul.mubr.bf16.gmra.mrb[0].mxu0 %v7531
  %v7665 = vpop.f32.mrb[0].mxu0
  %v7666 = vadd.f32 0.0, %v7665
  %v7667 = vpop.f32.mrb[0].mxu0
  %v7668 = vpop.f32.mrb[0].mxu0
  %v7669 = vadd.f32 0.0, %v7668
  %v7670 = vpop.f32.mrb[0].mxu0
  %7671 = vmatprep.mubr.bf16.mxu0 0
  %7672 = vmatmul.mubr.bf16.gmra.mrb[0].mxu0 %v7534
  %v7673 = vpop.f32.mrb[0].mxu0
  %v7674 = vadd.f32 0.0, %v7673
  %v7675 = vpop.f32.mrb[0].mxu0
  %v7676 = vpop.f32.mrb[0].mxu0
  %v7677 = vadd.f32 0.0, %v7676
  %v7678 = vpop.f32.mrb[0].mxu0
  %7679 = vmatprep.mubr.bf16.mxu0 0
  %7680 = vmatmul.mubr.bf16.gmra.mrb[0].mxu0 %v7537
  %v7681 = vpop.f32.mrb[0].mxu0
  %v7682 = vadd.f32 0.0, %v7681
  %v7683 = vpop.f32.mrb[0].mxu0
  %v7684 = vpop.f32.mrb[0].mxu0
  %v7685 = vadd.f32 0.0, %v7684
  %v7686 = vpop.f32.mrb[0].mxu0
  %7687 = vmatprep.mubr.bf16.mxu0 0
  %7688 = vmatmul.mubr.bf16.gmra.mrb[0].mxu0 %v7540
  %v7689 = vpop.f32.mrb[0].mxu0
  %v7690 = vadd.f32 0.0, %v7689
  %v7691 = vpop.f32.mrb[0].mxu0
  %v7692 = vpop.f32.mrb[0].mxu0
  %v7693 = vadd.f32 0.0, %v7692
  %v7694 = vpop.f32.mrb[0].mxu0
  %7695 = vmatprep.mubr.bf16.mxu0 0
  %7696 = vmatmul.mubr.bf16.gmra.mrb[0].mxu0 %v7543
  %v7697 = vpop.f32.mrb[0].mxu0
  %v7698 = vadd.f32 0.0, %v7697
  %v7699 = vpop.f32.mrb[0].mxu0
  %v7700 = vpop.f32.mrb[0].mxu0
  %v7701 = vadd.f32 0.0, %v7700
  %v7702 = vpop.f32.mrb[0].mxu0
  %7703 = vmatprep.mubr.bf16.mxu0 0
  %7704 = vmatmul.mubr.bf16.gmra.mrb[0].mxu0 %v7546
  %v7705 = vpop.f32.mrb[0].mxu0
  %v7706 = vadd.f32 0.0, %v7705
  %v7707 = vpop.f32.mrb[0].mxu0
  %v7708 = vpop.f32.mrb[0].mxu0
  %v7709 = vadd.f32 0.0, %v7708
  %v7710 = vpop.f32.mrb[0].mxu0
  %7711 = vmatprep.mubr.bf16.mxu0 0
  %7712 = vmatmul.mubr.bf16.gmra.mrb[0].mxu0 %v7549
  %v7713 = vpop.f32.mrb[0].mxu0
  %v7714 = vadd.f32 0.0, %v7713
  %v7715 = vpop.f32.mrb[0].mxu0
  %v7716 = vpop.f32.mrb[0].mxu0
  %v7717 = vadd.f32 0.0, %v7716
  %v7718 = vpop.f32.mrb[0].mxu0
  %7719 = vmatprep.mubr.bf16.mxu0 0
  %7720 = vmatmul.mubr.bf16.gmra.mrb[0].mxu0 %v7552
  %v7721 = vpop.f32.mrb[0].mxu0
  %v7722 = vadd.f32 0.0, %v7721
  %v7723 = vpop.f32.mrb[0].mxu0
  %v7724 = vpop.f32.mrb[0].mxu0
  %v7725 = vadd.f32 0.0, %v7724
  %v7726 = vpop.f32.mrb[0].mxu0
  %7727 = vmatprep.mubr.bf16.mxu0 0
  %7728 = vmatmul.mubr.bf16.gmra.mrb[0].mxu0 %v7555
  %v7729 = vpop.f32.mrb[0].mxu0
  %v7730 = vadd.f32 0.0, %v7729
  %v7731 = vpop.f32.mrb[0].mxu0
  %v7732 = vpop.f32.mrb[0].mxu0
  %v7733 = vadd.f32 0.0, %v7732
  %v7734 = vpop.f32.mrb[0].mxu0
  %7735 = vmatprep.mubr.bf16.mxu0 0
  %7736 = vmatmul.mubr.bf16.gmra.mrb[0].mxu0 %v7558
  %v7737 = vpop.f32.mrb[0].mxu0
  %v7738 = vadd.f32 0.0, %v7737
  %v7739 = vpop.f32.mrb[0].mxu0
  %v7740 = vpop.f32.mrb[0].mxu0
  %v7741 = vadd.f32 0.0, %v7740
  %v7742 = vpop.f32.mrb[0].mxu0
  %7743 = vmatprep.mubr.bf16.mxu0 0
  %7744 = vmatmul.mubr.bf16.gmra.mrb[0].mxu0 %v7561
  %v7745 = vpop.f32.mrb[0].mxu0
  %v7746 = vadd.f32 0.0, %v7745
  %v7747 = vpop.f32.mrb[0].mxu0
  %v7748 = vpop.f32.mrb[0].mxu0
  %v7749 = vadd.f32 0.0, %v7748
  %v7750 = vpop.f32.mrb[0].mxu0
  %7751 = vmatprep.mubr.bf16.mxu0 0
  %7752 = vmatmul.mubr.bf16.gmra.mrb[0].mxu0 %v7564
  %v7753 = vpop.f32.mrb[0].mxu0
  %v7754 = vadd.f32 0.0, %v7753
  %v7755 = vpop.f32.mrb[0].mxu0
  %v7756 = vpop.f32.mrb[0].mxu0
  %v7757 = vadd.f32 0.0, %v7756
  %v7758 = vpop.f32.mrb[0].mxu0
  %7759 = vmatprep.mubr.bf16.mxu0 0
  %7760 = vmatmul.mubr.bf16.gmra.mrb[0].mxu0 %v7567
  %v7761 = vpop.f32.mrb[0].mxu0
  %v7762 = vadd.f32 0.0, %v7761
  %v7763 = vpop.f32.mrb[0].mxu0
  %v7764 = vpop.f32.mrb[0].mxu0
  %v7765 = vadd.f32 0.0, %v7764
  %v7766 = vpop.f32.mrb[0].mxu0
  %7767 = vmatprep.mubr.bf16.mxu0 0
  %7768 = vmatmul.mubr.bf16.gmra.mrb[0].mxu0 %v7570
  %v7769 = vpop.f32.mrb[0].mxu0
  %v7770 = vadd.f32 0.0, %v7769
  %v7771 = vpop.f32.mrb[0].mxu0
  %v7772 = vpop.f32.mrb[0].mxu0
  %v7773 = vadd.f32 0.0, %v7772
  %v7774 = vpop.f32.mrb[0].mxu0
  %7775 = vmatprep.mubr.bf16.mxu0 0
  %7776 = vmatmul.mubr.bf16.gmra.mrb[0].mxu0 %v7573
  %v7777 = vpop.f32.mrb[0].mxu0
  %v7778 = vadd.f32 0.0, %v7777
  %v7779 = vpop.f32.mrb[0].mxu0
  %v7780 = vpop.f32.mrb[0].mxu0
  %v7781 = vadd.f32 0.0, %v7780
  %v7782 = vpop.f32.mrb[0].mxu0
  %7783 = vmatprep.mubr.bf16.mxu0 0
  %7784 = vmatmul.mubr.bf16.gmra.mrb[0].mxu0 %v7576
  %v7785 = vpop.f32.mrb[0].mxu0
  %v7786 = vadd.f32 0.0, %v7785
  %v7787 = vpop.f32.mrb[0].mxu0
  %v7788 = vpop.f32.mrb[0].mxu0
  %v7789 = vadd.f32 0.0, %v7788
  %v7790 = vpop.f32.mrb[0].mxu0
  %7791 = vmatprep.mubr.bf16.mxu0 0
  %7792 = vmatmul.mubr.bf16.gmra.mrb[0].mxu0 %v7579
  %v7793 = vpop.f32.mrb[0].mxu0
  %v7794 = vadd.f32 0.0, %v7793
  %v7795 = vpop.f32.mrb[0].mxu0
  %v7796 = vpop.f32.mrb[0].mxu0
  %v7797 = vadd.f32 0.0, %v7796
  %v7798 = vpop.f32.mrb[0].mxu0
  %7799 = vmatprep.mubr.bf16.mxu0 0
  %7800 = vmatmul.mubr.bf16.gmra.mrb[0].mxu0 %v7582
  %v7801 = vpop.f32.mrb[0].mxu0
  %v7802 = vadd.f32 0.0, %v7801
  %v7803 = vpop.f32.mrb[0].mxu0
  %v7804 = vpop.f32.mrb[0].mxu0
  %v7805 = vadd.f32 0.0, %v7804
  %v7806 = vpop.f32.mrb[0].mxu0
  %7807 = vmatprep.mubr.bf16.mxu0 0
  %7808 = vmatmul.mubr.bf16.gmra.mrb[0].mxu0 %v7585
  %v7809 = vpop.f32.mrb[0].mxu0
  %v7810 = vadd.f32 0.0, %v7809
  %v7811 = vpop.f32.mrb[0].mxu0
  %v7812 = vpop.f32.mrb[0].mxu0
  %v7813 = vadd.f32 0.0, %v7812
  %v7814 = vpop.f32.mrb[0].mxu0
  %7815 = vmatprep.mubr.bf16.mxu0 0
  %7816 = vmatmul.mubr.bf16.gmra.mrb[0].mxu0 %v7588
  %v7817 = vpop.f32.mrb[0].mxu0
  %v7818 = vadd.f32 0.0, %v7817
  %v7819 = vpop.f32.mrb[0].mxu0
  %v7820 = vpop.f32.mrb[0].mxu0
  %v7821 = vadd.f32 0.0, %v7820
  %v7822 = vpop.f32.mrb[0].mxu0
  %7823 = vmatprep.mubr.bf16.mxu0 0
  %7824 = vmatmul.mubr.bf16.gmra.mrb[0].mxu0 %v7591
  %v7825 = vpop.f32.mrb[0].mxu0
  %v7826 = vadd.f32 0.0, %v7825
  %v7827 = vpop.f32.mrb[0].mxu0
  %v7828 = vpop.f32.mrb[0].mxu0
  %v7829 = vadd.f32 0.0, %v7828
  %v7830 = vpop.f32.mrb[0].mxu0
  %7831 = vmatprep.mubr.bf16.mxu0 0
  %7832 = vmatmul.mubr.bf16.gmra.mrb[0].mxu0 %v7594
  %v7833 = vpop.f32.mrb[0].mxu0
  %v7834 = vadd.f32 0.0, %v7833
  %v7835 = vpop.f32.mrb[0].mxu0
  %v7836 = vpop.f32.mrb[0].mxu0
  %v7837 = vadd.f32 0.0, %v7836
  %v7838 = vpop.f32.mrb[0].mxu0
  %7839 = vmatprep.mubr.bf16.mxu0 0
  %7840 = vmatmul.mubr.bf16.gmra.mrb[0].mxu0 %v7597
  %v7841 = vpop.f32.mrb[0].mxu0
  %v7842 = vadd.f32 0.0, %v7841
  %v7843 = vpop.f32.mrb[0].mxu0
  %v7844 = vpop.f32.mrb[0].mxu0
  %v7845 = vadd.f32 0.0, %v7844
  %v7846 = vpop.f32.mrb[0].mxu0
  %7847 = vmatprep.mubr.bf16.mxu0 0
  %7848 = vmatmul.mubr.bf16.gmra.mrb[0].mxu0 %v7600
  %v7849 = vpop.f32.mrb[0].mxu0
  %v7850 = vadd.f32 0.0, %v7849
  %v7851 = vpop.f32.mrb[0].mxu0
  %v7852 = vpop.f32.mrb[0].mxu0
  %v7853 = vadd.f32 0.0, %v7852
  %v7854 = vpop.f32.mrb[0].mxu0
  %7855 = vmatprep.mubr.bf16.mxu0 0
  %7856 = vmatmul.mubr.bf16.gmra.mrb[0].mxu0 %v7603
  %v7857 = vpop.f32.mrb[0].mxu0
  %v7858 = vadd.f32 0.0, %v7857
  %v7859 = vpop.f32.mrb[0].mxu0
  %v7860 = vpop.f32.mrb[0].mxu0
  %v7861 = vadd.f32 0.0, %v7860
  %v7862 = vpop.f32.mrb[0].mxu0
  %7863 = vmatprep.mubr.bf16.mxu0 0
  %7864 = vmatmul.mubr.bf16.gmra.mrb[0].mxu0 %v7606
  %v7865 = vpop.f32.mrb[0].mxu0
  %v7866 = vadd.f32 0.0, %v7865
  %v7867 = vpop.f32.mrb[0].mxu0
  %v7868 = vpop.f32.mrb[0].mxu0
  %v7869 = vadd.f32 0.0, %v7868
  %v7870 = vpop.f32.mrb[0].mxu0
  %7871 = vmatprep.mubr.bf16.mxu0 0
  %7872 = vmatmul.mubr.bf16.gmra.mrb[0].mxu0 %v7609
  %v7873 = vpop.f32.mrb[0].mxu0
  %v7874 = vadd.f32 0.0, %v7873
  %v7875 = vpop.f32.mrb[0].mxu0
  %v7876 = vpop.f32.mrb[0].mxu0
  %v7877 = vadd.f32 0.0, %v7876
  %v7878 = vpop.f32.mrb[0].mxu0
  %7879 = vmatprep.mubr.bf16.mxu0 0
  %7880 = vmatmul.mubr.bf16.gmra.mrb[0].mxu0 %v7612
  %v7881 = vpop.f32.mrb[0].mxu0
  %v7882 = vadd.f32 0.0, %v7881
  %v7883 = vpop.f32.mrb[0].mxu0
  %v7884 = vpop.f32.mrb[0].mxu0
  %v7885 = vadd.f32 0.0, %v7884
  %v7886 = vpop.f32.mrb[0].mxu0
  %7887 = vmatprep.mubr.bf16.mxu0 0
  %7888 = vmatmul.mubr.bf16.gmra.mrb[0].mxu0 %v7615
  %v7889 = vpop.f32.mrb[0].mxu0
  %v7890 = vadd.f32 0.0, %v7889
  %v7891 = vpop.f32.mrb[0].mxu0
  %v7892 = vpop.f32.mrb[0].mxu0
  %v7893 = vadd.f32 0.0, %v7892
  %v7894 = vpop.f32.mrb[0].mxu0
  %7895 = vmatprep.mubr.bf16.mxu0 0
  %7896 = vmatmul.mubr.bf16.gmra.mrb[0].mxu0 %v7618
  %v7897 = vpop.f32.mrb[0].mxu0
  %v7898 = vadd.f32 0.0, %v7897
  %v7899 = vpop.f32.mrb[0].mxu0
  %v7900 = vpop.f32.mrb[0].mxu0
  %v7901 = vadd.f32 0.0, %v7900
  %v7902 = vpop.f32.mrb[0].mxu0
  %7903 = vmatprep.mubr.bf16.mxu0 0
  %7904 = vmatmul.mubr.bf16.gmra.mrb[0].mxu0 %v7621
  %v7905 = vpop.f32.mrb[0].mxu0
  %v7906 = vadd.f32 0.0, %v7905
  %v7907 = vpop.f32.mrb[0].mxu0
  %v7908 = vpop.f32.mrb[0].mxu0
  %v7909 = vadd.f32 0.0, %v7908
  %v7910 = vpop.f32.mrb[0].mxu0
  %7911 = vdwg.mxu0
  %v7912 = vsel %vm3499, %v7658, -inf
  %v7913 = vrot.slane %v7912, 4
  %v7914 = vmax.f32 %v7912, %v7913
  %v7915 = vrot.slane %v7914, 2
  %v7916 = vmax.f32 %v7914, %v7915
  %v7917 = vrot.slane %v7916, 1
  %v7918 = vmax.f32 %v7916, %v7917
  %v7919 = vsel %vm3499, %v7661, -inf
  %v7920 = vrot.slane %v7919, 4
  %v7921 = vmax.f32 %v7919, %v7920
  %v7922 = vrot.slane %v7921, 2
  %v7923 = vmax.f32 %v7921, %v7922
  %v7924 = vrot.slane %v7923, 1
  %v7925 = vmax.f32 %v7923, %v7924
  %v7926 = vsel %vm3499, %v7666, -inf
  %v7927 = vrot.slane %v7926, 4
  %v7928 = vmax.f32 %v7926, %v7927
  %v7929 = vrot.slane %v7928, 2
  %v7930 = vmax.f32 %v7928, %v7929
  %v7931 = vrot.slane %v7930, 1
  %v7932 = vmax.f32 %v7930, %v7931
  %v7933 = vsel %vm3499, %v7669, -inf
  %v7934 = vrot.slane %v7933, 4
  %v7935 = vmax.f32 %v7933, %v7934
  %v7936 = vrot.slane %v7935, 2
  %v7937 = vmax.f32 %v7935, %v7936
  %v7938 = vrot.slane %v7937, 1
  %v7939 = vmax.f32 %v7937, %v7938
  %v7940 = vsel %vm3499, %v7674, -inf
  %v7941 = vrot.slane %v7940, 4
  %v7942 = vmax.f32 %v7940, %v7941
  %v7943 = vrot.slane %v7942, 2
  %v7944 = vmax.f32 %v7942, %v7943
  %v7945 = vrot.slane %v7944, 1
  %v7946 = vmax.f32 %v7944, %v7945
  %v7947 = vsel %vm3499, %v7677, -inf
  %v7948 = vrot.slane %v7947, 4
  %v7949 = vmax.f32 %v7947, %v7948
  %v7950 = vrot.slane %v7949, 2
  %v7951 = vmax.f32 %v7949, %v7950
  %v7952 = vrot.slane %v7951, 1
  %v7953 = vmax.f32 %v7951, %v7952
  %v7954 = vsel %vm3499, %v7682, -inf
  %v7955 = vrot.slane %v7954, 4
  %v7956 = vmax.f32 %v7954, %v7955
  %v7957 = vrot.slane %v7956, 2
  %v7958 = vmax.f32 %v7956, %v7957
  %v7959 = vrot.slane %v7958, 1
  %v7960 = vmax.f32 %v7958, %v7959
  %v7961 = vsel %vm3499, %v7685, -inf
  %v7962 = vrot.slane %v7961, 4
  %v7963 = vmax.f32 %v7961, %v7962
  %v7964 = vrot.slane %v7963, 2
  %v7965 = vmax.f32 %v7963, %v7964
  %v7966 = vrot.slane %v7965, 1
  %v7967 = vmax.f32 %v7965, %v7966
  %v7968 = vsel %vm3499, %v7690, -inf
  %v7969 = vrot.slane %v7968, 4
  %v7970 = vmax.f32 %v7968, %v7969
  %v7971 = vrot.slane %v7970, 2
  %v7972 = vmax.f32 %v7970, %v7971
  %v7973 = vrot.slane %v7972, 1
  %v7974 = vmax.f32 %v7972, %v7973
  %v7975 = vsel %vm3499, %v7693, -inf
  %v7976 = vrot.slane %v7975, 4
  %v7977 = vmax.f32 %v7975, %v7976
  %v7978 = vrot.slane %v7977, 2
  %v7979 = vmax.f32 %v7977, %v7978
  %v7980 = vrot.slane %v7979, 1
  %v7981 = vmax.f32 %v7979, %v7980
  %v7982 = vsel %vm3499, %v7698, -inf
  %v7983 = vrot.slane %v7982, 4
  %v7984 = vmax.f32 %v7982, %v7983
  %v7985 = vrot.slane %v7984, 2
  %v7986 = vmax.f32 %v7984, %v7985
  %v7987 = vrot.slane %v7986, 1
  %v7988 = vmax.f32 %v7986, %v7987
  %v7989 = vsel %vm3499, %v7701, -inf
  %v7990 = vrot.slane %v7989, 4
  %v7991 = vmax.f32 %v7989, %v7990
  %v7992 = vrot.slane %v7991, 2
  %v7993 = vmax.f32 %v7991, %v7992
  %v7994 = vrot.slane %v7993, 1
  %v7995 = vmax.f32 %v7993, %v7994
  %v7996 = vsel %vm3499, %v7706, -inf
  %v7997 = vrot.slane %v7996, 4
  %v7998 = vmax.f32 %v7996, %v7997
  %v7999 = vrot.slane %v7998, 2
  %v8000 = vmax.f32 %v7998, %v7999
  %v8001 = vrot.slane %v8000, 1
  %v8002 = vmax.f32 %v8000, %v8001
  %v8003 = vsel %vm3499, %v7709, -inf
  %v8004 = vrot.slane %v8003, 4
  %v8005 = vmax.f32 %v8003, %v8004
  %v8006 = vrot.slane %v8005, 2
  %v8007 = vmax.f32 %v8005, %v8006
  %v8008 = vrot.slane %v8007, 1
  %v8009 = vmax.f32 %v8007, %v8008
  %v8010 = vsel %vm3499, %v7714, -inf
  %v8011 = vrot.slane %v8010, 4
  %v8012 = vmax.f32 %v8010, %v8011
  %v8013 = vrot.slane %v8012, 2
  %v8014 = vmax.f32 %v8012, %v8013
  %v8015 = vrot.slane %v8014, 1
  %v8016 = vmax.f32 %v8014, %v8015
  %v8017 = vsel %vm3499, %v7717, -inf
  %v8018 = vrot.slane %v8017, 4
  %v8019 = vmax.f32 %v8017, %v8018
  %v8020 = vrot.slane %v8019, 2
  %v8021 = vmax.f32 %v8019, %v8020
  %v8022 = vrot.slane %v8021, 1
  %v8023 = vmax.f32 %v8021, %v8022
  %v8024 = vsel %vm3499, %v7722, -inf
  %v8025 = vrot.slane %v8024, 4
  %v8026 = vmax.f32 %v8024, %v8025
  %v8027 = vrot.slane %v8026, 2
  %v8028 = vmax.f32 %v8026, %v8027
  %v8029 = vrot.slane %v8028, 1
  %v8030 = vmax.f32 %v8028, %v8029
  %v8031 = vsel %vm3499, %v7725, -inf
  %v8032 = vrot.slane %v8031, 4
  %v8033 = vmax.f32 %v8031, %v8032
  %v8034 = vrot.slane %v8033, 2
  %v8035 = vmax.f32 %v8033, %v8034
  %v8036 = vrot.slane %v8035, 1
  %v8037 = vmax.f32 %v8035, %v8036
  %v8038 = vsel %vm3499, %v7730, -inf
  %v8039 = vrot.slane %v8038, 4
  %v8040 = vmax.f32 %v8038, %v8039
  %v8041 = vrot.slane %v8040, 2
  %v8042 = vmax.f32 %v8040, %v8041
  %v8043 = vrot.slane %v8042, 1
  %v8044 = vmax.f32 %v8042, %v8043
  %v8045 = vsel %vm3499, %v7733, -inf
  %v8046 = vrot.slane %v8045, 4
  %v8047 = vmax.f32 %v8045, %v8046
  %v8048 = vrot.slane %v8047, 2
  %v8049 = vmax.f32 %v8047, %v8048
  %v8050 = vrot.slane %v8049, 1
  %v8051 = vmax.f32 %v8049, %v8050
  %v8052 = vsel %vm3499, %v7738, -inf
  %v8053 = vrot.slane %v8052, 4
  %v8054 = vmax.f32 %v8052, %v8053
  %v8055 = vrot.slane %v8054, 2
  %v8056 = vmax.f32 %v8054, %v8055
  %v8057 = vrot.slane %v8056, 1
  %v8058 = vmax.f32 %v8056, %v8057
  %v8059 = vsel %vm3499, %v7741, -inf
  %v8060 = vrot.slane %v8059, 4
  %v8061 = vmax.f32 %v8059, %v8060
  %v8062 = vrot.slane %v8061, 2
  %v8063 = vmax.f32 %v8061, %v8062
  %v8064 = vrot.slane %v8063, 1
  %v8065 = vmax.f32 %v8063, %v8064
  %v8066 = vsel %vm3499, %v7746, -inf
  %v8067 = vrot.slane %v8066, 4
  %v8068 = vmax.f32 %v8066, %v8067
  %v8069 = vrot.slane %v8068, 2
  %v8070 = vmax.f32 %v8068, %v8069
  %v8071 = vrot.slane %v8070, 1
  %v8072 = vmax.f32 %v8070, %v8071
  %v8073 = vsel %vm3499, %v7749, -inf
  %v8074 = vrot.slane %v8073, 4
  %v8075 = vmax.f32 %v8073, %v8074
  %v8076 = vrot.slane %v8075, 2
  %v8077 = vmax.f32 %v8075, %v8076
  %v8078 = vrot.slane %v8077, 1
  %v8079 = vmax.f32 %v8077, %v8078
  %v8080 = vsel %vm3499, %v7754, -inf
  %v8081 = vrot.slane %v8080, 4
  %v8082 = vmax.f32 %v8080, %v8081
  %v8083 = vrot.slane %v8082, 2
  %v8084 = vmax.f32 %v8082, %v8083
  %v8085 = vrot.slane %v8084, 1
  %v8086 = vmax.f32 %v8084, %v8085
  %v8087 = vsel %vm3499, %v7757, -inf
  %v8088 = vrot.slane %v8087, 4
  %v8089 = vmax.f32 %v8087, %v8088
  %v8090 = vrot.slane %v8089, 2
  %v8091 = vmax.f32 %v8089, %v8090
  %v8092 = vrot.slane %v8091, 1
  %v8093 = vmax.f32 %v8091, %v8092
  %v8094 = vsel %vm3499, %v7762, -inf
  %v8095 = vrot.slane %v8094, 4
  %v8096 = vmax.f32 %v8094, %v8095
  %v8097 = vrot.slane %v8096, 2
  %v8098 = vmax.f32 %v8096, %v8097
  %v8099 = vrot.slane %v8098, 1
  %v8100 = vmax.f32 %v8098, %v8099
  %v8101 = vsel %vm3499, %v7765, -inf
  %v8102 = vrot.slane %v8101, 4
  %v8103 = vmax.f32 %v8101, %v8102
  %v8104 = vrot.slane %v8103, 2
  %v8105 = vmax.f32 %v8103, %v8104
  %v8106 = vrot.slane %v8105, 1
  %v8107 = vmax.f32 %v8105, %v8106
  %v8108 = vsel %vm3499, %v7770, -inf
  %v8109 = vrot.slane %v8108, 4
  %v8110 = vmax.f32 %v8108, %v8109
  %v8111 = vrot.slane %v8110, 2
  %v8112 = vmax.f32 %v8110, %v8111
  %v8113 = vrot.slane %v8112, 1
  %v8114 = vmax.f32 %v8112, %v8113
  %v8115 = vsel %vm3499, %v7773, -inf
  %v8116 = vrot.slane %v8115, 4
  %v8117 = vmax.f32 %v8115, %v8116
  %v8118 = vrot.slane %v8117, 2
  %v8119 = vmax.f32 %v8117, %v8118
  %v8120 = vrot.slane %v8119, 1
  %v8121 = vmax.f32 %v8119, %v8120
  %v8122 = vsel %vm3499, %v7778, -inf
  %v8123 = vrot.slane %v8122, 4
  %v8124 = vmax.f32 %v8122, %v8123
  %v8125 = vrot.slane %v8124, 2
  %v8126 = vmax.f32 %v8124, %v8125
  %v8127 = vrot.slane %v8126, 1
  %v8128 = vmax.f32 %v8126, %v8127
  %v8129 = vsel %vm3499, %v7781, -inf
  %v8130 = vrot.slane %v8129, 4
  %v8131 = vmax.f32 %v8129, %v8130
  %v8132 = vrot.slane %v8131, 2
  %v8133 = vmax.f32 %v8131, %v8132
  %v8134 = vrot.slane %v8133, 1
  %v8135 = vmax.f32 %v8133, %v8134
  %v8136 = vsel %vm3499, %v7786, -inf
  %v8137 = vrot.slane %v8136, 4
  %v8138 = vmax.f32 %v8136, %v8137
  %v8139 = vrot.slane %v8138, 2
  %v8140 = vmax.f32 %v8138, %v8139
  %v8141 = vrot.slane %v8140, 1
  %v8142 = vmax.f32 %v8140, %v8141
  %v8143 = vsel %vm3499, %v7789, -inf
  %v8144 = vrot.slane %v8143, 4
  %v8145 = vmax.f32 %v8143, %v8144
  %v8146 = vrot.slane %v8145, 2
  %v8147 = vmax.f32 %v8145, %v8146
  %v8148 = vrot.slane %v8147, 1
  %v8149 = vmax.f32 %v8147, %v8148
  %v8150 = vsel %vm3499, %v7794, -inf
  %v8151 = vrot.slane %v8150, 4
  %v8152 = vmax.f32 %v8150, %v8151
  %v8153 = vrot.slane %v8152, 2
  %v8154 = vmax.f32 %v8152, %v8153
  %v8155 = vrot.slane %v8154, 1
  %v8156 = vmax.f32 %v8154, %v8155
  %v8157 = vsel %vm3499, %v7797, -inf
  %v8158 = vrot.slane %v8157, 4
  %v8159 = vmax.f32 %v8157, %v8158
  %v8160 = vrot.slane %v8159, 2
  %v8161 = vmax.f32 %v8159, %v8160
  %v8162 = vrot.slane %v8161, 1
  %v8163 = vmax.f32 %v8161, %v8162
  %v8164 = vsel %vm3499, %v7802, -inf
  %v8165 = vrot.slane %v8164, 4
  %v8166 = vmax.f32 %v8164, %v8165
  %v8167 = vrot.slane %v8166, 2
  %v8168 = vmax.f32 %v8166, %v8167
  %v8169 = vrot.slane %v8168, 1
  %v8170 = vmax.f32 %v8168, %v8169
  %v8171 = vsel %vm3499, %v7805, -inf
  %v8172 = vrot.slane %v8171, 4
  %v8173 = vmax.f32 %v8171, %v8172
  %v8174 = vrot.slane %v8173, 2
  %v8175 = vmax.f32 %v8173, %v8174
  %v8176 = vrot.slane %v8175, 1
  %v8177 = vmax.f32 %v8175, %v8176
  %v8178 = vsel %vm3499, %v7810, -inf
  %v8179 = vrot.slane %v8178, 4
  %v8180 = vmax.f32 %v8178, %v8179
  %v8181 = vrot.slane %v8180, 2
  %v8182 = vmax.f32 %v8180, %v8181
  %v8183 = vrot.slane %v8182, 1
  %v8184 = vmax.f32 %v8182, %v8183
  %v8185 = vsel %vm3499, %v7813, -inf
  %v8186 = vrot.slane %v8185, 4
  %v8187 = vmax.f32 %v8185, %v8186
  %v8188 = vrot.slane %v8187, 2
  %v8189 = vmax.f32 %v8187, %v8188
  %v8190 = vrot.slane %v8189, 1
  %v8191 = vmax.f32 %v8189, %v8190
  %v8192 = vsel %vm3499, %v7818, -inf
  %v8193 = vrot.slane %v8192, 4
  %v8194 = vmax.f32 %v8192, %v8193
  %v8195 = vrot.slane %v8194, 2
  %v8196 = vmax.f32 %v8194, %v8195
  %v8197 = vrot.slane %v8196, 1
  %v8198 = vmax.f32 %v8196, %v8197
  %v8199 = vsel %vm3499, %v7821, -inf
  %v8200 = vrot.slane %v8199, 4
  %v8201 = vmax.f32 %v8199, %v8200
  %v8202 = vrot.slane %v8201, 2
  %v8203 = vmax.f32 %v8201, %v8202
  %v8204 = vrot.slane %v8203, 1
  %v8205 = vmax.f32 %v8203, %v8204
  %v8206 = vsel %vm3499, %v7826, -inf
  %v8207 = vrot.slane %v8206, 4
  %v8208 = vmax.f32 %v8206, %v8207
  %v8209 = vrot.slane %v8208, 2
  %v8210 = vmax.f32 %v8208, %v8209
  %v8211 = vrot.slane %v8210, 1
  %v8212 = vmax.f32 %v8210, %v8211
  %v8213 = vsel %vm3499, %v7829, -inf
  %v8214 = vrot.slane %v8213, 4
  %v8215 = vmax.f32 %v8213, %v8214
  %v8216 = vrot.slane %v8215, 2
  %v8217 = vmax.f32 %v8215, %v8216
  %v8218 = vrot.slane %v8217, 1
  %v8219 = vmax.f32 %v8217, %v8218
  %v8220 = vsel %vm3499, %v7834, -inf
  %v8221 = vrot.slane %v8220, 4
  %v8222 = vmax.f32 %v8220, %v8221
  %v8223 = vrot.slane %v8222, 2
  %v8224 = vmax.f32 %v8222, %v8223
  %v8225 = vrot.slane %v8224, 1
  %v8226 = vmax.f32 %v8224, %v8225
  %v8227 = vsel %vm3499, %v7837, -inf
  %v8228 = vrot.slane %v8227, 4
  %v8229 = vmax.f32 %v8227, %v8228
  %v8230 = vrot.slane %v8229, 2
  %v8231 = vmax.f32 %v8229, %v8230
  %v8232 = vrot.slane %v8231, 1
  %v8233 = vmax.f32 %v8231, %v8232
  %v8234 = vsel %vm3499, %v7842, -inf
  %v8235 = vrot.slane %v8234, 4
  %v8236 = vmax.f32 %v8234, %v8235
  %v8237 = vrot.slane %v8236, 2
  %v8238 = vmax.f32 %v8236, %v8237
  %v8239 = vrot.slane %v8238, 1
  %v8240 = vmax.f32 %v8238, %v8239
  %v8241 = vsel %vm3499, %v7845, -inf
  %v8242 = vrot.slane %v8241, 4
  %v8243 = vmax.f32 %v8241, %v8242
  %v8244 = vrot.slane %v8243, 2
  %v8245 = vmax.f32 %v8243, %v8244
  %v8246 = vrot.slane %v8245, 1
  %v8247 = vmax.f32 %v8245, %v8246
  %v8248 = vsel %vm3499, %v7850, -inf
  %v8249 = vrot.slane %v8248, 4
  %v8250 = vmax.f32 %v8248, %v8249
  %v8251 = vrot.slane %v8250, 2
  %v8252 = vmax.f32 %v8250, %v8251
  %v8253 = vrot.slane %v8252, 1
  %v8254 = vmax.f32 %v8252, %v8253
  %v8255 = vsel %vm3499, %v7853, -inf
  %v8256 = vrot.slane %v8255, 4
  %v8257 = vmax.f32 %v8255, %v8256
  %v8258 = vrot.slane %v8257, 2
  %v8259 = vmax.f32 %v8257, %v8258
  %v8260 = vrot.slane %v8259, 1
  %v8261 = vmax.f32 %v8259, %v8260
  %v8262 = vsel %vm3499, %v7858, -inf
  %v8263 = vrot.slane %v8262, 4
  %v8264 = vmax.f32 %v8262, %v8263
  %v8265 = vrot.slane %v8264, 2
  %v8266 = vmax.f32 %v8264, %v8265
  %v8267 = vrot.slane %v8266, 1
  %v8268 = vmax.f32 %v8266, %v8267
  %v8269 = vsel %vm3499, %v7861, -inf
  %v8270 = vrot.slane %v8269, 4
  %v8271 = vmax.f32 %v8269, %v8270
  %v8272 = vrot.slane %v8271, 2
  %v8273 = vmax.f32 %v8271, %v8272
  %v8274 = vrot.slane %v8273, 1
  %v8275 = vmax.f32 %v8273, %v8274
  %v8276 = vsel %vm3499, %v7866, -inf
  %v8277 = vrot.slane %v8276, 4
  %v8278 = vmax.f32 %v8276, %v8277
  %v8279 = vrot.slane %v8278, 2
  %v8280 = vmax.f32 %v8278, %v8279
  %v8281 = vrot.slane %v8280, 1
  %v8282 = vmax.f32 %v8280, %v8281
  %v8283 = vsel %vm3499, %v7869, -inf
  %v8284 = vrot.slane %v8283, 4
  %v8285 = vmax.f32 %v8283, %v8284
  %v8286 = vrot.slane %v8285, 2
  %v8287 = vmax.f32 %v8285, %v8286
  %v8288 = vrot.slane %v8287, 1
  %v8289 = vmax.f32 %v8287, %v8288
  %v8290 = vsel %vm3499, %v7874, -inf
  %v8291 = vrot.slane %v8290, 4
  %v8292 = vmax.f32 %v8290, %v8291
  %v8293 = vrot.slane %v8292, 2
  %v8294 = vmax.f32 %v8292, %v8293
  %v8295 = vrot.slane %v8294, 1
  %v8296 = vmax.f32 %v8294, %v8295
  %v8297 = vsel %vm3499, %v7877, -inf
  %v8298 = vrot.slane %v8297, 4
  %v8299 = vmax.f32 %v8297, %v8298
  %v8300 = vrot.slane %v8299, 2
  %v8301 = vmax.f32 %v8299, %v8300
  %v8302 = vrot.slane %v8301, 1
  %v8303 = vmax.f32 %v8301, %v8302
  %v8304 = vsel %vm3499, %v7882, -inf
  %v8305 = vrot.slane %v8304, 4
  %v8306 = vmax.f32 %v8304, %v8305
  %v8307 = vrot.slane %v8306, 2
  %v8308 = vmax.f32 %v8306, %v8307
  %v8309 = vrot.slane %v8308, 1
  %v8310 = vmax.f32 %v8308, %v8309
  %v8311 = vsel %vm3499, %v7885, -inf
  %v8312 = vrot.slane %v8311, 4
  %v8313 = vmax.f32 %v8311, %v8312
  %v8314 = vrot.slane %v8313, 2
  %v8315 = vmax.f32 %v8313, %v8314
  %v8316 = vrot.slane %v8315, 1
  %v8317 = vmax.f32 %v8315, %v8316
  %v8318 = vsel %vm3499, %v7890, -inf
  %v8319 = vrot.slane %v8318, 4
  %v8320 = vmax.f32 %v8318, %v8319
  %v8321 = vrot.slane %v8320, 2
  %v8322 = vmax.f32 %v8320, %v8321
  %v8323 = vrot.slane %v8322, 1
  %v8324 = vmax.f32 %v8322, %v8323
  %v8325 = vsel %vm3499, %v7893, -inf
  %v8326 = vrot.slane %v8325, 4
  %v8327 = vmax.f32 %v8325, %v8326
  %v8328 = vrot.slane %v8327, 2
  %v8329 = vmax.f32 %v8327, %v8328
  %v8330 = vrot.slane %v8329, 1
  %v8331 = vmax.f32 %v8329, %v8330
  %v8332 = vsel %vm3499, %v7898, -inf
  %v8333 = vrot.slane %v8332, 4
  %v8334 = vmax.f32 %v8332, %v8333
  %v8335 = vrot.slane %v8334, 2
  %v8336 = vmax.f32 %v8334, %v8335
  %v8337 = vrot.slane %v8336, 1
  %v8338 = vmax.f32 %v8336, %v8337
  %v8339 = vsel %vm3499, %v7901, -inf
  %v8340 = vrot.slane %v8339, 4
  %v8341 = vmax.f32 %v8339, %v8340
  %v8342 = vrot.slane %v8341, 2
  %v8343 = vmax.f32 %v8341, %v8342
  %v8344 = vrot.slane %v8343, 1
  %v8345 = vmax.f32 %v8343, %v8344
  %v8346 = vsel %vm3499, %v7906, -inf
  %v8347 = vrot.slane %v8346, 4
  %v8348 = vmax.f32 %v8346, %v8347
  %v8349 = vrot.slane %v8348, 2
  %v8350 = vmax.f32 %v8348, %v8349
  %v8351 = vrot.slane %v8350, 1
  %v8352 = vmax.f32 %v8350, %v8351
  %v8353 = vsel %vm3499, %v7909, -inf
  %v8354 = vrot.slane %v8353, 4
  %v8355 = vmax.f32 %v8353, %v8354
  %v8356 = vrot.slane %v8355, 2
  %v8357 = vmax.f32 %v8355, %v8356
  %v8358 = vrot.slane %v8357, 1
  %v8359 = vmax.f32 %v8357, %v8358
  %v8360 = vpack.c.bf16 %v7918, %v7918
  %v8361 = vpack.c.bf16 %v7925, %v7925
  %v8362 = vpack.c.bf16 %v7932, %v7932
  %v8363 = vpack.c.bf16 %v7939, %v7939
  %v8364 = vpack.c.bf16 %v7946, %v7946
  %v8365 = vpack.c.bf16 %v7953, %v7953
  %v8366 = vpack.c.bf16 %v7960, %v7960
  %v8367 = vpack.c.bf16 %v7967, %v7967
  %v8368 = vpack.c.bf16 %v7974, %v7974
  %v8369 = vpack.c.bf16 %v7981, %v7981
  %v8370 = vpack.c.bf16 %v7988, %v7988
  %v8371 = vpack.c.bf16 %v7995, %v7995
  %v8372 = vpack.c.bf16 %v8002, %v8002
  %v8373 = vpack.c.bf16 %v8009, %v8009
  %v8374 = vpack.c.bf16 %v8016, %v8016
  %v8375 = vpack.c.bf16 %v8023, %v8023
  %v8376 = vpack.c.bf16 %v8030, %v8030
  %v8377 = vpack.c.bf16 %v8037, %v8037
  %v8378 = vpack.c.bf16 %v8044, %v8044
  %v8379 = vpack.c.bf16 %v8051, %v8051
  %v8380 = vpack.c.bf16 %v8058, %v8058
  %v8381 = vpack.c.bf16 %v8065, %v8065
  %v8382 = vpack.c.bf16 %v8072, %v8072
  %v8383 = vpack.c.bf16 %v8079, %v8079
  %v8384 = vpack.c.bf16 %v8086, %v8086
  %v8385 = vpack.c.bf16 %v8093, %v8093
  %v8386 = vpack.c.bf16 %v8100, %v8100
  %v8387 = vpack.c.bf16 %v8107, %v8107
  %v8388 = vpack.c.bf16 %v8114, %v8114
  %v8389 = vpack.c.bf16 %v8121, %v8121
  %v8390 = vpack.c.bf16 %v8128, %v8128
  %v8391 = vpack.c.bf16 %v8135, %v8135
  %v8392 = vpack.c.bf16 %v8142, %v8142
  %v8393 = vpack.c.bf16 %v8149, %v8149
  %v8394 = vpack.c.bf16 %v8156, %v8156
  %v8395 = vpack.c.bf16 %v8163, %v8163
  %v8396 = vpack.c.bf16 %v8170, %v8170
  %v8397 = vpack.c.bf16 %v8177, %v8177
  %v8398 = vpack.c.bf16 %v8184, %v8184
  %v8399 = vpack.c.bf16 %v8191, %v8191
  %v8400 = vpack.c.bf16 %v8198, %v8198
  %v8401 = vpack.c.bf16 %v8205, %v8205
  %v8402 = vpack.c.bf16 %v8212, %v8212
  %v8403 = vpack.c.bf16 %v8219, %v8219
  %v8404 = vpack.c.bf16 %v8226, %v8226
  %v8405 = vpack.c.bf16 %v8233, %v8233
  %v8406 = vpack.c.bf16 %v8240, %v8240
  %v8407 = vpack.c.bf16 %v8247, %v8247
  %v8408 = vpack.c.bf16 %v8254, %v8254
  %v8409 = vpack.c.bf16 %v8261, %v8261
  %v8410 = vpack.c.bf16 %v8268, %v8268
  %v8411 = vpack.c.bf16 %v8275, %v8275
  %v8412 = vpack.c.bf16 %v8282, %v8282
  %v8413 = vpack.c.bf16 %v8289, %v8289
  %v8414 = vpack.c.bf16 %v8296, %v8296
  %v8415 = vpack.c.bf16 %v8303, %v8303
  %v8416 = vpack.c.bf16 %v8310, %v8310
  %v8417 = vpack.c.bf16 %v8317, %v8317
  %v8418 = vpack.c.bf16 %v8324, %v8324
  %v8419 = vpack.c.bf16 %v8331, %v8331
  %v8420 = vpack.c.bf16 %v8338, %v8338
  %v8421 = vpack.c.bf16 %v8345, %v8345
  %v8422 = vpack.c.bf16 %v8352, %v8352
  %v8423 = vpack.c.bf16 %v8359, %v8359
  %v8488 = vunpack.c.l.b16 %v8360
  %v8489 = vunpack.c.l.b16 %v8361
  %v8490 = vunpack.c.l.b16 %v8362
  %v8491 = vunpack.c.l.b16 %v8363
  %v8492 = vunpack.c.l.b16 %v8364
  %v8493 = vunpack.c.l.b16 %v8365
  %v8494 = vunpack.c.l.b16 %v8366
  %v8495 = vunpack.c.l.b16 %v8367
  %v8496 = vunpack.c.l.b16 %v8368
  %v8497 = vunpack.c.l.b16 %v8369
  %v8498 = vunpack.c.l.b16 %v8370
  %v8499 = vunpack.c.l.b16 %v8371
  %v8500 = vunpack.c.l.b16 %v8372
  %v8501 = vunpack.c.l.b16 %v8373
  %v8502 = vunpack.c.l.b16 %v8374
  %v8503 = vunpack.c.l.b16 %v8375
  %v8504 = vunpack.c.l.b16 %v8376
  %v8505 = vunpack.c.l.b16 %v8377
  %v8506 = vunpack.c.l.b16 %v8378
  %v8507 = vunpack.c.l.b16 %v8379
  %v8508 = vunpack.c.l.b16 %v8380
  %v8509 = vunpack.c.l.b16 %v8381
  %v8510 = vunpack.c.l.b16 %v8382
  %v8511 = vunpack.c.l.b16 %v8383
  %v8512 = vunpack.c.l.b16 %v8384
  %v8513 = vunpack.c.l.b16 %v8385
  %v8514 = vunpack.c.l.b16 %v8386
  %v8515 = vunpack.c.l.b16 %v8387
  %v8516 = vunpack.c.l.b16 %v8388
  %v8517 = vunpack.c.l.b16 %v8389
  %v8518 = vunpack.c.l.b16 %v8390
  %v8519 = vunpack.c.l.b16 %v8391
  %v8520 = vunpack.c.l.b16 %v8392
  %v8521 = vunpack.c.l.b16 %v8393
  %v8522 = vunpack.c.l.b16 %v8394
  %v8523 = vunpack.c.l.b16 %v8395
  %v8524 = vunpack.c.l.b16 %v8396
  %v8525 = vunpack.c.l.b16 %v8397
  %v8526 = vunpack.c.l.b16 %v8398
  %v8527 = vunpack.c.l.b16 %v8399
  %v8528 = vunpack.c.l.b16 %v8400
  %v8529 = vunpack.c.l.b16 %v8401
  %v8530 = vunpack.c.l.b16 %v8402
  %v8531 = vunpack.c.l.b16 %v8403
  %v8532 = vunpack.c.l.b16 %v8404
  %v8533 = vunpack.c.l.b16 %v8405
  %v8534 = vunpack.c.l.b16 %v8406
  %v8535 = vunpack.c.l.b16 %v8407
  %v8536 = vunpack.c.l.b16 %v8408
  %v8537 = vunpack.c.l.b16 %v8409
  %v8538 = vunpack.c.l.b16 %v8410
  %v8539 = vunpack.c.l.b16 %v8411
  %v8540 = vunpack.c.l.b16 %v8412
  %v8541 = vunpack.c.l.b16 %v8413
  %v8542 = vunpack.c.l.b16 %v8414
  %v8543 = vunpack.c.l.b16 %v8415
  %v8544 = vunpack.c.l.b16 %v8416
  %v8545 = vunpack.c.l.b16 %v8417
  %v8546 = vunpack.c.l.b16 %v8418
  %v8547 = vunpack.c.l.b16 %v8419
  %v8548 = vunpack.c.l.b16 %v8420
  %v8549 = vunpack.c.l.b16 %v8421
  %v8550 = vunpack.c.l.b16 %v8422
  %v8551 = vunpack.c.l.b16 %v8423
  %v8552 = vsel %vm4140, %v8489, %v8488
  %v8553 = vsel %vm4142, %v8490, %v8552
  %v8554 = vsel %vm4144, %v8491, %v8553
  %v8555 = vsel %vm4146, %v8492, %v8554
  %v8556 = vsel %vm4148, %v8493, %v8555
  %v8557 = vsel %vm4150, %v8494, %v8556
  %v8558 = vsel %vm4152, %v8495, %v8557
  %v8559 = vsel %vm4140, %v8497, %v8496
  %v8560 = vsel %vm4142, %v8498, %v8559
  %v8561 = vsel %vm4144, %v8499, %v8560
  %v8562 = vsel %vm4146, %v8500, %v8561
  %v8563 = vsel %vm4148, %v8501, %v8562
  %v8564 = vsel %vm4150, %v8502, %v8563
  %v8565 = vsel %vm4152, %v8503, %v8564
  %v8566 = vsel %vm4140, %v8505, %v8504
  %v8567 = vsel %vm4142, %v8506, %v8566
  %v8568 = vsel %vm4144, %v8507, %v8567
  %v8569 = vsel %vm4146, %v8508, %v8568
  %v8570 = vsel %vm4148, %v8509, %v8569
  %v8571 = vsel %vm4150, %v8510, %v8570
  %v8572 = vsel %vm4152, %v8511, %v8571
  %v8573 = vsel %vm4140, %v8513, %v8512
  %v8574 = vsel %vm4142, %v8514, %v8573
  %v8575 = vsel %vm4144, %v8515, %v8574
  %v8576 = vsel %vm4146, %v8516, %v8575
  %v8577 = vsel %vm4148, %v8517, %v8576
  %v8578 = vsel %vm4150, %v8518, %v8577
  %v8579 = vsel %vm4152, %v8519, %v8578
  %v8580 = vsel %vm4140, %v8521, %v8520
  %v8581 = vsel %vm4142, %v8522, %v8580
  %v8582 = vsel %vm4144, %v8523, %v8581
  %v8583 = vsel %vm4146, %v8524, %v8582
  %v8584 = vsel %vm4148, %v8525, %v8583
  %v8585 = vsel %vm4150, %v8526, %v8584
  %v8586 = vsel %vm4152, %v8527, %v8585
  %v8587 = vsel %vm4140, %v8529, %v8528
  %v8588 = vsel %vm4142, %v8530, %v8587
  %v8589 = vsel %vm4144, %v8531, %v8588
  %v8590 = vsel %vm4146, %v8532, %v8589
  %v8591 = vsel %vm4148, %v8533, %v8590
  %v8592 = vsel %vm4150, %v8534, %v8591
  %v8593 = vsel %vm4152, %v8535, %v8592
  %v8594 = vsel %vm4140, %v8537, %v8536
  %v8595 = vsel %vm4142, %v8538, %v8594
  %v8596 = vsel %vm4144, %v8539, %v8595
  %v8597 = vsel %vm4146, %v8540, %v8596
  %v8598 = vsel %vm4148, %v8541, %v8597
  %v8599 = vsel %vm4150, %v8542, %v8598
  %v8600 = vsel %vm4152, %v8543, %v8599
  %v8601 = vsel %vm4140, %v8545, %v8544
  %v8602 = vsel %vm4142, %v8546, %v8601
  %v8603 = vsel %vm4144, %v8547, %v8602
  %v8604 = vsel %vm4146, %v8548, %v8603
  %v8605 = vsel %vm4148, %v8549, %v8604
  %v8606 = vsel %vm4150, %v8550, %v8605
  %v8607 = vsel %vm4152, %v8551, %v8606
  %v8608 = vpack.c.b16 %v8565, %v8558
  %v8609 = vpack.c.b16 %v8579, %v8572
  %v8610 = vpack.c.b16 %v8593, %v8586
  %v8611 = vpack.c.b16 %v8607, %v8600
  %8616 = vmatprep.subr.bf16.mxu0 0
  %8617 = vmatpush1.bf16.msra.mxu0 %v8608
  %8618 = vmatprep.subr.bf16.mxu0 0
  %8619 = vmatpush1.bf16.msra.mxu0 %v8609
  %8620 = vmatprep.subr.bf16.mxu0 0
  %8621 = vmatpush1.bf16.msra.mxu0 %v8610
  %8622 = vmatprep.subr.bf16.mxu0 0
  %8623 = vmatpush1.bf16.msra.mxu0 %v8611
  %8624 = vmatprep.subr.bf16.mxu0 0
  %8625 = vmatpush1.bf16.msra.mxu0 0
  %8626 = vmatprep.subr.bf16.mxu0 0
  %8627 = vmatpush1.bf16.msra.mxu0 0
  %8628 = vmatprep.subr.bf16.mxu0 0
  %8629 = vmatpush1.bf16.msra.mxu0 0
  %8630 = vmatprep.subr.bf16.mxu0 0
  %8631 = vmatpush1.bf16.msra.mxu0 0
  %8632 = vmatprep.subr.bf16.mxu0 0
  %8633 = vmatpush1.bf16.msra.mxu0 0
  %8634 = vmatprep.subr.bf16.mxu0 0
  %8635 = vmatpush1.bf16.msra.mxu0 0
  %8636 = vmatprep.subr.bf16.mxu0 0
  %8637 = vmatpush1.bf16.msra.mxu0 0
  %8638 = vmatprep.subr.bf16.mxu0 0
  %8639 = vmatpush1.bf16.msra.mxu0 0
  %8640 = vmatprep.subr.bf16.mxu0 0
  %8641 = vmatpush1.bf16.msra.mxu0 0
  %8642 = vmatprep.subr.bf16.mxu0 0
  %8643 = vmatpush1.bf16.msra.mxu0 0
  %8644 = vmatprep.subr.bf16.mxu0 0
  %8645 = vmatpush1.bf16.msra.mxu0 0
  %8646 = vmatprep.subr.bf16.mxu0 0
  %8647 = vmatpush1.bf16.msra.mxu0 0
  %8648 = vmatprep.mubr.bf16.mxu0 0
  %8649 = vmatmul.mubr.bf16.gmra.mrb[0].mxu0 %v2634
  %v8650 = vpop.f32.mrb[0].mxu0
  %v8651 = vadd.f32 0.0, %v8650
  %v8652 = vpop.f32.mrb[0].mxu0
  %v8653 = vpop.f32.mrb[0].mxu0
  %v8654 = vadd.f32 0.0, %v8653
  %v8655 = vpop.f32.mrb[0].mxu0
  %8656 = vmatprep.mubr.bf16.mxu0 0
  %8657 = vmatmul.mubr.bf16.gmra.mrb[0].mxu0 %v2637
  %v8658 = vpop.f32.mrb[0].mxu0
  %v8659 = vadd.f32 0.0, %v8658
  %v8660 = vpop.f32.mrb[0].mxu0
  %v8661 = vpop.f32.mrb[0].mxu0
  %v8662 = vadd.f32 0.0, %v8661
  %v8663 = vpop.f32.mrb[0].mxu0
  %8664 = vmatprep.mubr.bf16.mxu0 0
  %8665 = vmatmul.mubr.bf16.gmra.mrb[0].mxu0 %v2640
  %v8666 = vpop.f32.mrb[0].mxu0
  %v8667 = vadd.f32 0.0, %v8666
  %v8668 = vpop.f32.mrb[0].mxu0
  %v8669 = vpop.f32.mrb[0].mxu0
  %v8670 = vadd.f32 0.0, %v8669
  %v8671 = vpop.f32.mrb[0].mxu0
  %8672 = vmatprep.mubr.bf16.mxu0 0
  %8673 = vmatmul.mubr.bf16.gmra.mrb[0].mxu0 %v2643
  %v8674 = vpop.f32.mrb[0].mxu0
  %v8675 = vadd.f32 0.0, %v8674
  %v8676 = vpop.f32.mrb[0].mxu0
  %v8677 = vpop.f32.mrb[0].mxu0
  %v8678 = vadd.f32 0.0, %v8677
  %v8679 = vpop.f32.mrb[0].mxu0
  %8680 = vmatprep.mubr.bf16.mxu0 0
  %8681 = vmatmul.mubr.bf16.gmra.mrb[0].mxu0 %v2646
  %v8682 = vpop.f32.mrb[0].mxu0
  %v8683 = vadd.f32 0.0, %v8682
  %v8684 = vpop.f32.mrb[0].mxu0
  %v8685 = vpop.f32.mrb[0].mxu0
  %v8686 = vadd.f32 0.0, %v8685
  %v8687 = vpop.f32.mrb[0].mxu0
  %8688 = vmatprep.mubr.bf16.mxu0 0
  %8689 = vmatmul.mubr.bf16.gmra.mrb[0].mxu0 %v2649
  %v8690 = vpop.f32.mrb[0].mxu0
  %v8691 = vadd.f32 0.0, %v8690
  %v8692 = vpop.f32.mrb[0].mxu0
  %v8693 = vpop.f32.mrb[0].mxu0
  %v8694 = vadd.f32 0.0, %v8693
  %v8695 = vpop.f32.mrb[0].mxu0
  %8696 = vmatprep.mubr.bf16.mxu0 0
  %8697 = vmatmul.mubr.bf16.gmra.mrb[0].mxu0 %v2652
  %v8698 = vpop.f32.mrb[0].mxu0
  %v8699 = vadd.f32 0.0, %v8698
  %v8700 = vpop.f32.mrb[0].mxu0
  %v8701 = vpop.f32.mrb[0].mxu0
  %v8702 = vadd.f32 0.0, %v8701
  %v8703 = vpop.f32.mrb[0].mxu0
  %8704 = vmatprep.mubr.bf16.mxu0 0
  %8705 = vmatmul.mubr.bf16.gmra.mrb[0].mxu0 %v2655
  %v8706 = vpop.f32.mrb[0].mxu0
  %v8707 = vadd.f32 0.0, %v8706
  %v8708 = vpop.f32.mrb[0].mxu0
  %v8709 = vpop.f32.mrb[0].mxu0
  %v8710 = vadd.f32 0.0, %v8709
  %v8711 = vpop.f32.mrb[0].mxu0
  %8712 = vmatprep.mubr.bf16.mxu0 0
  %8713 = vmatmul.mubr.bf16.gmra.mrb[0].mxu0 %v2658
  %v8714 = vpop.f32.mrb[0].mxu0
  %v8715 = vadd.f32 0.0, %v8714
  %v8716 = vpop.f32.mrb[0].mxu0
  %v8717 = vpop.f32.mrb[0].mxu0
  %v8718 = vadd.f32 0.0, %v8717
  %v8719 = vpop.f32.mrb[0].mxu0
  %8720 = vmatprep.mubr.bf16.mxu0 0
  %8721 = vmatmul.mubr.bf16.gmra.mrb[0].mxu0 %v2661
  %v8722 = vpop.f32.mrb[0].mxu0
  %v8723 = vadd.f32 0.0, %v8722
  %v8724 = vpop.f32.mrb[0].mxu0
  %v8725 = vpop.f32.mrb[0].mxu0
  %v8726 = vadd.f32 0.0, %v8725
  %v8727 = vpop.f32.mrb[0].mxu0
  %8728 = vmatprep.mubr.bf16.mxu0 0
  %8729 = vmatmul.mubr.bf16.gmra.mrb[0].mxu0 %v2664
  %v8730 = vpop.f32.mrb[0].mxu0
  %v8731 = vadd.f32 0.0, %v8730
  %v8732 = vpop.f32.mrb[0].mxu0
  %v8733 = vpop.f32.mrb[0].mxu0
  %v8734 = vadd.f32 0.0, %v8733
  %v8735 = vpop.f32.mrb[0].mxu0
  %8736 = vmatprep.mubr.bf16.mxu0 0
  %8737 = vmatmul.mubr.bf16.gmra.mrb[0].mxu0 %v2667
  %v8738 = vpop.f32.mrb[0].mxu0
  %v8739 = vadd.f32 0.0, %v8738
  %v8740 = vpop.f32.mrb[0].mxu0
  %v8741 = vpop.f32.mrb[0].mxu0
  %v8742 = vadd.f32 0.0, %v8741
  %v8743 = vpop.f32.mrb[0].mxu0
  %8744 = vmatprep.mubr.bf16.mxu0 0
  %8745 = vmatmul.mubr.bf16.gmra.mrb[0].mxu0 %v2670
  %v8746 = vpop.f32.mrb[0].mxu0
  %v8747 = vadd.f32 0.0, %v8746
  %v8748 = vpop.f32.mrb[0].mxu0
  %v8749 = vpop.f32.mrb[0].mxu0
  %v8750 = vadd.f32 0.0, %v8749
  %v8751 = vpop.f32.mrb[0].mxu0
  %8752 = vmatprep.mubr.bf16.mxu0 0
  %8753 = vmatmul.mubr.bf16.gmra.mrb[0].mxu0 %v2673
  %v8754 = vpop.f32.mrb[0].mxu0
  %v8755 = vadd.f32 0.0, %v8754
  %v8756 = vpop.f32.mrb[0].mxu0
  %v8757 = vpop.f32.mrb[0].mxu0
  %v8758 = vadd.f32 0.0, %v8757
  %v8759 = vpop.f32.mrb[0].mxu0
  %8760 = vmatprep.mubr.bf16.mxu0 0
  %8761 = vmatmul.mubr.bf16.gmra.mrb[0].mxu0 %v2676
  %v8762 = vpop.f32.mrb[0].mxu0
  %v8763 = vadd.f32 0.0, %v8762
  %v8764 = vpop.f32.mrb[0].mxu0
  %v8765 = vpop.f32.mrb[0].mxu0
  %v8766 = vadd.f32 0.0, %v8765
  %v8767 = vpop.f32.mrb[0].mxu0
  %8768 = vmatprep.mubr.bf16.mxu0 0
  %8769 = vmatmul.mubr.bf16.gmra.mrb[0].mxu0 %v2679
  %v8770 = vpop.f32.mrb[0].mxu0
  %v8771 = vadd.f32 0.0, %v8770
  %v8772 = vpop.f32.mrb[0].mxu0
  %v8773 = vpop.f32.mrb[0].mxu0
  %v8774 = vadd.f32 0.0, %v8773
  %v8775 = vpop.f32.mrb[0].mxu0
  %8776 = vmatprep.mubr.bf16.mxu0 0
  %8777 = vmatmul.mubr.bf16.gmra.mrb[0].mxu0 %v2682
  %v8778 = vpop.f32.mrb[0].mxu0
  %v8779 = vadd.f32 0.0, %v8778
  %v8780 = vpop.f32.mrb[0].mxu0
  %v8781 = vpop.f32.mrb[0].mxu0
  %v8782 = vadd.f32 0.0, %v8781
  %v8783 = vpop.f32.mrb[0].mxu0
  %8784 = vmatprep.mubr.bf16.mxu0 0
  %8785 = vmatmul.mubr.bf16.gmra.mrb[0].mxu0 %v2685
  %v8786 = vpop.f32.mrb[0].mxu0
  %v8787 = vadd.f32 0.0, %v8786
  %v8788 = vpop.f32.mrb[0].mxu0
  %v8789 = vpop.f32.mrb[0].mxu0
  %v8790 = vadd.f32 0.0, %v8789
  %v8791 = vpop.f32.mrb[0].mxu0
  %8792 = vmatprep.mubr.bf16.mxu0 0
  %8793 = vmatmul.mubr.bf16.gmra.mrb[0].mxu0 %v2688
  %v8794 = vpop.f32.mrb[0].mxu0
  %v8795 = vadd.f32 0.0, %v8794
  %v8796 = vpop.f32.mrb[0].mxu0
  %v8797 = vpop.f32.mrb[0].mxu0
  %v8798 = vadd.f32 0.0, %v8797
  %v8799 = vpop.f32.mrb[0].mxu0
  %8800 = vmatprep.mubr.bf16.mxu0 0
  %8801 = vmatmul.mubr.bf16.gmra.mrb[0].mxu0 %v2691
  %v8802 = vpop.f32.mrb[0].mxu0
  %v8803 = vadd.f32 0.0, %v8802
  %v8804 = vpop.f32.mrb[0].mxu0
  %v8805 = vpop.f32.mrb[0].mxu0
  %v8806 = vadd.f32 0.0, %v8805
  %v8807 = vpop.f32.mrb[0].mxu0
  %8808 = vmatprep.mubr.bf16.mxu0 0
  %8809 = vmatmul.mubr.bf16.gmra.mrb[0].mxu0 %v2694
  %v8810 = vpop.f32.mrb[0].mxu0
  %v8811 = vadd.f32 0.0, %v8810
  %v8812 = vpop.f32.mrb[0].mxu0
  %v8813 = vpop.f32.mrb[0].mxu0
  %v8814 = vadd.f32 0.0, %v8813
  %v8815 = vpop.f32.mrb[0].mxu0
  %8816 = vmatprep.mubr.bf16.mxu0 0
  %8817 = vmatmul.mubr.bf16.gmra.mrb[0].mxu0 %v2697
  %v8818 = vpop.f32.mrb[0].mxu0
  %v8819 = vadd.f32 0.0, %v8818
  %v8820 = vpop.f32.mrb[0].mxu0
  %v8821 = vpop.f32.mrb[0].mxu0
  %v8822 = vadd.f32 0.0, %v8821
  %v8823 = vpop.f32.mrb[0].mxu0
  %8824 = vmatprep.mubr.bf16.mxu0 0
  %8825 = vmatmul.mubr.bf16.gmra.mrb[0].mxu0 %v2700
  %v8826 = vpop.f32.mrb[0].mxu0
  %v8827 = vadd.f32 0.0, %v8826
  %v8828 = vpop.f32.mrb[0].mxu0
  %v8829 = vpop.f32.mrb[0].mxu0
  %v8830 = vadd.f32 0.0, %v8829
  %v8831 = vpop.f32.mrb[0].mxu0
  %8832 = vmatprep.mubr.bf16.mxu0 0
  %8833 = vmatmul.mubr.bf16.gmra.mrb[0].mxu0 %v2703
  %v8834 = vpop.f32.mrb[0].mxu0
  %v8835 = vadd.f32 0.0, %v8834
  %v8836 = vpop.f32.mrb[0].mxu0
  %v8837 = vpop.f32.mrb[0].mxu0
  %v8838 = vadd.f32 0.0, %v8837
  %v8839 = vpop.f32.mrb[0].mxu0
  %8840 = vmatprep.mubr.bf16.mxu0 0
  %8841 = vmatmul.mubr.bf16.gmra.mrb[0].mxu0 %v2706
  %v8842 = vpop.f32.mrb[0].mxu0
  %v8843 = vadd.f32 0.0, %v8842
  %v8844 = vpop.f32.mrb[0].mxu0
  %v8845 = vpop.f32.mrb[0].mxu0
  %v8846 = vadd.f32 0.0, %v8845
  %v8847 = vpop.f32.mrb[0].mxu0
  %8848 = vmatprep.mubr.bf16.mxu0 0
  %8849 = vmatmul.mubr.bf16.gmra.mrb[0].mxu0 %v2709
  %v8850 = vpop.f32.mrb[0].mxu0
  %v8851 = vadd.f32 0.0, %v8850
  %v8852 = vpop.f32.mrb[0].mxu0
  %v8853 = vpop.f32.mrb[0].mxu0
  %v8854 = vadd.f32 0.0, %v8853
  %v8855 = vpop.f32.mrb[0].mxu0
  %8856 = vmatprep.mubr.bf16.mxu0 0
  %8857 = vmatmul.mubr.bf16.gmra.mrb[0].mxu0 %v2712
  %v8858 = vpop.f32.mrb[0].mxu0
  %v8859 = vadd.f32 0.0, %v8858
  %v8860 = vpop.f32.mrb[0].mxu0
  %v8861 = vpop.f32.mrb[0].mxu0
  %v8862 = vadd.f32 0.0, %v8861
  %v8863 = vpop.f32.mrb[0].mxu0
  %8864 = vmatprep.mubr.bf16.mxu0 0
  %8865 = vmatmul.mubr.bf16.gmra.mrb[0].mxu0 %v2715
  %v8866 = vpop.f32.mrb[0].mxu0
  %v8867 = vadd.f32 0.0, %v8866
  %v8868 = vpop.f32.mrb[0].mxu0
  %v8869 = vpop.f32.mrb[0].mxu0
  %v8870 = vadd.f32 0.0, %v8869
  %v8871 = vpop.f32.mrb[0].mxu0
  %8872 = vmatprep.mubr.bf16.mxu0 0
  %8873 = vmatmul.mubr.bf16.gmra.mrb[0].mxu0 %v2718
  %v8874 = vpop.f32.mrb[0].mxu0
  %v8875 = vadd.f32 0.0, %v8874
  %v8876 = vpop.f32.mrb[0].mxu0
  %v8877 = vpop.f32.mrb[0].mxu0
  %v8878 = vadd.f32 0.0, %v8877
  %v8879 = vpop.f32.mrb[0].mxu0
  %8880 = vmatprep.mubr.bf16.mxu0 0
  %8881 = vmatmul.mubr.bf16.gmra.mrb[0].mxu0 %v2721
  %v8882 = vpop.f32.mrb[0].mxu0
  %v8883 = vadd.f32 0.0, %v8882
  %v8884 = vpop.f32.mrb[0].mxu0
  %v8885 = vpop.f32.mrb[0].mxu0
  %v8886 = vadd.f32 0.0, %v8885
  %v8887 = vpop.f32.mrb[0].mxu0
  %8888 = vmatprep.mubr.bf16.mxu0 0
  %8889 = vmatmul.mubr.bf16.gmra.mrb[0].mxu0 %v2724
  %v8890 = vpop.f32.mrb[0].mxu0
  %v8891 = vadd.f32 0.0, %v8890
  %v8892 = vpop.f32.mrb[0].mxu0
  %v8893 = vpop.f32.mrb[0].mxu0
  %v8894 = vadd.f32 0.0, %v8893
  %v8895 = vpop.f32.mrb[0].mxu0
  %8896 = vmatprep.mubr.bf16.mxu0 0
  %8897 = vmatmul.mubr.bf16.gmra.mrb[0].mxu0 %v2727
  %v8898 = vpop.f32.mrb[0].mxu0
  %v8899 = vadd.f32 0.0, %v8898
  %v8900 = vpop.f32.mrb[0].mxu0
  %v8901 = vpop.f32.mrb[0].mxu0
  %v8902 = vadd.f32 0.0, %v8901
  %v8903 = vpop.f32.mrb[0].mxu0
  %8904 = vdwg.mxu0
  %v8905 = vsub.f32 %v7658, %v8651
  %v8906 = vsub.f32 %v7661, %v8654
  %v8907 = vsub.f32 %v7666, %v8659
  %v8908 = vsub.f32 %v7669, %v8662
  %v8909 = vsub.f32 %v7674, %v8667
  %v8910 = vsub.f32 %v7677, %v8670
  %v8911 = vsub.f32 %v7682, %v8675
  %v8912 = vsub.f32 %v7685, %v8678
  %v8913 = vsub.f32 %v7690, %v8683
  %v8914 = vsub.f32 %v7693, %v8686
  %v8915 = vsub.f32 %v7698, %v8691
  %v8916 = vsub.f32 %v7701, %v8694
  %v8917 = vsub.f32 %v7706, %v8699
  %v8918 = vsub.f32 %v7709, %v8702
  %v8919 = vsub.f32 %v7714, %v8707
  %v8920 = vsub.f32 %v7717, %v8710
  %v8921 = vsub.f32 %v7722, %v8715
  %v8922 = vsub.f32 %v7725, %v8718
  %v8923 = vsub.f32 %v7730, %v8723
  %v8924 = vsub.f32 %v7733, %v8726
  %v8925 = vsub.f32 %v7738, %v8731
  %v8926 = vsub.f32 %v7741, %v8734
  %v8927 = vsub.f32 %v7746, %v8739
  %v8928 = vsub.f32 %v7749, %v8742
  %v8929 = vsub.f32 %v7754, %v8747
  %v8930 = vsub.f32 %v7757, %v8750
  %v8931 = vsub.f32 %v7762, %v8755
  %v8932 = vsub.f32 %v7765, %v8758
  %v8933 = vsub.f32 %v7770, %v8763
  %v8934 = vsub.f32 %v7773, %v8766
  %v8935 = vsub.f32 %v7778, %v8771
  %v8936 = vsub.f32 %v7781, %v8774
  %v8937 = vsub.f32 %v7786, %v8779
  %v8938 = vsub.f32 %v7789, %v8782
  %v8939 = vsub.f32 %v7794, %v8787
  %v8940 = vsub.f32 %v7797, %v8790
  %v8941 = vsub.f32 %v7802, %v8795
  %v8942 = vsub.f32 %v7805, %v8798
  %v8943 = vsub.f32 %v7810, %v8803
  %v8944 = vsub.f32 %v7813, %v8806
  %v8945 = vsub.f32 %v7818, %v8811
  %v8946 = vsub.f32 %v7821, %v8814
  %v8947 = vsub.f32 %v7826, %v8819
  %v8948 = vsub.f32 %v7829, %v8822
  %v8949 = vsub.f32 %v7834, %v8827
  %v8950 = vsub.f32 %v7837, %v8830
  %v8951 = vsub.f32 %v7842, %v8835
  %v8952 = vsub.f32 %v7845, %v8838
  %v8953 = vsub.f32 %v7850, %v8843
  %v8954 = vsub.f32 %v7853, %v8846
  %v8955 = vsub.f32 %v7858, %v8851
  %v8956 = vsub.f32 %v7861, %v8854
  %v8957 = vsub.f32 %v7866, %v8859
  %v8958 = vsub.f32 %v7869, %v8862
  %v8959 = vsub.f32 %v7874, %v8867
  %v8960 = vsub.f32 %v7877, %v8870
  %v8961 = vsub.f32 %v7882, %v8875
  %v8962 = vsub.f32 %v7885, %v8878
  %v8963 = vsub.f32 %v7890, %v8883
  %v8964 = vsub.f32 %v7893, %v8886
  %v8965 = vsub.f32 %v7898, %v8891
  %v8966 = vsub.f32 %v7901, %v8894
  %v8967 = vsub.f32 %v7906, %v8899
  %v8968 = vsub.f32 %v7909, %v8902
  %v8969 = vmul.f32 %v8905, 1.442695
  %v8970 = vpow.pop %v8969
  %v8971 = vmul.f32 %v8906, 1.442695
  %v8972 = vpow.pop %v8971
  %v8973 = vmul.f32 %v8907, 1.442695
  %v8974 = vpow.pop %v8973
  %v8975 = vmul.f32 %v8908, 1.442695
  %v8976 = vpow.pop %v8975
  %v8977 = vmul.f32 %v8909, 1.442695
  %v8978 = vpow.pop %v8977
  %v8979 = vmul.f32 %v8910, 1.442695
  %v8980 = vpow.pop %v8979
  %v8981 = vmul.f32 %v8911, 1.442695
  %v8982 = vpow.pop %v8981
  %v8983 = vmul.f32 %v8912, 1.442695
  %v8984 = vpow.pop %v8983
  %v8985 = vmul.f32 %v8913, 1.442695
  %v8986 = vpow.pop %v8985
  %v8987 = vmul.f32 %v8914, 1.442695
  %v8988 = vpow.pop %v8987
  %v8989 = vmul.f32 %v8915, 1.442695
  %v8990 = vpow.pop %v8989
  %v8991 = vmul.f32 %v8916, 1.442695
  %v8992 = vpow.pop %v8991
  %v8993 = vmul.f32 %v8917, 1.442695
  %v8994 = vpow.pop %v8993
  %v8995 = vmul.f32 %v8918, 1.442695
  %v8996 = vpow.pop %v8995
  %v8997 = vmul.f32 %v8919, 1.442695
  %v8998 = vpow.pop %v8997
  %v8999 = vmul.f32 %v8920, 1.442695
  %v9000 = vpow.pop %v8999
  %v9001 = vmul.f32 %v8921, 1.442695
  %v9002 = vpow.pop %v9001
  %v9003 = vmul.f32 %v8922, 1.442695
  %v9004 = vpow.pop %v9003
  %v9005 = vmul.f32 %v8923, 1.442695
  %v9006 = vpow.pop %v9005
  %v9007 = vmul.f32 %v8924, 1.442695
  %v9008 = vpow.pop %v9007
  %v9009 = vmul.f32 %v8925, 1.442695
  %v9010 = vpow.pop %v9009
  %v9011 = vmul.f32 %v8926, 1.442695
  %v9012 = vpow.pop %v9011
  %v9013 = vmul.f32 %v8927, 1.442695
  %v9014 = vpow.pop %v9013
  %v9015 = vmul.f32 %v8928, 1.442695
  %v9016 = vpow.pop %v9015
  %v9017 = vmul.f32 %v8929, 1.442695
  %v9018 = vpow.pop %v9017
  %v9019 = vmul.f32 %v8930, 1.442695
  %v9020 = vpow.pop %v9019
  %v9021 = vmul.f32 %v8931, 1.442695
  %v9022 = vpow.pop %v9021
  %v9023 = vmul.f32 %v8932, 1.442695
  %v9024 = vpow.pop %v9023
  %v9025 = vmul.f32 %v8933, 1.442695
  %v9026 = vpow.pop %v9025
  %v9027 = vmul.f32 %v8934, 1.442695
  %v9028 = vpow.pop %v9027
  %v9029 = vmul.f32 %v8935, 1.442695
  %v9030 = vpow.pop %v9029
  %v9031 = vmul.f32 %v8936, 1.442695
  %v9032 = vpow.pop %v9031
  %v9033 = vmul.f32 %v8937, 1.442695
  %v9034 = vpow.pop %v9033
  %v9035 = vmul.f32 %v8938, 1.442695
  %v9036 = vpow.pop %v9035
  %v9037 = vmul.f32 %v8939, 1.442695
  %v9038 = vpow.pop %v9037
  %v9039 = vmul.f32 %v8940, 1.442695
  %v9040 = vpow.pop %v9039
  %v9041 = vmul.f32 %v8941, 1.442695
  %v9042 = vpow.pop %v9041
  %v9043 = vmul.f32 %v8942, 1.442695
  %v9044 = vpow.pop %v9043
  %v9045 = vmul.f32 %v8943, 1.442695
  %v9046 = vpow.pop %v9045
  %v9047 = vmul.f32 %v8944, 1.442695
  %v9048 = vpow.pop %v9047
  %v9049 = vmul.f32 %v8945, 1.442695
  %v9050 = vpow.pop %v9049
  %v9051 = vmul.f32 %v8946, 1.442695
  %v9052 = vpow.pop %v9051
  %v9053 = vmul.f32 %v8947, 1.442695
  %v9054 = vpow.pop %v9053
  %v9055 = vmul.f32 %v8948, 1.442695
  %v9056 = vpow.pop %v9055
  %v9057 = vmul.f32 %v8949, 1.442695
  %v9058 = vpow.pop %v9057
  %v9059 = vmul.f32 %v8950, 1.442695
  %v9060 = vpow.pop %v9059
  %v9061 = vmul.f32 %v8951, 1.442695
  %v9062 = vpow.pop %v9061
  %v9063 = vmul.f32 %v8952, 1.442695
  %v9064 = vpow.pop %v9063
  %v9065 = vmul.f32 %v8953, 1.442695
  %v9066 = vpow.pop %v9065
  %v9067 = vmul.f32 %v8954, 1.442695
  %v9068 = vpow.pop %v9067
  %v9069 = vmul.f32 %v8955, 1.442695
  %v9070 = vpow.pop %v9069
  %v9071 = vmul.f32 %v8956, 1.442695
  %v9072 = vpow.pop %v9071
  %v9073 = vmul.f32 %v8957, 1.442695
  %v9074 = vpow.pop %v9073
  %v9075 = vmul.f32 %v8958, 1.442695
  %v9076 = vpow.pop %v9075
  %v9077 = vmul.f32 %v8959, 1.442695
  %v9078 = vpow.pop %v9077
  %v9079 = vmul.f32 %v8960, 1.442695
  %v9080 = vpow.pop %v9079
  %v9081 = vmul.f32 %v8961, 1.442695
  %v9082 = vpow.pop %v9081
  %v9083 = vmul.f32 %v8962, 1.442695
  %v9084 = vpow.pop %v9083
  %v9085 = vmul.f32 %v8963, 1.442695
  %v9086 = vpow.pop %v9085
  %v9087 = vmul.f32 %v8964, 1.442695
  %v9088 = vpow.pop %v9087
  %v9089 = vmul.f32 %v8965, 1.442695
  %v9090 = vpow.pop %v9089
  %v9091 = vmul.f32 %v8966, 1.442695
  %v9092 = vpow.pop %v9091
  %v9093 = vmul.f32 %v8967, 1.442695
  %v9094 = vpow.pop %v9093
  %v9095 = vmul.f32 %v8968, 1.442695
  %v9096 = vpow.pop %v9095
  %v9097 = vpack.c.bf16 %v8972, %v8970
  %v9098 = vpack.c.bf16 %v8976, %v8974
  %v9099 = vpack.c.bf16 %v8980, %v8978
  %v9100 = vpack.c.bf16 %v8984, %v8982
  %v9101 = vpack.c.bf16 %v8988, %v8986
  %v9102 = vpack.c.bf16 %v8992, %v8990
  %v9103 = vpack.c.bf16 %v8996, %v8994
  %v9104 = vpack.c.bf16 %v9000, %v8998
  %v9105 = vpack.c.bf16 %v9004, %v9002
  %v9106 = vpack.c.bf16 %v9008, %v9006
  %v9107 = vpack.c.bf16 %v9012, %v9010
  %v9108 = vpack.c.bf16 %v9016, %v9014
  %v9109 = vpack.c.bf16 %v9020, %v9018
  %v9110 = vpack.c.bf16 %v9024, %v9022
  %v9111 = vpack.c.bf16 %v9028, %v9026
  %v9112 = vpack.c.bf16 %v9032, %v9030
  %v9113 = vpack.c.bf16 %v9036, %v9034
  %v9114 = vpack.c.bf16 %v9040, %v9038
  %v9115 = vpack.c.bf16 %v9044, %v9042
  %v9116 = vpack.c.bf16 %v9048, %v9046
  %v9117 = vpack.c.bf16 %v9052, %v9050
  %v9118 = vpack.c.bf16 %v9056, %v9054
  %v9119 = vpack.c.bf16 %v9060, %v9058
  %v9120 = vpack.c.bf16 %v9064, %v9062
  %v9121 = vpack.c.bf16 %v9068, %v9066
  %v9122 = vpack.c.bf16 %v9072, %v9070
  %v9123 = vpack.c.bf16 %v9076, %v9074
  %v9124 = vpack.c.bf16 %v9080, %v9078
  %v9125 = vpack.c.bf16 %v9084, %v9082
  %v9126 = vpack.c.bf16 %v9088, %v9086
  %v9127 = vpack.c.bf16 %v9092, %v9090
  %v9128 = vpack.c.bf16 %v9096, %v9094
  %9129 = vmatprep.subr.bf16.mxu0 0
  %9130 = vmatpush1.bf16.msra.mxu0 %v9097
  %9131 = vmatprep.subr.bf16.mxu0 0
  %9132 = vmatpush1.bf16.msra.mxu0 %v9098
  %9133 = vmatprep.subr.bf16.mxu0 0
  %9134 = vmatpush1.bf16.msra.mxu0 %v9099
  %9135 = vmatprep.subr.bf16.mxu0 0
  %9136 = vmatpush1.bf16.msra.mxu0 %v9100
  %9137 = vmatprep.subr.bf16.mxu0 0
  %9138 = vmatpush1.bf16.msra.mxu0 %v9101
  %9139 = vmatprep.subr.bf16.mxu0 0
  %9140 = vmatpush1.bf16.msra.mxu0 %v9102
  %9141 = vmatprep.subr.bf16.mxu0 0
  %9142 = vmatpush1.bf16.msra.mxu0 %v9103
  %9143 = vmatprep.subr.bf16.mxu0 0
  %9144 = vmatpush1.bf16.msra.mxu0 %v9104
  %9145 = vmatprep.subr.bf16.mxu0 0
  %9146 = vmatpush1.bf16.msra.mxu0 %v9105
  %9147 = vmatprep.subr.bf16.mxu0 0
  %9148 = vmatpush1.bf16.msra.mxu0 %v9106
  %9149 = vmatprep.subr.bf16.mxu0 0
  %9150 = vmatpush1.bf16.msra.mxu0 %v9107
  %9151 = vmatprep.subr.bf16.mxu0 0
  %9152 = vmatpush1.bf16.msra.mxu0 %v9108
  %9153 = vmatprep.subr.bf16.mxu0 0
  %9154 = vmatpush1.bf16.msra.mxu0 %v9109
  %9155 = vmatprep.subr.bf16.mxu0 0
  %9156 = vmatpush1.bf16.msra.mxu0 %v9110
  %9157 = vmatprep.subr.bf16.mxu0 0
  %9158 = vmatpush1.bf16.msra.mxu0 %v9111
  %9159 = vmatprep.subr.bf16.mxu0 0
  %9160 = vmatpush1.bf16.msra.mxu0 %v9112
  %9161 = vmatprep.mubr.bf16.mxu0 %v1140
  %9162 = vmatmul.mubr.bf16.gmra.mrb[0].mxu0 %v1139
  %v9163 = vpop.f32.mrb[0].mxu0
  %v9164 = vadd.f32 0.0, %v9163
  %v9165 = vpop.f32.mrb[0].mxu0
  %v9166 = vpop.f32.mrb[0].mxu0
  %v9167 = vadd.f32 0.0, %v9166
  %v9168 = vpop.f32.mrb[0].mxu0
  %9169 = vmatprep.mubr.bf16.mxu0 %v1144
  %9170 = vmatmul.mubr.bf16.gmra.mrb[0].mxu0 %v1143
  %v9171 = vpop.f32.mrb[0].mxu0
  %v9172 = vadd.f32 0.0, %v9171
  %v9173 = vpop.f32.mrb[0].mxu0
  %v9174 = vpop.f32.mrb[0].mxu0
  %v9175 = vadd.f32 0.0, %v9174
  %v9176 = vpop.f32.mrb[0].mxu0
  %9177 = vmatprep.mubr.bf16.mxu0 %v1148
  %9178 = vmatmul.mubr.bf16.gmra.mrb[0].mxu0 %v1147
  %v9179 = vpop.f32.mrb[0].mxu0
  %v9180 = vadd.f32 0.0, %v9179
  %v9181 = vpop.f32.mrb[0].mxu0
  %v9182 = vpop.f32.mrb[0].mxu0
  %v9183 = vadd.f32 0.0, %v9182
  %v9184 = vpop.f32.mrb[0].mxu0
  %9185 = vmatprep.mubr.bf16.mxu0 %v1152
  %9186 = vmatmul.mubr.bf16.gmra.mrb[0].mxu0 %v1151
  %v9187 = vpop.f32.mrb[0].mxu0
  %v9188 = vadd.f32 0.0, %v9187
  %v9189 = vpop.f32.mrb[0].mxu0
  %v9190 = vpop.f32.mrb[0].mxu0
  %v9191 = vadd.f32 0.0, %v9190
  %v9192 = vpop.f32.mrb[0].mxu0
  %9193 = vdwg.mxu0
  %9194 = vmatprep.subr.bf16.mxu0 0
  %9195 = vmatpush1.bf16.msra.mxu0 %v9113
  %9196 = vmatprep.subr.bf16.mxu0 0
  %9197 = vmatpush1.bf16.msra.mxu0 %v9114
  %9198 = vmatprep.subr.bf16.mxu0 0
  %9199 = vmatpush1.bf16.msra.mxu0 %v9115
  %9200 = vmatprep.subr.bf16.mxu0 0
  %9201 = vmatpush1.bf16.msra.mxu0 %v9116
  %9202 = vmatprep.subr.bf16.mxu0 0
  %9203 = vmatpush1.bf16.msra.mxu0 %v9117
  %9204 = vmatprep.subr.bf16.mxu0 0
  %9205 = vmatpush1.bf16.msra.mxu0 %v9118
  %9206 = vmatprep.subr.bf16.mxu0 0
  %9207 = vmatpush1.bf16.msra.mxu0 %v9119
  %9208 = vmatprep.subr.bf16.mxu0 0
  %9209 = vmatpush1.bf16.msra.mxu0 %v9120
  %9210 = vmatprep.subr.bf16.mxu0 0
  %9211 = vmatpush1.bf16.msra.mxu0 %v9121
  %9212 = vmatprep.subr.bf16.mxu0 0
  %9213 = vmatpush1.bf16.msra.mxu0 %v9122
  %9214 = vmatprep.subr.bf16.mxu0 0
  %9215 = vmatpush1.bf16.msra.mxu0 %v9123
  %9216 = vmatprep.subr.bf16.mxu0 0
  %9217 = vmatpush1.bf16.msra.mxu0 %v9124
  %9218 = vmatprep.subr.bf16.mxu0 0
  %9219 = vmatpush1.bf16.msra.mxu0 %v9125
  %9220 = vmatprep.subr.bf16.mxu0 0
  %9221 = vmatpush1.bf16.msra.mxu0 %v9126
  %9222 = vmatprep.subr.bf16.mxu0 0
  %9223 = vmatpush1.bf16.msra.mxu0 %v9127
  %9224 = vmatprep.subr.bf16.mxu0 0
  %9225 = vmatpush1.bf16.msra.mxu0 %v9128
  %9226 = vmatprep.mubr.bf16.mxu0 %v1142
  %9227 = vmatmul.mubr.bf16.gmra.mrb[0].mxu0 %v1141
  %v9228 = vpop.f32.mrb[0].mxu0
  %v9229 = vadd.f32 %v9164, %v9228
  %v9230 = vpop.f32.mrb[0].mxu0
  %v9231 = vpop.f32.mrb[0].mxu0
  %v9232 = vadd.f32 %v9167, %v9231
  %v9233 = vpop.f32.mrb[0].mxu0
  %9234 = vmatprep.mubr.bf16.mxu0 %v1146
  %9235 = vmatmul.mubr.bf16.gmra.mrb[0].mxu0 %v1145
  %v9236 = vpop.f32.mrb[0].mxu0
  %v9237 = vadd.f32 %v9172, %v9236
  %v9238 = vpop.f32.mrb[0].mxu0
  %v9239 = vpop.f32.mrb[0].mxu0
  %v9240 = vadd.f32 %v9175, %v9239
  %v9241 = vpop.f32.mrb[0].mxu0
  %9242 = vmatprep.mubr.bf16.mxu0 %v1150
  %9243 = vmatmul.mubr.bf16.gmra.mrb[0].mxu0 %v1149
  %v9244 = vpop.f32.mrb[0].mxu0
  %v9245 = vadd.f32 %v9180, %v9244
  %v9246 = vpop.f32.mrb[0].mxu0
  %v9247 = vpop.f32.mrb[0].mxu0
  %v9248 = vadd.f32 %v9183, %v9247
  %v9249 = vpop.f32.mrb[0].mxu0
  %9250 = vmatprep.mubr.bf16.mxu0 %v1154
  %9251 = vmatmul.mubr.bf16.gmra.mrb[0].mxu0 %v1153
  %v9252 = vpop.f32.mrb[0].mxu0
  %v9253 = vadd.f32 %v9188, %v9252
  %v9254 = vpop.f32.mrb[0].mxu0
  %v9255 = vpop.f32.mrb[0].mxu0
  %v9256 = vadd.f32 %v9191, %v9255
  %v9257 = vpop.f32.mrb[0].mxu0
  %9258 = vdwg.mxu0
  %v9260 = vsel %vm3499, %v9097, 0
  %v9263 = vsel %vm3499, %v9098, 0
  %v9266 = vsel %vm3499, %v9099, 0
  %v9269 = vsel %vm3499, %v9100, 0
  %v9272 = vsel %vm3499, %v9101, 0
  %v9275 = vsel %vm3499, %v9102, 0
  %v9278 = vsel %vm3499, %v9103, 0
  %v9281 = vsel %vm3499, %v9104, 0
  %v9284 = vsel %vm3499, %v9105, 0
  %v9287 = vsel %vm3499, %v9106, 0
  %v9290 = vsel %vm3499, %v9107, 0
  %v9293 = vsel %vm3499, %v9108, 0
  %v9296 = vsel %vm3499, %v9109, 0
  %v9299 = vsel %vm3499, %v9110, 0
  %v9302 = vsel %vm3499, %v9111, 0
  %v9305 = vsel %vm3499, %v9112, 0
  %v9308 = vsel %vm3499, %v9113, 0
  %v9311 = vsel %vm3499, %v9114, 0
  %v9314 = vsel %vm3499, %v9115, 0
  %v9317 = vsel %vm3499, %v9116, 0
  %v9320 = vsel %vm3499, %v9117, 0
  %v9323 = vsel %vm3499, %v9118, 0
  %v9326 = vsel %vm3499, %v9119, 0
  %v9329 = vsel %vm3499, %v9120, 0
  %v9332 = vsel %vm3499, %v9121, 0
  %v9335 = vsel %vm3499, %v9122, 0
  %v9338 = vsel %vm3499, %v9123, 0
  %v9341 = vsel %vm3499, %v9124, 0
  %v9344 = vsel %vm3499, %v9125, 0
  %v9347 = vsel %vm3499, %v9126, 0
  %v9350 = vsel %vm3499, %v9127, 0
  %v9353 = vsel %vm3499, %v9128, 0
  %9355 = vmatprep.subr.bf16.mxu0 0
  %9356 = vmatpush1.bf16.msra.mxu0 %v4952
  %9357 = vmatprep.subr.bf16.mxu0 0
  %9358 = vmatpush1.bf16.msra.mxu0 0
  %9359 = vmatprep.subr.bf16.mxu0 0
  %9360 = vmatpush1.bf16.msra.mxu0 0
  %9361 = vmatprep.subr.bf16.mxu0 0
  %9362 = vmatpush1.bf16.msra.mxu0 0
  %9363 = vmatprep.subr.bf16.mxu0 0
  %9364 = vmatpush1.bf16.msra.mxu0 0
  %9365 = vmatprep.subr.bf16.mxu0 0
  %9366 = vmatpush1.bf16.msra.mxu0 0
  %9367 = vmatprep.subr.bf16.mxu0 0
  %9368 = vmatpush1.bf16.msra.mxu0 0
  %9369 = vmatprep.subr.bf16.mxu0 0
  %9370 = vmatpush1.bf16.msra.mxu0 0
  %9371 = vmatprep.subr.bf16.mxu0 0
  %9372 = vmatpush1.bf16.msra.mxu0 0
  %9373 = vmatprep.subr.bf16.mxu0 0
  %9374 = vmatpush1.bf16.msra.mxu0 0
  %9375 = vmatprep.subr.bf16.mxu0 0
  %9376 = vmatpush1.bf16.msra.mxu0 0
  %9377 = vmatprep.subr.bf16.mxu0 0
  %9378 = vmatpush1.bf16.msra.mxu0 0
  %9379 = vmatprep.subr.bf16.mxu0 0
  %9380 = vmatpush1.bf16.msra.mxu0 0
  %9381 = vmatprep.subr.bf16.mxu0 0
  %9382 = vmatpush1.bf16.msra.mxu0 0
  %9383 = vmatprep.subr.bf16.mxu0 0
  %9384 = vmatpush1.bf16.msra.mxu0 0
  %9385 = vmatprep.subr.bf16.mxu0 0
  %9386 = vmatpush1.bf16.msra.mxu0 0
  %9387 = vmatprep.mubr.bf16.mxu0 0
  %9388 = vmatmul.mubr.bf16.gmra.mrb[0].mxu0 %v9260
  %v9389 = vpop.f32.mrb[0].mxu0
  %v9390 = vadd.f32 0.0, %v9389
  %v9391 = vpop.f32.mrb[0].mxu0
  %v9392 = vpop.f32.mrb[0].mxu0
  %v9393 = vadd.f32 0.0, %v9392
  %v9394 = vpop.f32.mrb[0].mxu0
  %9395 = vmatprep.mubr.bf16.mxu0 0
  %9396 = vmatmul.mubr.bf16.gmra.mrb[0].mxu0 %v9263
  %v9397 = vpop.f32.mrb[0].mxu0
  %v9398 = vadd.f32 0.0, %v9397
  %v9399 = vpop.f32.mrb[0].mxu0
  %v9400 = vpop.f32.mrb[0].mxu0
  %v9401 = vadd.f32 0.0, %v9400
  %v9402 = vpop.f32.mrb[0].mxu0
  %9403 = vmatprep.mubr.bf16.mxu0 0
  %9404 = vmatmul.mubr.bf16.gmra.mrb[0].mxu0 %v9266
  %v9405 = vpop.f32.mrb[0].mxu0
  %v9406 = vadd.f32 0.0, %v9405
  %v9407 = vpop.f32.mrb[0].mxu0
  %v9408 = vpop.f32.mrb[0].mxu0
  %v9409 = vadd.f32 0.0, %v9408
  %v9410 = vpop.f32.mrb[0].mxu0
  %9411 = vmatprep.mubr.bf16.mxu0 0
  %9412 = vmatmul.mubr.bf16.gmra.mrb[0].mxu0 %v9269
  %v9413 = vpop.f32.mrb[0].mxu0
  %v9414 = vadd.f32 0.0, %v9413
  %v9415 = vpop.f32.mrb[0].mxu0
  %v9416 = vpop.f32.mrb[0].mxu0
  %v9417 = vadd.f32 0.0, %v9416
  %v9418 = vpop.f32.mrb[0].mxu0
  %9419 = vmatprep.mubr.bf16.mxu0 0
  %9420 = vmatmul.mubr.bf16.gmra.mrb[0].mxu0 %v9272
  %v9421 = vpop.f32.mrb[0].mxu0
  %v9422 = vadd.f32 0.0, %v9421
  %v9423 = vpop.f32.mrb[0].mxu0
  %v9424 = vpop.f32.mrb[0].mxu0
  %v9425 = vadd.f32 0.0, %v9424
  %v9426 = vpop.f32.mrb[0].mxu0
  %9427 = vmatprep.mubr.bf16.mxu0 0
  %9428 = vmatmul.mubr.bf16.gmra.mrb[0].mxu0 %v9275
  %v9429 = vpop.f32.mrb[0].mxu0
  %v9430 = vadd.f32 0.0, %v9429
  %v9431 = vpop.f32.mrb[0].mxu0
  %v9432 = vpop.f32.mrb[0].mxu0
  %v9433 = vadd.f32 0.0, %v9432
  %v9434 = vpop.f32.mrb[0].mxu0
  %9435 = vmatprep.mubr.bf16.mxu0 0
  %9436 = vmatmul.mubr.bf16.gmra.mrb[0].mxu0 %v9278
  %v9437 = vpop.f32.mrb[0].mxu0
  %v9438 = vadd.f32 0.0, %v9437
  %v9439 = vpop.f32.mrb[0].mxu0
  %v9440 = vpop.f32.mrb[0].mxu0
  %v9441 = vadd.f32 0.0, %v9440
  %v9442 = vpop.f32.mrb[0].mxu0
  %9443 = vmatprep.mubr.bf16.mxu0 0
  %9444 = vmatmul.mubr.bf16.gmra.mrb[0].mxu0 %v9281
  %v9445 = vpop.f32.mrb[0].mxu0
  %v9446 = vadd.f32 0.0, %v9445
  %v9447 = vpop.f32.mrb[0].mxu0
  %v9448 = vpop.f32.mrb[0].mxu0
  %v9449 = vadd.f32 0.0, %v9448
  %v9450 = vpop.f32.mrb[0].mxu0
  %9451 = vmatprep.mubr.bf16.mxu0 0
  %9452 = vmatmul.mubr.bf16.gmra.mrb[0].mxu0 %v9284
  %v9453 = vpop.f32.mrb[0].mxu0
  %v9454 = vadd.f32 0.0, %v9453
  %v9455 = vpop.f32.mrb[0].mxu0
  %v9456 = vpop.f32.mrb[0].mxu0
  %v9457 = vadd.f32 0.0, %v9456
  %v9458 = vpop.f32.mrb[0].mxu0
  %9459 = vmatprep.mubr.bf16.mxu0 0
  %9460 = vmatmul.mubr.bf16.gmra.mrb[0].mxu0 %v9287
  %v9461 = vpop.f32.mrb[0].mxu0
  %v9462 = vadd.f32 0.0, %v9461
  %v9463 = vpop.f32.mrb[0].mxu0
  %v9464 = vpop.f32.mrb[0].mxu0
  %v9465 = vadd.f32 0.0, %v9464
  %v9466 = vpop.f32.mrb[0].mxu0
  %9467 = vmatprep.mubr.bf16.mxu0 0
  %9468 = vmatmul.mubr.bf16.gmra.mrb[0].mxu0 %v9290
  %v9469 = vpop.f32.mrb[0].mxu0
  %v9470 = vadd.f32 0.0, %v9469
  %v9471 = vpop.f32.mrb[0].mxu0
  %v9472 = vpop.f32.mrb[0].mxu0
  %v9473 = vadd.f32 0.0, %v9472
  %v9474 = vpop.f32.mrb[0].mxu0
  %9475 = vmatprep.mubr.bf16.mxu0 0
  %9476 = vmatmul.mubr.bf16.gmra.mrb[0].mxu0 %v9293
  %v9477 = vpop.f32.mrb[0].mxu0
  %v9478 = vadd.f32 0.0, %v9477
  %v9479 = vpop.f32.mrb[0].mxu0
  %v9480 = vpop.f32.mrb[0].mxu0
  %v9481 = vadd.f32 0.0, %v9480
  %v9482 = vpop.f32.mrb[0].mxu0
  %9483 = vmatprep.mubr.bf16.mxu0 0
  %9484 = vmatmul.mubr.bf16.gmra.mrb[0].mxu0 %v9296
  %v9485 = vpop.f32.mrb[0].mxu0
  %v9486 = vadd.f32 0.0, %v9485
  %v9487 = vpop.f32.mrb[0].mxu0
  %v9488 = vpop.f32.mrb[0].mxu0
  %v9489 = vadd.f32 0.0, %v9488
  %v9490 = vpop.f32.mrb[0].mxu0
  %9491 = vmatprep.mubr.bf16.mxu0 0
  %9492 = vmatmul.mubr.bf16.gmra.mrb[0].mxu0 %v9299
  %v9493 = vpop.f32.mrb[0].mxu0
  %v9494 = vadd.f32 0.0, %v9493
  %v9495 = vpop.f32.mrb[0].mxu0
  %v9496 = vpop.f32.mrb[0].mxu0
  %v9497 = vadd.f32 0.0, %v9496
  %v9498 = vpop.f32.mrb[0].mxu0
  %9499 = vmatprep.mubr.bf16.mxu0 0
  %9500 = vmatmul.mubr.bf16.gmra.mrb[0].mxu0 %v9302
  %v9501 = vpop.f32.mrb[0].mxu0
  %v9502 = vadd.f32 0.0, %v9501
  %v9503 = vpop.f32.mrb[0].mxu0
  %v9504 = vpop.f32.mrb[0].mxu0
  %v9505 = vadd.f32 0.0, %v9504
  %v9506 = vpop.f32.mrb[0].mxu0
  %9507 = vmatprep.mubr.bf16.mxu0 0
  %9508 = vmatmul.mubr.bf16.gmra.mrb[0].mxu0 %v9305
  %v9509 = vpop.f32.mrb[0].mxu0
  %v9510 = vadd.f32 0.0, %v9509
  %v9511 = vpop.f32.mrb[0].mxu0
  %v9512 = vpop.f32.mrb[0].mxu0
  %v9513 = vadd.f32 0.0, %v9512
  %v9514 = vpop.f32.mrb[0].mxu0
  %9515 = vmatprep.mubr.bf16.mxu0 0
  %9516 = vmatmul.mubr.bf16.gmra.mrb[0].mxu0 %v9308
  %v9517 = vpop.f32.mrb[0].mxu0
  %v9518 = vadd.f32 0.0, %v9517
  %v9519 = vpop.f32.mrb[0].mxu0
  %v9520 = vpop.f32.mrb[0].mxu0
  %v9521 = vadd.f32 0.0, %v9520
  %v9522 = vpop.f32.mrb[0].mxu0
  %9523 = vmatprep.mubr.bf16.mxu0 0
  %9524 = vmatmul.mubr.bf16.gmra.mrb[0].mxu0 %v9311
  %v9525 = vpop.f32.mrb[0].mxu0
  %v9526 = vadd.f32 0.0, %v9525
  %v9527 = vpop.f32.mrb[0].mxu0
  %v9528 = vpop.f32.mrb[0].mxu0
  %v9529 = vadd.f32 0.0, %v9528
  %v9530 = vpop.f32.mrb[0].mxu0
  %9531 = vmatprep.mubr.bf16.mxu0 0
  %9532 = vmatmul.mubr.bf16.gmra.mrb[0].mxu0 %v9314
  %v9533 = vpop.f32.mrb[0].mxu0
  %v9534 = vadd.f32 0.0, %v9533
  %v9535 = vpop.f32.mrb[0].mxu0
  %v9536 = vpop.f32.mrb[0].mxu0
  %v9537 = vadd.f32 0.0, %v9536
  %v9538 = vpop.f32.mrb[0].mxu0
  %9539 = vmatprep.mubr.bf16.mxu0 0
  %9540 = vmatmul.mubr.bf16.gmra.mrb[0].mxu0 %v9317
  %v9541 = vpop.f32.mrb[0].mxu0
  %v9542 = vadd.f32 0.0, %v9541
  %v9543 = vpop.f32.mrb[0].mxu0
  %v9544 = vpop.f32.mrb[0].mxu0
  %v9545 = vadd.f32 0.0, %v9544
  %v9546 = vpop.f32.mrb[0].mxu0
  %9547 = vmatprep.mubr.bf16.mxu0 0
  %9548 = vmatmul.mubr.bf16.gmra.mrb[0].mxu0 %v9320
  %v9549 = vpop.f32.mrb[0].mxu0
  %v9550 = vadd.f32 0.0, %v9549
  %v9551 = vpop.f32.mrb[0].mxu0
  %v9552 = vpop.f32.mrb[0].mxu0
  %v9553 = vadd.f32 0.0, %v9552
  %v9554 = vpop.f32.mrb[0].mxu0
  %9555 = vmatprep.mubr.bf16.mxu0 0
  %9556 = vmatmul.mubr.bf16.gmra.mrb[0].mxu0 %v9323
  %v9557 = vpop.f32.mrb[0].mxu0
  %v9558 = vadd.f32 0.0, %v9557
  %v9559 = vpop.f32.mrb[0].mxu0
  %v9560 = vpop.f32.mrb[0].mxu0
  %v9561 = vadd.f32 0.0, %v9560
  %v9562 = vpop.f32.mrb[0].mxu0
  %9563 = vmatprep.mubr.bf16.mxu0 0
  %9564 = vmatmul.mubr.bf16.gmra.mrb[0].mxu0 %v9326
  %v9565 = vpop.f32.mrb[0].mxu0
  %v9566 = vadd.f32 0.0, %v9565
  %v9567 = vpop.f32.mrb[0].mxu0
  %v9568 = vpop.f32.mrb[0].mxu0
  %v9569 = vadd.f32 0.0, %v9568
  %v9570 = vpop.f32.mrb[0].mxu0
  %9571 = vmatprep.mubr.bf16.mxu0 0
  %9572 = vmatmul.mubr.bf16.gmra.mrb[0].mxu0 %v9329
  %v9573 = vpop.f32.mrb[0].mxu0
  %v9574 = vadd.f32 0.0, %v9573
  %v9575 = vpop.f32.mrb[0].mxu0
  %v9576 = vpop.f32.mrb[0].mxu0
  %v9577 = vadd.f32 0.0, %v9576
  %v9578 = vpop.f32.mrb[0].mxu0
  %9579 = vmatprep.mubr.bf16.mxu0 0
  %9580 = vmatmul.mubr.bf16.gmra.mrb[0].mxu0 %v9332
  %v9581 = vpop.f32.mrb[0].mxu0
  %v9582 = vadd.f32 0.0, %v9581
  %v9583 = vpop.f32.mrb[0].mxu0
  %v9584 = vpop.f32.mrb[0].mxu0
  %v9585 = vadd.f32 0.0, %v9584
  %v9586 = vpop.f32.mrb[0].mxu0
  %9587 = vmatprep.mubr.bf16.mxu0 0
  %9588 = vmatmul.mubr.bf16.gmra.mrb[0].mxu0 %v9335
  %v9589 = vpop.f32.mrb[0].mxu0
  %v9590 = vadd.f32 0.0, %v9589
  %v9591 = vpop.f32.mrb[0].mxu0
  %v9592 = vpop.f32.mrb[0].mxu0
  %v9593 = vadd.f32 0.0, %v9592
  %v9594 = vpop.f32.mrb[0].mxu0
  %9595 = vmatprep.mubr.bf16.mxu0 0
  %9596 = vmatmul.mubr.bf16.gmra.mrb[0].mxu0 %v9338
  %v9597 = vpop.f32.mrb[0].mxu0
  %v9598 = vadd.f32 0.0, %v9597
  %v9599 = vpop.f32.mrb[0].mxu0
  %v9600 = vpop.f32.mrb[0].mxu0
  %v9601 = vadd.f32 0.0, %v9600
  %v9602 = vpop.f32.mrb[0].mxu0
  %9603 = vmatprep.mubr.bf16.mxu0 0
  %9604 = vmatmul.mubr.bf16.gmra.mrb[0].mxu0 %v9341
  %v9605 = vpop.f32.mrb[0].mxu0
  %v9606 = vadd.f32 0.0, %v9605
  %v9607 = vpop.f32.mrb[0].mxu0
  %v9608 = vpop.f32.mrb[0].mxu0
  %v9609 = vadd.f32 0.0, %v9608
  %v9610 = vpop.f32.mrb[0].mxu0
  %9611 = vmatprep.mubr.bf16.mxu0 0
  %9612 = vmatmul.mubr.bf16.gmra.mrb[0].mxu0 %v9344
  %v9613 = vpop.f32.mrb[0].mxu0
  %v9614 = vadd.f32 0.0, %v9613
  %v9615 = vpop.f32.mrb[0].mxu0
  %v9616 = vpop.f32.mrb[0].mxu0
  %v9617 = vadd.f32 0.0, %v9616
  %v9618 = vpop.f32.mrb[0].mxu0
  %9619 = vmatprep.mubr.bf16.mxu0 0
  %9620 = vmatmul.mubr.bf16.gmra.mrb[0].mxu0 %v9347
  %v9621 = vpop.f32.mrb[0].mxu0
  %v9622 = vadd.f32 0.0, %v9621
  %v9623 = vpop.f32.mrb[0].mxu0
  %v9624 = vpop.f32.mrb[0].mxu0
  %v9625 = vadd.f32 0.0, %v9624
  %v9626 = vpop.f32.mrb[0].mxu0
  %9627 = vmatprep.mubr.bf16.mxu0 0
  %9628 = vmatmul.mubr.bf16.gmra.mrb[0].mxu0 %v9350
  %v9629 = vpop.f32.mrb[0].mxu0
  %v9630 = vadd.f32 0.0, %v9629
  %v9631 = vpop.f32.mrb[0].mxu0
  %v9632 = vpop.f32.mrb[0].mxu0
  %v9633 = vadd.f32 0.0, %v9632
  %v9634 = vpop.f32.mrb[0].mxu0
  %9635 = vmatprep.mubr.bf16.mxu0 0
  %9636 = vmatmul.mubr.bf16.gmra.mrb[0].mxu0 %v9353
  %v9637 = vpop.f32.mrb[0].mxu0
  %v9638 = vadd.f32 0.0, %v9637
  %v9639 = vpop.f32.mrb[0].mxu0
  %v9640 = vpop.f32.mrb[0].mxu0
  %v9641 = vadd.f32 0.0, %v9640
  %v9642 = vpop.f32.mrb[0].mxu0
  %9643 = vdwg.mxu0
  %v9644 = vmul.f32 %v9390, %v7010
  %v9645 = vmul.f32 %v9393, %v7012
  %v9646 = vmul.f32 %v9398, %v7014
  %v9647 = vmul.f32 %v9401, %v7016
  %v9648 = vmul.f32 %v9406, %v7018
  %v9649 = vmul.f32 %v9409, %v7020
  %v9650 = vmul.f32 %v9414, %v7022
  %v9651 = vmul.f32 %v9417, %v7024
  %v9652 = vmul.f32 %v9422, %v7026
  %v9653 = vmul.f32 %v9425, %v7028
  %v9654 = vmul.f32 %v9430, %v7030
  %v9655 = vmul.f32 %v9433, %v7032
  %v9656 = vmul.f32 %v9438, %v7034
  %v9657 = vmul.f32 %v9441, %v7036
  %v9658 = vmul.f32 %v9446, %v7038
  %v9659 = vmul.f32 %v9449, %v7040
  %v9660 = vmul.f32 %v9454, %v7042
  %v9661 = vmul.f32 %v9457, %v7044
  %v9662 = vmul.f32 %v9462, %v7046
  %v9663 = vmul.f32 %v9465, %v7048
  %v9664 = vmul.f32 %v9470, %v7050
  %v9665 = vmul.f32 %v9473, %v7052
  %v9666 = vmul.f32 %v9478, %v7054
  %v9667 = vmul.f32 %v9481, %v7056
  %v9668 = vmul.f32 %v9486, %v7058
  %v9669 = vmul.f32 %v9489, %v7060
  %v9670 = vmul.f32 %v9494, %v7062
  %v9671 = vmul.f32 %v9497, %v7064
  %v9672 = vmul.f32 %v9502, %v7066
  %v9673 = vmul.f32 %v9505, %v7068
  %v9674 = vmul.f32 %v9510, %v7070
  %v9675 = vmul.f32 %v9513, %v7072
  %v9676 = vmul.f32 %v9518, %v7074
  %v9677 = vmul.f32 %v9521, %v7076
  %v9678 = vmul.f32 %v9526, %v7078
  %v9679 = vmul.f32 %v9529, %v7080
  %v9680 = vmul.f32 %v9534, %v7082
  %v9681 = vmul.f32 %v9537, %v7084
  %v9682 = vmul.f32 %v9542, %v7086
  %v9683 = vmul.f32 %v9545, %v7088
  %v9684 = vmul.f32 %v9550, %v7090
  %v9685 = vmul.f32 %v9553, %v7092
  %v9686 = vmul.f32 %v9558, %v7094
  %v9687 = vmul.f32 %v9561, %v7096
  %v9688 = vmul.f32 %v9566, %v7098
  %v9689 = vmul.f32 %v9569, %v7100
  %v9690 = vmul.f32 %v9574, %v7102
  %v9691 = vmul.f32 %v9577, %v7104
  %v9692 = vmul.f32 %v9582, %v7106
  %v9693 = vmul.f32 %v9585, %v7108
  %v9694 = vmul.f32 %v9590, %v7110
  %v9695 = vmul.f32 %v9593, %v7112
  %v9696 = vmul.f32 %v9598, %v7114
  %v9697 = vmul.f32 %v9601, %v7116
  %v9698 = vmul.f32 %v9606, %v7118
  %v9699 = vmul.f32 %v9609, %v7120
  %v9700 = vmul.f32 %v9614, %v7122
  %v9701 = vmul.f32 %v9617, %v7124
  %v9702 = vmul.f32 %v9622, %v7126
  %v9703 = vmul.f32 %v9625, %v7128
  %v9704 = vmul.f32 %v9630, %v7130
  %v9705 = vmul.f32 %v9633, %v7132
  %v9706 = vmul.f32 %v9638, %v7134
  %v9707 = vmul.f32 %v9641, %v7136
  %v9708 = vpack.c.bf16 %v9645, %v9644
  %v9709 = vpack.c.bf16 %v9647, %v9646
  %v9710 = vpack.c.bf16 %v9649, %v9648
  %v9711 = vpack.c.bf16 %v9651, %v9650
  %v9712 = vpack.c.bf16 %v9653, %v9652
  %v9713 = vpack.c.bf16 %v9655, %v9654
  %v9714 = vpack.c.bf16 %v9657, %v9656
  %v9715 = vpack.c.bf16 %v9659, %v9658
  %v9716 = vpack.c.bf16 %v9661, %v9660
  %v9717 = vpack.c.bf16 %v9663, %v9662
  %v9718 = vpack.c.bf16 %v9665, %v9664
  %v9719 = vpack.c.bf16 %v9667, %v9666
  %v9720 = vpack.c.bf16 %v9669, %v9668
  %v9721 = vpack.c.bf16 %v9671, %v9670
  %v9722 = vpack.c.bf16 %v9673, %v9672
  %v9723 = vpack.c.bf16 %v9675, %v9674
  %v9724 = vpack.c.bf16 %v9677, %v9676
  %v9725 = vpack.c.bf16 %v9679, %v9678
  %v9726 = vpack.c.bf16 %v9681, %v9680
  %v9727 = vpack.c.bf16 %v9683, %v9682
  %v9728 = vpack.c.bf16 %v9685, %v9684
  %v9729 = vpack.c.bf16 %v9687, %v9686
  %v9730 = vpack.c.bf16 %v9689, %v9688
  %v9731 = vpack.c.bf16 %v9691, %v9690
  %v9732 = vpack.c.bf16 %v9693, %v9692
  %v9733 = vpack.c.bf16 %v9695, %v9694
  %v9734 = vpack.c.bf16 %v9697, %v9696
  %v9735 = vpack.c.bf16 %v9699, %v9698
  %v9736 = vpack.c.bf16 %v9701, %v9700
  %v9737 = vpack.c.bf16 %v9703, %v9702
  %v9738 = vpack.c.bf16 %v9705, %v9704
  %v9739 = vpack.c.bf16 %v9707, %v9706
  %9740 = vmatprep.subr.bf16.mxu0 0
  %9741 = vmatpush1.bf16.msra.mxu0 %v9708
  %9742 = vmatprep.subr.bf16.mxu0 0
  %9743 = vmatpush1.bf16.msra.mxu0 %v9709
  %9744 = vmatprep.subr.bf16.mxu0 0
  %9745 = vmatpush1.bf16.msra.mxu0 %v9710
  %9746 = vmatprep.subr.bf16.mxu0 0
  %9747 = vmatpush1.bf16.msra.mxu0 %v9711
  %9748 = vmatprep.subr.bf16.mxu0 0
  %9749 = vmatpush1.bf16.msra.mxu0 %v9712
  %9750 = vmatprep.subr.bf16.mxu0 0
  %9751 = vmatpush1.bf16.msra.mxu0 %v9713
  %9752 = vmatprep.subr.bf16.mxu0 0
  %9753 = vmatpush1.bf16.msra.mxu0 %v9714
  %9754 = vmatprep.subr.bf16.mxu0 0
  %9755 = vmatpush1.bf16.msra.mxu0 %v9715
  %9756 = vmatprep.subr.bf16.mxu0 0
  %9757 = vmatpush1.bf16.msra.mxu0 %v9716
  %9758 = vmatprep.subr.bf16.mxu0 0
  %9759 = vmatpush1.bf16.msra.mxu0 %v9717
  %9760 = vmatprep.subr.bf16.mxu0 0
  %9761 = vmatpush1.bf16.msra.mxu0 %v9718
  %9762 = vmatprep.subr.bf16.mxu0 0
  %9763 = vmatpush1.bf16.msra.mxu0 %v9719
  %9764 = vmatprep.subr.bf16.mxu0 0
  %9765 = vmatpush1.bf16.msra.mxu0 %v9720
  %9766 = vmatprep.subr.bf16.mxu0 0
  %9767 = vmatpush1.bf16.msra.mxu0 %v9721
  %9768 = vmatprep.subr.bf16.mxu0 0
  %9769 = vmatpush1.bf16.msra.mxu0 %v9722
  %9770 = vmatprep.subr.bf16.mxu0 0
  %9771 = vmatpush1.bf16.msra.mxu0 %v9723
  %9772 = vmatprep.mubr.bf16.mxu0 %v1140
  %9773 = vmatmul.mubr.bf16.gmra.mrb[0].mxu0 %v1139
  %v9774 = vpop.f32.mrb[0].mxu0
  %v9775 = vadd.f32 0.0, %v9774
  %v9776 = vpop.f32.mrb[0].mxu0
  %v9777 = vpop.f32.mrb[0].mxu0
  %v9778 = vadd.f32 0.0, %v9777
  %v9779 = vpop.f32.mrb[0].mxu0
  %9780 = vmatprep.mubr.bf16.mxu0 %v1144
  %9781 = vmatmul.mubr.bf16.gmra.mrb[0].mxu0 %v1143
  %v9782 = vpop.f32.mrb[0].mxu0
  %v9783 = vadd.f32 0.0, %v9782
  %v9784 = vpop.f32.mrb[0].mxu0
  %v9785 = vpop.f32.mrb[0].mxu0
  %v9786 = vadd.f32 0.0, %v9785
  %v9787 = vpop.f32.mrb[0].mxu0
  %9788 = vmatprep.mubr.bf16.mxu0 %v1148
  %9789 = vmatmul.mubr.bf16.gmra.mrb[0].mxu0 %v1147
  %v9790 = vpop.f32.mrb[0].mxu0
  %v9791 = vadd.f32 0.0, %v9790
  %v9792 = vpop.f32.mrb[0].mxu0
  %v9793 = vpop.f32.mrb[0].mxu0
  %v9794 = vadd.f32 0.0, %v9793
  %v9795 = vpop.f32.mrb[0].mxu0
  %9796 = vmatprep.mubr.bf16.mxu0 %v1152
  %9797 = vmatmul.mubr.bf16.gmra.mrb[0].mxu0 %v1151
  %v9798 = vpop.f32.mrb[0].mxu0
  %v9799 = vadd.f32 0.0, %v9798
  %v9800 = vpop.f32.mrb[0].mxu0
  %v9801 = vpop.f32.mrb[0].mxu0
  %v9802 = vadd.f32 0.0, %v9801
  %v9803 = vpop.f32.mrb[0].mxu0
  %9804 = vdwg.mxu0
  %9805 = vmatprep.subr.bf16.mxu0 0
  %9806 = vmatpush1.bf16.msra.mxu0 %v9724
  %9807 = vmatprep.subr.bf16.mxu0 0
  %9808 = vmatpush1.bf16.msra.mxu0 %v9725
  %9809 = vmatprep.subr.bf16.mxu0 0
  %9810 = vmatpush1.bf16.msra.mxu0 %v9726
  %9811 = vmatprep.subr.bf16.mxu0 0
  %9812 = vmatpush1.bf16.msra.mxu0 %v9727
  %9813 = vmatprep.subr.bf16.mxu0 0
  %9814 = vmatpush1.bf16.msra.mxu0 %v9728
  %9815 = vmatprep.subr.bf16.mxu0 0
  %9816 = vmatpush1.bf16.msra.mxu0 %v9729
  %9817 = vmatprep.subr.bf16.mxu0 0
  %9818 = vmatpush1.bf16.msra.mxu0 %v9730
  %9819 = vmatprep.subr.bf16.mxu0 0
  %9820 = vmatpush1.bf16.msra.mxu0 %v9731
  %9821 = vmatprep.subr.bf16.mxu0 0
  %9822 = vmatpush1.bf16.msra.mxu0 %v9732
  %9823 = vmatprep.subr.bf16.mxu0 0
  %9824 = vmatpush1.bf16.msra.mxu0 %v9733
  %9825 = vmatprep.subr.bf16.mxu0 0
  %9826 = vmatpush1.bf16.msra.mxu0 %v9734
  %9827 = vmatprep.subr.bf16.mxu0 0
  %9828 = vmatpush1.bf16.msra.mxu0 %v9735
  %9829 = vmatprep.subr.bf16.mxu0 0
  %9830 = vmatpush1.bf16.msra.mxu0 %v9736
  %9831 = vmatprep.subr.bf16.mxu0 0
  %9832 = vmatpush1.bf16.msra.mxu0 %v9737
  %9833 = vmatprep.subr.bf16.mxu0 0
  %9834 = vmatpush1.bf16.msra.mxu0 %v9738
  %9835 = vmatprep.subr.bf16.mxu0 0
  %9836 = vmatpush1.bf16.msra.mxu0 %v9739
  %9837 = vmatprep.mubr.bf16.mxu0 %v1142
  %9838 = vmatmul.mubr.bf16.gmra.mrb[0].mxu0 %v1141
  %v9839 = vpop.f32.mrb[0].mxu0
  %v9840 = vadd.f32 %v9775, %v9839
  %v9841 = vpop.f32.mrb[0].mxu0
  %v9842 = vpop.f32.mrb[0].mxu0
  %v9843 = vadd.f32 %v9778, %v9842
  %v9844 = vpop.f32.mrb[0].mxu0
  %9845 = vmatprep.mubr.bf16.mxu0 %v1146
  %9846 = vmatmul.mubr.bf16.gmra.mrb[0].mxu0 %v1145
  %v9847 = vpop.f32.mrb[0].mxu0
  %v9848 = vadd.f32 %v9783, %v9847
  %v9849 = vpop.f32.mrb[0].mxu0
  %v9850 = vpop.f32.mrb[0].mxu0
  %v9851 = vadd.f32 %v9786, %v9850
  %v9852 = vpop.f32.mrb[0].mxu0
  %9853 = vmatprep.mubr.bf16.mxu0 %v1150
  %9854 = vmatmul.mubr.bf16.gmra.mrb[0].mxu0 %v1149
  %v9855 = vpop.f32.mrb[0].mxu0
  %v9856 = vadd.f32 %v9791, %v9855
  %v9857 = vpop.f32.mrb[0].mxu0
  %v9858 = vpop.f32.mrb[0].mxu0
  %v9859 = vadd.f32 %v9794, %v9858
  %v9860 = vpop.f32.mrb[0].mxu0
  %9861 = vmatprep.mubr.bf16.mxu0 %v1154
  %9862 = vmatmul.mubr.bf16.gmra.mrb[0].mxu0 %v1153
  %v9863 = vpop.f32.mrb[0].mxu0
  %v9864 = vadd.f32 %v9799, %v9863
  %v9865 = vpop.f32.mrb[0].mxu0
  %v9866 = vpop.f32.mrb[0].mxu0
  %v9867 = vadd.f32 %v9802, %v9866
  %v9868 = vpop.f32.mrb[0].mxu0
  %9869 = vdwg.mxu0
  %v9870 = vpack.c.bf16 %v9232, %v9229
  %v9871 = vpack.c.bf16 %v9240, %v9237
  %v9872 = vpack.c.bf16 %v9248, %v9245
  %v9873 = vpack.c.bf16 %v9256, %v9253
  %v9875 = vsel %vm3499, %v9870, 0
  %v9878 = vsel %vm3499, %v9871, 0
  %v9881 = vsel %vm3499, %v9872, 0
  %v9884 = vsel %vm3499, %v9873, 0
  %9886 = vmatprep.subr.bf16.mxu0 0
  %9887 = vmatpush1.bf16.msra.mxu0 %v4952
  %9888 = vmatprep.subr.bf16.mxu0 0
  %9889 = vmatpush1.bf16.msra.mxu0 0
  %9890 = vmatprep.subr.bf16.mxu0 0
  %9891 = vmatpush1.bf16.msra.mxu0 0
  %9892 = vmatprep.subr.bf16.mxu0 0
  %9893 = vmatpush1.bf16.msra.mxu0 0
  %9894 = vmatprep.subr.bf16.mxu0 0
  %9895 = vmatpush1.bf16.msra.mxu0 0
  %9896 = vmatprep.subr.bf16.mxu0 0
  %9897 = vmatpush1.bf16.msra.mxu0 0
  %9898 = vmatprep.subr.bf16.mxu0 0
  %9899 = vmatpush1.bf16.msra.mxu0 0
  %9900 = vmatprep.subr.bf16.mxu0 0
  %9901 = vmatpush1.bf16.msra.mxu0 0
  %9902 = vmatprep.subr.bf16.mxu0 0
  %9903 = vmatpush1.bf16.msra.mxu0 0
  %9904 = vmatprep.subr.bf16.mxu0 0
  %9905 = vmatpush1.bf16.msra.mxu0 0
  %9906 = vmatprep.subr.bf16.mxu0 0
  %9907 = vmatpush1.bf16.msra.mxu0 0
  %9908 = vmatprep.subr.bf16.mxu0 0
  %9909 = vmatpush1.bf16.msra.mxu0 0
  %9910 = vmatprep.subr.bf16.mxu0 0
  %9911 = vmatpush1.bf16.msra.mxu0 0
  %9912 = vmatprep.subr.bf16.mxu0 0
  %9913 = vmatpush1.bf16.msra.mxu0 0
  %9914 = vmatprep.subr.bf16.mxu0 0
  %9915 = vmatpush1.bf16.msra.mxu0 0
  %9916 = vmatprep.subr.bf16.mxu0 0
  %9917 = vmatpush1.bf16.msra.mxu0 0
  %9918 = vmatprep.mubr.bf16.mxu0 0
  %9919 = vmatmul.mubr.bf16.gmra.mrb[0].mxu0 %v9875
  %v9920 = vpop.f32.mrb[0].mxu0
  %v9921 = vadd.f32 0.0, %v9920
  %v9922 = vpop.f32.mrb[0].mxu0
  %v9923 = vpop.f32.mrb[0].mxu0
  %v9924 = vadd.f32 0.0, %v9923
  %v9925 = vpop.f32.mrb[0].mxu0
  %9926 = vmatprep.mubr.bf16.mxu0 0
  %9927 = vmatmul.mubr.bf16.gmra.mrb[0].mxu0 %v9878
  %v9928 = vpop.f32.mrb[0].mxu0
  %v9929 = vadd.f32 0.0, %v9928
  %v9930 = vpop.f32.mrb[0].mxu0
  %v9931 = vpop.f32.mrb[0].mxu0
  %v9932 = vadd.f32 0.0, %v9931
  %v9933 = vpop.f32.mrb[0].mxu0
  %9934 = vmatprep.mubr.bf16.mxu0 0
  %9935 = vmatmul.mubr.bf16.gmra.mrb[0].mxu0 %v9881
  %v9936 = vpop.f32.mrb[0].mxu0
  %v9937 = vadd.f32 0.0, %v9936
  %v9938 = vpop.f32.mrb[0].mxu0
  %v9939 = vpop.f32.mrb[0].mxu0
  %v9940 = vadd.f32 0.0, %v9939
  %v9941 = vpop.f32.mrb[0].mxu0
  %9942 = vmatprep.mubr.bf16.mxu0 0
  %9943 = vmatmul.mubr.bf16.gmra.mrb[0].mxu0 %v9884
  %v9944 = vpop.f32.mrb[0].mxu0
  %v9945 = vadd.f32 0.0, %v9944
  %v9946 = vpop.f32.mrb[0].mxu0
  %v9947 = vpop.f32.mrb[0].mxu0
  %v9948 = vadd.f32 0.0, %v9947
  %v9949 = vpop.f32.mrb[0].mxu0
  %9950 = vdwg.mxu0
  %v9951 = vrcp.pop %v9921
  %v9952 = vrcp.pop %v9924
  %v9953 = vrcp.pop %v9929
  %v9954 = vrcp.pop %v9932
  %v9955 = vrcp.pop %v9937
  %v9956 = vrcp.pop %v9940
  %v9957 = vrcp.pop %v9945
  %v9958 = vrcp.pop %v9948
  %v9959 = vmul.f32 %v9840, %v9951
  %v9960 = vmul.f32 %v9843, %v9952
  %v9961 = vmul.f32 %v9848, %v9953
  %v9962 = vmul.f32 %v9851, %v9954
  %v9963 = vmul.f32 %v9856, %v9955
  %v9964 = vmul.f32 %v9859, %v9956
  %v9965 = vmul.f32 %v9864, %v9957
  %v9966 = vmul.f32 %v9867, %v9958
  %s9967 = scalar_lea.vmem %s8, 64
  %v9968 = vld [vmem:[%s9967] sm:$0xf]
  %v9969 = vld [vmem:[%s9967 + $0x4] sm:$0xf]
  %v9970 = vld [vmem:[%s9967 + $0x8] sm:$0xf]
  %v9971 = vld [vmem:[%s9967 + $0xc] sm:$0xf]
  %v9972 = vld [vmem:[%s9967 + $0x10] sm:$0xf]
  %v9973 = vld [vmem:[%s9967 + $0x14] sm:$0xf]
  %v9974 = vld [vmem:[%s9967 + $0x18] sm:$0xf]
  %v9975 = vld [vmem:[%s9967 + $0x1c] sm:$0xf]
  %v9976 = vld [vmem:[%s9967 + $0x20] sm:$0xf]
  %v9977 = vld [vmem:[%s9967 + $0x24] sm:$0xf]
  %v9978 = vld [vmem:[%s9967 + $0x28] sm:$0xf]
  %v9979 = vld [vmem:[%s9967 + $0x2c] sm:$0xf]
  %v9980 = vld [vmem:[%s9967 + $0x30] sm:$0xf]
  %v9981 = vld [vmem:[%s9967 + $0x34] sm:$0xf]
  %v9982 = vld [vmem:[%s9967 + $0x38] sm:$0xf]
  %v9983 = vld [vmem:[%s9967 + $0x3c] sm:$0xf]
  %v9984 = vpack.c.bf16 %v9960, %v9959
  %v9985 = vpack.c.bf16 %v9962, %v9961
  %v9986 = vpack.c.bf16 %v9964, %v9963
  %v9987 = vpack.c.bf16 %v9966, %v9965
  %v10004 = vunpack.c.l.b16 %v9968
  %v10005 = vunpack.c.l.b16 %v9969
  %v10006 = vunpack.c.l.b16 %v9970
  %v10007 = vunpack.c.l.b16 %v9971
  %v10008 = vunpack.c.l.b16 %v9972
  %v10009 = vunpack.c.l.b16 %v9973
  %v10010 = vunpack.c.l.b16 %v9974
  %v10011 = vunpack.c.l.b16 %v9975
  %v10012 = vunpack.c.l.b16 %v9976
  %v10013 = vunpack.c.l.b16 %v9977
  %v10014 = vunpack.c.l.b16 %v9978
  %v10015 = vunpack.c.l.b16 %v9979
  %v10016 = vunpack.c.l.b16 %v9980
  %v10017 = vunpack.c.l.b16 %v9981
  %v10018 = vunpack.c.l.b16 %v9982
  %v10019 = vunpack.c.l.b16 %v9983
  %v10020 = vpack.c.b16 %v10005, %v10004
  %v10021 = vpack.c.b16 %v10007, %v10006
  %v10022 = vpack.c.b16 %v10009, %v10008
  %v10023 = vpack.c.b16 %v10011, %v10010
  %v10024 = vpack.c.b16 %v10013, %v10012
  %v10025 = vpack.c.b16 %v10015, %v10014
  %v10026 = vpack.c.b16 %v10017, %v10016
  %v10027 = vpack.c.b16 %v10019, %v10018
  %10036 = vmatprep.subr.bf16.mxu0 0
  %10037 = vmatpush1.bf16.msra.mxu0 %v10020
  %10038 = vmatprep.subr.bf16.mxu0 0
  %10039 = vmatpush1.bf16.msra.mxu0 %v10021
  %10040 = vmatprep.subr.bf16.mxu0 0
  %10041 = vmatpush1.bf16.msra.mxu0 %v10022
  %10042 = vmatprep.subr.bf16.mxu0 0
  %10043 = vmatpush1.bf16.msra.mxu0 %v10023
  %10044 = vmatprep.subr.bf16.mxu0 0
  %10045 = vmatpush1.bf16.msra.mxu0 %v10024
  %10046 = vmatprep.subr.bf16.mxu0 0
  %10047 = vmatpush1.bf16.msra.mxu0 %v10025
  %10048 = vmatprep.subr.bf16.mxu0 0
  %10049 = vmatpush1.bf16.msra.mxu0 %v10026
  %10050 = vmatprep.subr.bf16.mxu0 0
  %10051 = vmatpush1.bf16.msra.mxu0 %v10027
  %10052 = vmatprep.subr.bf16.mxu0 0
  %10053 = vmatpush1.bf16.msra.mxu0 0
  %10054 = vmatprep.subr.bf16.mxu0 0
  %10055 = vmatpush1.bf16.msra.mxu0 0
  %10056 = vmatprep.subr.bf16.mxu0 0
  %10057 = vmatpush1.bf16.msra.mxu0 0
  %10058 = vmatprep.subr.bf16.mxu0 0
  %10059 = vmatpush1.bf16.msra.mxu0 0
  %10060 = vmatprep.subr.bf16.mxu0 0
  %10061 = vmatpush1.bf16.msra.mxu0 0
  %10062 = vmatprep.subr.bf16.mxu0 0
  %10063 = vmatpush1.bf16.msra.mxu0 0
  %10064 = vmatprep.subr.bf16.mxu0 0
  %10065 = vmatpush1.bf16.msra.mxu0 0
  %10066 = vmatprep.subr.bf16.mxu0 0
  %10067 = vmatpush1.bf16.msra.mxu0 0
  %10068 = vmatprep.mubr.bf16.mxu0 0
  %10069 = vmatmul.mubr.bf16.gmra.mrb[0].mxu0 %v9984
  %v10070 = vpop.f32.mrb[0].mxu0
  %v10071 = vadd.f32 0.0, %v10070
  %v10072 = vpop.f32.mrb[0].mxu0
  %v10073 = vpop.f32.mrb[0].mxu0
  %v10074 = vadd.f32 0.0, %v10073
  %v10075 = vpop.f32.mrb[0].mxu0
  %10076 = vmatprep.mubr.bf16.mxu0 0
  %10077 = vmatmul.mubr.bf16.gmra.mrb[0].mxu0 %v9985
  %v10078 = vpop.f32.mrb[0].mxu0
  %v10079 = vadd.f32 0.0, %v10078
  %v10080 = vpop.f32.mrb[0].mxu0
  %v10081 = vpop.f32.mrb[0].mxu0
  %v10082 = vadd.f32 0.0, %v10081
  %v10083 = vpop.f32.mrb[0].mxu0
  %10084 = vmatprep.mubr.bf16.mxu0 0
  %10085 = vmatmul.mubr.bf16.gmra.mrb[0].mxu0 %v9986
  %v10086 = vpop.f32.mrb[0].mxu0
  %v10087 = vadd.f32 0.0, %v10086
  %v10088 = vpop.f32.mrb[0].mxu0
  %v10089 = vpop.f32.mrb[0].mxu0
  %v10090 = vadd.f32 0.0, %v10089
  %v10091 = vpop.f32.mrb[0].mxu0
  %10092 = vmatprep.mubr.bf16.mxu0 0
  %10093 = vmatmul.mubr.bf16.gmra.mrb[0].mxu0 %v9987
  %v10094 = vpop.f32.mrb[0].mxu0
  %v10095 = vadd.f32 0.0, %v10094
  %v10096 = vpop.f32.mrb[0].mxu0
  %v10097 = vpop.f32.mrb[0].mxu0
  %v10098 = vadd.f32 0.0, %v10097
  %v10099 = vpop.f32.mrb[0].mxu0
  %10100 = vdwg.mxu0
  %v10101 = vadd.f32 %v6058, %v10071
  %v10102 = vadd.f32 %v6059, %v10074
  %v10103 = vadd.f32 %v6060, %v10079
  %v10104 = vadd.f32 %v6061, %v10082
  %v10105 = vadd.f32 %v6062, %v10087
  %v10106 = vadd.f32 %v6063, %v10090
  %v10107 = vadd.f32 %v6064, %v10095
  %v10108 = vadd.f32 %v6065, %v10098
  %s10109 = scalar_lea.vmem %s9, 1
  %v10110 = vld [vmem:[%s10109] sm:$0x1]
  %v10112 = vlaneseq
  %v10113 = vshrl.u32 %v10112, 7
  %v10114 = vsub.s32 0, %v10113
  %v10115 = vrot.slane %v10110, %v10114
  %v10117 = vadd.f32 %v10101, %v10115
  %v10118 = vadd.f32 %v10102, %v10115
  %v10119 = vadd.f32 %v10103, %v10115
  %v10120 = vadd.f32 %v10104, %v10115
  %v10121 = vadd.f32 %v10105, %v10115
  %v10122 = vadd.f32 %v10106, %v10115
  %v10123 = vadd.f32 %v10107, %v10115
  %v10124 = vadd.f32 %v10108, %v10115
  %s10125 = scalar_lea.vmem %s10, 16
  %v10126 = vld [vmem:[%s10125] sm:$0xf]
  %v10127 = vld [vmem:[%s10125 + $0x4] sm:$0xf]
  %v10128 = vld [vmem:[%s10125 + $0x8] sm:$0xf]
  %v10129 = vld [vmem:[%s10125 + $0xc] sm:$0xf]
  %v10130 = vpack.c.bf16 %v10118, %v10117
  %v10131 = vpack.c.bf16 %v10120, %v10119
  %v10132 = vpack.c.bf16 %v10122, %v10121
  %v10133 = vpack.c.bf16 %v10124, %v10123
  %s10134 = scalar_lea.vmem %s11, 1
  %v10135 = vld [vmem:[%s10134] sm:$0x1]
  %v10137 = vlaneseq
  %v10138 = vshrl.u32 %v10137, 7
  %v10139 = vsub.s32 0, %v10138
  %v10140 = vrot.slane %v10135, %v10139
  %v10146 = vunpack.c.l.b16 %v10126
  %v10147 = vunpack.c.l.b16 %v10127
  %v10148 = vunpack.c.l.b16 %v10128
  %v10149 = vunpack.c.l.b16 %v10129
  %v10150 = vpack.c.b16 %v10147, %v10146
  %v10151 = vpack.c.b16 %v10149, %v10148
  %v10155 = vsel %vm1234, %v10130, 0
  %v10158 = vsel %vm1234, %v10131, 0
  %v10161 = vsel %vm1234, %v10132, 0
  %v10164 = vsel %vm1234, %v10133, 0
  %10166 = vmatprep.subr.bf16.mxu0 0
  %10167 = vmatpush1.bf16.msra.mxu0 %v10150
  %10168 = vmatprep.subr.bf16.mxu0 0
  %10169 = vmatpush1.bf16.msra.mxu0 %v10151
  %10170 = vmatprep.subr.bf16.mxu0 0
  %10171 = vmatpush1.bf16.msra.mxu0 0
  %10172 = vmatprep.subr.bf16.mxu0 0
  %10173 = vmatpush1.bf16.msra.mxu0 0
  %10174 = vmatprep.subr.bf16.mxu0 0
  %10175 = vmatpush1.bf16.msra.mxu0 0
  %10176 = vmatprep.subr.bf16.mxu0 0
  %10177 = vmatpush1.bf16.msra.mxu0 0
  %10178 = vmatprep.subr.bf16.mxu0 0
  %10179 = vmatpush1.bf16.msra.mxu0 0
  %10180 = vmatprep.subr.bf16.mxu0 0
  %10181 = vmatpush1.bf16.msra.mxu0 0
  %10182 = vmatprep.subr.bf16.mxu0 0
  %10183 = vmatpush1.bf16.msra.mxu0 0
  %10184 = vmatprep.subr.bf16.mxu0 0
  %10185 = vmatpush1.bf16.msra.mxu0 0
  %10186 = vmatprep.subr.bf16.mxu0 0
  %10187 = vmatpush1.bf16.msra.mxu0 0
  %10188 = vmatprep.subr.bf16.mxu0 0
  %10189 = vmatpush1.bf16.msra.mxu0 0
  %10190 = vmatprep.subr.bf16.mxu0 0
  %10191 = vmatpush1.bf16.msra.mxu0 0
  %10192 = vmatprep.subr.bf16.mxu0 0
  %10193 = vmatpush1.bf16.msra.mxu0 0
  %10194 = vmatprep.subr.bf16.mxu0 0
  %10195 = vmatpush1.bf16.msra.mxu0 0
  %10196 = vmatprep.subr.bf16.mxu0 0
  %10197 = vmatpush1.bf16.msra.mxu0 0
  %10198 = vmatprep.mubr.bf16.mxu0 0
  %10199 = vmatmul.mubr.bf16.gmra.mrb[0].mxu0 %v10155
  %v10200 = vpop.f32.mrb[0].mxu0
  %v10201 = vadd.f32 %v10140, %v10200
  %v10202 = vpop.f32.mrb[0].mxu0
  %v10203 = vpop.f32.mrb[0].mxu0
  %v10204 = vadd.f32 %v10140, %v10203
  %v10205 = vpop.f32.mrb[0].mxu0
  %10206 = vmatprep.mubr.bf16.mxu0 0
  %10207 = vmatmul.mubr.bf16.gmra.mrb[0].mxu0 %v10158
  %v10208 = vpop.f32.mrb[0].mxu0
  %v10209 = vadd.f32 %v10140, %v10208
  %v10210 = vpop.f32.mrb[0].mxu0
  %v10211 = vpop.f32.mrb[0].mxu0
  %v10212 = vadd.f32 %v10140, %v10211
  %v10213 = vpop.f32.mrb[0].mxu0
  %10214 = vmatprep.mubr.bf16.mxu0 0
  %10215 = vmatmul.mubr.bf16.gmra.mrb[0].mxu0 %v10161
  %v10216 = vpop.f32.mrb[0].mxu0
  %v10217 = vadd.f32 %v10140, %v10216
  %v10218 = vpop.f32.mrb[0].mxu0
  %v10219 = vpop.f32.mrb[0].mxu0
  %v10220 = vadd.f32 %v10140, %v10219
  %v10221 = vpop.f32.mrb[0].mxu0
  %10222 = vmatprep.mubr.bf16.mxu0 0
  %10223 = vmatmul.mubr.bf16.gmra.mrb[0].mxu0 %v10164
  %v10224 = vpop.f32.mrb[0].mxu0
  %v10225 = vadd.f32 %v10140, %v10224
  %v10226 = vpop.f32.mrb[0].mxu0
  %v10227 = vpop.f32.mrb[0].mxu0
  %v10228 = vadd.f32 %v10140, %v10227
  %v10229 = vpop.f32.mrb[0].mxu0
  %10230 = vdwg.mxu0
  %v10231 = vmax.f32 %v10201, 0.0
  %v10232 = vmax.f32 %v10204, 0.0
  %v10233 = vmax.f32 %v10209, 0.0
  %v10234 = vmax.f32 %v10212, 0.0
  %v10235 = vmax.f32 %v10217, 0.0
  %v10236 = vmax.f32 %v10220, 0.0
  %v10237 = vmax.f32 %v10225, 0.0
  %v10238 = vmax.f32 %v10228, 0.0
  %s10239 = scalar_lea.vmem %s12, 16
  %v10240 = vld [vmem:[%s10239] sm:$0xf]
  %v10241 = vld [vmem:[%s10239 + $0x4] sm:$0xf]
  %v10242 = vld [vmem:[%s10239 + $0x8] sm:$0xf]
  %v10243 = vld [vmem:[%s10239 + $0xc] sm:$0xf]
  %v10244 = vpack.c.bf16 %v10232, %v10231
  %v10245 = vpack.c.bf16 %v10234, %v10233
  %v10246 = vpack.c.bf16 %v10236, %v10235
  %v10247 = vpack.c.bf16 %v10238, %v10237
  %s10248 = scalar_lea.vmem %s13, 1
  %v10249 = vld [vmem:[%s10248] sm:$0x1]
  %v10251 = vlaneseq
  %v10252 = vshrl.u32 %v10251, 7
  %v10253 = vsub.s32 0, %v10252
  %v10254 = vrot.slane %v10249, %v10253
  %v10260 = vunpack.c.l.b16 %v10240
  %v10261 = vunpack.c.l.b16 %v10241
  %v10262 = vunpack.c.l.b16 %v10242
  %v10263 = vunpack.c.l.b16 %v10243
  %v10264 = vpack.c.b16 %v10261, %v10260
  %v10265 = vpack.c.b16 %v10263, %v10262
  %v10269 = vsel %vm1234, %v10244, 0
  %v10272 = vsel %vm1234, %v10245, 0
  %v10275 = vsel %vm1234, %v10246, 0
  %v10278 = vsel %vm1234, %v10247, 0
  %10280 = vmatprep.subr.bf16.mxu0 0
  %10281 = vmatpush1.bf16.msra.mxu0 %v10264
  %10282 = vmatprep.subr.bf16.mxu0 0
  %10283 = vmatpush1.bf16.msra.mxu0 %v10265
  %10284 = vmatprep.subr.bf16.mxu0 0
  %10285 = vmatpush1.bf16.msra.mxu0 0
  %10286 = vmatprep.subr.bf16.mxu0 0
  %10287 = vmatpush1.bf16.msra.mxu0 0
  %10288 = vmatprep.subr.bf16.mxu0 0
  %10289 = vmatpush1.bf16.msra.mxu0 0
  %10290 = vmatprep.subr.bf16.mxu0 0
  %10291 = vmatpush1.bf16.msra.mxu0 0
  %10292 = vmatprep.subr.bf16.mxu0 0
  %10293 = vmatpush1.bf16.msra.mxu0 0
  %10294 = vmatprep.subr.bf16.mxu0 0
  %10295 = vmatpush1.bf16.msra.mxu0 0
  %10296 = vmatprep.subr.bf16.mxu0 0
  %10297 = vmatpush1.bf16.msra.mxu0 0
  %10298 = vmatprep.subr.bf16.mxu0 0
  %10299 = vmatpush1.bf16.msra.mxu0 0
  %10300 = vmatprep.subr.bf16.mxu0 0
  %10301 = vmatpush1.bf16.msra.mxu0 0
  %10302 = vmatprep.subr.bf16.mxu0 0
  %10303 = vmatpush1.bf16.msra.mxu0 0
  %10304 = vmatprep.subr.bf16.mxu0 0
  %10305 = vmatpush1.bf16.msra.mxu0 0
  %10306 = vmatprep.subr.bf16.mxu0 0
  %10307 = vmatpush1.bf16.msra.mxu0 0
  %10308 = vmatprep.subr.bf16.mxu0 0
  %10309 = vmatpush1.bf16.msra.mxu0 0
  %10310 = vmatprep.subr.bf16.mxu0 0
  %10311 = vmatpush1.bf16.msra.mxu0 0
  %10312 = vmatprep.mubr.bf16.mxu0 0
  %10313 = vmatmul.mubr.bf16.gmra.mrb[0].mxu0 %v10269
  %v10314 = vpop.f32.mrb[0].mxu0
  %v10315 = vadd.f32 %v10254, %v10314
  %v10316 = vpop.f32.mrb[0].mxu0
  %v10317 = vpop.f32.mrb[0].mxu0
  %v10318 = vadd.f32 %v10254, %v10317
  %v10319 = vpop.f32.mrb[0].mxu0
  %10320 = vmatprep.mubr.bf16.mxu0 0
  %10321 = vmatmul.mubr.bf16.gmra.mrb[0].mxu0 %v10272
  %v10322 = vpop.f32.mrb[0].mxu0
  %v10323 = vadd.f32 %v10254, %v10322
  %v10324 = vpop.f32.mrb[0].mxu0
  %v10325 = vpop.f32.mrb[0].mxu0
  %v10326 = vadd.f32 %v10254, %v10325
  %v10327 = vpop.f32.mrb[0].mxu0
  %10328 = vmatprep.mubr.bf16.mxu0 0
  %10329 = vmatmul.mubr.bf16.gmra.mrb[0].mxu0 %v10275
  %v10330 = vpop.f32.mrb[0].mxu0
  %v10331 = vadd.f32 %v10254, %v10330
  %v10332 = vpop.f32.mrb[0].mxu0
  %v10333 = vpop.f32.mrb[0].mxu0
  %v10334 = vadd.f32 %v10254, %v10333
  %v10335 = vpop.f32.mrb[0].mxu0
  %10336 = vmatprep.mubr.bf16.mxu0 0
  %10337 = vmatmul.mubr.bf16.gmra.mrb[0].mxu0 %v10278
  %v10338 = vpop.f32.mrb[0].mxu0
  %v10339 = vadd.f32 %v10254, %v10338
  %v10340 = vpop.f32.mrb[0].mxu0
  %v10341 = vpop.f32.mrb[0].mxu0
  %v10342 = vadd.f32 %v10254, %v10341
  %v10343 = vpop.f32.mrb[0].mxu0
  %10344 = vdwg.mxu0
  %v10345 = vmax.f32 %v10315, 0.0
  %v10346 = vmax.f32 %v10318, 0.0
  %v10347 = vmax.f32 %v10323, 0.0
  %v10348 = vmax.f32 %v10326, 0.0
  %v10349 = vmax.f32 %v10331, 0.0
  %v10350 = vmax.f32 %v10334, 0.0
  %v10351 = vmax.f32 %v10339, 0.0
  %v10352 = vmax.f32 %v10342, 0.0
  %s10353 = scalar_lea.vmem %s14, 16
  %v10354 = vld [vmem:[%s10353] sm:$0xf]
  %v10355 = vld [vmem:[%s10353 + $0x4] sm:$0xf]
  %v10356 = vld [vmem:[%s10353 + $0x8] sm:$0xf]
  %v10357 = vld [vmem:[%s10353 + $0xc] sm:$0xf]
  %v10358 = vpack.c.bf16 %v10346, %v10345
  %v10359 = vpack.c.bf16 %v10348, %v10347
  %v10360 = vpack.c.bf16 %v10350, %v10349
  %v10361 = vpack.c.bf16 %v10352, %v10351
  %v10366 = vunpack.c.l.b16 %v10354
  %v10367 = vunpack.c.l.b16 %v10355
  %v10368 = vunpack.c.l.b16 %v10356
  %v10369 = vunpack.c.l.b16 %v10357
  %v10370 = vpack.c.b16 %v10367, %v10366
  %v10371 = vpack.c.b16 %v10369, %v10368
  %v10375 = vsel %vm1234, %v10358, 0
  %v10378 = vsel %vm1234, %v10359, 0
  %v10381 = vsel %vm1234, %v10360, 0
  %v10384 = vsel %vm1234, %v10361, 0
  %10386 = vmatprep.subr.bf16.mxu0 0
  %10387 = vmatpush1.bf16.msra.mxu0 %v10370
  %10388 = vmatprep.subr.bf16.mxu0 0
  %10389 = vmatpush1.bf16.msra.mxu0 %v10371
  %10390 = vmatprep.subr.bf16.mxu0 0
  %10391 = vmatpush1.bf16.msra.mxu0 0
  %10392 = vmatprep.subr.bf16.mxu0 0
  %10393 = vmatpush1.bf16.msra.mxu0 0
  %10394 = vmatprep.subr.bf16.mxu0 0
  %10395 = vmatpush1.bf16.msra.mxu0 0
  %10396 = vmatprep.subr.bf16.mxu0 0
  %10397 = vmatpush1.bf16.msra.mxu0 0
  %10398 = vmatprep.subr.bf16.mxu0 0
  %10399 = vmatpush1.bf16.msra.mxu0 0
  %10400 = vmatprep.subr.bf16.mxu0 0
  %10401 = vmatpush1.bf16.msra.mxu0 0
  %10402 = vmatprep.subr.bf16.mxu0 0
  %10403 = vmatpush1.bf16.msra.mxu0 0
  %10404 = vmatprep.subr.bf16.mxu0 0
  %10405 = vmatpush1.bf16.msra.mxu0 0
  %10406 = vmatprep.subr.bf16.mxu0 0
  %10407 = vmatpush1.bf16.msra.mxu0 0
  %10408 = vmatprep.subr.bf16.mxu0 0
  %10409 = vmatpush1.bf16.msra.mxu0 0
  %10410 = vmatprep.subr.bf16.mxu0 0
  %10411 = vmatpush1.bf16.msra.mxu0 0
  %10412 = vmatprep.subr.bf16.mxu0 0
  %10413 = vmatpush1.bf16.msra.mxu0 0
  %10414 = vmatprep.subr.bf16.mxu0 0
  %10415 = vmatpush1.bf16.msra.mxu0 0
  %10416 = vmatprep.subr.bf16.mxu0 0
  %10417 = vmatpush1.bf16.msra.mxu0 0
  %10418 = vmatprep.mubr.bf16.mxu0 0
  %10419 = vmatmul.mubr.bf16.gmra.mrb[0].mxu0 %v10375
  %v10420 = vpop.f32.mrb[0].mxu0
  %v10421 = vadd.f32 0.0, %v10420
  %v10422 = vpop.f32.mrb[0].mxu0
  %v10423 = vpop.f32.mrb[0].mxu0
  %v10424 = vadd.f32 0.0, %v10423
  %v10425 = vpop.f32.mrb[0].mxu0
  %10426 = vmatprep.mubr.bf16.mxu0 0
  %10427 = vmatmul.mubr.bf16.gmra.mrb[0].mxu0 %v10378
  %v10428 = vpop.f32.mrb[0].mxu0
  %v10429 = vadd.f32 0.0, %v10428
  %v10430 = vpop.f32.mrb[0].mxu0
  %v10431 = vpop.f32.mrb[0].mxu0
  %v10432 = vadd.f32 0.0, %v10431
  %v10433 = vpop.f32.mrb[0].mxu0
  %10434 = vmatprep.mubr.bf16.mxu0 0
  %10435 = vmatmul.mubr.bf16.gmra.mrb[0].mxu0 %v10381
  %v10436 = vpop.f32.mrb[0].mxu0
  %v10437 = vadd.f32 0.0, %v10436
  %v10438 = vpop.f32.mrb[0].mxu0
  %v10439 = vpop.f32.mrb[0].mxu0
  %v10440 = vadd.f32 0.0, %v10439
  %v10441 = vpop.f32.mrb[0].mxu0
  %10442 = vmatprep.mubr.bf16.mxu0 0
  %10443 = vmatmul.mubr.bf16.gmra.mrb[0].mxu0 %v10384
  %v10444 = vpop.f32.mrb[0].mxu0
  %v10445 = vadd.f32 0.0, %v10444
  %v10446 = vpop.f32.mrb[0].mxu0
  %v10447 = vpop.f32.mrb[0].mxu0
  %v10448 = vadd.f32 0.0, %v10447
  %v10449 = vpop.f32.mrb[0].mxu0
  %10450 = vdwg.mxu0
  %v10451 = vadd.f32 %v10117, %v10421
  %v10452 = vadd.f32 %v10118, %v10424
  %v10453 = vadd.f32 %v10119, %v10429
  %v10454 = vadd.f32 %v10120, %v10432
  %v10455 = vadd.f32 %v10121, %v10437
  %v10456 = vadd.f32 %v10122, %v10440
  %v10457 = vadd.f32 %v10123, %v10445
  %v10458 = vadd.f32 %v10124, %v10448
  %s10459 = scalar_lea.vmem %s15, 1
  %v10460 = vld [vmem:[%s10459] sm:$0x1]
  %v10462 = vlaneseq
  %v10463 = vshrl.u32 %v10462, 7
  %v10464 = vsub.s32 0, %v10463
  %v10465 = vrot.slane %v10460, %v10464
  %v10467 = vadd.f32 %v10451, %v10465
  %v10468 = vadd.f32 %v10452, %v10465
  %v10469 = vadd.f32 %v10453, %v10465
  %v10470 = vadd.f32 %v10454, %v10465
  %v10471 = vadd.f32 %v10455, %v10465
  %v10472 = vadd.f32 %v10456, %v10465
  %v10473 = vadd.f32 %v10457, %v10465
  %v10474 = vadd.f32 %v10458, %v10465
  %v10475 = vld [vmem:[%s16] sm:$0xf]
  %v10476 = vld [vmem:[%s16 + $0x4] sm:$0xf]
  %v10477 = vld [vmem:[%s16 + $0x8] sm:$0xf]
  %v10478 = vld [vmem:[%s16 + $0xc] sm:$0xf]
  %v10479 = vpack.c.bf16 %v10468, %v10467
  %v10480 = vpack.c.bf16 %v10470, %v10469
  %v10481 = vpack.c.bf16 %v10472, %v10471
  %v10482 = vpack.c.bf16 %v10474, %v10473
  %v10483 = vld [vmem:[%s17] sm:$0x1]
  %v10485 = vlaneseq
  %v10486 = vshrl.u32 %v10485, 7
  %v10487 = vsub.s32 0, %v10486
  %v10488 = vrot.slane %v10483, %v10487
  %v10494 = vunpack.c.l.b16 %v10475
  %v10495 = vunpack.c.l.b16 %v10476
  %v10496 = vunpack.c.l.b16 %v10477
  %v10497 = vunpack.c.l.b16 %v10478
  %v10498 = vpack.c.b16 %v10495, %v10494
  %v10499 = vpack.c.b16 %v10497, %v10496
  %v10503 = vsel %vm1234, %v10479, 0
  %v10506 = vsel %vm1234, %v10480, 0
  %v10509 = vsel %vm1234, %v10481, 0
  %v10512 = vsel %vm1234, %v10482, 0
  %10514 = vmatprep.subr.bf16.mxu0 0
  %10515 = vmatpush1.bf16.msra.mxu0 %v10498
  %10516 = vmatprep.subr.bf16.mxu0 0
  %10517 = vmatpush1.bf16.msra.mxu0 %v10499
  %10518 = vmatprep.subr.bf16.mxu0 0
  %10519 = vmatpush1.bf16.msra.mxu0 0
  %10520 = vmatprep.subr.bf16.mxu0 0
  %10521 = vmatpush1.bf16.msra.mxu0 0
  %10522 = vmatprep.subr.bf16.mxu0 0
  %10523 = vmatpush1.bf16.msra.mxu0 0
  %10524 = vmatprep.subr.bf16.mxu0 0
  %10525 = vmatpush1.bf16.msra.mxu0 0
  %10526 = vmatprep.subr.bf16.mxu0 0
  %10527 = vmatpush1.bf16.msra.mxu0 0
  %10528 = vmatprep.subr.bf16.mxu0 0
  %10529 = vmatpush1.bf16.msra.mxu0 0
  %10530 = vmatprep.subr.bf16.mxu0 0
  %10531 = vmatpush1.bf16.msra.mxu0 0
  %10532 = vmatprep.subr.bf16.mxu0 0
  %10533 = vmatpush1.bf16.msra.mxu0 0
  %10534 = vmatprep.subr.bf16.mxu0 0
  %10535 = vmatpush1.bf16.msra.mxu0 0
  %10536 = vmatprep.subr.bf16.mxu0 0
  %10537 = vmatpush1.bf16.msra.mxu0 0
  %10538 = vmatprep.subr.bf16.mxu0 0
  %10539 = vmatpush1.bf16.msra.mxu0 0
  %10540 = vmatprep.subr.bf16.mxu0 0
  %10541 = vmatpush1.bf16.msra.mxu0 0
  %10542 = vmatprep.subr.bf16.mxu0 0
  %10543 = vmatpush1.bf16.msra.mxu0 0
  %10544 = vmatprep.subr.bf16.mxu0 0
  %10545 = vmatpush1.bf16.msra.mxu0 0
  %10546 = vmatprep.mubr.bf16.mxu0 0
  %10547 = vmatmul.mubr.bf16.gmra.mrb[0].mxu0 %v10503
  %v10548 = vpop.f32.mrb[0].mxu0
  %v10549 = vadd.f32 %v10488, %v10548
  %v10550 = vpop.f32.mrb[0].mxu0
  %v10551 = vpop.f32.mrb[0].mxu0
  %v10552 = vadd.f32 %v10488, %v10551
  %v10553 = vpop.f32.mrb[0].mxu0
  %10554 = vmatprep.mubr.bf16.mxu0 0
  %10555 = vmatmul.mubr.bf16.gmra.mrb[0].mxu0 %v10506
  %v10556 = vpop.f32.mrb[0].mxu0
  %v10557 = vadd.f32 %v10488, %v10556
  %v10558 = vpop.f32.mrb[0].mxu0
  %v10559 = vpop.f32.mrb[0].mxu0
  %v10560 = vadd.f32 %v10488, %v10559
  %v10561 = vpop.f32.mrb[0].mxu0
  %10562 = vmatprep.mubr.bf16.mxu0 0
  %10563 = vmatmul.mubr.bf16.gmra.mrb[0].mxu0 %v10509
  %v10564 = vpop.f32.mrb[0].mxu0
  %v10565 = vadd.f32 %v10488, %v10564
  %v10566 = vpop.f32.mrb[0].mxu0
  %v10567 = vpop.f32.mrb[0].mxu0
  %v10568 = vadd.f32 %v10488, %v10567
  %v10569 = vpop.f32.mrb[0].mxu0
  %10570 = vmatprep.mubr.bf16.mxu0 0
  %10571 = vmatmul.mubr.bf16.gmra.mrb[0].mxu0 %v10512
  %v10572 = vpop.f32.mrb[0].mxu0
  %v10573 = vadd.f32 %v10488, %v10572
  %v10574 = vpop.f32.mrb[0].mxu0
  %v10575 = vpop.f32.mrb[0].mxu0
  %v10576 = vadd.f32 %v10488, %v10575
  %v10577 = vpop.f32.mrb[0].mxu0
  %10578 = vdwg.mxu0
  %10579 = vst.msk [vmem:[%s18] sm:$0xff] %vm1589, %v10549
  %10580 = vst.msk [vmem:[%s18 + $0x8] sm:$0xff] %vm1589, %v10552
  %10581 = vst.msk [vmem:[%s18 + $0x10] sm:$0xff] %vm1589, %v10557
  %10582 = vst.msk [vmem:[%s18 + $0x18] sm:$0xff] %vm1589, %v10560
  %10583 = vst.msk [vmem:[%s18 + $0x20] sm:$0xff] %vm1589, %v10565
  %10584 = vst.msk [vmem:[%s18 + $0x28] sm:$0xff] %vm1589, %v10568
  %10585 = vst.msk [vmem:[%s18 + $0x30] sm:$0xff] %vm1589, %v10573
  %10586 = vst.msk [vmem:[%s18 + $0x38] sm:$0xff] %vm1589, %v10576
  // Predicated region
  $region74: #{decoder_forward.1} parent=0 // pred_check
    _
  $region75: #{decoder_forward.1} parent=0 // pred_check_branch
    %10588 = sbr.rel (0) target = $region77
  $region76: #{decoder_forward.1} parent=0 // pred_region
    _
  $region77: #{decoder_forward.1} parent=0 // pred_fallthru
    _
  // Predicated region
  $region78: #{decoder_forward.1} parent=0 // pred_check
    _
  $region79: #{decoder_forward.1} parent=0 // pred_check_branch
    %10590 = sbr.rel (0) target = $region81
  $region80: #{decoder_forward.1} parent=0 // pred_region
    _
  $region81: #{decoder_forward.1} parent=0 // pred_fallthru
    _

</llo_original>
